<compile_context>
chip_gen: v7x
topology: tpu7x:2x2x1
jax: 0.10.0
libtpu: 0.0.40
codegen_flags: <defaults>
</compile_context>

<pallas_src>
import jax
import jax.numpy as jnp
from jax.experimental import pallas as pl
from jax.experimental.pallas import tpu as pltpu

# ----------------------------- configuration --------------------------------
VIS_IMAGE_SIZE = 16      # vision_config.image_size
VIS_PATCH_SIZE = 8       # vision_config.patch_size
VIS_HIDDEN     = 128     # vision_config.hidden_size (lane-dense)
VIS_HEADS      = 2       # head_dim = 64
VIS_FFN        = 256
VIS_LAYERS     = 2

TXT_HIDDEN     = 128     # text_config.hidden_size (lane-dense)
TXT_HEADS      = 2       # head_dim = 64
TXT_FFN        = 256
TXT_LAYERS     = 2
VOCAB          = 256
MAX_POS        = 64

IMAGE_TOKEN_INDEX = 200
IMAGE_GRID_PINPOINTS = [(2 * VIS_IMAGE_SIZE, 2 * VIS_IMAGE_SIZE)]   # [(32, 32)]

GRID = VIS_IMAGE_SIZE // VIS_PATCH_SIZE            # 2 patches per side per crop
NUM_PATCH_TOKENS = GRID * GRID                     # 4 (after dropping CLS)
S_VIS = 1 + NUM_PATCH_TOKENS                       # 5 tokens per crop (CLS + patches)
PATCH_DIM = 3 * VIS_PATCH_SIZE * VIS_PATCH_SIZE    # 192
VIS_DH = VIS_HIDDEN // VIS_HEADS                   # 64
TXT_DH = TXT_HIDDEN // TXT_HEADS                   # 64

VMEM_LIMIT_BYTES = 32 * 1024 * 1024


# ----------------------------- in-kernel helpers ------------------------------
def _mm(a, w):
    """bf16 MXU matmul with f32 accumulation (VMEM-resident operands)."""
    return jnp.dot(a.astype(jnp.bfloat16), w.astype(jnp.bfloat16),
                   preferred_element_type=jnp.float32)


def _layernorm(x, g, b, eps=1e-5):
    mu = jnp.mean(x, axis=-1, keepdims=True)
    var = jnp.mean(jnp.square(x - mu), axis=-1, keepdims=True)
    return (x - mu) * jax.lax.rsqrt(var + eps) * g + b


def _rmsnorm(x, g, eps=1e-6):
    ms = jnp.mean(jnp.square(x), axis=-1, keepdims=True)
    return x * jax.lax.rsqrt(ms + eps) * g


def _softmax_lastdim(s):
    s = s - jnp.max(s, axis=-1, keepdims=True)
    p = jnp.exp(s)
    return p * pl.reciprocal(jnp.sum(p, axis=-1, keepdims=True), approx=True)


def _mha_proj(q, k, v, out_w, num_heads, head_dim, bias):
    """Multi-head attention with the output projection fused into the per-head
    loop (no lane-concat).  q must already carry the 1/sqrt(dh) scale; `bias`
    is an (S, S) additive f32 mask built once by the caller."""
    S = q.shape[0]
    d_out = out_w.shape[-1]
    o = jnp.zeros((S, d_out), jnp.float32)
    for h in range(num_heads):
        sl = slice(h * head_dim, (h + 1) * head_dim)
        qh = q[:, sl].astype(jnp.bfloat16)
        kh = k[:, sl].astype(jnp.bfloat16)
        vh = v[:, sl].astype(jnp.bfloat16)
        # NT matmul: contract last dims -> (S, S) f32 scores
        s = jax.lax.dot_general(qh, kh, (((1,), (1,)), ((), ())),
                                preferred_element_type=jnp.float32) + bias
        p = _softmax_lastdim(s)
        ah = jnp.dot(p.astype(jnp.bfloat16), vh, preferred_element_type=jnp.float32)
        o = o + jnp.dot(ah.astype(jnp.bfloat16), out_w[sl, :].astype(jnp.bfloat16),
                        preferred_element_type=jnp.float32)
    return o


# --------------------- fused vision tower + projector kernel -------------------
def _vision_tower_kernel(patches_ref, crow_ref, ccol_ref, pos_cls_ref,
                         patch_w_ref, lnp_g_ref, lnp_b_ref,
                         ln1_g_ref, ln1_b_ref, qkv_w_ref, qkv_b_ref,
                         out_w_ref, out_b_ref, ln2_g_ref, ln2_b_ref,
                         fc1_w_ref, fc1_b_ref, fc2_w_ref, fc2_b_ref,
                         pw1_ref, pb1_ref, pw2_ref, pb2_ref,
                         o_ref):
    """All crops at once: patch embed -> CLIP encoder (block-diag attn) -> projector."""
    scale = VIS_DH ** -0.5
    n = crow_ref.shape[0]

    # Block-diagonal (per-crop) additive attention bias, built once for all
    # layers and heads from two tiny crop-id vectors.
    crow = jnp.broadcast_to(crow_ref[...], (n, n))
    ccol = jnp.broadcast_to(ccol_ref[...], (n, n))
    block_bias = jnp.where(crow == ccol, 0.0, -1e30).astype(jnp.float32)

    # Patch embedding.  CLS rows of `patches` are all-zero, so row 0 of each
    # crop becomes exactly cls_embed + pos[0] (both folded into pos_cls).
    x = _mm(patches_ref[...], patch_w_ref[...]) + pos_cls_ref[...]       # (N, Dv) f32
    x = _layernorm(x, lnp_g_ref[...], lnp_b_ref[...])

    for l in range(VIS_LAYERS):                                          # static unroll
        h = _layernorm(x, ln1_g_ref[l], ln1_b_ref[l])
        qkv = _mm(h, qkv_w_ref[l]) + qkv_b_ref[l]                        # (N, 3*Dv)
        q = qkv[:, :VIS_HIDDEN] * scale
        k = qkv[:, VIS_HIDDEN:2 * VIS_HIDDEN]
        v = qkv[:, 2 * VIS_HIDDEN:]
        x = x + _mha_proj(q, k, v, out_w_ref[l], VIS_HEADS, VIS_DH, block_bias) \
              + out_b_ref[l]
        h = _layernorm(x, ln2_g_ref[l], ln2_b_ref[l])
        h = jax.nn.gelu(_mm(h, fc1_w_ref[l]) + fc1_b_ref[l], approximate=True)
        x = x + _mm(h, fc2_w_ref[l]) + fc2_b_ref[l]

    # Multi-modal projector (linear + GELU + linear) fused into the same kernel.
    # (The projector is row-wise, so applying it to the CLS rows and dropping
    # them afterwards matches the reference 'default' feature-select semantics.)
    h = jax.nn.gelu(_mm(x, pw1_ref[...]) + pb1_ref[...], approximate=True)
    o_ref[...] = (_mm(h, pw2_ref[...]) + pb2_ref[...]).astype(o_ref.dtype)


def vision_tower_and_projector(params, patches_flat, num_crops):
    """patches_flat: (num_crops*S_VIS, PATCH_DIM) f32 -> (num_crops*S_VIS, TXT_HIDDEN) bf16."""
    n_tok = num_crops * S_VIS
    pos_cls_tiled = jnp.tile(params["vis_pos_cls"], (num_crops, 1))      # (n_tok, Dv) f32
    tok_crop = jnp.repeat(jnp.arange(num_crops, dtype=jnp.int32), S_VIS)
    crow = tok_crop[:, None]                                             # (n_tok, 1)
    ccol = tok_crop[None, :]                                             # (1, n_tok)

    args = (patches_flat, crow, ccol, pos_cls_tiled,
            params["vis_patch_w"], params["vis_ln_pre_g"], params["vis_ln_pre_b"],
            params["vis_ln1_g"], params["vis_ln1_b"],
            params["vis_qkv_w"], params["vis_qkv_b"],
            params["vis_out_w"], params["vis_out_b"],
            params["vis_ln2_g"], params["vis_ln2_b"],
            params["vis_fc1_w"], params["vis_fc1_b"],
            params["vis_fc2_w"], params["vis_fc2_b"],
            params["proj_w1"], params["proj_b1"],
            params["proj_w2"], params["proj_b2"])

    vmem = pl.BlockSpec(memory_space=pltpu.MemorySpace.VMEM)
    return pl.pallas_call(
        _vision_tower_kernel,
        out_shape=jax.ShapeDtypeStruct((n_tok, TXT_HIDDEN), jnp.bfloat16),
        in_specs=[vmem] * len(args),
        out_specs=vmem,
        compiler_params=pltpu.CompilerParams(vmem_limit_bytes=VMEM_LIMIT_BYTES),
    )(*args)


# --------------------- fused language-model (decoder) kernel -------------------
def _language_model_kernel(x_ref, pos_ref, rms1_ref, qkv_w_ref, out_w_ref, rms2_ref,
                           gate_up_w_ref, down_w_ref, final_rms_ref, o_ref):
    """Entire LLaMA-style decoder in one kernel: residual stream stays in VMEM."""
    S = x_ref.shape[0]
    scale = TXT_DH ** -0.5

    # Causal additive bias built once, reused by every layer and head.
    row = jax.lax.broadcasted_iota(jnp.int32, (S, S), 0)
    col = jax.lax.broadcasted_iota(jnp.int32, (S, S), 1)
    causal_bias = jnp.where(col <= row, 0.0, -1e30).astype(jnp.float32)

    x = x_ref[...].astype(jnp.float32) + pos_ref[...].astype(jnp.float32)   # (S, Dt) f32

    for l in range(TXT_LAYERS):                                             # static unroll
        h = _rmsnorm(x, rms1_ref[l])
        qkv = _mm(h, qkv_w_ref[l])                                          # bias-free
        q = qkv[:, :TXT_HIDDEN] * scale
        k = qkv[:, TXT_HIDDEN:2 * TXT_HIDDEN]
        v = qkv[:, 2 * TXT_HIDDEN:]
        x = x + _mha_proj(q, k, v, out_w_ref[l], TXT_HEADS, TXT_DH, causal_bias)
        h = _rmsnorm(x, rms2_ref[l])
        gu = _mm(h, gate_up_w_ref[l])                                       # fused gate|up
        x = x + _mm(jax.nn.silu(gu[:, :TXT_FFN]) * gu[:, TXT_FFN:], down_w_ref[l])

    o_ref[...] = _rmsnorm(x, final_rms_ref[...]).astype(o_ref.dtype)


def language_model_forward(params, inputs_embeds, positions):
    pos_slab = jnp.take(params["pos_embed"], positions, axis=0)             # (S, Dt) bf16
    S, Dt = inputs_embeds.shape
    args = (inputs_embeds, pos_slab,
            params["txt_rms1_g"], params["txt_qkv_w"], params["txt_out_w"],
            params["txt_rms2_g"], params["txt_gate_up_w"], params["txt_down_w"],
            params["final_rms_g"])
    vmem = pl.BlockSpec(memory_space=pltpu.MemorySpace.VMEM)
    return pl.pallas_call(
        _language_model_kernel,
        out_shape=jax.ShapeDtypeStruct((S, Dt), jnp.float32),
        in_specs=[vmem] * len(args),
        out_specs=vmem,
        compiler_params=pltpu.CompilerParams(vmem_limit_bytes=VMEM_LIMIT_BYTES),
    )(*args)


# ----------------------------- parameter init ----------------------------------
def _init_params(key):
    def nrm(k, shape, scale=0.02, dtype=jnp.float32):
        return (scale * jax.random.normal(k, shape, jnp.float32)).astype(dtype)

    keys = iter(jax.random.split(key, 64))
    bf16 = jnp.bfloat16
    dv, dt = VIS_HIDDEN, TXT_HIDDEN
    p = {}

    # vision tower (CLIP-like); matmul weights stored bf16, norm params f32.
    p["vis_patch_w"] = nrm(next(keys), (PATCH_DIM, dv), dtype=bf16)
    cls = nrm(next(keys), (1, dv))
    pos = nrm(next(keys), (S_VIS, dv))
    p["vis_pos_cls"] = pos.at[0, :].add(cls[0])   # CLS embed folded into pos row 0
    p["vis_ln_pre_g"] = jnp.ones((1, dv), jnp.float32)
    p["vis_ln_pre_b"] = jnp.zeros((1, dv), jnp.float32)
    L = VIS_LAYERS
    p["vis_ln1_g"] = jnp.ones((L, 1, dv), jnp.float32)
    p["vis_ln1_b"] = jnp.zeros((L, 1, dv), jnp.float32)
    p["vis_qkv_w"] = nrm(next(keys), (L, dv, 3 * dv), dtype=bf16)
    p["vis_qkv_b"] = jnp.zeros((L, 1, 3 * dv), jnp.float32)
    p["vis_out_w"] = nrm(next(keys), (L, dv, dv), dtype=bf16)
    p["vis_out_b"] = jnp.zeros((L, 1, dv), jnp.float32)
    p["vis_ln2_g"] = jnp.ones((L, 1, dv), jnp.float32)
    p["vis_ln2_b"] = jnp.zeros((L, 1, dv), jnp.float32)
    p["vis_fc1_w"] = nrm(next(keys), (L, dv, VIS_FFN), dtype=bf16)
    p["vis_fc1_b"] = jnp.zeros((L, 1, VIS_FFN), jnp.float32)
    p["vis_fc2_w"] = nrm(next(keys), (L, VIS_FFN, dv), dtype=bf16)
    p["vis_fc2_b"] = jnp.zeros((L, 1, dv), jnp.float32)

    # multi-modal projector
    p["proj_w1"] = nrm(next(keys), (dv, dt), dtype=bf16)
    p["proj_b1"] = jnp.zeros((1, dt), jnp.float32)
    p["proj_w2"] = nrm(next(keys), (dt, dt), dtype=bf16)
    p["proj_b2"] = jnp.zeros((1, dt), jnp.float32)

    # image_newline (nn.Parameter of size text_hidden); kept bf16 like the features.
    p["image_newline"] = nrm(next(keys), (dt,), dtype=bf16)

    # language model (small LLaMA-style decoder), bias-free matmuls
    p["tok_embed"] = nrm(next(keys), (VOCAB, dt), dtype=bf16)
    p["pos_embed"] = nrm(next(keys), (MAX_POS, dt), dtype=bf16)
    Lt = TXT_LAYERS
    p["txt_rms1_g"] = jnp.ones((Lt, 1, dt), jnp.float32)
    p["txt_qkv_w"] = nrm(next(keys), (Lt, dt, 3 * dt), dtype=bf16)
    p["txt_out_w"] = nrm(next(keys), (Lt, dt, dt), dtype=bf16)
    p["txt_rms2_g"] = jnp.ones((Lt, 1, dt), jnp.float32)
    p["txt_gate_up_w"] = nrm(next(keys), (Lt, dt, 2 * TXT_FFN), dtype=bf16)   # fused gate|up
    p["txt_down_w"] = nrm(next(keys), (Lt, TXT_FFN, dt), dtype=bf16)
    p["final_rms_g"] = jnp.ones((1, dt), jnp.float32)
    return p


# ------------------------- plain-JAX index plumbing -----------------------------
def extract_patches(pixel_values):
    """(N, 3, H, W) NCHW -> (N*S_VIS, PATCH_DIM).  Row 0 of each crop is the
    all-zero CLS slot (the CLS embedding is folded into pos_cls in the kernel);
    non-overlapping patch extraction == stride-patch conv rewritten as a matmul."""
    N, C, H, W = pixel_values.shape
    ph = pw = VIS_PATCH_SIZE
    g = H // ph
    patches = pixel_values.reshape(N, C, g, ph, g, pw)
    patches = jnp.transpose(patches, (0, 2, 4, 1, 3, 5)).reshape(N, g * g, C * ph * pw)
    patches = jnp.pad(patches, ((0, 0), (1, 0), (0, 0)))    # CLS slot at row 0
    return patches.reshape(N * S_VIS, C * ph * pw)


def merge_image_patch_embeddings(params, patch_embeddings, image_size_hw):
    """strategy='spatial_unpad'.  patch_embeddings: (1+num_patches, G*G, D) bf16;
    image_size_hw is a static (h, w) tuple -> merged (n_tokens, D) bf16."""
    height = width = GRID
    base = patch_embeddings[0]                                    # (G*G, D)
    other = patch_embeddings[1:]
    orig_h, orig_w = image_size_hw
    pin_h, pin_w = IMAGE_GRID_PINPOINTS[0]
    num_patch_height = pin_h // VIS_IMAGE_SIZE
    num_patch_width = pin_w // VIS_IMAGE_SIZE
    num_patches = num_patch_height * num_patch_width
    other = other[:num_patches].reshape(num_patch_height, num_patch_width,
                                        height, width, -1)
    other = jnp.transpose(other, (4, 0, 2, 1, 3))                 # (D, nph, h, npw, w)
    D = other.shape[0]
    cur_h, cur_w = num_patch_height * height, num_patch_width * width
    other = other.reshape(D, cur_h, cur_w)
    # unpad_image (static arithmetic, mirrors the torch version)
    if orig_w / orig_h > cur_w / cur_h:
        new_h = int(orig_h * (cur_w / orig_w))
        pad = (cur_h - new_h) // 2
        other = other[:, pad:cur_h - pad, :]
    else:
        new_w = int(orig_w * (cur_h / orig_h))
        pad = (cur_w - new_w) // 2
        other = other[:, :, pad:cur_w - pad]
    newline = jnp.broadcast_to(params["image_newline"][:, None, None],
                               (D, other.shape[1], 1))
    other = jnp.concatenate([other, newline], axis=-1)            # (D, H', W'+1)
    other = other.reshape(D, -1).T                                # (H'*(W'+1), D)
    return jnp.concatenate([base, other], axis=0)


def embed_multimodal(params, input_ids, image_embeds):
    mask = input_ids == IMAGE_TOKEN_INDEX
    safe_ids = jnp.where(mask, 0, input_ids)
    text_emb = jnp.take(params["tok_embed"], safe_ids, axis=0)     # bf16
    idx = jnp.cumsum(mask.astype(jnp.int32)) - 1
    idx = jnp.clip(idx, 0, image_embeds.shape[0] - 1)
    img_emb = image_embeds[idx]                                    # bf16
    return jnp.where(mask[:, None], img_emb, text_emb)             # bf16


# ----------------------------- full forward -------------------------------------
def llava_next_forward(params, input_ids, positions, pixel_values, image_size_hw):
    """pixel_values: (num_images, 1+num_patches, 3, H, W); image_size_hw static."""
    b, npatch, c, h, w = pixel_values.shape
    stacked = pixel_values.reshape(b * npatch, c, h, w)
    patches_flat = extract_patches(stacked)                         # (b*np*S, PATCH_DIM)
    proj = vision_tower_and_projector(params, patches_flat, b * npatch)   # (b*np*S, Dt) bf16
    proj = proj.reshape(b * npatch, S_VIS, TXT_HIDDEN)[:, 1:, :]    # strategy 'default': drop CLS
    proj = proj.reshape(b, npatch, NUM_PATCH_TOKENS, TXT_HIDDEN)
    merged = [merge_image_patch_embeddings(params, proj[i], image_size_hw)
              for i in range(b)]
    image_embeds = jnp.concatenate(merged, axis=0)                  # bf16
    inputs_embeds = embed_multimodal(params, input_ids, image_embeds)
    return language_model_forward(params, inputs_embeds, positions)


# ----------------------------- main ---------------------------------------------
if __name__ == "__main__":
    key = jax.random.PRNGKey(0)
    pkey, xkey = jax.random.split(key)
    params = _init_params(pkey)

    # one image, anyres pinpoint (32, 32) -> 1 base crop + 2x2 grid crops = 5 crops
    num_images = 1
    pin_h, pin_w = IMAGE_GRID_PINPOINTS[0]
    num_crops = 1 + (pin_h // VIS_IMAGE_SIZE) * (pin_w // VIS_IMAGE_SIZE)   # 5
    pixel_values = jax.random.normal(
        xkey, (num_images, num_crops, 3, VIS_IMAGE_SIZE, VIS_IMAGE_SIZE), jnp.float32)
    image_size_hw = IMAGE_GRID_PINPOINTS[0]                                 # (32, 32)

    # image feature size: base GG=4 + unpadded 4*4 + newline 4 = 24 tokens
    num_image_tokens = NUM_PATCH_TOKENS + 4 * 4 + 4                         # 24
    text_prefix = jnp.array([1, 17, 42, 99], jnp.int32)
    text_suffix = jnp.array([7, 23, 5, 2], jnp.int32)
    image_tokens = jnp.full((num_image_tokens,), IMAGE_TOKEN_INDEX, jnp.int32)
    input_ids = jnp.concatenate([text_prefix, image_tokens, text_suffix])   # (32,)
    positions = jnp.arange(input_ids.shape[0], dtype=jnp.int32)

    fwd = jax.jit(llava_next_forward, static_argnums=(4,))
    hidden_states = fwd(params, input_ids, positions, pixel_values, image_size_hw)
    hidden_states = jax.block_until_ready(hidden_states)
    assert hidden_states.shape == (input_ids.shape[0], TXT_HIDDEN)
    assert bool(jnp.all(jnp.isfinite(hidden_states)))
    print("KERNEL_OK")
</pallas_src>

<mosaic_0001>
module attributes {stable_mosaic.version = 11 : i64} {
  func.func @_vision_tower_kernel(%arg0: memref<25x192xf32, #tpu.memory_space<vmem>>, %arg1: memref<25x1xi32, #tpu.memory_space<vmem>>, %arg2: memref<1x25xi32, #tpu.memory_space<vmem>>, %arg3: memref<25x128xf32, #tpu.memory_space<vmem>>, %arg4: memref<192x128xbf16, #tpu.memory_space<vmem>>, %arg5: memref<1x128xf32, #tpu.memory_space<vmem>>, %arg6: memref<1x128xf32, #tpu.memory_space<vmem>>, %arg7: memref<2x1x128xf32, #tpu.memory_space<vmem>>, %arg8: memref<2x1x128xf32, #tpu.memory_space<vmem>>, %arg9: memref<2x128x384xbf16, #tpu.memory_space<vmem>>, %arg10: memref<2x1x384xf32, #tpu.memory_space<vmem>>, %arg11: memref<2x128x128xbf16, #tpu.memory_space<vmem>>, %arg12: memref<2x1x128xf32, #tpu.memory_space<vmem>>, %arg13: memref<2x1x128xf32, #tpu.memory_space<vmem>>, %arg14: memref<2x1x128xf32, #tpu.memory_space<vmem>>, %arg15: memref<2x128x256xbf16, #tpu.memory_space<vmem>>, %arg16: memref<2x1x256xf32, #tpu.memory_space<vmem>>, %arg17: memref<2x256x128xbf16, #tpu.memory_space<vmem>>, %arg18: memref<2x1x128xf32, #tpu.memory_space<vmem>>, %arg19: memref<128x128xbf16, #tpu.memory_space<vmem>>, %arg20: memref<1x128xf32, #tpu.memory_space<vmem>>, %arg21: memref<128x128xbf16, #tpu.memory_space<vmem>>, %arg22: memref<1x128xf32, #tpu.memory_space<vmem>>, %arg23: memref<25x128xbf16, #tpu.memory_space<vmem>>) attributes {dimension_semantics = [], scalar_prefetch = 0 : i64, scratch_operands = 0 : i64, tpu.core_type = #tpu.core_type<tc>} {
    %c0 = arith.constant 0 : index
    %c0_0 = arith.constant 0 : index
    %0 = vector.load %arg1[%c0, %c0_0] : memref<25x1xi32, #tpu.memory_space<vmem>>, vector<25x1xi32>
    %1 = vector.shape_cast %0 : vector<25x1xi32> to vector<25x1xi32>
    %2 = vector.broadcast %1 : vector<25x1xi32> to vector<25x25xi32>
    %c0_1 = arith.constant 0 : index
    %c0_2 = arith.constant 0 : index
    %3 = vector.load %arg2[%c0_1, %c0_2] : memref<1x25xi32, #tpu.memory_space<vmem>>, vector<1x25xi32>
    %4 = vector.shape_cast %3 : vector<1x25xi32> to vector<1x25xi32>
    %5 = vector.broadcast %4 : vector<1x25xi32> to vector<25x25xi32>
    %6 = arith.cmpi eq, %2, %5 : vector<25x25xi32>
    %cst = arith.constant 0.000000e+00 : f32
    %cst_3 = arith.constant -1.000000e+30 : f32
    %7 = vector.broadcast %cst : f32 to vector<25x25xf32>
    %8 = vector.broadcast %cst_3 : f32 to vector<25x25xf32>
    %9 = arith.select %6, %7, %8 : vector<25x25xi1>, vector<25x25xf32>
    %c0_4 = arith.constant 0 : index
    %c0_5 = arith.constant 0 : index
    %10 = vector.load %arg0[%c0_4, %c0_5] : memref<25x192xf32, #tpu.memory_space<vmem>>, vector<25x192xf32>
    %c0_6 = arith.constant 0 : index
    %c0_7 = arith.constant 0 : index
    %11 = vector.load %arg4[%c0_6, %c0_7] : memref<192x128xbf16, #tpu.memory_space<vmem>>, vector<192x128xbf16>
    %12 = arith.truncf %10 : vector<25x192xf32> to vector<25x192xbf16>
    %cst_8 = arith.constant dense<0.000000e+00> : vector<25x128xf32>
    %13 = tpu.matmul %12, %11, %cst_8 {dimension_numbers = #tpu.dot_dimension_numbers<[1], [0], [0], [1], [0, 0, 1, 1], [], []>} : vector<25x192xbf16>, vector<192x128xbf16>, vector<25x128xf32> -> vector<25x128xf32>
    %c0_9 = arith.constant 0 : index
    %c0_10 = arith.constant 0 : index
    %14 = vector.load %arg3[%c0_9, %c0_10] : memref<25x128xf32, #tpu.memory_space<vmem>>, vector<25x128xf32>
    %15 = arith.addf %13, %14 : vector<25x128xf32>
    %c0_11 = arith.constant 0 : index
    %c0_12 = arith.constant 0 : index
    %16 = vector.load %arg5[%c0_11, %c0_12] : memref<1x128xf32, #tpu.memory_space<vmem>>, vector<1x128xf32>
    %c0_13 = arith.constant 0 : index
    %c0_14 = arith.constant 0 : index
    %17 = vector.load %arg6[%c0_13, %c0_14] : memref<1x128xf32, #tpu.memory_space<vmem>>, vector<1x128xf32>
    %cst_15 = arith.constant dense<0.000000e+00> : vector<25xf32>
    %18 = vector.multi_reduction <add>, %15, %cst_15 [1] : vector<25x128xf32> to vector<25xf32>
    %19 = vector.shape_cast %18 : vector<25xf32> to vector<25x1xf32>
    %cst_16 = arith.constant 1.280000e+02 : f32
    %20 = vector.broadcast %cst_16 : f32 to vector<25x1xf32>
    %21 = arith.divf %19, %20 : vector<25x1xf32>
    %22 = vector.broadcast %21 : vector<25x1xf32> to vector<25x128xf32>
    %23 = arith.subf %15, %22 : vector<25x128xf32>
    %24 = arith.mulf %23, %23 : vector<25x128xf32>
    %cst_17 = arith.constant dense<0.000000e+00> : vector<25xf32>
    %25 = vector.multi_reduction <add>, %24, %cst_17 [1] : vector<25x128xf32> to vector<25xf32>
    %26 = vector.shape_cast %25 : vector<25xf32> to vector<25x1xf32>
    %cst_18 = arith.constant 1.280000e+02 : f32
    %27 = vector.broadcast %cst_18 : f32 to vector<25x1xf32>
    %28 = arith.divf %26, %27 : vector<25x1xf32>
    %29 = vector.broadcast %21 : vector<25x1xf32> to vector<25x128xf32>
    %30 = arith.subf %15, %29 : vector<25x128xf32>
    %cst_19 = arith.constant 9.99999974E-6 : f32
    %31 = vector.broadcast %cst_19 : f32 to vector<25x1xf32>
    %32 = arith.addf %28, %31 : vector<25x1xf32>
    %33 = math.rsqrt %32 : vector<25x1xf32>
    %34 = vector.broadcast %33 : vector<25x1xf32> to vector<25x128xf32>
    %35 = arith.mulf %30, %34 : vector<25x128xf32>
    %36 = vector.broadcast %16 : vector<1x128xf32> to vector<25x128xf32>
    %37 = arith.mulf %35, %36 : vector<25x128xf32>
    %38 = vector.broadcast %17 : vector<1x128xf32> to vector<25x128xf32>
    %39 = arith.addf %37, %38 : vector<25x128xf32>
    %c0_20 = arith.constant 0 : index
    %c0_21 = arith.constant 0 : index
    %c0_22 = arith.constant 0 : index
    %40 = vector.load %arg7[%c0_20, %c0_21, %c0_22] : memref<2x1x128xf32, #tpu.memory_space<vmem>>, vector<1x1x128xf32>
    %41 = vector.shape_cast %40 : vector<1x1x128xf32> to vector<1x128xf32>
    %c0_23 = arith.constant 0 : index
    %c0_24 = arith.constant 0 : index
    %c0_25 = arith.constant 0 : index
    %42 = vector.load %arg8[%c0_23, %c0_24, %c0_25] : memref<2x1x128xf32, #tpu.memory_space<vmem>>, vector<1x1x128xf32>
    %43 = vector.shape_cast %42 : vector<1x1x128xf32> to vector<1x128xf32>
    %cst_26 = arith.constant dense<0.000000e+00> : vector<25xf32>
    %44 = vector.multi_reduction <add>, %39, %cst_26 [1] : vector<25x128xf32> to vector<25xf32>
    %45 = vector.shape_cast %44 : vector<25xf32> to vector<25x1xf32>
    %cst_27 = arith.constant 1.280000e+02 : f32
    %46 = vector.broadcast %cst_27 : f32 to vector<25x1xf32>
    %47 = arith.divf %45, %46 : vector<25x1xf32>
    %48 = vector.broadcast %47 : vector<25x1xf32> to vector<25x128xf32>
    %49 = arith.subf %39, %48 : vector<25x128xf32>
    %50 = arith.mulf %49, %49 : vector<25x128xf32>
    %cst_28 = arith.constant dense<0.000000e+00> : vector<25xf32>
    %51 = vector.multi_reduction <add>, %50, %cst_28 [1] : vector<25x128xf32> to vector<25xf32>
    %52 = vector.shape_cast %51 : vector<25xf32> to vector<25x1xf32>
    %cst_29 = arith.constant 1.280000e+02 : f32
    %53 = vector.broadcast %cst_29 : f32 to vector<25x1xf32>
    %54 = arith.divf %52, %53 : vector<25x1xf32>
    %55 = vector.broadcast %47 : vector<25x1xf32> to vector<25x128xf32>
    %56 = arith.subf %39, %55 : vector<25x128xf32>
    %cst_30 = arith.constant 9.99999974E-6 : f32
    %57 = vector.broadcast %cst_30 : f32 to vector<25x1xf32>
    %58 = arith.addf %54, %57 : vector<25x1xf32>
    %59 = math.rsqrt %58 : vector<25x1xf32>
    %60 = vector.broadcast %59 : vector<25x1xf32> to vector<25x128xf32>
    %61 = arith.mulf %56, %60 : vector<25x128xf32>
    %62 = vector.broadcast %41 : vector<1x128xf32> to vector<25x128xf32>
    %63 = arith.mulf %61, %62 : vector<25x128xf32>
    %64 = vector.broadcast %43 : vector<1x128xf32> to vector<25x128xf32>
    %65 = arith.addf %63, %64 : vector<25x128xf32>
    %c0_31 = arith.constant 0 : index
    %c0_32 = arith.constant 0 : index
    %c0_33 = arith.constant 0 : index
    %66 = vector.load %arg9[%c0_31, %c0_32, %c0_33] : memref<2x128x384xbf16, #tpu.memory_space<vmem>>, vector<1x128x384xbf16>
    %67 = vector.shape_cast %66 : vector<1x128x384xbf16> to vector<128x384xbf16>
    %68 = arith.truncf %65 : vector<25x128xf32> to vector<25x128xbf16>
    %cst_34 = arith.constant dense<0.000000e+00> : vector<25x384xf32>
    %69 = tpu.matmul %68, %67, %cst_34 {dimension_numbers = #tpu.dot_dimension_numbers<[1], [0], [0], [1], [0, 0, 1, 1], [], []>} : vector<25x128xbf16>, vector<128x384xbf16>, vector<25x384xf32> -> vector<25x384xf32>
    %c0_35 = arith.constant 0 : index
    %c0_36 = arith.constant 0 : index
    %c0_37 = arith.constant 0 : index
    %70 = vector.load %arg10[%c0_35, %c0_36, %c0_37] : memref<2x1x384xf32, #tpu.memory_space<vmem>>, vector<1x1x384xf32>
    %71 = vector.shape_cast %70 : vector<1x1x384xf32> to vector<1x384xf32>
    %72 = vector.broadcast %71 : vector<1x384xf32> to vector<25x384xf32>
    %73 = arith.addf %69, %72 : vector<25x384xf32>
    %74 = vector.extract_strided_slice %73 {offsets = [0, 0], sizes = [25, 128], strides = [1, 1]} : vector<25x384xf32> to vector<25x128xf32>
    %cst_38 = arith.constant 1.250000e-01 : f32
    %75 = vector.broadcast %cst_38 : f32 to vector<25x128xf32>
    %76 = arith.mulf %74, %75 : vector<25x128xf32>
    %77 = vector.extract_strided_slice %73 {offsets = [0, 128], sizes = [25, 128], strides = [1, 1]} : vector<25x384xf32> to vector<25x128xf32>
    %78 = vector.extract_strided_slice %73 {offsets = [0, 256], sizes = [25, 128], strides = [1, 1]} : vector<25x384xf32> to vector<25x128xf32>
    %c0_39 = arith.constant 0 : index
    %c0_40 = arith.constant 0 : index
    %c0_41 = arith.constant 0 : index
    %79 = vector.load %arg11[%c0_39, %c0_40, %c0_41] : memref<2x128x128xbf16, #tpu.memory_space<vmem>>, vector<1x128x128xbf16>
    %80 = vector.shape_cast %79 : vector<1x128x128xbf16> to vector<128x128xbf16>
    %cst_42 = arith.constant 0.000000e+00 : f32
    %81 = vector.broadcast %cst_42 : f32 to vector<25x128xf32>
    %82 = vector.extract_strided_slice %76 {offsets = [0, 0], sizes = [25, 64], strides = [1, 1]} : vector<25x128xf32> to vector<25x64xf32>
    %83 = arith.truncf %82 : vector<25x64xf32> to vector<25x64xbf16>
    %84 = vector.extract_strided_slice %77 {offsets = [0, 0], sizes = [25, 64], strides = [1, 1]} : vector<25x128xf32> to vector<25x64xf32>
    %85 = arith.truncf %84 : vector<25x64xf32> to vector<25x64xbf16>
    %86 = vector.extract_strided_slice %78 {offsets = [0, 0], sizes = [25, 64], strides = [1, 1]} : vector<25x128xf32> to vector<25x64xf32>
    %87 = arith.truncf %86 : vector<25x64xf32> to vector<25x64xbf16>
    %cst_43 = arith.constant dense<0.000000e+00> : vector<25x25xf32>
    %88 = tpu.matmul %83, %85, %cst_43 {dimension_numbers = #tpu.dot_dimension_numbers<[1], [1], [0], [0], [0, 0, 1, 0], [], []>} : vector<25x64xbf16>, vector<25x64xbf16>, vector<25x25xf32> -> vector<25x25xf32>
    %89 = arith.addf %88, %9 : vector<25x25xf32>
    %cst_44 = arith.constant dense<0xFF800000> : vector<25xf32>
    %90 = vector.multi_reduction <maximumf>, %89, %cst_44 [1] : vector<25x25xf32> to vector<25xf32>
    %91 = vector.shape_cast %90 : vector<25xf32> to vector<25x1xf32>
    %92 = vector.broadcast %91 : vector<25x1xf32> to vector<25x25xf32>
    %93 = arith.subf %89, %92 : vector<25x25xf32>
    %94 = math.exp %93 : vector<25x25xf32>
    %cst_45 = arith.constant dense<0.000000e+00> : vector<25xf32>
    %95 = vector.multi_reduction <add>, %94, %cst_45 [1] : vector<25x25xf32> to vector<25xf32>
    %96 = vector.shape_cast %95 : vector<25xf32> to vector<25x1xf32>
    %97 = tpu.reciprocal %96 {approx = true} : vector<25x1xf32> -> vector<25x1xf32>
    %98 = vector.broadcast %97 : vector<25x1xf32> to vector<25x25xf32>
    %99 = arith.mulf %94, %98 : vector<25x25xf32>
    %100 = arith.truncf %99 : vector<25x25xf32> to vector<25x25xbf16>
    %cst_46 = arith.constant dense<0.000000e+00> : vector<25x64xf32>
    %101 = tpu.matmul %100, %87, %cst_46 {dimension_numbers = #tpu.dot_dimension_numbers<[1], [0], [0], [1], [0, 0, 1, 1], [], []>} : vector<25x25xbf16>, vector<25x64xbf16>, vector<25x64xf32> -> vector<25x64xf32>
    %102 = arith.truncf %101 : vector<25x64xf32> to vector<25x64xbf16>
    %103 = vector.extract_strided_slice %80 {offsets = [0, 0], sizes = [64, 128], strides = [1, 1]} : vector<128x128xbf16> to vector<64x128xbf16>
    %cst_47 = arith.constant dense<0.000000e+00> : vector<25x128xf32>
    %104 = tpu.matmul %102, %103, %cst_47 {dimension_numbers = #tpu.dot_dimension_numbers<[1], [0], [0], [1], [0, 0, 1, 1], [], []>} : vector<25x64xbf16>, vector<64x128xbf16>, vector<25x128xf32> -> vector<25x128xf32>
    %105 = arith.addf %81, %104 : vector<25x128xf32>
    %106 = vector.extract_strided_slice %76 {offsets = [0, 64], sizes = [25, 64], strides = [1, 1]} : vector<25x128xf32> to vector<25x64xf32>
    %107 = arith.truncf %106 : vector<25x64xf32> to vector<25x64xbf16>
    %108 = vector.extract_strided_slice %77 {offsets = [0, 64], sizes = [25, 64], strides = [1, 1]} : vector<25x128xf32> to vector<25x64xf32>
    %109 = arith.truncf %108 : vector<25x64xf32> to vector<25x64xbf16>
    %110 = vector.extract_strided_slice %78 {offsets = [0, 64], sizes = [25, 64], strides = [1, 1]} : vector<25x128xf32> to vector<25x64xf32>
    %111 = arith.truncf %110 : vector<25x64xf32> to vector<25x64xbf16>
    %cst_48 = arith.constant dense<0.000000e+00> : vector<25x25xf32>
    %112 = tpu.matmul %107, %109, %cst_48 {dimension_numbers = #tpu.dot_dimension_numbers<[1], [1], [0], [0], [0, 0, 1, 0], [], []>} : vector<25x64xbf16>, vector<25x64xbf16>, vector<25x25xf32> -> vector<25x25xf32>
    %113 = arith.addf %112, %9 : vector<25x25xf32>
    %cst_49 = arith.constant dense<0xFF800000> : vector<25xf32>
    %114 = vector.multi_reduction <maximumf>, %113, %cst_49 [1] : vector<25x25xf32> to vector<25xf32>
    %115 = vector.shape_cast %114 : vector<25xf32> to vector<25x1xf32>
    %116 = vector.broadcast %115 : vector<25x1xf32> to vector<25x25xf32>
    %117 = arith.subf %113, %116 : vector<25x25xf32>
    %118 = math.exp %117 : vector<25x25xf32>
    %cst_50 = arith.constant dense<0.000000e+00> : vector<25xf32>
    %119 = vector.multi_reduction <add>, %118, %cst_50 [1] : vector<25x25xf32> to vector<25xf32>
    %120 = vector.shape_cast %119 : vector<25xf32> to vector<25x1xf32>
    %121 = tpu.reciprocal %120 {approx = true} : vector<25x1xf32> -> vector<25x1xf32>
    %122 = vector.broadcast %121 : vector<25x1xf32> to vector<25x25xf32>
    %123 = arith.mulf %118, %122 : vector<25x25xf32>
    %124 = arith.truncf %123 : vector<25x25xf32> to vector<25x25xbf16>
    %cst_51 = arith.constant dense<0.000000e+00> : vector<25x64xf32>
    %125 = tpu.matmul %124, %111, %cst_51 {dimension_numbers = #tpu.dot_dimension_numbers<[1], [0], [0], [1], [0, 0, 1, 1], [], []>} : vector<25x25xbf16>, vector<25x64xbf16>, vector<25x64xf32> -> vector<25x64xf32>
    %126 = arith.truncf %125 : vector<25x64xf32> to vector<25x64xbf16>
    %127 = vector.extract_strided_slice %80 {offsets = [64, 0], sizes = [64, 128], strides = [1, 1]} : vector<128x128xbf16> to vector<64x128xbf16>
    %cst_52 = arith.constant dense<0.000000e+00> : vector<25x128xf32>
    %128 = tpu.matmul %126, %127, %cst_52 {dimension_numbers = #tpu.dot_dimension_numbers<[1], [0], [0], [1], [0, 0, 1, 1], [], []>} : vector<25x64xbf16>, vector<64x128xbf16>, vector<25x128xf32> -> vector<25x128xf32>
    %129 = arith.addf %105, %128 : vector<25x128xf32>
    %130 = arith.addf %39, %129 : vector<25x128xf32>
    %c0_53 = arith.constant 0 : index
    %c0_54 = arith.constant 0 : index
    %c0_55 = arith.constant 0 : index
    %131 = vector.load %arg12[%c0_53, %c0_54, %c0_55] : memref<2x1x128xf32, #tpu.memory_space<vmem>>, vector<1x1x128xf32>
    %132 = vector.shape_cast %131 : vector<1x1x128xf32> to vector<1x128xf32>
    %133 = vector.broadcast %132 : vector<1x128xf32> to vector<25x128xf32>
    %134 = arith.addf %130, %133 : vector<25x128xf32>
    %c0_56 = arith.constant 0 : index
    %c0_57 = arith.constant 0 : index
    %c0_58 = arith.constant 0 : index
    %135 = vector.load %arg13[%c0_56, %c0_57, %c0_58] : memref<2x1x128xf32, #tpu.memory_space<vmem>>, vector<1x1x128xf32>
    %136 = vector.shape_cast %135 : vector<1x1x128xf32> to vector<1x128xf32>
    %c0_59 = arith.constant 0 : index
    %c0_60 = arith.constant 0 : index
    %c0_61 = arith.constant 0 : index
    %137 = vector.load %arg14[%c0_59, %c0_60, %c0_61] : memref<2x1x128xf32, #tpu.memory_space<vmem>>, vector<1x1x128xf32>
    %138 = vector.shape_cast %137 : vector<1x1x128xf32> to vector<1x128xf32>
    %cst_62 = arith.constant dense<0.000000e+00> : vector<25xf32>
    %139 = vector.multi_reduction <add>, %134, %cst_62 [1] : vector<25x128xf32> to vector<25xf32>
    %140 = vector.shape_cast %139 : vector<25xf32> to vector<25x1xf32>
    %cst_63 = arith.constant 1.280000e+02 : f32
    %141 = vector.broadcast %cst_63 : f32 to vector<25x1xf32>
    %142 = arith.divf %140, %141 : vector<25x1xf32>
    %143 = vector.broadcast %142 : vector<25x1xf32> to vector<25x128xf32>
    %144 = arith.subf %134, %143 : vector<25x128xf32>
    %145 = arith.mulf %144, %144 : vector<25x128xf32>
    %cst_64 = arith.constant dense<0.000000e+00> : vector<25xf32>
    %146 = vector.multi_reduction <add>, %145, %cst_64 [1] : vector<25x128xf32> to vector<25xf32>
    %147 = vector.shape_cast %146 : vector<25xf32> to vector<25x1xf32>
    %cst_65 = arith.constant 1.280000e+02 : f32
    %148 = vector.broadcast %cst_65 : f32 to vector<25x1xf32>
    %149 = arith.divf %147, %148 : vector<25x1xf32>
    %150 = vector.broadcast %142 : vector<25x1xf32> to vector<25x128xf32>
    %151 = arith.subf %134, %150 : vector<25x128xf32>
    %cst_66 = arith.constant 9.99999974E-6 : f32
    %152 = vector.broadcast %cst_66 : f32 to vector<25x1xf32>
    %153 = arith.addf %149, %152 : vector<25x1xf32>
    %154 = math.rsqrt %153 : vector<25x1xf32>
    %155 = vector.broadcast %154 : vector<25x1xf32> to vector<25x128xf32>
    %156 = arith.mulf %151, %155 : vector<25x128xf32>
    %157 = vector.broadcast %136 : vector<1x128xf32> to vector<25x128xf32>
    %158 = arith.mulf %156, %157 : vector<25x128xf32>
    %159 = vector.broadcast %138 : vector<1x128xf32> to vector<25x128xf32>
    %160 = arith.addf %158, %159 : vector<25x128xf32>
    %c0_67 = arith.constant 0 : index
    %c0_68 = arith.constant 0 : index
    %c0_69 = arith.constant 0 : index
    %161 = vector.load %arg15[%c0_67, %c0_68, %c0_69] : memref<2x128x256xbf16, #tpu.memory_space<vmem>>, vector<1x128x256xbf16>
    %162 = vector.shape_cast %161 : vector<1x128x256xbf16> to vector<128x256xbf16>
    %163 = arith.truncf %160 : vector<25x128xf32> to vector<25x128xbf16>
    %cst_70 = arith.constant dense<0.000000e+00> : vector<25x256xf32>
    %164 = tpu.matmul %163, %162, %cst_70 {dimension_numbers = #tpu.dot_dimension_numbers<[1], [0], [0], [1], [0, 0, 1, 1], [], []>} : vector<25x128xbf16>, vector<128x256xbf16>, vector<25x256xf32> -> vector<25x256xf32>
    %c0_71 = arith.constant 0 : index
    %c0_72 = arith.constant 0 : index
    %c0_73 = arith.constant 0 : index
    %165 = vector.load %arg16[%c0_71, %c0_72, %c0_73] : memref<2x1x256xf32, #tpu.memory_space<vmem>>, vector<1x1x256xf32>
    %166 = vector.shape_cast %165 : vector<1x1x256xf32> to vector<1x256xf32>
    %167 = vector.broadcast %166 : vector<1x256xf32> to vector<25x256xf32>
    %168 = arith.addf %164, %167 : vector<25x256xf32>
    %169 = arith.mulf %168, %168 : vector<25x256xf32>
    %170 = arith.mulf %168, %169 : vector<25x256xf32>
    %cst_74 = arith.constant 4.471500e-02 : f32
    %171 = vector.broadcast %cst_74 : f32 to vector<25x256xf32>
    %172 = arith.mulf %171, %170 : vector<25x256xf32>
    %173 = arith.addf %168, %172 : vector<25x256xf32>
    %cst_75 = arith.constant 0.797884583 : f32
    %174 = vector.broadcast %cst_75 : f32 to vector<25x256xf32>
    %175 = arith.mulf %174, %173 : vector<25x256xf32>
    %176 = math.tanh %175 : vector<25x256xf32>
    %cst_76 = arith.constant 1.000000e+00 : f32
    %177 = vector.broadcast %cst_76 : f32 to vector<25x256xf32>
    %178 = arith.addf %177, %176 : vector<25x256xf32>
    %cst_77 = arith.constant 5.000000e-01 : f32
    %179 = vector.broadcast %cst_77 : f32 to vector<25x256xf32>
    %180 = arith.mulf %179, %178 : vector<25x256xf32>
    %181 = arith.mulf %168, %180 : vector<25x256xf32>
    %c0_78 = arith.constant 0 : index
    %c0_79 = arith.constant 0 : index
    %c0_80 = arith.constant 0 : index
    %182 = vector.load %arg17[%c0_78, %c0_79, %c0_80] : memref<2x256x128xbf16, #tpu.memory_space<vmem>>, vector<1x256x128xbf16>
    %183 = vector.shape_cast %182 : vector<1x256x128xbf16> to vector<256x128xbf16>
    %184 = arith.truncf %181 : vector<25x256xf32> to vector<25x256xbf16>
    %cst_81 = arith.constant dense<0.000000e+00> : vector<25x128xf32>
    %185 = tpu.matmul %184, %183, %cst_81 {dimension_numbers = #tpu.dot_dimension_numbers<[1], [0], [0], [1], [0, 0, 1, 1], [], []>} : vector<25x256xbf16>, vector<256x128xbf16>, vector<25x128xf32> -> vector<25x128xf32>
    %186 = arith.addf %134, %185 : vector<25x128xf32>
    %c0_82 = arith.constant 0 : index
    %c0_83 = arith.constant 0 : index
    %c0_84 = arith.constant 0 : index
    %187 = vector.load %arg18[%c0_82, %c0_83, %c0_84] : memref<2x1x128xf32, #tpu.memory_space<vmem>>, vector<1x1x128xf32>
    %188 = vector.shape_cast %187 : vector<1x1x128xf32> to vector<1x128xf32>
    %189 = vector.broadcast %188 : vector<1x128xf32> to vector<25x128xf32>
    %190 = arith.addf %186, %189 : vector<25x128xf32>
    %c1 = arith.constant 1 : index
    %c0_85 = arith.constant 0 : index
    %c0_86 = arith.constant 0 : index
    %191 = vector.load %arg7[%c1, %c0_85, %c0_86] : memref<2x1x128xf32, #tpu.memory_space<vmem>>, vector<1x1x128xf32>
    %192 = vector.shape_cast %191 : vector<1x1x128xf32> to vector<1x128xf32>
    %c1_87 = arith.constant 1 : index
    %c0_88 = arith.constant 0 : index
    %c0_89 = arith.constant 0 : index
    %193 = vector.load %arg8[%c1_87, %c0_88, %c0_89] : memref<2x1x128xf32, #tpu.memory_space<vmem>>, vector<1x1x128xf32>
    %194 = vector.shape_cast %193 : vector<1x1x128xf32> to vector<1x128xf32>
    %cst_90 = arith.constant dense<0.000000e+00> : vector<25xf32>
    %195 = vector.multi_reduction <add>, %190, %cst_90 [1] : vector<25x128xf32> to vector<25xf32>
    %196 = vector.shape_cast %195 : vector<25xf32> to vector<25x1xf32>
    %cst_91 = arith.constant 1.280000e+02 : f32
    %197 = vector.broadcast %cst_91 : f32 to vector<25x1xf32>
    %198 = arith.divf %196, %197 : vector<25x1xf32>
    %199 = vector.broadcast %198 : vector<25x1xf32> to vector<25x128xf32>
    %200 = arith.subf %190, %199 : vector<25x128xf32>
    %201 = arith.mulf %200, %200 : vector<25x128xf32>
    %cst_92 = arith.constant dense<0.000000e+00> : vector<25xf32>
    %202 = vector.multi_reduction <add>, %201, %cst_92 [1] : vector<25x128xf32> to vector<25xf32>
    %203 = vector.shape_cast %202 : vector<25xf32> to vector<25x1xf32>
    %cst_93 = arith.constant 1.280000e+02 : f32
    %204 = vector.broadcast %cst_93 : f32 to vector<25x1xf32>
    %205 = arith.divf %203, %204 : vector<25x1xf32>
    %206 = vector.broadcast %198 : vector<25x1xf32> to vector<25x128xf32>
    %207 = arith.subf %190, %206 : vector<25x128xf32>
    %cst_94 = arith.constant 9.99999974E-6 : f32
    %208 = vector.broadcast %cst_94 : f32 to vector<25x1xf32>
    %209 = arith.addf %205, %208 : vector<25x1xf32>
    %210 = math.rsqrt %209 : vector<25x1xf32>
    %211 = vector.broadcast %210 : vector<25x1xf32> to vector<25x128xf32>
    %212 = arith.mulf %207, %211 : vector<25x128xf32>
    %213 = vector.broadcast %192 : vector<1x128xf32> to vector<25x128xf32>
    %214 = arith.mulf %212, %213 : vector<25x128xf32>
    %215 = vector.broadcast %194 : vector<1x128xf32> to vector<25x128xf32>
    %216 = arith.addf %214, %215 : vector<25x128xf32>
    %c1_95 = arith.constant 1 : index
    %c0_96 = arith.constant 0 : index
    %c0_97 = arith.constant 0 : index
    %217 = vector.load %arg9[%c1_95, %c0_96, %c0_97] : memref<2x128x384xbf16, #tpu.memory_space<vmem>>, vector<1x128x384xbf16>
    %218 = vector.shape_cast %217 : vector<1x128x384xbf16> to vector<128x384xbf16>
    %219 = arith.truncf %216 : vector<25x128xf32> to vector<25x128xbf16>
    %cst_98 = arith.constant dense<0.000000e+00> : vector<25x384xf32>
    %220 = tpu.matmul %219, %218, %cst_98 {dimension_numbers = #tpu.dot_dimension_numbers<[1], [0], [0], [1], [0, 0, 1, 1], [], []>} : vector<25x128xbf16>, vector<128x384xbf16>, vector<25x384xf32> -> vector<25x384xf32>
    %c1_99 = arith.constant 1 : index
    %c0_100 = arith.constant 0 : index
    %c0_101 = arith.constant 0 : index
    %221 = vector.load %arg10[%c1_99, %c0_100, %c0_101] : memref<2x1x384xf32, #tpu.memory_space<vmem>>, vector<1x1x384xf32>
    %222 = vector.shape_cast %221 : vector<1x1x384xf32> to vector<1x384xf32>
    %223 = vector.broadcast %222 : vector<1x384xf32> to vector<25x384xf32>
    %224 = arith.addf %220, %223 : vector<25x384xf32>
    %225 = vector.extract_strided_slice %224 {offsets = [0, 0], sizes = [25, 128], strides = [1, 1]} : vector<25x384xf32> to vector<25x128xf32>
    %cst_102 = arith.constant 1.250000e-01 : f32
    %226 = vector.broadcast %cst_102 : f32 to vector<25x128xf32>
    %227 = arith.mulf %225, %226 : vector<25x128xf32>
    %228 = vector.extract_strided_slice %224 {offsets = [0, 128], sizes = [25, 128], strides = [1, 1]} : vector<25x384xf32> to vector<25x128xf32>
    %229 = vector.extract_strided_slice %224 {offsets = [0, 256], sizes = [25, 128], strides = [1, 1]} : vector<25x384xf32> to vector<25x128xf32>
    %c1_103 = arith.constant 1 : index
    %c0_104 = arith.constant 0 : index
    %c0_105 = arith.constant 0 : index
    %230 = vector.load %arg11[%c1_103, %c0_104, %c0_105] : memref<2x128x128xbf16, #tpu.memory_space<vmem>>, vector<1x128x128xbf16>
    %231 = vector.shape_cast %230 : vector<1x128x128xbf16> to vector<128x128xbf16>
    %cst_106 = arith.constant 0.000000e+00 : f32
    %232 = vector.broadcast %cst_106 : f32 to vector<25x128xf32>
    %233 = vector.extract_strided_slice %227 {offsets = [0, 0], sizes = [25, 64], strides = [1, 1]} : vector<25x128xf32> to vector<25x64xf32>
    %234 = arith.truncf %233 : vector<25x64xf32> to vector<25x64xbf16>
    %235 = vector.extract_strided_slice %228 {offsets = [0, 0], sizes = [25, 64], strides = [1, 1]} : vector<25x128xf32> to vector<25x64xf32>
    %236 = arith.truncf %235 : vector<25x64xf32> to vector<25x64xbf16>
    %237 = vector.extract_strided_slice %229 {offsets = [0, 0], sizes = [25, 64], strides = [1, 1]} : vector<25x128xf32> to vector<25x64xf32>
    %238 = arith.truncf %237 : vector<25x64xf32> to vector<25x64xbf16>
    %cst_107 = arith.constant dense<0.000000e+00> : vector<25x25xf32>
    %239 = tpu.matmul %234, %236, %cst_107 {dimension_numbers = #tpu.dot_dimension_numbers<[1], [1], [0], [0], [0, 0, 1, 0], [], []>} : vector<25x64xbf16>, vector<25x64xbf16>, vector<25x25xf32> -> vector<25x25xf32>
    %240 = arith.addf %239, %9 : vector<25x25xf32>
    %cst_108 = arith.constant dense<0xFF800000> : vector<25xf32>
    %241 = vector.multi_reduction <maximumf>, %240, %cst_108 [1] : vector<25x25xf32> to vector<25xf32>
    %242 = vector.shape_cast %241 : vector<25xf32> to vector<25x1xf32>
    %243 = vector.broadcast %242 : vector<25x1xf32> to vector<25x25xf32>
    %244 = arith.subf %240, %243 : vector<25x25xf32>
    %245 = math.exp %244 : vector<25x25xf32>
    %cst_109 = arith.constant dense<0.000000e+00> : vector<25xf32>
    %246 = vector.multi_reduction <add>, %245, %cst_109 [1] : vector<25x25xf32> to vector<25xf32>
    %247 = vector.shape_cast %246 : vector<25xf32> to vector<25x1xf32>
    %248 = tpu.reciprocal %247 {approx = true} : vector<25x1xf32> -> vector<25x1xf32>
    %249 = vector.broadcast %248 : vector<25x1xf32> to vector<25x25xf32>
    %250 = arith.mulf %245, %249 : vector<25x25xf32>
    %251 = arith.truncf %250 : vector<25x25xf32> to vector<25x25xbf16>
    %cst_110 = arith.constant dense<0.000000e+00> : vector<25x64xf32>
    %252 = tpu.matmul %251, %238, %cst_110 {dimension_numbers = #tpu.dot_dimension_numbers<[1], [0], [0], [1], [0, 0, 1, 1], [], []>} : vector<25x25xbf16>, vector<25x64xbf16>, vector<25x64xf32> -> vector<25x64xf32>
    %253 = arith.truncf %252 : vector<25x64xf32> to vector<25x64xbf16>
    %254 = vector.extract_strided_slice %231 {offsets = [0, 0], sizes = [64, 128], strides = [1, 1]} : vector<128x128xbf16> to vector<64x128xbf16>
    %cst_111 = arith.constant dense<0.000000e+00> : vector<25x128xf32>
    %255 = tpu.matmul %253, %254, %cst_111 {dimension_numbers = #tpu.dot_dimension_numbers<[1], [0], [0], [1], [0, 0, 1, 1], [], []>} : vector<25x64xbf16>, vector<64x128xbf16>, vector<25x128xf32> -> vector<25x128xf32>
    %256 = arith.addf %232, %255 : vector<25x128xf32>
    %257 = vector.extract_strided_slice %227 {offsets = [0, 64], sizes = [25, 64], strides = [1, 1]} : vector<25x128xf32> to vector<25x64xf32>
    %258 = arith.truncf %257 : vector<25x64xf32> to vector<25x64xbf16>
    %259 = vector.extract_strided_slice %228 {offsets = [0, 64], sizes = [25, 64], strides = [1, 1]} : vector<25x128xf32> to vector<25x64xf32>
    %260 = arith.truncf %259 : vector<25x64xf32> to vector<25x64xbf16>
    %261 = vector.extract_strided_slice %229 {offsets = [0, 64], sizes = [25, 64], strides = [1, 1]} : vector<25x128xf32> to vector<25x64xf32>
    %262 = arith.truncf %261 : vector<25x64xf32> to vector<25x64xbf16>
    %cst_112 = arith.constant dense<0.000000e+00> : vector<25x25xf32>
    %263 = tpu.matmul %258, %260, %cst_112 {dimension_numbers = #tpu.dot_dimension_numbers<[1], [1], [0], [0], [0, 0, 1, 0], [], []>} : vector<25x64xbf16>, vector<25x64xbf16>, vector<25x25xf32> -> vector<25x25xf32>
    %264 = arith.addf %263, %9 : vector<25x25xf32>
    %cst_113 = arith.constant dense<0xFF800000> : vector<25xf32>
    %265 = vector.multi_reduction <maximumf>, %264, %cst_113 [1] : vector<25x25xf32> to vector<25xf32>
    %266 = vector.shape_cast %265 : vector<25xf32> to vector<25x1xf32>
    %267 = vector.broadcast %266 : vector<25x1xf32> to vector<25x25xf32>
    %268 = arith.subf %264, %267 : vector<25x25xf32>
    %269 = math.exp %268 : vector<25x25xf32>
    %cst_114 = arith.constant dense<0.000000e+00> : vector<25xf32>
    %270 = vector.multi_reduction <add>, %269, %cst_114 [1] : vector<25x25xf32> to vector<25xf32>
    %271 = vector.shape_cast %270 : vector<25xf32> to vector<25x1xf32>
    %272 = tpu.reciprocal %271 {approx = true} : vector<25x1xf32> -> vector<25x1xf32>
    %273 = vector.broadcast %272 : vector<25x1xf32> to vector<25x25xf32>
    %274 = arith.mulf %269, %273 : vector<25x25xf32>
    %275 = arith.truncf %274 : vector<25x25xf32> to vector<25x25xbf16>
    %cst_115 = arith.constant dense<0.000000e+00> : vector<25x64xf32>
    %276 = tpu.matmul %275, %262, %cst_115 {dimension_numbers = #tpu.dot_dimension_numbers<[1], [0], [0], [1], [0, 0, 1, 1], [], []>} : vector<25x25xbf16>, vector<25x64xbf16>, vector<25x64xf32> -> vector<25x64xf32>
    %277 = arith.truncf %276 : vector<25x64xf32> to vector<25x64xbf16>
    %278 = vector.extract_strided_slice %231 {offsets = [64, 0], sizes = [64, 128], strides = [1, 1]} : vector<128x128xbf16> to vector<64x128xbf16>
    %cst_116 = arith.constant dense<0.000000e+00> : vector<25x128xf32>
    %279 = tpu.matmul %277, %278, %cst_116 {dimension_numbers = #tpu.dot_dimension_numbers<[1], [0], [0], [1], [0, 0, 1, 1], [], []>} : vector<25x64xbf16>, vector<64x128xbf16>, vector<25x128xf32> -> vector<25x128xf32>
    %280 = arith.addf %256, %279 : vector<25x128xf32>
    %281 = arith.addf %190, %280 : vector<25x128xf32>
    %c1_117 = arith.constant 1 : index
    %c0_118 = arith.constant 0 : index
    %c0_119 = arith.constant 0 : index
    %282 = vector.load %arg12[%c1_117, %c0_118, %c0_119] : memref<2x1x128xf32, #tpu.memory_space<vmem>>, vector<1x1x128xf32>
    %283 = vector.shape_cast %282 : vector<1x1x128xf32> to vector<1x128xf32>
    %284 = vector.broadcast %283 : vector<1x128xf32> to vector<25x128xf32>
    %285 = arith.addf %281, %284 : vector<25x128xf32>
    %c1_120 = arith.constant 1 : index
    %c0_121 = arith.constant 0 : index
    %c0_122 = arith.constant 0 : index
    %286 = vector.load %arg13[%c1_120, %c0_121, %c0_122] : memref<2x1x128xf32, #tpu.memory_space<vmem>>, vector<1x1x128xf32>
    %287 = vector.shape_cast %286 : vector<1x1x128xf32> to vector<1x128xf32>
    %c1_123 = arith.constant 1 : index
    %c0_124 = arith.constant 0 : index
    %c0_125 = arith.constant 0 : index
    %288 = vector.load %arg14[%c1_123, %c0_124, %c0_125] : memref<2x1x128xf32, #tpu.memory_space<vmem>>, vector<1x1x128xf32>
    %289 = vector.shape_cast %288 : vector<1x1x128xf32> to vector<1x128xf32>
    %cst_126 = arith.constant dense<0.000000e+00> : vector<25xf32>
    %290 = vector.multi_reduction <add>, %285, %cst_126 [1] : vector<25x128xf32> to vector<25xf32>
    %291 = vector.shape_cast %290 : vector<25xf32> to vector<25x1xf32>
    %cst_127 = arith.constant 1.280000e+02 : f32
    %292 = vector.broadcast %cst_127 : f32 to vector<25x1xf32>
    %293 = arith.divf %291, %292 : vector<25x1xf32>
    %294 = vector.broadcast %293 : vector<25x1xf32> to vector<25x128xf32>
    %295 = arith.subf %285, %294 : vector<25x128xf32>
    %296 = arith.mulf %295, %295 : vector<25x128xf32>
    %cst_128 = arith.constant dense<0.000000e+00> : vector<25xf32>
    %297 = vector.multi_reduction <add>, %296, %cst_128 [1] : vector<25x128xf32> to vector<25xf32>
    %298 = vector.shape_cast %297 : vector<25xf32> to vector<25x1xf32>
    %cst_129 = arith.constant 1.280000e+02 : f32
    %299 = vector.broadcast %cst_129 : f32 to vector<25x1xf32>
    %300 = arith.divf %298, %299 : vector<25x1xf32>
    %301 = vector.broadcast %293 : vector<25x1xf32> to vector<25x128xf32>
    %302 = arith.subf %285, %301 : vector<25x128xf32>
    %cst_130 = arith.constant 9.99999974E-6 : f32
    %303 = vector.broadcast %cst_130 : f32 to vector<25x1xf32>
    %304 = arith.addf %300, %303 : vector<25x1xf32>
    %305 = math.rsqrt %304 : vector<25x1xf32>
    %306 = vector.broadcast %305 : vector<25x1xf32> to vector<25x128xf32>
    %307 = arith.mulf %302, %306 : vector<25x128xf32>
    %308 = vector.broadcast %287 : vector<1x128xf32> to vector<25x128xf32>
    %309 = arith.mulf %307, %308 : vector<25x128xf32>
    %310 = vector.broadcast %289 : vector<1x128xf32> to vector<25x128xf32>
    %311 = arith.addf %309, %310 : vector<25x128xf32>
    %c1_131 = arith.constant 1 : index
    %c0_132 = arith.constant 0 : index
    %c0_133 = arith.constant 0 : index
    %312 = vector.load %arg15[%c1_131, %c0_132, %c0_133] : memref<2x128x256xbf16, #tpu.memory_space<vmem>>, vector<1x128x256xbf16>
    %313 = vector.shape_cast %312 : vector<1x128x256xbf16> to vector<128x256xbf16>
    %314 = arith.truncf %311 : vector<25x128xf32> to vector<25x128xbf16>
    %cst_134 = arith.constant dense<0.000000e+00> : vector<25x256xf32>
    %315 = tpu.matmul %314, %313, %cst_134 {dimension_numbers = #tpu.dot_dimension_numbers<[1], [0], [0], [1], [0, 0, 1, 1], [], []>} : vector<25x128xbf16>, vector<128x256xbf16>, vector<25x256xf32> -> vector<25x256xf32>
    %c1_135 = arith.constant 1 : index
    %c0_136 = arith.constant 0 : index
    %c0_137 = arith.constant 0 : index
    %316 = vector.load %arg16[%c1_135, %c0_136, %c0_137] : memref<2x1x256xf32, #tpu.memory_space<vmem>>, vector<1x1x256xf32>
    %317 = vector.shape_cast %316 : vector<1x1x256xf32> to vector<1x256xf32>
    %318 = vector.broadcast %317 : vector<1x256xf32> to vector<25x256xf32>
    %319 = arith.addf %315, %318 : vector<25x256xf32>
    %320 = arith.mulf %319, %319 : vector<25x256xf32>
    %321 = arith.mulf %319, %320 : vector<25x256xf32>
    %cst_138 = arith.constant 4.471500e-02 : f32
    %322 = vector.broadcast %cst_138 : f32 to vector<25x256xf32>
    %323 = arith.mulf %322, %321 : vector<25x256xf32>
    %324 = arith.addf %319, %323 : vector<25x256xf32>
    %cst_139 = arith.constant 0.797884583 : f32
    %325 = vector.broadcast %cst_139 : f32 to vector<25x256xf32>
    %326 = arith.mulf %325, %324 : vector<25x256xf32>
    %327 = math.tanh %326 : vector<25x256xf32>
    %cst_140 = arith.constant 1.000000e+00 : f32
    %328 = vector.broadcast %cst_140 : f32 to vector<25x256xf32>
    %329 = arith.addf %328, %327 : vector<25x256xf32>
    %cst_141 = arith.constant 5.000000e-01 : f32
    %330 = vector.broadcast %cst_141 : f32 to vector<25x256xf32>
    %331 = arith.mulf %330, %329 : vector<25x256xf32>
    %332 = arith.mulf %319, %331 : vector<25x256xf32>
    %c1_142 = arith.constant 1 : index
    %c0_143 = arith.constant 0 : index
    %c0_144 = arith.constant 0 : index
    %333 = vector.load %arg17[%c1_142, %c0_143, %c0_144] : memref<2x256x128xbf16, #tpu.memory_space<vmem>>, vector<1x256x128xbf16>
    %334 = vector.shape_cast %333 : vector<1x256x128xbf16> to vector<256x128xbf16>
    %335 = arith.truncf %332 : vector<25x256xf32> to vector<25x256xbf16>
    %cst_145 = arith.constant dense<0.000000e+00> : vector<25x128xf32>
    %336 = tpu.matmul %335, %334, %cst_145 {dimension_numbers = #tpu.dot_dimension_numbers<[1], [0], [0], [1], [0, 0, 1, 1], [], []>} : vector<25x256xbf16>, vector<256x128xbf16>, vector<25x128xf32> -> vector<25x128xf32>
    %337 = arith.addf %285, %336 : vector<25x128xf32>
    %c1_146 = arith.constant 1 : index
    %c0_147 = arith.constant 0 : index
    %c0_148 = arith.constant 0 : index
    %338 = vector.load %arg18[%c1_146, %c0_147, %c0_148] : memref<2x1x128xf32, #tpu.memory_space<vmem>>, vector<1x1x128xf32>
    %339 = vector.shape_cast %338 : vector<1x1x128xf32> to vector<1x128xf32>
    %340 = vector.broadcast %339 : vector<1x128xf32> to vector<25x128xf32>
    %341 = arith.addf %337, %340 : vector<25x128xf32>
    %c0_149 = arith.constant 0 : index
    %c0_150 = arith.constant 0 : index
    %342 = vector.load %arg19[%c0_149, %c0_150] : memref<128x128xbf16, #tpu.memory_space<vmem>>, vector<128x128xbf16>
    %343 = arith.truncf %341 : vector<25x128xf32> to vector<25x128xbf16>
    %cst_151 = arith.constant dense<0.000000e+00> : vector<25x128xf32>
    %344 = tpu.matmul %343, %342, %cst_151 {dimension_numbers = #tpu.dot_dimension_numbers<[1], [0], [0], [1], [0, 0, 1, 1], [], []>} : vector<25x128xbf16>, vector<128x128xbf16>, vector<25x128xf32> -> vector<25x128xf32>
    %c0_152 = arith.constant 0 : index
    %c0_153 = arith.constant 0 : index
    %345 = vector.load %arg20[%c0_152, %c0_153] : memref<1x128xf32, #tpu.memory_space<vmem>>, vector<1x128xf32>
    %346 = vector.broadcast %345 : vector<1x128xf32> to vector<25x128xf32>
    %347 = arith.addf %344, %346 : vector<25x128xf32>
    %348 = arith.mulf %347, %347 : vector<25x128xf32>
    %349 = arith.mulf %347, %348 : vector<25x128xf32>
    %cst_154 = arith.constant 4.471500e-02 : f32
    %350 = vector.broadcast %cst_154 : f32 to vector<25x128xf32>
    %351 = arith.mulf %350, %349 : vector<25x128xf32>
    %352 = arith.addf %347, %351 : vector<25x128xf32>
    %cst_155 = arith.constant 0.797884583 : f32
    %353 = vector.broadcast %cst_155 : f32 to vector<25x128xf32>
    %354 = arith.mulf %353, %352 : vector<25x128xf32>
    %355 = math.tanh %354 : vector<25x128xf32>
    %cst_156 = arith.constant 1.000000e+00 : f32
    %356 = vector.broadcast %cst_156 : f32 to vector<25x128xf32>
    %357 = arith.addf %356, %355 : vector<25x128xf32>
    %cst_157 = arith.constant 5.000000e-01 : f32
    %358 = vector.broadcast %cst_157 : f32 to vector<25x128xf32>
    %359 = arith.mulf %358, %357 : vector<25x128xf32>
    %360 = arith.mulf %347, %359 : vector<25x128xf32>
    %c0_158 = arith.constant 0 : index
    %c0_159 = arith.constant 0 : index
    %361 = vector.load %arg21[%c0_158, %c0_159] : memref<128x128xbf16, #tpu.memory_space<vmem>>, vector<128x128xbf16>
    %362 = arith.truncf %360 : vector<25x128xf32> to vector<25x128xbf16>
    %cst_160 = arith.constant dense<0.000000e+00> : vector<25x128xf32>
    %363 = tpu.matmul %362, %361, %cst_160 {dimension_numbers = #tpu.dot_dimension_numbers<[1], [0], [0], [1], [0, 0, 1, 1], [], []>} : vector<25x128xbf16>, vector<128x128xbf16>, vector<25x128xf32> -> vector<25x128xf32>
    %c0_161 = arith.constant 0 : index
    %c0_162 = arith.constant 0 : index
    %364 = vector.load %arg22[%c0_161, %c0_162] : memref<1x128xf32, #tpu.memory_space<vmem>>, vector<1x128xf32>
    %365 = vector.broadcast %364 : vector<1x128xf32> to vector<25x128xf32>
    %366 = arith.addf %363, %365 : vector<25x128xf32>
    %367 = arith.truncf %366 : vector<25x128xf32> to vector<25x128xbf16>
    %c0_163 = arith.constant 0 : index
    %c0_164 = arith.constant 0 : index
    %368 = vector.load %arg23[%c0_163, %c0_164] : memref<25x128xbf16, #tpu.memory_space<vmem>>, vector<25x128xbf16>
    tpu.vector_store %arg23[%c0_163, %c0_164], %367 {strides = array<i32>} : memref<25x128xbf16, #tpu.memory_space<vmem>>, vector<25x128xbf16>,
    return
  }
}

module attributes {stable_mosaic.version = 11 : i64} {
  func.func @_language_model_kernel(%arg0: memref<32x128xbf16, #tpu.memory_space<vmem>>, %arg1: memref<32x128xbf16, #tpu.memory_space<vmem>>, %arg2: memref<2x1x128xf32, #tpu.memory_space<vmem>>, %arg3: memref<2x128x384xbf16, #tpu.memory_space<vmem>>, %arg4: memref<2x128x128xbf16, #tpu.memory_space<vmem>>, %arg5: memref<2x1x128xf32, #tpu.memory_space<vmem>>, %arg6: memref<2x128x512xbf16, #tpu.memory_space<vmem>>, %arg7: memref<2x256x128xbf16, #tpu.memory_space<vmem>>, %arg8: memref<1x128xf32, #tpu.memory_space<vmem>>, %arg9: memref<32x128xf32, #tpu.memory_space<vmem>>) attributes {dimension_semantics = [], scalar_prefetch = 0 : i64, scratch_operands = 0 : i64, tpu.core_type = #tpu.core_type<tc>} {
    %0 = tpu.iota {dimensions = array<i32: 0>} : vector<32x32xi32>
    %1 = tpu.iota {dimensions = array<i32: 1>} : vector<32x32xi32>
    %2 = arith.cmpi sle, %1, %0 : vector<32x32xi32>
    %cst = arith.constant 0.000000e+00 : f32
    %cst_0 = arith.constant -1.000000e+30 : f32
    %3 = vector.broadcast %cst : f32 to vector<32x32xf32>
    %4 = vector.broadcast %cst_0 : f32 to vector<32x32xf32>
    %5 = arith.select %2, %3, %4 : vector<32x32xi1>, vector<32x32xf32>
    %c0 = arith.constant 0 : index
    %c0_1 = arith.constant 0 : index
    %6 = vector.load %arg0[%c0, %c0_1] : memref<32x128xbf16, #tpu.memory_space<vmem>>, vector<32x128xbf16>
    %7 = arith.extf %6 : vector<32x128xbf16> to vector<32x128xf32>
    %c0_2 = arith.constant 0 : index
    %c0_3 = arith.constant 0 : index
    %8 = vector.load %arg1[%c0_2, %c0_3] : memref<32x128xbf16, #tpu.memory_space<vmem>>, vector<32x128xbf16>
    %9 = arith.extf %8 : vector<32x128xbf16> to vector<32x128xf32>
    %10 = arith.addf %7, %9 : vector<32x128xf32>
    %c0_4 = arith.constant 0 : index
    %c0_5 = arith.constant 0 : index
    %c0_6 = arith.constant 0 : index
    %11 = vector.load %arg2[%c0_4, %c0_5, %c0_6] : memref<2x1x128xf32, #tpu.memory_space<vmem>>, vector<1x1x128xf32>
    %12 = vector.shape_cast %11 : vector<1x1x128xf32> to vector<1x128xf32>
    %13 = arith.mulf %10, %10 : vector<32x128xf32>
    %cst_7 = arith.constant dense<0.000000e+00> : vector<32xf32>
    %14 = vector.multi_reduction <add>, %13, %cst_7 [1] : vector<32x128xf32> to vector<32xf32>
    %15 = vector.shape_cast %14 : vector<32xf32> to vector<32x1xf32>
    %cst_8 = arith.constant 1.280000e+02 : f32
    %16 = vector.broadcast %cst_8 : f32 to vector<32x1xf32>
    %17 = arith.divf %15, %16 : vector<32x1xf32>
    %cst_9 = arith.constant 9.99999997E-7 : f32
    %18 = vector.broadcast %cst_9 : f32 to vector<32x1xf32>
    %19 = arith.addf %17, %18 : vector<32x1xf32>
    %20 = math.rsqrt %19 : vector<32x1xf32>
    %21 = vector.broadcast %20 : vector<32x1xf32> to vector<32x128xf32>
    %22 = arith.mulf %10, %21 : vector<32x128xf32>
    %23 = vector.broadcast %12 : vector<1x128xf32> to vector<32x128xf32>
    %24 = arith.mulf %22, %23 : vector<32x128xf32>
    %c0_10 = arith.constant 0 : index
    %c0_11 = arith.constant 0 : index
    %c0_12 = arith.constant 0 : index
    %25 = vector.load %arg3[%c0_10, %c0_11, %c0_12] : memref<2x128x384xbf16, #tpu.memory_space<vmem>>, vector<1x128x384xbf16>
    %26 = vector.shape_cast %25 : vector<1x128x384xbf16> to vector<128x384xbf16>
    %27 = arith.truncf %24 : vector<32x128xf32> to vector<32x128xbf16>
    %cst_13 = arith.constant dense<0.000000e+00> : vector<32x384xf32>
    %28 = tpu.matmul %27, %26, %cst_13 {dimension_numbers = #tpu.dot_dimension_numbers<[1], [0], [0], [1], [0, 0, 1, 1], [], []>} : vector<32x128xbf16>, vector<128x384xbf16>, vector<32x384xf32> -> vector<32x384xf32>
    %29 = vector.extract_strided_slice %28 {offsets = [0, 0], sizes = [32, 128], strides = [1, 1]} : vector<32x384xf32> to vector<32x128xf32>
    %cst_14 = arith.constant 1.250000e-01 : f32
    %30 = vector.broadcast %cst_14 : f32 to vector<32x128xf32>
    %31 = arith.mulf %29, %30 : vector<32x128xf32>
    %32 = vector.extract_strided_slice %28 {offsets = [0, 128], sizes = [32, 128], strides = [1, 1]} : vector<32x384xf32> to vector<32x128xf32>
    %33 = vector.extract_strided_slice %28 {offsets = [0, 256], sizes = [32, 128], strides = [1, 1]} : vector<32x384xf32> to vector<32x128xf32>
    %c0_15 = arith.constant 0 : index
    %c0_16 = arith.constant 0 : index
    %c0_17 = arith.constant 0 : index
    %34 = vector.load %arg4[%c0_15, %c0_16, %c0_17] : memref<2x128x128xbf16, #tpu.memory_space<vmem>>, vector<1x128x128xbf16>
    %35 = vector.shape_cast %34 : vector<1x128x128xbf16> to vector<128x128xbf16>
    %cst_18 = arith.constant 0.000000e+00 : f32
    %36 = vector.broadcast %cst_18 : f32 to vector<32x128xf32>
    %37 = vector.extract_strided_slice %31 {offsets = [0, 0], sizes = [32, 64], strides = [1, 1]} : vector<32x128xf32> to vector<32x64xf32>
    %38 = arith.truncf %37 : vector<32x64xf32> to vector<32x64xbf16>
    %39 = vector.extract_strided_slice %32 {offsets = [0, 0], sizes = [32, 64], strides = [1, 1]} : vector<32x128xf32> to vector<32x64xf32>
    %40 = arith.truncf %39 : vector<32x64xf32> to vector<32x64xbf16>
    %41 = vector.extract_strided_slice %33 {offsets = [0, 0], sizes = [32, 64], strides = [1, 1]} : vector<32x128xf32> to vector<32x64xf32>
    %42 = arith.truncf %41 : vector<32x64xf32> to vector<32x64xbf16>
    %cst_19 = arith.constant dense<0.000000e+00> : vector<32x32xf32>
    %43 = tpu.matmul %38, %40, %cst_19 {dimension_numbers = #tpu.dot_dimension_numbers<[1], [1], [0], [0], [0, 0, 1, 0], [], []>} : vector<32x64xbf16>, vector<32x64xbf16>, vector<32x32xf32> -> vector<32x32xf32>
    %44 = arith.addf %43, %5 : vector<32x32xf32>
    %cst_20 = arith.constant dense<0xFF800000> : vector<32xf32>
    %45 = vector.multi_reduction <maximumf>, %44, %cst_20 [1] : vector<32x32xf32> to vector<32xf32>
    %46 = vector.shape_cast %45 : vector<32xf32> to vector<32x1xf32>
    %47 = vector.broadcast %46 : vector<32x1xf32> to vector<32x32xf32>
    %48 = arith.subf %44, %47 : vector<32x32xf32>
    %49 = math.exp %48 : vector<32x32xf32>
    %cst_21 = arith.constant dense<0.000000e+00> : vector<32xf32>
    %50 = vector.multi_reduction <add>, %49, %cst_21 [1] : vector<32x32xf32> to vector<32xf32>
    %51 = vector.shape_cast %50 : vector<32xf32> to vector<32x1xf32>
    %52 = tpu.reciprocal %51 {approx = true} : vector<32x1xf32> -> vector<32x1xf32>
    %53 = vector.broadcast %52 : vector<32x1xf32> to vector<32x32xf32>
    %54 = arith.mulf %49, %53 : vector<32x32xf32>
    %55 = arith.truncf %54 : vector<32x32xf32> to vector<32x32xbf16>
    %cst_22 = arith.constant dense<0.000000e+00> : vector<32x64xf32>
    %56 = tpu.matmul %55, %42, %cst_22 {dimension_numbers = #tpu.dot_dimension_numbers<[1], [0], [0], [1], [0, 0, 1, 1], [], []>} : vector<32x32xbf16>, vector<32x64xbf16>, vector<32x64xf32> -> vector<32x64xf32>
    %57 = arith.truncf %56 : vector<32x64xf32> to vector<32x64xbf16>
    %58 = vector.extract_strided_slice %35 {offsets = [0, 0], sizes = [64, 128], strides = [1, 1]} : vector<128x128xbf16> to vector<64x128xbf16>
    %cst_23 = arith.constant dense<0.000000e+00> : vector<32x128xf32>
    %59 = tpu.matmul %57, %58, %cst_23 {dimension_numbers = #tpu.dot_dimension_numbers<[1], [0], [0], [1], [0, 0, 1, 1], [], []>} : vector<32x64xbf16>, vector<64x128xbf16>, vector<32x128xf32> -> vector<32x128xf32>
    %60 = arith.addf %36, %59 : vector<32x128xf32>
    %61 = vector.extract_strided_slice %31 {offsets = [0, 64], sizes = [32, 64], strides = [1, 1]} : vector<32x128xf32> to vector<32x64xf32>
    %62 = arith.truncf %61 : vector<32x64xf32> to vector<32x64xbf16>
    %63 = vector.extract_strided_slice %32 {offsets = [0, 64], sizes = [32, 64], strides = [1, 1]} : vector<32x128xf32> to vector<32x64xf32>
    %64 = arith.truncf %63 : vector<32x64xf32> to vector<32x64xbf16>
    %65 = vector.extract_strided_slice %33 {offsets = [0, 64], sizes = [32, 64], strides = [1, 1]} : vector<32x128xf32> to vector<32x64xf32>
    %66 = arith.truncf %65 : vector<32x64xf32> to vector<32x64xbf16>
    %cst_24 = arith.constant dense<0.000000e+00> : vector<32x32xf32>
    %67 = tpu.matmul %62, %64, %cst_24 {dimension_numbers = #tpu.dot_dimension_numbers<[1], [1], [0], [0], [0, 0, 1, 0], [], []>} : vector<32x64xbf16>, vector<32x64xbf16>, vector<32x32xf32> -> vector<32x32xf32>
    %68 = arith.addf %67, %5 : vector<32x32xf32>
    %cst_25 = arith.constant dense<0xFF800000> : vector<32xf32>
    %69 = vector.multi_reduction <maximumf>, %68, %cst_25 [1] : vector<32x32xf32> to vector<32xf32>
    %70 = vector.shape_cast %69 : vector<32xf32> to vector<32x1xf32>
    %71 = vector.broadcast %70 : vector<32x1xf32> to vector<32x32xf32>
    %72 = arith.subf %68, %71 : vector<32x32xf32>
    %73 = math.exp %72 : vector<32x32xf32>
    %cst_26 = arith.constant dense<0.000000e+00> : vector<32xf32>
    %74 = vector.multi_reduction <add>, %73, %cst_26 [1] : vector<32x32xf32> to vector<32xf32>
    %75 = vector.shape_cast %74 : vector<32xf32> to vector<32x1xf32>
    %76 = tpu.reciprocal %75 {approx = true} : vector<32x1xf32> -> vector<32x1xf32>
    %77 = vector.broadcast %76 : vector<32x1xf32> to vector<32x32xf32>
    %78 = arith.mulf %73, %77 : vector<32x32xf32>
    %79 = arith.truncf %78 : vector<32x32xf32> to vector<32x32xbf16>
    %cst_27 = arith.constant dense<0.000000e+00> : vector<32x64xf32>
    %80 = tpu.matmul %79, %66, %cst_27 {dimension_numbers = #tpu.dot_dimension_numbers<[1], [0], [0], [1], [0, 0, 1, 1], [], []>} : vector<32x32xbf16>, vector<32x64xbf16>, vector<32x64xf32> -> vector<32x64xf32>
    %81 = arith.truncf %80 : vector<32x64xf32> to vector<32x64xbf16>
    %82 = vector.extract_strided_slice %35 {offsets = [64, 0], sizes = [64, 128], strides = [1, 1]} : vector<128x128xbf16> to vector<64x128xbf16>
    %cst_28 = arith.constant dense<0.000000e+00> : vector<32x128xf32>
    %83 = tpu.matmul %81, %82, %cst_28 {dimension_numbers = #tpu.dot_dimension_numbers<[1], [0], [0], [1], [0, 0, 1, 1], [], []>} : vector<32x64xbf16>, vector<64x128xbf16>, vector<32x128xf32> -> vector<32x128xf32>
    %84 = arith.addf %60, %83 : vector<32x128xf32>
    %85 = arith.addf %10, %84 : vector<32x128xf32>
    %c0_29 = arith.constant 0 : index
    %c0_30 = arith.constant 0 : index
    %c0_31 = arith.constant 0 : index
    %86 = vector.load %arg5[%c0_29, %c0_30, %c0_31] : memref<2x1x128xf32, #tpu.memory_space<vmem>>, vector<1x1x128xf32>
    %87 = vector.shape_cast %86 : vector<1x1x128xf32> to vector<1x128xf32>
    %88 = arith.mulf %85, %85 : vector<32x128xf32>
    %cst_32 = arith.constant dense<0.000000e+00> : vector<32xf32>
    %89 = vector.multi_reduction <add>, %88, %cst_32 [1] : vector<32x128xf32> to vector<32xf32>
    %90 = vector.shape_cast %89 : vector<32xf32> to vector<32x1xf32>
    %cst_33 = arith.constant 1.280000e+02 : f32
    %91 = vector.broadcast %cst_33 : f32 to vector<32x1xf32>
    %92 = arith.divf %90, %91 : vector<32x1xf32>
    %cst_34 = arith.constant 9.99999997E-7 : f32
    %93 = vector.broadcast %cst_34 : f32 to vector<32x1xf32>
    %94 = arith.addf %92, %93 : vector<32x1xf32>
    %95 = math.rsqrt %94 : vector<32x1xf32>
    %96 = vector.broadcast %95 : vector<32x1xf32> to vector<32x128xf32>
    %97 = arith.mulf %85, %96 : vector<32x128xf32>
    %98 = vector.broadcast %87 : vector<1x128xf32> to vector<32x128xf32>
    %99 = arith.mulf %97, %98 : vector<32x128xf32>
    %c0_35 = arith.constant 0 : index
    %c0_36 = arith.constant 0 : index
    %c0_37 = arith.constant 0 : index
    %100 = vector.load %arg6[%c0_35, %c0_36, %c0_37] : memref<2x128x512xbf16, #tpu.memory_space<vmem>>, vector<1x128x512xbf16>
    %101 = vector.shape_cast %100 : vector<1x128x512xbf16> to vector<128x512xbf16>
    %102 = arith.truncf %99 : vector<32x128xf32> to vector<32x128xbf16>
    %cst_38 = arith.constant dense<0.000000e+00> : vector<32x512xf32>
    %103 = tpu.matmul %102, %101, %cst_38 {dimension_numbers = #tpu.dot_dimension_numbers<[1], [0], [0], [1], [0, 0, 1, 1], [], []>} : vector<32x128xbf16>, vector<128x512xbf16>, vector<32x512xf32> -> vector<32x512xf32>
    %104 = vector.extract_strided_slice %103 {offsets = [0, 0], sizes = [32, 256], strides = [1, 1]} : vector<32x512xf32> to vector<32x256xf32>
    %105 = arith.negf %104 : vector<32x256xf32>
    %106 = math.exp %105 : vector<32x256xf32>
    %cst_39 = arith.constant 1.000000e+00 : f32
    %107 = vector.broadcast %cst_39 : f32 to vector<32x256xf32>
    %108 = arith.addf %107, %106 : vector<32x256xf32>
    %109 = arith.divf %107, %108 : vector<32x256xf32>
    %110 = arith.mulf %104, %109 : vector<32x256xf32>
    %111 = vector.extract_strided_slice %103 {offsets = [0, 256], sizes = [32, 256], strides = [1, 1]} : vector<32x512xf32> to vector<32x256xf32>
    %112 = arith.mulf %110, %111 : vector<32x256xf32>
    %c0_40 = arith.constant 0 : index
    %c0_41 = arith.constant 0 : index
    %c0_42 = arith.constant 0 : index
    %113 = vector.load %arg7[%c0_40, %c0_41, %c0_42] : memref<2x256x128xbf16, #tpu.memory_space<vmem>>, vector<1x256x128xbf16>
    %114 = vector.shape_cast %113 : vector<1x256x128xbf16> to vector<256x128xbf16>
    %115 = arith.truncf %112 : vector<32x256xf32> to vector<32x256xbf16>
    %cst_43 = arith.constant dense<0.000000e+00> : vector<32x128xf32>
    %116 = tpu.matmul %115, %114, %cst_43 {dimension_numbers = #tpu.dot_dimension_numbers<[1], [0], [0], [1], [0, 0, 1, 1], [], []>} : vector<32x256xbf16>, vector<256x128xbf16>, vector<32x128xf32> -> vector<32x128xf32>
    %117 = arith.addf %85, %116 : vector<32x128xf32>
    %c1 = arith.constant 1 : index
    %c0_44 = arith.constant 0 : index
    %c0_45 = arith.constant 0 : index
    %118 = vector.load %arg2[%c1, %c0_44, %c0_45] : memref<2x1x128xf32, #tpu.memory_space<vmem>>, vector<1x1x128xf32>
    %119 = vector.shape_cast %118 : vector<1x1x128xf32> to vector<1x128xf32>
    %120 = arith.mulf %117, %117 : vector<32x128xf32>
    %cst_46 = arith.constant dense<0.000000e+00> : vector<32xf32>
    %121 = vector.multi_reduction <add>, %120, %cst_46 [1] : vector<32x128xf32> to vector<32xf32>
    %122 = vector.shape_cast %121 : vector<32xf32> to vector<32x1xf32>
    %cst_47 = arith.constant 1.280000e+02 : f32
    %123 = vector.broadcast %cst_47 : f32 to vector<32x1xf32>
    %124 = arith.divf %122, %123 : vector<32x1xf32>
    %cst_48 = arith.constant 9.99999997E-7 : f32
    %125 = vector.broadcast %cst_48 : f32 to vector<32x1xf32>
    %126 = arith.addf %124, %125 : vector<32x1xf32>
    %127 = math.rsqrt %126 : vector<32x1xf32>
    %128 = vector.broadcast %127 : vector<32x1xf32> to vector<32x128xf32>
    %129 = arith.mulf %117, %128 : vector<32x128xf32>
    %130 = vector.broadcast %119 : vector<1x128xf32> to vector<32x128xf32>
    %131 = arith.mulf %129, %130 : vector<32x128xf32>
    %c1_49 = arith.constant 1 : index
    %c0_50 = arith.constant 0 : index
    %c0_51 = arith.constant 0 : index
    %132 = vector.load %arg3[%c1_49, %c0_50, %c0_51] : memref<2x128x384xbf16, #tpu.memory_space<vmem>>, vector<1x128x384xbf16>
    %133 = vector.shape_cast %132 : vector<1x128x384xbf16> to vector<128x384xbf16>
    %134 = arith.truncf %131 : vector<32x128xf32> to vector<32x128xbf16>
    %cst_52 = arith.constant dense<0.000000e+00> : vector<32x384xf32>
    %135 = tpu.matmul %134, %133, %cst_52 {dimension_numbers = #tpu.dot_dimension_numbers<[1], [0], [0], [1], [0, 0, 1, 1], [], []>} : vector<32x128xbf16>, vector<128x384xbf16>, vector<32x384xf32> -> vector<32x384xf32>
    %136 = vector.extract_strided_slice %135 {offsets = [0, 0], sizes = [32, 128], strides = [1, 1]} : vector<32x384xf32> to vector<32x128xf32>
    %cst_53 = arith.constant 1.250000e-01 : f32
    %137 = vector.broadcast %cst_53 : f32 to vector<32x128xf32>
    %138 = arith.mulf %136, %137 : vector<32x128xf32>
    %139 = vector.extract_strided_slice %135 {offsets = [0, 128], sizes = [32, 128], strides = [1, 1]} : vector<32x384xf32> to vector<32x128xf32>
    %140 = vector.extract_strided_slice %135 {offsets = [0, 256], sizes = [32, 128], strides = [1, 1]} : vector<32x384xf32> to vector<32x128xf32>
    %c1_54 = arith.constant 1 : index
    %c0_55 = arith.constant 0 : index
    %c0_56 = arith.constant 0 : index
    %141 = vector.load %arg4[%c1_54, %c0_55, %c0_56] : memref<2x128x128xbf16, #tpu.memory_space<vmem>>, vector<1x128x128xbf16>
    %142 = vector.shape_cast %141 : vector<1x128x128xbf16> to vector<128x128xbf16>
    %cst_57 = arith.constant 0.000000e+00 : f32
    %143 = vector.broadcast %cst_57 : f32 to vector<32x128xf32>
    %144 = vector.extract_strided_slice %138 {offsets = [0, 0], sizes = [32, 64], strides = [1, 1]} : vector<32x128xf32> to vector<32x64xf32>
    %145 = arith.truncf %144 : vector<32x64xf32> to vector<32x64xbf16>
    %146 = vector.extract_strided_slice %139 {offsets = [0, 0], sizes = [32, 64], strides = [1, 1]} : vector<32x128xf32> to vector<32x64xf32>
    %147 = arith.truncf %146 : vector<32x64xf32> to vector<32x64xbf16>
    %148 = vector.extract_strided_slice %140 {offsets = [0, 0], sizes = [32, 64], strides = [1, 1]} : vector<32x128xf32> to vector<32x64xf32>
    %149 = arith.truncf %148 : vector<32x64xf32> to vector<32x64xbf16>
    %cst_58 = arith.constant dense<0.000000e+00> : vector<32x32xf32>
    %150 = tpu.matmul %145, %147, %cst_58 {dimension_numbers = #tpu.dot_dimension_numbers<[1], [1], [0], [0], [0, 0, 1, 0], [], []>} : vector<32x64xbf16>, vector<32x64xbf16>, vector<32x32xf32> -> vector<32x32xf32>
    %151 = arith.addf %150, %5 : vector<32x32xf32>
    %cst_59 = arith.constant dense<0xFF800000> : vector<32xf32>
    %152 = vector.multi_reduction <maximumf>, %151, %cst_59 [1] : vector<32x32xf32> to vector<32xf32>
    %153 = vector.shape_cast %152 : vector<32xf32> to vector<32x1xf32>
    %154 = vector.broadcast %153 : vector<32x1xf32> to vector<32x32xf32>
    %155 = arith.subf %151, %154 : vector<32x32xf32>
    %156 = math.exp %155 : vector<32x32xf32>
    %cst_60 = arith.constant dense<0.000000e+00> : vector<32xf32>
    %157 = vector.multi_reduction <add>, %156, %cst_60 [1] : vector<32x32xf32> to vector<32xf32>
    %158 = vector.shape_cast %157 : vector<32xf32> to vector<32x1xf32>
    %159 = tpu.reciprocal %158 {approx = true} : vector<32x1xf32> -> vector<32x1xf32>
    %160 = vector.broadcast %159 : vector<32x1xf32> to vector<32x32xf32>
    %161 = arith.mulf %156, %160 : vector<32x32xf32>
    %162 = arith.truncf %161 : vector<32x32xf32> to vector<32x32xbf16>
    %cst_61 = arith.constant dense<0.000000e+00> : vector<32x64xf32>
    %163 = tpu.matmul %162, %149, %cst_61 {dimension_numbers = #tpu.dot_dimension_numbers<[1], [0], [0], [1], [0, 0, 1, 1], [], []>} : vector<32x32xbf16>, vector<32x64xbf16>, vector<32x64xf32> -> vector<32x64xf32>
    %164 = arith.truncf %163 : vector<32x64xf32> to vector<32x64xbf16>
    %165 = vector.extract_strided_slice %142 {offsets = [0, 0], sizes = [64, 128], strides = [1, 1]} : vector<128x128xbf16> to vector<64x128xbf16>
    %cst_62 = arith.constant dense<0.000000e+00> : vector<32x128xf32>
    %166 = tpu.matmul %164, %165, %cst_62 {dimension_numbers = #tpu.dot_dimension_numbers<[1], [0], [0], [1], [0, 0, 1, 1], [], []>} : vector<32x64xbf16>, vector<64x128xbf16>, vector<32x128xf32> -> vector<32x128xf32>
    %167 = arith.addf %143, %166 : vector<32x128xf32>
    %168 = vector.extract_strided_slice %138 {offsets = [0, 64], sizes = [32, 64], strides = [1, 1]} : vector<32x128xf32> to vector<32x64xf32>
    %169 = arith.truncf %168 : vector<32x64xf32> to vector<32x64xbf16>
    %170 = vector.extract_strided_slice %139 {offsets = [0, 64], sizes = [32, 64], strides = [1, 1]} : vector<32x128xf32> to vector<32x64xf32>
    %171 = arith.truncf %170 : vector<32x64xf32> to vector<32x64xbf16>
    %172 = vector.extract_strided_slice %140 {offsets = [0, 64], sizes = [32, 64], strides = [1, 1]} : vector<32x128xf32> to vector<32x64xf32>
    %173 = arith.truncf %172 : vector<32x64xf32> to vector<32x64xbf16>
    %cst_63 = arith.constant dense<0.000000e+00> : vector<32x32xf32>
    %174 = tpu.matmul %169, %171, %cst_63 {dimension_numbers = #tpu.dot_dimension_numbers<[1], [1], [0], [0], [0, 0, 1, 0], [], []>} : vector<32x64xbf16>, vector<32x64xbf16>, vector<32x32xf32> -> vector<32x32xf32>
    %175 = arith.addf %174, %5 : vector<32x32xf32>
    %cst_64 = arith.constant dense<0xFF800000> : vector<32xf32>
    %176 = vector.multi_reduction <maximumf>, %175, %cst_64 [1] : vector<32x32xf32> to vector<32xf32>
    %177 = vector.shape_cast %176 : vector<32xf32> to vector<32x1xf32>
    %178 = vector.broadcast %177 : vector<32x1xf32> to vector<32x32xf32>
    %179 = arith.subf %175, %178 : vector<32x32xf32>
    %180 = math.exp %179 : vector<32x32xf32>
    %cst_65 = arith.constant dense<0.000000e+00> : vector<32xf32>
    %181 = vector.multi_reduction <add>, %180, %cst_65 [1] : vector<32x32xf32> to vector<32xf32>
    %182 = vector.shape_cast %181 : vector<32xf32> to vector<32x1xf32>
    %183 = tpu.reciprocal %182 {approx = true} : vector<32x1xf32> -> vector<32x1xf32>
    %184 = vector.broadcast %183 : vector<32x1xf32> to vector<32x32xf32>
    %185 = arith.mulf %180, %184 : vector<32x32xf32>
    %186 = arith.truncf %185 : vector<32x32xf32> to vector<32x32xbf16>
    %cst_66 = arith.constant dense<0.000000e+00> : vector<32x64xf32>
    %187 = tpu.matmul %186, %173, %cst_66 {dimension_numbers = #tpu.dot_dimension_numbers<[1], [0], [0], [1], [0, 0, 1, 1], [], []>} : vector<32x32xbf16>, vector<32x64xbf16>, vector<32x64xf32> -> vector<32x64xf32>
    %188 = arith.truncf %187 : vector<32x64xf32> to vector<32x64xbf16>
    %189 = vector.extract_strided_slice %142 {offsets = [64, 0], sizes = [64, 128], strides = [1, 1]} : vector<128x128xbf16> to vector<64x128xbf16>
    %cst_67 = arith.constant dense<0.000000e+00> : vector<32x128xf32>
    %190 = tpu.matmul %188, %189, %cst_67 {dimension_numbers = #tpu.dot_dimension_numbers<[1], [0], [0], [1], [0, 0, 1, 1], [], []>} : vector<32x64xbf16>, vector<64x128xbf16>, vector<32x128xf32> -> vector<32x128xf32>
    %191 = arith.addf %167, %190 : vector<32x128xf32>
    %192 = arith.addf %117, %191 : vector<32x128xf32>
    %c1_68 = arith.constant 1 : index
    %c0_69 = arith.constant 0 : index
    %c0_70 = arith.constant 0 : index
    %193 = vector.load %arg5[%c1_68, %c0_69, %c0_70] : memref<2x1x128xf32, #tpu.memory_space<vmem>>, vector<1x1x128xf32>
    %194 = vector.shape_cast %193 : vector<1x1x128xf32> to vector<1x128xf32>
    %195 = arith.mulf %192, %192 : vector<32x128xf32>
    %cst_71 = arith.constant dense<0.000000e+00> : vector<32xf32>
    %196 = vector.multi_reduction <add>, %195, %cst_71 [1] : vector<32x128xf32> to vector<32xf32>
    %197 = vector.shape_cast %196 : vector<32xf32> to vector<32x1xf32>
    %cst_72 = arith.constant 1.280000e+02 : f32
    %198 = vector.broadcast %cst_72 : f32 to vector<32x1xf32>
    %199 = arith.divf %197, %198 : vector<32x1xf32>
    %cst_73 = arith.constant 9.99999997E-7 : f32
    %200 = vector.broadcast %cst_73 : f32 to vector<32x1xf32>
    %201 = arith.addf %199, %200 : vector<32x1xf32>
    %202 = math.rsqrt %201 : vector<32x1xf32>
    %203 = vector.broadcast %202 : vector<32x1xf32> to vector<32x128xf32>
    %204 = arith.mulf %192, %203 : vector<32x128xf32>
    %205 = vector.broadcast %194 : vector<1x128xf32> to vector<32x128xf32>
    %206 = arith.mulf %204, %205 : vector<32x128xf32>
    %c1_74 = arith.constant 1 : index
    %c0_75 = arith.constant 0 : index
    %c0_76 = arith.constant 0 : index
    %207 = vector.load %arg6[%c1_74, %c0_75, %c0_76] : memref<2x128x512xbf16, #tpu.memory_space<vmem>>, vector<1x128x512xbf16>
    %208 = vector.shape_cast %207 : vector<1x128x512xbf16> to vector<128x512xbf16>
    %209 = arith.truncf %206 : vector<32x128xf32> to vector<32x128xbf16>
    %cst_77 = arith.constant dense<0.000000e+00> : vector<32x512xf32>
    %210 = tpu.matmul %209, %208, %cst_77 {dimension_numbers = #tpu.dot_dimension_numbers<[1], [0], [0], [1], [0, 0, 1, 1], [], []>} : vector<32x128xbf16>, vector<128x512xbf16>, vector<32x512xf32> -> vector<32x512xf32>
    %211 = vector.extract_strided_slice %210 {offsets = [0, 0], sizes = [32, 256], strides = [1, 1]} : vector<32x512xf32> to vector<32x256xf32>
    %212 = arith.negf %211 : vector<32x256xf32>
    %213 = math.exp %212 : vector<32x256xf32>
    %cst_78 = arith.constant 1.000000e+00 : f32
    %214 = vector.broadcast %cst_78 : f32 to vector<32x256xf32>
    %215 = arith.addf %214, %213 : vector<32x256xf32>
    %216 = arith.divf %214, %215 : vector<32x256xf32>
    %217 = arith.mulf %211, %216 : vector<32x256xf32>
    %218 = vector.extract_strided_slice %210 {offsets = [0, 256], sizes = [32, 256], strides = [1, 1]} : vector<32x512xf32> to vector<32x256xf32>
    %219 = arith.mulf %217, %218 : vector<32x256xf32>
    %c1_79 = arith.constant 1 : index
    %c0_80 = arith.constant 0 : index
    %c0_81 = arith.constant 0 : index
    %220 = vector.load %arg7[%c1_79, %c0_80, %c0_81] : memref<2x256x128xbf16, #tpu.memory_space<vmem>>, vector<1x256x128xbf16>
    %221 = vector.shape_cast %220 : vector<1x256x128xbf16> to vector<256x128xbf16>
    %222 = arith.truncf %219 : vector<32x256xf32> to vector<32x256xbf16>
    %cst_82 = arith.constant dense<0.000000e+00> : vector<32x128xf32>
    %223 = tpu.matmul %222, %221, %cst_82 {dimension_numbers = #tpu.dot_dimension_numbers<[1], [0], [0], [1], [0, 0, 1, 1], [], []>} : vector<32x256xbf16>, vector<256x128xbf16>, vector<32x128xf32> -> vector<32x128xf32>
    %224 = arith.addf %192, %223 : vector<32x128xf32>
    %c0_83 = arith.constant 0 : index
    %c0_84 = arith.constant 0 : index
    %225 = vector.load %arg8[%c0_83, %c0_84] : memref<1x128xf32, #tpu.memory_space<vmem>>, vector<1x128xf32>
    %226 = arith.mulf %224, %224 : vector<32x128xf32>
    %cst_85 = arith.constant dense<0.000000e+00> : vector<32xf32>
    %227 = vector.multi_reduction <add>, %226, %cst_85 [1] : vector<32x128xf32> to vector<32xf32>
    %228 = vector.shape_cast %227 : vector<32xf32> to vector<32x1xf32>
    %cst_86 = arith.constant 1.280000e+02 : f32
    %229 = vector.broadcast %cst_86 : f32 to vector<32x1xf32>
    %230 = arith.divf %228, %229 : vector<32x1xf32>
    %cst_87 = arith.constant 9.99999997E-7 : f32
    %231 = vector.broadcast %cst_87 : f32 to vector<32x1xf32>
    %232 = arith.addf %230, %231 : vector<32x1xf32>
    %233 = math.rsqrt %232 : vector<32x1xf32>
    %234 = vector.broadcast %233 : vector<32x1xf32> to vector<32x128xf32>
    %235 = arith.mulf %224, %234 : vector<32x128xf32>
    %236 = vector.broadcast %225 : vector<1x128xf32> to vector<32x128xf32>
    %237 = arith.mulf %235, %236 : vector<32x128xf32>
    %c0_88 = arith.constant 0 : index
    %c0_89 = arith.constant 0 : index
    %238 = vector.load %arg9[%c0_88, %c0_89] : memref<32x128xf32, #tpu.memory_space<vmem>>, vector<32x128xf32>
    tpu.vector_store %arg9[%c0_88, %c0_89], %237 {strides = array<i32>} : memref<32x128xf32, #tpu.memory_space<vmem>>, vector<32x128xf32>,
    return
  }
}

</mosaic_0001>

<llo_original>
// kernel: tile.9
$region0: #{tile.9}
  %s0 = inlined_call_operand.vmem [shape: f32[5,5,128], index: 0, kind: input, shape index: {}]
  %s1 = inlined_call_operand.vmem [shape: f32[25,128], index: 1, kind: output, shape index: {}]
  %v2 = vld [vmem:[%s0] sm:$0x1f]
  %3 = vst [vmem:[%s1] sm:$0x1f] %v2
  %s4 = scalar_lea.vmem %s0, 8
  %v5 = vld [vmem:[%s4] sm:$0x1f]
  %s6 = scalar_lea.vmem %s1, 5
  %7 = vst [vmem:[%s6] sm:$0x1f] %v5
  %s8 = scalar_lea.vmem %s0, 16
  %v9 = vld [vmem:[%s8] sm:$0x1f]
  %s10 = scalar_lea.vmem %s1, 10
  %11 = vst [vmem:[%s10] sm:$0x1f] %v9
  %s12 = scalar_lea.vmem %s0, 24
  %v13 = vld [vmem:[%s12] sm:$0x1f]
  %s14 = scalar_lea.vmem %s1, 15
  %15 = vst [vmem:[%s14] sm:$0x1f] %v13
  %s16 = scalar_lea.vmem %s0, 32
  %v17 = vld [vmem:[%s16] sm:$0x1f]
  %s18 = scalar_lea.vmem %s1, 20
  %19 = vst [vmem:[%s18] sm:$0x1f] %v17

// kernel: llava_next_forward.3
$region0: #{llava_next_forward.3}
  #allocation0 [shape = 'u32[]', space=smem, size = 0x4, offset = 0x4, fixed_abs, tag = 'smem constant byte address 0x4 - core index']
  #allocation1 [shape = 'u32[144,128]{1,0:T(1,128)}', space=vmem, size = 0x12000, scoped, tag = 'internal scratch']
  %s0 = inlined_call_operand.vmem [shape: bf16[32,128], index: 0, kind: input, shape index: {}]
  %s1 = inlined_call_operand.vmem [shape: bf16[32,128], index: 1, kind: input, shape index: {}]
  %s2 = inlined_call_operand.vmem [shape: f32[2,1,128], index: 2, kind: input, shape index: {}]
  %s3 = inlined_call_operand.vmem [shape: bf16[2,128,384], index: 3, kind: input, shape index: {}]
  %s4 = inlined_call_operand.vmem [shape: bf16[2,128,128], index: 4, kind: input, shape index: {}]
  %s5 = inlined_call_operand.vmem [shape: f32[2,1,128], index: 5, kind: input, shape index: {}]
  %s6 = inlined_call_operand.vmem [shape: bf16[2,128,512], index: 6, kind: input, shape index: {}]
  %s7 = inlined_call_operand.vmem [shape: bf16[2,256,128], index: 7, kind: input, shape index: {}]
  %s8 = inlined_call_operand.vmem [shape: f32[1,128], index: 8, kind: input, shape index: {}]
  %s9 = inlined_call_operand.hbm [shape: f32[32,128], index: 9, kind: output, shape index: {}]
  %s10 = sld [smem:[#allocation0]]
  $region46: #{llava_next_forward.3} parent=0
    _
  %s12 = ssub.s32 1, %s10
  %s13 = scalar_select 0, %s12, %s10
  $region1: #{llava_next_forward.3} parent=0
    #allocation2 [shape = 'u8[16384]{0}', space=vmem, size = 0x4000, scoped, tag = 'output window, operand 0, single buffered']
    #allocation3 [shape = 's32[1]{0}', space=sflag, size = 0x4, scoped, tag = 'scoped memory for llava_next_forward.3']
    %14 = vsyncpa [#allocation3], 0
    // Predicated region
    $region2: #{llava_next_forward.3} parent=1 // pred_check
      _
    $region3: #{llava_next_forward.3} parent=1 // pred_check_branch
      %16 = sbr.rel (0) target = $region5
    $region4: #{llava_next_forward.3} parent=1 // pred_region
      _
    $region5: #{llava_next_forward.3} parent=1 // pred_fallthru
      _
    // Predicated region
    $region6: #{llava_next_forward.3} parent=1 // pred_check
      _
    $region7: #{llava_next_forward.3} parent=1 // pred_check_branch
      %18 = sbr.rel (0) target = $region9
    $region8: #{llava_next_forward.3} parent=1 // pred_region
      _
    $region9: #{llava_next_forward.3} parent=1 // pred_fallthru
      _
    // Predicated region
    $region10: #{llava_next_forward.3} parent=1 // pred_check
      _
    $region11: #{llava_next_forward.3} parent=1 // pred_check_branch
      %20 = sbr.rel (0) target = $region13
    $region12: #{llava_next_forward.3} parent=1 // pred_region
      _
    $region13: #{llava_next_forward.3} parent=1 // pred_fallthru
      _
    // Predicated region
    $region14: #{llava_next_forward.3} parent=1 // pred_check
      _
    $region15: #{llava_next_forward.3} parent=1 // pred_check_branch
      %22 = sbr.rel (0) target = $region17
    $region16: #{llava_next_forward.3} parent=1 // pred_region
      _
    $region17: #{llava_next_forward.3} parent=1 // pred_fallthru
      _
    // Predicated region
    $region18: #{llava_next_forward.3} parent=1 // pred_check
      _
    $region19: #{llava_next_forward.3} parent=1 // pred_check_branch
      %24 = sbr.rel (0) target = $region21
    $region20: #{llava_next_forward.3} parent=1 // pred_region
      _
    $region21: #{llava_next_forward.3} parent=1 // pred_fallthru
      _
    // Predicated region
    $region22: #{llava_next_forward.3} parent=1 // pred_check
      _
    $region23: #{llava_next_forward.3} parent=1 // pred_check_branch
      %26 = sbr.rel (0) target = $region25
    $region24: #{llava_next_forward.3} parent=1 // pred_region
      _
    $region25: #{llava_next_forward.3} parent=1 // pred_fallthru
      _
    // Predicated region
    $region26: #{llava_next_forward.3} parent=1 // pred_check
      _
    $region27: #{llava_next_forward.3} parent=1 // pred_check_branch
      %28 = sbr.rel (0) target = $region29
    $region28: #{llava_next_forward.3} parent=1 // pred_region
      _
    $region29: #{llava_next_forward.3} parent=1 // pred_fallthru
      _
    // Predicated region
    $region30: #{llava_next_forward.3} parent=1 // pred_check
      _
    $region31: #{llava_next_forward.3} parent=1 // pred_check_branch
      %30 = sbr.rel (0) target = $region33
    $region32: #{llava_next_forward.3} parent=1 // pred_region
      _
    $region33: #{llava_next_forward.3} parent=1 // pred_fallthru
      _
    // Predicated region
    $region34: #{llava_next_forward.3} parent=1 // pred_check
      _
    $region35: #{llava_next_forward.3} parent=1 // pred_check_branch
      %32 = sbr.rel (0) target = $region37
    $region36: #{llava_next_forward.3} parent=1 // pred_region
      _
    $region37: #{llava_next_forward.3} parent=1 // pred_fallthru
      _
    %v34 = vlaneseq
    %v35 = vshrl.u32 %v34, 7
    %v36 = vadd.s32 %v35, 8
    %v37 = vadd.s32 %v35, 16
    %v38 = vadd.s32 %v35, 24
    %v39 = vlaneseq
    %v40 = vand.u32 %v39, 127
    %vm41 = vcmp.le.s32.totalorder %v40, %v35
    %vm42 = vcmp.le.s32.totalorder %v40, %v36
    %vm43 = vcmp.le.s32.totalorder %v40, %v37
    %vm44 = vcmp.le.s32.totalorder %v40, %v38
    %v45 = vsel %vm41, 0.0, -1e+30
    %v46 = vsel %vm42, 0.0, -1e+30
    %v47 = vsel %vm43, 0.0, -1e+30
    %v48 = vsel %vm44, 0.0, -1e+30
    %v49 = vld [vmem:[%s0] sm:$0xf]
    %v50 = vld [vmem:[%s0 + $0x4] sm:$0xf]
    %v51 = vld [vmem:[%s0 + $0x8] sm:$0xf]
    %v52 = vld [vmem:[%s0 + $0xc] sm:$0xf]
    %v53 = vunpack.c.l.bf16 %v49
    %v54 = vunpack.c.l.bf16 %v50
    %v55 = vunpack.c.l.bf16 %v51
    %v56 = vunpack.c.l.bf16 %v52
    %v57 = vld [vmem:[%s1] sm:$0xf]
    %v58 = vld [vmem:[%s1 + $0x4] sm:$0xf]
    %v59 = vld [vmem:[%s1 + $0x8] sm:$0xf]
    %v60 = vld [vmem:[%s1 + $0xc] sm:$0xf]
    %v61 = vunpack.c.l.bf16 %v57
    %v62 = vunpack.c.l.bf16 %v58
    %v63 = vunpack.c.l.bf16 %v59
    %v64 = vunpack.c.l.bf16 %v60
    %v65 = vadd.f32 %v53, %v61
    %v66 = vadd.f32 %v54, %v62
    %v67 = vadd.f32 %v55, %v63
    %v68 = vadd.f32 %v56, %v64
    %v69 = vld [vmem:[%s2] sm:$0x1]
    %v70 = vmul.f32 %v65, %v65
    %v71 = vmul.f32 %v66, %v66
    %v72 = vmul.f32 %v67, %v67
    %v73 = vmul.f32 %v68, %v68
    %74 = vadd.xlane.f32.xlu0 %v70
    %v75 = vpop.xlane.xlu0 %74
    %76 = vadd.xlane.f32.xlu0 %v71
    %v77 = vpop.xlane.xlu0 %76
    %78 = vadd.xlane.f32.xlu0 %v72
    %v79 = vpop.xlane.xlu0 %78
    %80 = vadd.xlane.f32.xlu0 %v73
    %v81 = vpop.xlane.xlu0 %80
    %v82 = vrcp.pop 128.0
    %v83 = vmul.f32 %v75, %v82
    %v84 = vmul.f32 %v77, %v82
    %v85 = vmul.f32 %v79, %v82
    %v86 = vmul.f32 %v81, %v82
    %v87 = vadd.f32 %v83, 1e-06
    %v88 = vadd.f32 %v84, 1e-06
    %v89 = vadd.f32 %v85, 1e-06
    %v90 = vadd.f32 %v86, 1e-06
    %v91 = vrsqrt.pop %v87
    %v92 = vrsqrt.pop %v88
    %v93 = vrsqrt.pop %v89
    %v94 = vrsqrt.pop %v90
    %v95 = vmul.f32 %v65, %v91
    %v96 = vmul.f32 %v66, %v92
    %v97 = vmul.f32 %v67, %v93
    %v98 = vmul.f32 %v68, %v94
    %v100 = vlaneseq
    %v101 = vshrl.u32 %v100, 7
    %v102 = vsub.s32 0, %v101
    %v103 = vrot.slane %v69, %v102
    %v105 = vmul.f32 %v95, %v103
    %v106 = vmul.f32 %v96, %v103
    %v107 = vmul.f32 %v97, %v103
    %v108 = vmul.f32 %v98, %v103
    %v109 = vld [vmem:[%s3] sm:$0xff]
    %v110 = vld [vmem:[%s3 + $0x8] sm:$0xf]
    %v111 = vld [vmem:[%s3 + $0xc] sm:$0xff]
    %v112 = vld [vmem:[%s3 + $0x14] sm:$0xf]
    %v113 = vld [vmem:[%s3 + $0x18] sm:$0xff]
    %v114 = vld [vmem:[%s3 + $0x20] sm:$0xf]
    %v115 = vld [vmem:[%s3 + $0x24] sm:$0xff]
    %v116 = vld [vmem:[%s3 + $0x2c] sm:$0xf]
    %v117 = vld [vmem:[%s3 + $0x30] sm:$0xff]
    %v118 = vld [vmem:[%s3 + $0x38] sm:$0xf]
    %v119 = vld [vmem:[%s3 + $0x3c] sm:$0xff]
    %v120 = vld [vmem:[%s3 + $0x44] sm:$0xf]
    %v121 = vld [vmem:[%s3 + $0x48] sm:$0xff]
    %v122 = vld [vmem:[%s3 + $0x50] sm:$0xf]
    %v123 = vld [vmem:[%s3 + $0x54] sm:$0xff]
    %v124 = vld [vmem:[%s3 + $0x5c] sm:$0xf]
    %v125 = vld [vmem:[%s3 + $0x60] sm:$0xff]
    %v126 = vld [vmem:[%s3 + $0x68] sm:$0xf]
    %v127 = vld [vmem:[%s3 + $0x6c] sm:$0xff]
    %v128 = vld [vmem:[%s3 + $0x74] sm:$0xf]
    %v129 = vld [vmem:[%s3 + $0x78] sm:$0xff]
    %v130 = vld [vmem:[%s3 + $0x80] sm:$0xf]
    %v131 = vld [vmem:[%s3 + $0x84] sm:$0xff]
    %v132 = vld [vmem:[%s3 + $0x8c] sm:$0xf]
    %v133 = vld [vmem:[%s3 + $0x90] sm:$0xff]
    %v134 = vld [vmem:[%s3 + $0x98] sm:$0xf]
    %v135 = vld [vmem:[%s3 + $0x9c] sm:$0xff]
    %v136 = vld [vmem:[%s3 + $0xa4] sm:$0xf]
    %v137 = vld [vmem:[%s3 + $0xa8] sm:$0xff]
    %v138 = vld [vmem:[%s3 + $0xb0] sm:$0xf]
    %v139 = vld [vmem:[%s3 + $0xb4] sm:$0xff]
    %v140 = vld [vmem:[%s3 + $0xbc] sm:$0xf]
    %v141 = vpack.c.bf16 %v106, %v105
    %v142 = vpack.c.bf16 %v108, %v107
    %v175 = vunpack.c.l.b16 %v109
    %v176 = vunpack.c.h.b16 %v109
    %v177 = vunpack.c.l.b16 %v110
    %v178 = vunpack.c.l.b16 %v111
    %v179 = vunpack.c.h.b16 %v111
    %v180 = vunpack.c.l.b16 %v112
    %v181 = vunpack.c.l.b16 %v113
    %v182 = vunpack.c.h.b16 %v113
    %v183 = vunpack.c.l.b16 %v114
    %v184 = vunpack.c.l.b16 %v115
    %v185 = vunpack.c.h.b16 %v115
    %v186 = vunpack.c.l.b16 %v116
    %v187 = vunpack.c.l.b16 %v117
    %v188 = vunpack.c.h.b16 %v117
    %v189 = vunpack.c.l.b16 %v118
    %v190 = vunpack.c.l.b16 %v119
    %v191 = vunpack.c.h.b16 %v119
    %v192 = vunpack.c.l.b16 %v120
    %v193 = vunpack.c.l.b16 %v121
    %v194 = vunpack.c.h.b16 %v121
    %v195 = vunpack.c.l.b16 %v122
    %v196 = vunpack.c.l.b16 %v123
    %v197 = vunpack.c.h.b16 %v123
    %v198 = vunpack.c.l.b16 %v124
    %v199 = vunpack.c.l.b16 %v125
    %v200 = vunpack.c.h.b16 %v125
    %v201 = vunpack.c.l.b16 %v126
    %v202 = vunpack.c.l.b16 %v127
    %v203 = vunpack.c.h.b16 %v127
    %v204 = vunpack.c.l.b16 %v128
    %v205 = vunpack.c.l.b16 %v129
    %v206 = vunpack.c.h.b16 %v129
    %v207 = vunpack.c.l.b16 %v130
    %v208 = vunpack.c.l.b16 %v131
    %v209 = vunpack.c.h.b16 %v131
    %v210 = vunpack.c.l.b16 %v132
    %v211 = vunpack.c.l.b16 %v133
    %v212 = vunpack.c.h.b16 %v133
    %v213 = vunpack.c.l.b16 %v134
    %v214 = vunpack.c.l.b16 %v135
    %v215 = vunpack.c.h.b16 %v135
    %v216 = vunpack.c.l.b16 %v136
    %v217 = vunpack.c.l.b16 %v137
    %v218 = vunpack.c.h.b16 %v137
    %v219 = vunpack.c.l.b16 %v138
    %v220 = vunpack.c.l.b16 %v139
    %v221 = vunpack.c.h.b16 %v139
    %v222 = vunpack.c.l.b16 %v140
    %v223 = vpack.c.b16 %v178, %v175
    %v224 = vpack.c.b16 %v179, %v176
    %v225 = vpack.c.b16 %v180, %v177
    %v226 = vpack.c.b16 %v184, %v181
    %v227 = vpack.c.b16 %v185, %v182
    %v228 = vpack.c.b16 %v186, %v183
    %v229 = vpack.c.b16 %v190, %v187
    %v230 = vpack.c.b16 %v191, %v188
    %v231 = vpack.c.b16 %v192, %v189
    %v232 = vpack.c.b16 %v196, %v193
    %v233 = vpack.c.b16 %v197, %v194
    %v234 = vpack.c.b16 %v198, %v195
    %v235 = vpack.c.b16 %v202, %v199
    %v236 = vpack.c.b16 %v203, %v200
    %v237 = vpack.c.b16 %v204, %v201
    %v238 = vpack.c.b16 %v208, %v205
    %v239 = vpack.c.b16 %v209, %v206
    %v240 = vpack.c.b16 %v210, %v207
    %v241 = vpack.c.b16 %v214, %v211
    %v242 = vpack.c.b16 %v215, %v212
    %v243 = vpack.c.b16 %v216, %v213
    %v244 = vpack.c.b16 %v220, %v217
    %v245 = vpack.c.b16 %v221, %v218
    %v246 = vpack.c.b16 %v222, %v219
    %271 = vmatprep.subr.bf16.mxu0 %v224
    %272 = vmatpush1.bf16.msra.mxu0 %v223
    %273 = vmatprep.subr.bf16.mxu0 %v227
    %274 = vmatpush1.bf16.msra.mxu0 %v226
    %275 = vmatprep.subr.bf16.mxu0 %v230
    %276 = vmatpush1.bf16.msra.mxu0 %v229
    %277 = vmatprep.subr.bf16.mxu0 %v233
    %278 = vmatpush1.bf16.msra.mxu0 %v232
    %279 = vmatprep.subr.bf16.mxu0 %v236
    %280 = vmatpush1.bf16.msra.mxu0 %v235
    %281 = vmatprep.subr.bf16.mxu0 %v239
    %282 = vmatpush1.bf16.msra.mxu0 %v238
    %283 = vmatprep.subr.bf16.mxu0 %v242
    %284 = vmatpush1.bf16.msra.mxu0 %v241
    %285 = vmatprep.subr.bf16.mxu0 %v245
    %286 = vmatpush1.bf16.msra.mxu0 %v244
    %287 = vmatprep.subr.bf16.mxu0 0
    %288 = vmatpush1.bf16.msra.mxu0 0
    %289 = vmatprep.subr.bf16.mxu0 0
    %290 = vmatpush1.bf16.msra.mxu0 0
    %291 = vmatprep.subr.bf16.mxu0 0
    %292 = vmatpush1.bf16.msra.mxu0 0
    %293 = vmatprep.subr.bf16.mxu0 0
    %294 = vmatpush1.bf16.msra.mxu0 0
    %295 = vmatprep.subr.bf16.mxu0 0
    %296 = vmatpush1.bf16.msra.mxu0 0
    %297 = vmatprep.subr.bf16.mxu0 0
    %298 = vmatpush1.bf16.msra.mxu0 0
    %299 = vmatprep.subr.bf16.mxu0 0
    %300 = vmatpush1.bf16.msra.mxu0 0
    %301 = vmatprep.subr.bf16.mxu0 0
    %302 = vmatpush1.bf16.msra.mxu0 0
    %303 = vmatprep.mubr.bf16.mxu0 0
    %304 = vmatmul.mubr.bf16.gmra.mrb[0].mxu0 %v141
    %v305 = vpop.f32.mrb[0].mxu0
    %v306 = vadd.f32 0.0, %v305
    %v307 = vpop.f32.mrb[0].mxu0
    %v308 = vadd.f32 0.0, %v307
    %v309 = vpop.f32.mrb[0].mxu0
    %v310 = vadd.f32 0.0, %v309
    %v311 = vpop.f32.mrb[0].mxu0
    %v312 = vadd.f32 0.0, %v311
    %313 = vmatprep.mubr.bf16.mxu0 0
    %314 = vmatmul.mubr.bf16.gmra.mrb[0].mxu0 %v142
    %v315 = vpop.f32.mrb[0].mxu0
    %v316 = vadd.f32 0.0, %v315
    %v317 = vpop.f32.mrb[0].mxu0
    %v318 = vadd.f32 0.0, %v317
    %v319 = vpop.f32.mrb[0].mxu0
    %v320 = vadd.f32 0.0, %v319
    %v321 = vpop.f32.mrb[0].mxu0
    %v322 = vadd.f32 0.0, %v321
    %323 = vdwg.mxu0
    %324 = vmatprep.subr.bf16.mxu0 0
    %325 = vmatpush1.bf16.msra.mxu0 %v225
    %326 = vmatprep.subr.bf16.mxu0 0
    %327 = vmatpush1.bf16.msra.mxu0 %v228
    %328 = vmatprep.subr.bf16.mxu0 0
    %329 = vmatpush1.bf16.msra.mxu0 %v231
    %330 = vmatprep.subr.bf16.mxu0 0
    %331 = vmatpush1.bf16.msra.mxu0 %v234
    %332 = vmatprep.subr.bf16.mxu0 0
    %333 = vmatpush1.bf16.msra.mxu0 %v237
    %334 = vmatprep.subr.bf16.mxu0 0
    %335 = vmatpush1.bf16.msra.mxu0 %v240
    %336 = vmatprep.subr.bf16.mxu0 0
    %337 = vmatpush1.bf16.msra.mxu0 %v243
    %338 = vmatprep.subr.bf16.mxu0 0
    %339 = vmatpush1.bf16.msra.mxu0 %v246
    %340 = vmatprep.subr.bf16.mxu0 0
    %341 = vmatpush1.bf16.msra.mxu0 0
    %342 = vmatprep.subr.bf16.mxu0 0
    %343 = vmatpush1.bf16.msra.mxu0 0
    %344 = vmatprep.subr.bf16.mxu0 0
    %345 = vmatpush1.bf16.msra.mxu0 0
    %346 = vmatprep.subr.bf16.mxu0 0
    %347 = vmatpush1.bf16.msra.mxu0 0
    %348 = vmatprep.subr.bf16.mxu0 0
    %349 = vmatpush1.bf16.msra.mxu0 0
    %350 = vmatprep.subr.bf16.mxu0 0
    %351 = vmatpush1.bf16.msra.mxu0 0
    %352 = vmatprep.subr.bf16.mxu0 0
    %353 = vmatpush1.bf16.msra.mxu0 0
    %354 = vmatprep.subr.bf16.mxu0 0
    %355 = vmatpush1.bf16.msra.mxu0 0
    %356 = vmatprep.mubr.bf16.mxu0 0
    %357 = vmatmul.mubr.bf16.gmra.mrb[0].mxu0 %v141
    %v358 = vpop.f32.mrb[0].mxu0
    %v359 = vadd.f32 0.0, %v358
    %v360 = vpop.f32.mrb[0].mxu0
    %v361 = vpop.f32.mrb[0].mxu0
    %v362 = vadd.f32 0.0, %v361
    %v363 = vpop.f32.mrb[0].mxu0
    %364 = vmatprep.mubr.bf16.mxu0 0
    %365 = vmatmul.mubr.bf16.gmra.mrb[0].mxu0 %v142
    %v366 = vpop.f32.mrb[0].mxu0
    %v367 = vadd.f32 0.0, %v366
    %v368 = vpop.f32.mrb[0].mxu0
    %v369 = vpop.f32.mrb[0].mxu0
    %v370 = vadd.f32 0.0, %v369
    %v371 = vpop.f32.mrb[0].mxu0
    %372 = vdwg.mxu0
    %v373 = vmul.f32 %v306, 0.125
    %v374 = vmul.f32 %v310, 0.125
    %v375 = vmul.f32 %v316, 0.125
    %v376 = vmul.f32 %v320, 0.125
    %v377 = vld [vmem:[%s4] sm:$0xf]
    %v378 = vld [vmem:[%s4 + $0x4] sm:$0xf]
    %v379 = vld [vmem:[%s4 + $0x8] sm:$0xf]
    %v380 = vld [vmem:[%s4 + $0xc] sm:$0xf]
    %v381 = vld [vmem:[%s4 + $0x10] sm:$0xf]
    %v382 = vld [vmem:[%s4 + $0x14] sm:$0xf]
    %v383 = vld [vmem:[%s4 + $0x18] sm:$0xf]
    %v384 = vld [vmem:[%s4 + $0x1c] sm:$0xf]
    %v385 = vld [vmem:[%s4 + $0x20] sm:$0xf]
    %v386 = vld [vmem:[%s4 + $0x24] sm:$0xf]
    %v387 = vld [vmem:[%s4 + $0x28] sm:$0xf]
    %v388 = vld [vmem:[%s4 + $0x2c] sm:$0xf]
    %v389 = vld [vmem:[%s4 + $0x30] sm:$0xf]
    %v390 = vld [vmem:[%s4 + $0x34] sm:$0xf]
    %v391 = vld [vmem:[%s4 + $0x38] sm:$0xf]
    %v392 = vld [vmem:[%s4 + $0x3c] sm:$0xf]
    %v393 = vpack.c.bf16 %v374, %v373
    %v394 = vpack.c.bf16 %v376, %v375
    %v395 = vpack.c.bf16 %v312, %v308
    %v396 = vpack.c.bf16 %v322, %v318
    %v397 = vpack.c.bf16 %v362, %v359
    %v398 = vpack.c.bf16 %v370, %v367
    %vm399 = vcmask 523264
    %v401 = vsel %vm399, %v393, 0
    %v404 = vsel %vm399, %v394, 0
    %v407 = vsel %vm399, %v395, 0
    %v410 = vsel %vm399, %v396, 0
    %412 = vmatprep.subr.bf16.mxu0 0
    %413 = vmatpush1.bf16.xpose.msra.mxu0 %v407
    %414 = vmatprep.subr.bf16.mxu0 0
    %415 = vmatpush1.bf16.xpose.msra.mxu0 %v410
    %416 = vmatprep.subr.bf16.mxu0 0
    %417 = vmatpush1.bf16.xpose.msra.mxu0 0
    %418 = vmatprep.subr.bf16.mxu0 0
    %419 = vmatpush1.bf16.xpose.msra.mxu0 0
    %420 = vmatprep.subr.bf16.mxu0 0
    %421 = vmatpush1.bf16.xpose.msra.mxu0 0
    %422 = vmatprep.subr.bf16.mxu0 0
    %423 = vmatpush1.bf16.xpose.msra.mxu0 0
    %424 = vmatprep.subr.bf16.mxu0 0
    %425 = vmatpush1.bf16.xpose.msra.mxu0 0
    %426 = vmatprep.subr.bf16.mxu0 0
    %427 = vmatpush1.bf16.xpose.msra.mxu0 0
    %428 = vmatprep.subr.bf16.mxu0 0
    %429 = vmatpush1.bf16.xpose.msra.mxu0 0
    %430 = vmatprep.subr.bf16.mxu0 0
    %431 = vmatpush1.bf16.xpose.msra.mxu0 0
    %432 = vmatprep.subr.bf16.mxu0 0
    %433 = vmatpush1.bf16.xpose.msra.mxu0 0
    %434 = vmatprep.subr.bf16.mxu0 0
    %435 = vmatpush1.bf16.xpose.msra.mxu0 0
    %436 = vmatprep.subr.bf16.mxu0 0
    %437 = vmatpush1.bf16.xpose.msra.mxu0 0
    %438 = vmatprep.subr.bf16.mxu0 0
    %439 = vmatpush1.bf16.xpose.msra.mxu0 0
    %440 = vmatprep.subr.bf16.mxu0 0
    %441 = vmatpush1.bf16.xpose.msra.mxu0 0
    %442 = vmatprep.subr.bf16.mxu0 0
    %443 = vmatpush1.bf16.xpose.msra.mxu0 0
    %444 = vmatprep.mubr.bf16.mxu0 0
    %445 = vmatmul.mubr.bf16.gmra.mrb[0].mxu0 %v401
    %v446 = vpop.f32.mrb[0].mxu0
    %v447 = vadd.f32 %v45, %v446
    %v448 = vpop.f32.mrb[0].mxu0
    %v449 = vpop.f32.mrb[0].mxu0
    %v450 = vadd.f32 %v46, %v449
    %v451 = vpop.f32.mrb[0].mxu0
    %452 = vmatprep.mubr.bf16.mxu0 0
    %453 = vmatmul.mubr.bf16.gmra.mrb[0].mxu0 %v404
    %v454 = vpop.f32.mrb[0].mxu0
    %v455 = vadd.f32 %v47, %v454
    %v456 = vpop.f32.mrb[0].mxu0
    %v457 = vpop.f32.mrb[0].mxu0
    %v458 = vadd.f32 %v48, %v457
    %v459 = vpop.f32.mrb[0].mxu0
    %460 = vdwg.mxu0
    %vm461 = vcmask 261120
    %v462 = vsel %vm461, %v447, -inf
    %463 = vmax.xlane.f32.xlu0 %v462
    %v464 = vpop.xlane.xlu0 %463
    %v465 = vsel %vm461, %v450, -inf
    %466 = vmax.xlane.f32.xlu0 %v465
    %v467 = vpop.xlane.xlu0 %466
    %v468 = vsel %vm461, %v455, -inf
    %469 = vmax.xlane.f32.xlu0 %v468
    %v470 = vpop.xlane.xlu0 %469
    %v471 = vsel %vm461, %v458, -inf
    %472 = vmax.xlane.f32.xlu0 %v471
    %v473 = vpop.xlane.xlu0 %472
    %v474 = vsub.f32 %v447, %v464
    %v475 = vsub.f32 %v450, %v467
    %v476 = vsub.f32 %v455, %v470
    %v477 = vsub.f32 %v458, %v473
    %v478 = vmul.f32 %v474, 1.442695
    %v479 = vpow.pop %v478
    %v480 = vmul.f32 %v475, 1.442695
    %v481 = vpow.pop %v480
    %v482 = vmul.f32 %v476, 1.442695
    %v483 = vpow.pop %v482
    %v484 = vmul.f32 %v477, 1.442695
    %v485 = vpow.pop %v484
    %v486 = vsel %vm461, %v479, 0.0
    %487 = vadd.xlane.f32.xlu0 %v486
    %v488 = vpop.xlane.xlu0 %487
    %v489 = vsel %vm461, %v481, 0.0
    %490 = vadd.xlane.f32.xlu0 %v489
    %v491 = vpop.xlane.xlu0 %490
    %v492 = vsel %vm461, %v483, 0.0
    %493 = vadd.xlane.f32.xlu0 %v492
    %v494 = vpop.xlane.xlu0 %493
    %v495 = vsel %vm461, %v485, 0.0
    %496 = vadd.xlane.f32.xlu0 %v495
    %v497 = vpop.xlane.xlu0 %496
    %v498 = vrcp.pop %v488
    %v499 = vrcp.pop %v491
    %v500 = vrcp.pop %v494
    %v501 = vrcp.pop %v497
    %v502 = vmul.f32 %v479, %v498
    %v503 = vmul.f32 %v481, %v499
    %v504 = vmul.f32 %v483, %v500
    %v505 = vmul.f32 %v485, %v501
    %v506 = vpack.c.bf16 %v503, %v502
    %v507 = vpack.c.bf16 %v505, %v504
    %v509 = vsel %vm461, %v506, 0
    %v512 = vsel %vm461, %v507, 0
    %514 = vmatprep.subr.bf16.mxu0 0
    %515 = vmatpush1.bf16.msra.mxu0 %v397
    %516 = vmatprep.subr.bf16.mxu0 0
    %517 = vmatpush1.bf16.msra.mxu0 %v398
    %518 = vmatprep.subr.bf16.mxu0 0
    %519 = vmatpush1.bf16.msra.mxu0 0
    %520 = vmatprep.subr.bf16.mxu0 0
    %521 = vmatpush1.bf16.msra.mxu0 0
    %522 = vmatprep.subr.bf16.mxu0 0
    %523 = vmatpush1.bf16.msra.mxu0 0
    %524 = vmatprep.subr.bf16.mxu0 0
    %525 = vmatpush1.bf16.msra.mxu0 0
    %526 = vmatprep.subr.bf16.mxu0 0
    %527 = vmatpush1.bf16.msra.mxu0 0
    %528 = vmatprep.subr.bf16.mxu0 0
    %529 = vmatpush1.bf16.msra.mxu0 0
    %530 = vmatprep.subr.bf16.mxu0 0
    %531 = vmatpush1.bf16.msra.mxu0 0
    %532 = vmatprep.subr.bf16.mxu0 0
    %533 = vmatpush1.bf16.msra.mxu0 0
    %534 = vmatprep.subr.bf16.mxu0 0
    %535 = vmatpush1.bf16.msra.mxu0 0
    %536 = vmatprep.subr.bf16.mxu0 0
    %537 = vmatpush1.bf16.msra.mxu0 0
    %538 = vmatprep.subr.bf16.mxu0 0
    %539 = vmatpush1.bf16.msra.mxu0 0
    %540 = vmatprep.subr.bf16.mxu0 0
    %541 = vmatpush1.bf16.msra.mxu0 0
    %542 = vmatprep.subr.bf16.mxu0 0
    %543 = vmatpush1.bf16.msra.mxu0 0
    %544 = vmatprep.subr.bf16.mxu0 0
    %545 = vmatpush1.bf16.msra.mxu0 0
    %546 = vmatprep.mubr.bf16.mxu0 0
    %547 = vmatmul.mubr.bf16.gmra.mrb[0].mxu0 %v509
    %v548 = vpop.f32.mrb[0].mxu0
    %v549 = vadd.f32 0.0, %v548
    %v550 = vpop.f32.mrb[0].mxu0
    %v551 = vpop.f32.mrb[0].mxu0
    %v552 = vadd.f32 0.0, %v551
    %v553 = vpop.f32.mrb[0].mxu0
    %554 = vmatprep.mubr.bf16.mxu0 0
    %555 = vmatmul.mubr.bf16.gmra.mrb[0].mxu0 %v512
    %v556 = vpop.f32.mrb[0].mxu0
    %v557 = vadd.f32 0.0, %v556
    %v558 = vpop.f32.mrb[0].mxu0
    %v559 = vpop.f32.mrb[0].mxu0
    %v560 = vadd.f32 0.0, %v559
    %v561 = vpop.f32.mrb[0].mxu0
    %562 = vdwg.mxu0
    %v563 = vpack.c.bf16 %v552, %v549
    %v564 = vpack.c.bf16 %v560, %v557
    %567 = vrot.lane.b32.xlu0 %v393, 64
    %v568 = vpop.permute.xlu0 %567
    %569 = vrot.lane.b32.xlu0 %v394, 64
    %v570 = vpop.permute.xlu0 %569
    %573 = vrot.lane.b32.xlu0 %v395, 64
    %v574 = vpop.permute.xlu0 %573
    %575 = vrot.lane.b32.xlu0 %v396, 64
    %v576 = vpop.permute.xlu0 %575
    %v578 = vsel %vm399, %v568, 0
    %v581 = vsel %vm399, %v570, 0
    %v584 = vsel %vm399, %v574, 0
    %v587 = vsel %vm399, %v576, 0
    %589 = vmatprep.subr.bf16.mxu0 0
    %590 = vmatpush1.bf16.xpose.msra.mxu0 %v584
    %591 = vmatprep.subr.bf16.mxu0 0
    %592 = vmatpush1.bf16.xpose.msra.mxu0 %v587
    %593 = vmatprep.subr.bf16.mxu0 0
    %594 = vmatpush1.bf16.xpose.msra.mxu0 0
    %595 = vmatprep.subr.bf16.mxu0 0
    %596 = vmatpush1.bf16.xpose.msra.mxu0 0
    %597 = vmatprep.subr.bf16.mxu0 0
    %598 = vmatpush1.bf16.xpose.msra.mxu0 0
    %599 = vmatprep.subr.bf16.mxu0 0
    %600 = vmatpush1.bf16.xpose.msra.mxu0 0
    %601 = vmatprep.subr.bf16.mxu0 0
    %602 = vmatpush1.bf16.xpose.msra.mxu0 0
    %603 = vmatprep.subr.bf16.mxu0 0
    %604 = vmatpush1.bf16.xpose.msra.mxu0 0
    %605 = vmatprep.subr.bf16.mxu0 0
    %606 = vmatpush1.bf16.xpose.msra.mxu0 0
    %607 = vmatprep.subr.bf16.mxu0 0
    %608 = vmatpush1.bf16.xpose.msra.mxu0 0
    %609 = vmatprep.subr.bf16.mxu0 0
    %610 = vmatpush1.bf16.xpose.msra.mxu0 0
    %611 = vmatprep.subr.bf16.mxu0 0
    %612 = vmatpush1.bf16.xpose.msra.mxu0 0
    %613 = vmatprep.subr.bf16.mxu0 0
    %614 = vmatpush1.bf16.xpose.msra.mxu0 0
    %615 = vmatprep.subr.bf16.mxu0 0
    %616 = vmatpush1.bf16.xpose.msra.mxu0 0
    %617 = vmatprep.subr.bf16.mxu0 0
    %618 = vmatpush1.bf16.xpose.msra.mxu0 0
    %619 = vmatprep.subr.bf16.mxu0 0
    %620 = vmatpush1.bf16.xpose.msra.mxu0 0
    %621 = vmatprep.mubr.bf16.mxu0 0
    %622 = vmatmul.mubr.bf16.gmra.mrb[0].mxu0 %v578
    %v623 = vpop.f32.mrb[0].mxu0
    %v624 = vadd.f32 %v45, %v623
    %v625 = vpop.f32.mrb[0].mxu0
    %v626 = vpop.f32.mrb[0].mxu0
    %v627 = vadd.f32 %v46, %v626
    %v628 = vpop.f32.mrb[0].mxu0
    %629 = vmatprep.mubr.bf16.mxu0 0
    %630 = vmatmul.mubr.bf16.gmra.mrb[0].mxu0 %v581
    %v631 = vpop.f32.mrb[0].mxu0
    %v632 = vadd.f32 %v47, %v631
    %v633 = vpop.f32.mrb[0].mxu0
    %v634 = vpop.f32.mrb[0].mxu0
    %v635 = vadd.f32 %v48, %v634
    %v636 = vpop.f32.mrb[0].mxu0
    %637 = vdwg.mxu0
    %v638 = vsel %vm461, %v624, -inf
    %639 = vmax.xlane.f32.xlu0 %v638
    %v640 = vpop.xlane.xlu0 %639
    %v641 = vsel %vm461, %v627, -inf
    %642 = vmax.xlane.f32.xlu0 %v641
    %v643 = vpop.xlane.xlu0 %642
    %v644 = vsel %vm461, %v632, -inf
    %645 = vmax.xlane.f32.xlu0 %v644
    %v646 = vpop.xlane.xlu0 %645
    %v647 = vsel %vm461, %v635, -inf
    %648 = vmax.xlane.f32.xlu0 %v647
    %v649 = vpop.xlane.xlu0 %648
    %v650 = vsub.f32 %v624, %v640
    %v651 = vsub.f32 %v627, %v643
    %v652 = vsub.f32 %v632, %v646
    %v653 = vsub.f32 %v635, %v649
    %v654 = vmul.f32 %v650, 1.442695
    %v655 = vpow.pop %v654
    %v656 = vmul.f32 %v651, 1.442695
    %v657 = vpow.pop %v656
    %v658 = vmul.f32 %v652, 1.442695
    %v659 = vpow.pop %v658
    %v660 = vmul.f32 %v653, 1.442695
    %v661 = vpow.pop %v660
    %v662 = vsel %vm461, %v655, 0.0
    %663 = vadd.xlane.f32.xlu0 %v662
    %v664 = vpop.xlane.xlu0 %663
    %v665 = vsel %vm461, %v657, 0.0
    %666 = vadd.xlane.f32.xlu0 %v665
    %v667 = vpop.xlane.xlu0 %666
    %v668 = vsel %vm461, %v659, 0.0
    %669 = vadd.xlane.f32.xlu0 %v668
    %v670 = vpop.xlane.xlu0 %669
    %v671 = vsel %vm461, %v661, 0.0
    %672 = vadd.xlane.f32.xlu0 %v671
    %v673 = vpop.xlane.xlu0 %672
    %v674 = vrcp.pop %v664
    %v675 = vrcp.pop %v667
    %v676 = vrcp.pop %v670
    %v677 = vrcp.pop %v673
    %v678 = vmul.f32 %v655, %v674
    %v679 = vmul.f32 %v657, %v675
    %v680 = vmul.f32 %v659, %v676
    %v681 = vmul.f32 %v661, %v677
    %v682 = vpack.c.bf16 %v679, %v678
    %v683 = vpack.c.bf16 %v681, %v680
    %686 = vrot.lane.b32.xlu0 %v397, 64
    %v687 = vpop.permute.xlu0 %686
    %688 = vrot.lane.b32.xlu0 %v398, 64
    %v689 = vpop.permute.xlu0 %688
    %v693 = vsel %vm461, %v682, 0
    %v696 = vsel %vm461, %v683, 0
    %698 = vmatprep.subr.bf16.mxu0 0
    %699 = vmatpush1.bf16.msra.mxu0 %v687
    %700 = vmatprep.subr.bf16.mxu0 0
    %701 = vmatpush1.bf16.msra.mxu0 %v689
    %702 = vmatprep.subr.bf16.mxu0 0
    %703 = vmatpush1.bf16.msra.mxu0 0
    %704 = vmatprep.subr.bf16.mxu0 0
    %705 = vmatpush1.bf16.msra.mxu0 0
    %706 = vmatprep.subr.bf16.mxu0 0
    %707 = vmatpush1.bf16.msra.mxu0 0
    %708 = vmatprep.subr.bf16.mxu0 0
    %709 = vmatpush1.bf16.msra.mxu0 0
    %710 = vmatprep.subr.bf16.mxu0 0
    %711 = vmatpush1.bf16.msra.mxu0 0
    %712 = vmatprep.subr.bf16.mxu0 0
    %713 = vmatpush1.bf16.msra.mxu0 0
    %714 = vmatprep.subr.bf16.mxu0 0
    %715 = vmatpush1.bf16.msra.mxu0 0
    %716 = vmatprep.subr.bf16.mxu0 0
    %717 = vmatpush1.bf16.msra.mxu0 0
    %718 = vmatprep.subr.bf16.mxu0 0
    %719 = vmatpush1.bf16.msra.mxu0 0
    %720 = vmatprep.subr.bf16.mxu0 0
    %721 = vmatpush1.bf16.msra.mxu0 0
    %722 = vmatprep.subr.bf16.mxu0 0
    %723 = vmatpush1.bf16.msra.mxu0 0
    %724 = vmatprep.subr.bf16.mxu0 0
    %725 = vmatpush1.bf16.msra.mxu0 0
    %726 = vmatprep.subr.bf16.mxu0 0
    %727 = vmatpush1.bf16.msra.mxu0 0
    %728 = vmatprep.subr.bf16.mxu0 0
    %729 = vmatpush1.bf16.msra.mxu0 0
    %730 = vmatprep.mubr.bf16.mxu0 0
    %731 = vmatmul.mubr.bf16.gmra.mrb[0].mxu0 %v693
    %v732 = vpop.f32.mrb[0].mxu0
    %v733 = vadd.f32 0.0, %v732
    %v734 = vpop.f32.mrb[0].mxu0
    %v735 = vpop.f32.mrb[0].mxu0
    %v736 = vadd.f32 0.0, %v735
    %v737 = vpop.f32.mrb[0].mxu0
    %738 = vmatprep.mubr.bf16.mxu0 0
    %739 = vmatmul.mubr.bf16.gmra.mrb[0].mxu0 %v696
    %v740 = vpop.f32.mrb[0].mxu0
    %v741 = vadd.f32 0.0, %v740
    %v742 = vpop.f32.mrb[0].mxu0
    %v743 = vpop.f32.mrb[0].mxu0
    %v744 = vadd.f32 0.0, %v743
    %v745 = vpop.f32.mrb[0].mxu0
    %746 = vdwg.mxu0
    %v747 = vpack.c.bf16 %v736, %v733
    %v748 = vpack.c.bf16 %v744, %v741
    %v757 = vunpack.c.l.b16 %v385
    %v758 = vunpack.c.l.b16 %v386
    %v759 = vunpack.c.l.b16 %v387
    %v760 = vunpack.c.l.b16 %v388
    %v761 = vunpack.c.l.b16 %v389
    %v762 = vunpack.c.l.b16 %v390
    %v763 = vunpack.c.l.b16 %v391
    %v764 = vunpack.c.l.b16 %v392
    %v765 = vpack.c.b16 %v758, %v757
    %v766 = vpack.c.b16 %v760, %v759
    %v767 = vpack.c.b16 %v762, %v761
    %v768 = vpack.c.b16 %v764, %v763
    %v774 = vsel %vm399, %v747, 0
    %v777 = vsel %vm399, %v748, 0
    %779 = vmatprep.subr.bf16.mxu0 0
    %780 = vmatpush1.bf16.msra.mxu0 %v765
    %781 = vmatprep.subr.bf16.mxu0 0
    %782 = vmatpush1.bf16.msra.mxu0 %v766
    %783 = vmatprep.subr.bf16.mxu0 0
    %784 = vmatpush1.bf16.msra.mxu0 %v767
    %785 = vmatprep.subr.bf16.mxu0 0
    %786 = vmatpush1.bf16.msra.mxu0 %v768
    %787 = vmatprep.subr.bf16.mxu0 0
    %788 = vmatpush1.bf16.msra.mxu0 0
    %789 = vmatprep.subr.bf16.mxu0 0
    %790 = vmatpush1.bf16.msra.mxu0 0
    %791 = vmatprep.subr.bf16.mxu0 0
    %792 = vmatpush1.bf16.msra.mxu0 0
    %793 = vmatprep.subr.bf16.mxu0 0
    %794 = vmatpush1.bf16.msra.mxu0 0
    %795 = vmatprep.subr.bf16.mxu0 0
    %796 = vmatpush1.bf16.msra.mxu0 0
    %797 = vmatprep.subr.bf16.mxu0 0
    %798 = vmatpush1.bf16.msra.mxu0 0
    %799 = vmatprep.subr.bf16.mxu0 0
    %800 = vmatpush1.bf16.msra.mxu0 0
    %801 = vmatprep.subr.bf16.mxu0 0
    %802 = vmatpush1.bf16.msra.mxu0 0
    %803 = vmatprep.subr.bf16.mxu0 0
    %804 = vmatpush1.bf16.msra.mxu0 0
    %805 = vmatprep.subr.bf16.mxu0 0
    %806 = vmatpush1.bf16.msra.mxu0 0
    %807 = vmatprep.subr.bf16.mxu0 0
    %808 = vmatpush1.bf16.msra.mxu0 0
    %809 = vmatprep.subr.bf16.mxu0 0
    %810 = vmatpush1.bf16.msra.mxu0 0
    %811 = vmatprep.mubr.bf16.mxu0 0
    %812 = vmatmul.mubr.bf16.gmra.mrb[0].mxu0 %v774
    %v813 = vpop.f32.mrb[0].mxu0
    %v814 = vadd.f32 0.0, %v813
    %v815 = vpop.f32.mrb[0].mxu0
    %v816 = vpop.f32.mrb[0].mxu0
    %v817 = vadd.f32 0.0, %v816
    %v818 = vpop.f32.mrb[0].mxu0
    %819 = vmatprep.mubr.bf16.mxu0 0
    %820 = vmatmul.mubr.bf16.gmra.mrb[0].mxu0 %v777
    %v821 = vpop.f32.mrb[0].mxu0
    %v822 = vadd.f32 0.0, %v821
    %v823 = vpop.f32.mrb[0].mxu0
    %v824 = vpop.f32.mrb[0].mxu0
    %v825 = vadd.f32 0.0, %v824
    %v826 = vpop.f32.mrb[0].mxu0
    %827 = vdwg.mxu0
    %v836 = vunpack.c.l.b16 %v377
    %v837 = vunpack.c.l.b16 %v378
    %v838 = vunpack.c.l.b16 %v379
    %v839 = vunpack.c.l.b16 %v380
    %v840 = vunpack.c.l.b16 %v381
    %v841 = vunpack.c.l.b16 %v382
    %v842 = vunpack.c.l.b16 %v383
    %v843 = vunpack.c.l.b16 %v384
    %v844 = vpack.c.b16 %v837, %v836
    %v845 = vpack.c.b16 %v839, %v838
    %v846 = vpack.c.b16 %v841, %v840
    %v847 = vpack.c.b16 %v843, %v842
    %v853 = vsel %vm399, %v563, 0
    %v856 = vsel %vm399, %v564, 0
    %858 = vmatprep.subr.bf16.mxu0 0
    %859 = vmatpush1.bf16.msra.mxu0 %v844
    %860 = vmatprep.subr.bf16.mxu0 0
    %861 = vmatpush1.bf16.msra.mxu0 %v845
    %862 = vmatprep.subr.bf16.mxu0 0
    %863 = vmatpush1.bf16.msra.mxu0 %v846
    %864 = vmatprep.subr.bf16.mxu0 0
    %865 = vmatpush1.bf16.msra.mxu0 %v847
    %866 = vmatprep.subr.bf16.mxu0 0
    %867 = vmatpush1.bf16.msra.mxu0 0
    %868 = vmatprep.subr.bf16.mxu0 0
    %869 = vmatpush1.bf16.msra.mxu0 0
    %870 = vmatprep.subr.bf16.mxu0 0
    %871 = vmatpush1.bf16.msra.mxu0 0
    %872 = vmatprep.subr.bf16.mxu0 0
    %873 = vmatpush1.bf16.msra.mxu0 0
    %874 = vmatprep.subr.bf16.mxu0 0
    %875 = vmatpush1.bf16.msra.mxu0 0
    %876 = vmatprep.subr.bf16.mxu0 0
    %877 = vmatpush1.bf16.msra.mxu0 0
    %878 = vmatprep.subr.bf16.mxu0 0
    %879 = vmatpush1.bf16.msra.mxu0 0
    %880 = vmatprep.subr.bf16.mxu0 0
    %881 = vmatpush1.bf16.msra.mxu0 0
    %882 = vmatprep.subr.bf16.mxu0 0
    %883 = vmatpush1.bf16.msra.mxu0 0
    %884 = vmatprep.subr.bf16.mxu0 0
    %885 = vmatpush1.bf16.msra.mxu0 0
    %886 = vmatprep.subr.bf16.mxu0 0
    %887 = vmatpush1.bf16.msra.mxu0 0
    %888 = vmatprep.subr.bf16.mxu0 0
    %889 = vmatpush1.bf16.msra.mxu0 0
    %890 = vmatprep.mubr.bf16.mxu0 0
    %891 = vmatmul.mubr.bf16.gmra.mrb[0].mxu0 %v853
    %v892 = vpop.f32.mrb[0].mxu0
    %v893 = vadd.f32 %v814, %v892
    %v894 = vpop.f32.mrb[0].mxu0
    %v895 = vpop.f32.mrb[0].mxu0
    %v896 = vadd.f32 %v817, %v895
    %v897 = vpop.f32.mrb[0].mxu0
    %898 = vmatprep.mubr.bf16.mxu0 0
    %899 = vmatmul.mubr.bf16.gmra.mrb[0].mxu0 %v856
    %v900 = vpop.f32.mrb[0].mxu0
    %v901 = vadd.f32 %v822, %v900
    %v902 = vpop.f32.mrb[0].mxu0
    %v903 = vpop.f32.mrb[0].mxu0
    %v904 = vadd.f32 %v825, %v903
    %v905 = vpop.f32.mrb[0].mxu0
    %906 = vdwg.mxu0
    %v907 = vadd.f32 %v65, %v893
    %v908 = vadd.f32 %v66, %v896
    %v909 = vadd.f32 %v67, %v901
    %v910 = vadd.f32 %v68, %v904
    %v911 = vld [vmem:[%s5] sm:$0x1]
    %v912 = vmul.f32 %v907, %v907
    %v913 = vmul.f32 %v908, %v908
    %v914 = vmul.f32 %v909, %v909
    %v915 = vmul.f32 %v910, %v910
    %916 = vadd.xlane.f32.xlu0 %v912
    %v917 = vpop.xlane.xlu0 %916
    %918 = vadd.xlane.f32.xlu0 %v913
    %v919 = vpop.xlane.xlu0 %918
    %920 = vadd.xlane.f32.xlu0 %v914
    %v921 = vpop.xlane.xlu0 %920
    %922 = vadd.xlane.f32.xlu0 %v915
    %v923 = vpop.xlane.xlu0 %922
    %v924 = vmul.f32 %v917, %v82
    %v925 = vmul.f32 %v919, %v82
    %v926 = vmul.f32 %v921, %v82
    %v927 = vmul.f32 %v923, %v82
    %v928 = vadd.f32 %v924, 1e-06
    %v929 = vadd.f32 %v925, 1e-06
    %v930 = vadd.f32 %v926, 1e-06
    %v931 = vadd.f32 %v927, 1e-06
    %v932 = vrsqrt.pop %v928
    %v933 = vrsqrt.pop %v929
    %v934 = vrsqrt.pop %v930
    %v935 = vrsqrt.pop %v931
    %v936 = vmul.f32 %v907, %v932
    %v937 = vmul.f32 %v908, %v933
    %v938 = vmul.f32 %v909, %v934
    %v939 = vmul.f32 %v910, %v935
    %v941 = vlaneseq
    %v942 = vshrl.u32 %v941, 7
    %v943 = vsub.s32 0, %v942
    %v944 = vrot.slane %v911, %v943
    %v946 = vmul.f32 %v936, %v944
    %v947 = vmul.f32 %v937, %v944
    %v948 = vmul.f32 %v938, %v944
    %v949 = vmul.f32 %v939, %v944
    %v950 = vld [vmem:[%s6] sm:$0xff]
    %v951 = vld [vmem:[%s6 + $0x8] sm:$0xff]
    %v952 = vld [vmem:[%s6 + $0x10] sm:$0xff]
    %v953 = vld [vmem:[%s6 + $0x18] sm:$0xff]
    %v954 = vld [vmem:[%s6 + $0x20] sm:$0xff]
    %v955 = vld [vmem:[%s6 + $0x28] sm:$0xff]
    %v956 = vld [vmem:[%s6 + $0x30] sm:$0xff]
    %v957 = vld [vmem:[%s6 + $0x38] sm:$0xff]
    %v958 = vld [vmem:[%s6 + $0x40] sm:$0xff]
    %v959 = vld [vmem:[%s6 + $0x48] sm:$0xff]
    %v960 = vld [vmem:[%s6 + $0x50] sm:$0xff]
    %v961 = vld [vmem:[%s6 + $0x58] sm:$0xff]
    %v962 = vld [vmem:[%s6 + $0x60] sm:$0xff]
    %v963 = vld [vmem:[%s6 + $0x68] sm:$0xff]
    %v964 = vld [vmem:[%s6 + $0x70] sm:$0xff]
    %v965 = vld [vmem:[%s6 + $0x78] sm:$0xff]
    %v966 = vld [vmem:[%s6 + $0x80] sm:$0xff]
    %v967 = vld [vmem:[%s6 + $0x88] sm:$0xff]
    %v968 = vld [vmem:[%s6 + $0x90] sm:$0xff]
    %v969 = vld [vmem:[%s6 + $0x98] sm:$0xff]
    %v970 = vld [vmem:[%s6 + $0xa0] sm:$0xff]
    %v971 = vld [vmem:[%s6 + $0xa8] sm:$0xff]
    %v972 = vld [vmem:[%s6 + $0xb0] sm:$0xff]
    %v973 = vld [vmem:[%s6 + $0xb8] sm:$0xff]
    %v974 = vld [vmem:[%s6 + $0xc0] sm:$0xff]
    %v975 = vld [vmem:[%s6 + $0xc8] sm:$0xff]
    %v976 = vld [vmem:[%s6 + $0xd0] sm:$0xff]
    %v977 = vld [vmem:[%s6 + $0xd8] sm:$0xff]
    %v978 = vld [vmem:[%s6 + $0xe0] sm:$0xff]
    %v979 = vld [vmem:[%s6 + $0xe8] sm:$0xff]
    %v980 = vld [vmem:[%s6 + $0xf0] sm:$0xff]
    %v981 = vld [vmem:[%s6 + $0xf8] sm:$0xff]
    %v982 = vpack.c.bf16 %v947, %v946
    %v983 = vpack.c.bf16 %v949, %v948
    %v1016 = vunpack.c.l.b16 %v950
    %v1017 = vunpack.c.h.b16 %v950
    %v1018 = vunpack.c.l.b16 %v951
    %v1019 = vunpack.c.h.b16 %v951
    %v1020 = vunpack.c.l.b16 %v952
    %v1021 = vunpack.c.h.b16 %v952
    %v1022 = vunpack.c.l.b16 %v953
    %v1023 = vunpack.c.h.b16 %v953
    %v1024 = vunpack.c.l.b16 %v954
    %v1025 = vunpack.c.h.b16 %v954
    %v1026 = vunpack.c.l.b16 %v955
    %v1027 = vunpack.c.h.b16 %v955
    %v1028 = vunpack.c.l.b16 %v956
    %v1029 = vunpack.c.h.b16 %v956
    %v1030 = vunpack.c.l.b16 %v957
    %v1031 = vunpack.c.h.b16 %v957
    %v1032 = vunpack.c.l.b16 %v958
    %v1033 = vunpack.c.h.b16 %v958
    %v1034 = vunpack.c.l.b16 %v959
    %v1035 = vunpack.c.h.b16 %v959
    %v1036 = vunpack.c.l.b16 %v960
    %v1037 = vunpack.c.h.b16 %v960
    %v1038 = vunpack.c.l.b16 %v961
    %v1039 = vunpack.c.h.b16 %v961
    %v1040 = vunpack.c.l.b16 %v962
    %v1041 = vunpack.c.h.b16 %v962
    %v1042 = vunpack.c.l.b16 %v963
    %v1043 = vunpack.c.h.b16 %v963
    %v1044 = vunpack.c.l.b16 %v964
    %v1045 = vunpack.c.h.b16 %v964
    %v1046 = vunpack.c.l.b16 %v965
    %v1047 = vunpack.c.h.b16 %v965
    %v1048 = vunpack.c.l.b16 %v966
    %v1049 = vunpack.c.h.b16 %v966
    %v1050 = vunpack.c.l.b16 %v967
    %v1051 = vunpack.c.h.b16 %v967
    %v1052 = vunpack.c.l.b16 %v968
    %v1053 = vunpack.c.h.b16 %v968
    %v1054 = vunpack.c.l.b16 %v969
    %v1055 = vunpack.c.h.b16 %v969
    %v1056 = vunpack.c.l.b16 %v970
    %v1057 = vunpack.c.h.b16 %v970
    %v1058 = vunpack.c.l.b16 %v971
    %v1059 = vunpack.c.h.b16 %v971
    %v1060 = vunpack.c.l.b16 %v972
    %v1061 = vunpack.c.h.b16 %v972
    %v1062 = vunpack.c.l.b16 %v973
    %v1063 = vunpack.c.h.b16 %v973
    %v1064 = vunpack.c.l.b16 %v974
    %v1065 = vunpack.c.h.b16 %v974
    %v1066 = vunpack.c.l.b16 %v975
    %v1067 = vunpack.c.h.b16 %v975
    %v1068 = vunpack.c.l.b16 %v976
    %v1069 = vunpack.c.h.b16 %v976
    %v1070 = vunpack.c.l.b16 %v977
    %v1071 = vunpack.c.h.b16 %v977
    %v1072 = vunpack.c.l.b16 %v978
    %v1073 = vunpack.c.h.b16 %v978
    %v1074 = vunpack.c.l.b16 %v979
    %v1075 = vunpack.c.h.b16 %v979
    %v1076 = vunpack.c.l.b16 %v980
    %v1077 = vunpack.c.h.b16 %v980
    %v1078 = vunpack.c.l.b16 %v981
    %v1079 = vunpack.c.h.b16 %v981
    %v1080 = vpack.c.b16 %v1020, %v1016
    %v1081 = vpack.c.b16 %v1021, %v1017
    %v1082 = vpack.c.b16 %v1022, %v1018
    %v1083 = vpack.c.b16 %v1023, %v1019
    %v1084 = vpack.c.b16 %v1028, %v1024
    %v1085 = vpack.c.b16 %v1029, %v1025
    %v1086 = vpack.c.b16 %v1030, %v1026
    %v1087 = vpack.c.b16 %v1031, %v1027
    %v1088 = vpack.c.b16 %v1036, %v1032
    %v1089 = vpack.c.b16 %v1037, %v1033
    %v1090 = vpack.c.b16 %v1038, %v1034
    %v1091 = vpack.c.b16 %v1039, %v1035
    %v1092 = vpack.c.b16 %v1044, %v1040
    %v1093 = vpack.c.b16 %v1045, %v1041
    %v1094 = vpack.c.b16 %v1046, %v1042
    %v1095 = vpack.c.b16 %v1047, %v1043
    %v1096 = vpack.c.b16 %v1052, %v1048
    %v1097 = vpack.c.b16 %v1053, %v1049
    %v1098 = vpack.c.b16 %v1054, %v1050
    %v1099 = vpack.c.b16 %v1055, %v1051
    %v1100 = vpack.c.b16 %v1060, %v1056
    %v1101 = vpack.c.b16 %v1061, %v1057
    %v1102 = vpack.c.b16 %v1062, %v1058
    %v1103 = vpack.c.b16 %v1063, %v1059
    %v1104 = vpack.c.b16 %v1068, %v1064
    %v1105 = vpack.c.b16 %v1069, %v1065
    %v1106 = vpack.c.b16 %v1070, %v1066
    %v1107 = vpack.c.b16 %v1071, %v1067
    %v1108 = vpack.c.b16 %v1076, %v1072
    %v1109 = vpack.c.b16 %v1077, %v1073
    %v1110 = vpack.c.b16 %v1078, %v1074
    %v1111 = vpack.c.b16 %v1079, %v1075
    %1144 = vmatprep.subr.bf16.mxu0 %v1081
    %1145 = vmatpush1.bf16.msra.mxu0 %v1080
    %1146 = vmatprep.subr.bf16.mxu0 %v1085
    %1147 = vmatpush1.bf16.msra.mxu0 %v1084
    %1148 = vmatprep.subr.bf16.mxu0 %v1089
    %1149 = vmatpush1.bf16.msra.mxu0 %v1088
    %1150 = vmatprep.subr.bf16.mxu0 %v1093
    %1151 = vmatpush1.bf16.msra.mxu0 %v1092
    %1152 = vmatprep.subr.bf16.mxu0 %v1097
    %1153 = vmatpush1.bf16.msra.mxu0 %v1096
    %1154 = vmatprep.subr.bf16.mxu0 %v1101
    %1155 = vmatpush1.bf16.msra.mxu0 %v1100
    %1156 = vmatprep.subr.bf16.mxu0 %v1105
    %1157 = vmatpush1.bf16.msra.mxu0 %v1104
    %1158 = vmatprep.subr.bf16.mxu0 %v1109
    %1159 = vmatpush1.bf16.msra.mxu0 %v1108
    %1160 = vmatprep.subr.bf16.mxu0 0
    %1161 = vmatpush1.bf16.msra.mxu0 0
    %1162 = vmatprep.subr.bf16.mxu0 0
    %1163 = vmatpush1.bf16.msra.mxu0 0
    %1164 = vmatprep.subr.bf16.mxu0 0
    %1165 = vmatpush1.bf16.msra.mxu0 0
    %1166 = vmatprep.subr.bf16.mxu0 0
    %1167 = vmatpush1.bf16.msra.mxu0 0
    %1168 = vmatprep.subr.bf16.mxu0 0
    %1169 = vmatpush1.bf16.msra.mxu0 0
    %1170 = vmatprep.subr.bf16.mxu0 0
    %1171 = vmatpush1.bf16.msra.mxu0 0
    %1172 = vmatprep.subr.bf16.mxu0 0
    %1173 = vmatpush1.bf16.msra.mxu0 0
    %1174 = vmatprep.subr.bf16.mxu0 0
    %1175 = vmatpush1.bf16.msra.mxu0 0
    %1176 = vmatprep.mubr.bf16.mxu0 0
    %1177 = vmatmul.mubr.bf16.gmra.mrb[0].mxu0 %v982
    %v1178 = vpop.f32.mrb[0].mxu0
    %v1179 = vadd.f32 0.0, %v1178
    %v1180 = vpop.f32.mrb[0].mxu0
    %v1181 = vadd.f32 0.0, %v1180
    %v1182 = vpop.f32.mrb[0].mxu0
    %v1183 = vadd.f32 0.0, %v1182
    %v1184 = vpop.f32.mrb[0].mxu0
    %v1185 = vadd.f32 0.0, %v1184
    %1186 = vmatprep.mubr.bf16.mxu0 0
    %1187 = vmatmul.mubr.bf16.gmra.mrb[0].mxu0 %v983
    %v1188 = vpop.f32.mrb[0].mxu0
    %v1189 = vadd.f32 0.0, %v1188
    %v1190 = vpop.f32.mrb[0].mxu0
    %v1191 = vadd.f32 0.0, %v1190
    %v1192 = vpop.f32.mrb[0].mxu0
    %v1193 = vadd.f32 0.0, %v1192
    %v1194 = vpop.f32.mrb[0].mxu0
    %v1195 = vadd.f32 0.0, %v1194
    %1196 = vdwg.mxu0
    %1197 = vmatprep.subr.bf16.mxu0 %v1083
    %1198 = vmatpush1.bf16.msra.mxu0 %v1082
    %1199 = vmatprep.subr.bf16.mxu0 %v1087
    %1200 = vmatpush1.bf16.msra.mxu0 %v1086
    %1201 = vmatprep.subr.bf16.mxu0 %v1091
    %1202 = vmatpush1.bf16.msra.mxu0 %v1090
    %1203 = vmatprep.subr.bf16.mxu0 %v1095
    %1204 = vmatpush1.bf16.msra.mxu0 %v1094
    %1205 = vmatprep.subr.bf16.mxu0 %v1099
    %1206 = vmatpush1.bf16.msra.mxu0 %v1098
    %1207 = vmatprep.subr.bf16.mxu0 %v1103
    %1208 = vmatpush1.bf16.msra.mxu0 %v1102
    %1209 = vmatprep.subr.bf16.mxu0 %v1107
    %1210 = vmatpush1.bf16.msra.mxu0 %v1106
    %1211 = vmatprep.subr.bf16.mxu0 %v1111
    %1212 = vmatpush1.bf16.msra.mxu0 %v1110
    %1213 = vmatprep.subr.bf16.mxu0 0
    %1214 = vmatpush1.bf16.msra.mxu0 0
    %1215 = vmatprep.subr.bf16.mxu0 0
    %1216 = vmatpush1.bf16.msra.mxu0 0
    %1217 = vmatprep.subr.bf16.mxu0 0
    %1218 = vmatpush1.bf16.msra.mxu0 0
    %1219 = vmatprep.subr.bf16.mxu0 0
    %1220 = vmatpush1.bf16.msra.mxu0 0
    %1221 = vmatprep.subr.bf16.mxu0 0
    %1222 = vmatpush1.bf16.msra.mxu0 0
    %1223 = vmatprep.subr.bf16.mxu0 0
    %1224 = vmatpush1.bf16.msra.mxu0 0
    %1225 = vmatprep.subr.bf16.mxu0 0
    %1226 = vmatpush1.bf16.msra.mxu0 0
    %1227 = vmatprep.subr.bf16.mxu0 0
    %1228 = vmatpush1.bf16.msra.mxu0 0
    %1229 = vmatprep.mubr.bf16.mxu0 0
    %1230 = vmatmul.mubr.bf16.gmra.mrb[0].mxu0 %v982
    %v1231 = vpop.f32.mrb[0].mxu0
    %v1232 = vadd.f32 0.0, %v1231
    %v1233 = vpop.f32.mrb[0].mxu0
    %v1234 = vadd.f32 0.0, %v1233
    %v1235 = vpop.f32.mrb[0].mxu0
    %v1236 = vadd.f32 0.0, %v1235
    %v1237 = vpop.f32.mrb[0].mxu0
    %v1238 = vadd.f32 0.0, %v1237
    %1239 = vmatprep.mubr.bf16.mxu0 0
    %1240 = vmatmul.mubr.bf16.gmra.mrb[0].mxu0 %v983
    %v1241 = vpop.f32.mrb[0].mxu0
    %v1242 = vadd.f32 0.0, %v1241
    %v1243 = vpop.f32.mrb[0].mxu0
    %v1244 = vadd.f32 0.0, %v1243
    %v1245 = vpop.f32.mrb[0].mxu0
    %v1246 = vadd.f32 0.0, %v1245
    %v1247 = vpop.f32.mrb[0].mxu0
    %v1248 = vadd.f32 0.0, %v1247
    %1249 = vdwg.mxu0
    %v1250 = vxor.u32 %v1179, 2147483648
    %v1251 = vxor.u32 %v1181, 2147483648
    %v1252 = vxor.u32 %v1183, 2147483648
    %v1253 = vxor.u32 %v1185, 2147483648
    %v1254 = vxor.u32 %v1189, 2147483648
    %v1255 = vxor.u32 %v1191, 2147483648
    %v1256 = vxor.u32 %v1193, 2147483648
    %v1257 = vxor.u32 %v1195, 2147483648
    %v1258 = vmul.f32 %v1250, 1.442695
    %v1259 = vpow.pop %v1258
    %v1260 = vmul.f32 %v1251, 1.442695
    %v1261 = vpow.pop %v1260
    %v1262 = vmul.f32 %v1252, 1.442695
    %v1263 = vpow.pop %v1262
    %v1264 = vmul.f32 %v1253, 1.442695
    %v1265 = vpow.pop %v1264
    %v1266 = vmul.f32 %v1254, 1.442695
    %v1267 = vpow.pop %v1266
    %v1268 = vmul.f32 %v1255, 1.442695
    %v1269 = vpow.pop %v1268
    %v1270 = vmul.f32 %v1256, 1.442695
    %v1271 = vpow.pop %v1270
    %v1272 = vmul.f32 %v1257, 1.442695
    %v1273 = vpow.pop %v1272
    %v1274 = vadd.f32 %v1259, 1.0
    %v1275 = vadd.f32 %v1261, 1.0
    %v1276 = vadd.f32 %v1263, 1.0
    %v1277 = vadd.f32 %v1265, 1.0
    %v1278 = vadd.f32 %v1267, 1.0
    %v1279 = vadd.f32 %v1269, 1.0
    %v1280 = vadd.f32 %v1271, 1.0
    %v1281 = vadd.f32 %v1273, 1.0
    %v1282 = vrcp.pop %v1274
    %v1283 = vmul.f32 1.0, %v1282
    %v1284 = vrcp.pop %v1275
    %v1285 = vmul.f32 1.0, %v1284
    %v1286 = vrcp.pop %v1276
    %v1287 = vmul.f32 1.0, %v1286
    %v1288 = vrcp.pop %v1277
    %v1289 = vmul.f32 1.0, %v1288
    %v1290 = vrcp.pop %v1278
    %v1291 = vmul.f32 1.0, %v1290
    %v1292 = vrcp.pop %v1279
    %v1293 = vmul.f32 1.0, %v1292
    %v1294 = vrcp.pop %v1280
    %v1295 = vmul.f32 1.0, %v1294
    %v1296 = vrcp.pop %v1281
    %v1297 = vmul.f32 1.0, %v1296
    %v1298 = vmul.f32 %v1179, %v1283
    %v1299 = vmul.f32 %v1181, %v1285
    %v1300 = vmul.f32 %v1183, %v1287
    %v1301 = vmul.f32 %v1185, %v1289
    %v1302 = vmul.f32 %v1189, %v1291
    %v1303 = vmul.f32 %v1191, %v1293
    %v1304 = vmul.f32 %v1193, %v1295
    %v1305 = vmul.f32 %v1195, %v1297
    %v1306 = vmul.f32 %v1298, %v1232
    %v1307 = vmul.f32 %v1299, %v1234
    %v1308 = vmul.f32 %v1300, %v1236
    %v1309 = vmul.f32 %v1301, %v1238
    %v1310 = vmul.f32 %v1302, %v1242
    %v1311 = vmul.f32 %v1303, %v1244
    %v1312 = vmul.f32 %v1304, %v1246
    %v1313 = vmul.f32 %v1305, %v1248
    %v1314 = vld [vmem:[%s7] sm:$0xf]
    %v1315 = vld [vmem:[%s7 + $0x4] sm:$0xf]
    %v1316 = vld [vmem:[%s7 + $0x8] sm:$0xf]
    %v1317 = vld [vmem:[%s7 + $0xc] sm:$0xf]
    %v1318 = vld [vmem:[%s7 + $0x10] sm:$0xf]
    %v1319 = vld [vmem:[%s7 + $0x14] sm:$0xf]
    %v1320 = vld [vmem:[%s7 + $0x18] sm:$0xf]
    %v1321 = vld [vmem:[%s7 + $0x1c] sm:$0xf]
    %v1322 = vld [vmem:[%s7 + $0x20] sm:$0xf]
    %v1323 = vld [vmem:[%s7 + $0x24] sm:$0xf]
    %v1324 = vld [vmem:[%s7 + $0x28] sm:$0xf]
    %v1325 = vld [vmem:[%s7 + $0x2c] sm:$0xf]
    %v1326 = vld [vmem:[%s7 + $0x30] sm:$0xf]
    %v1327 = vld [vmem:[%s7 + $0x34] sm:$0xf]
    %v1328 = vld [vmem:[%s7 + $0x38] sm:$0xf]
    %v1329 = vld [vmem:[%s7 + $0x3c] sm:$0xf]
    %v1330 = vld [vmem:[%s7 + $0x40] sm:$0xf]
    %v1331 = vld [vmem:[%s7 + $0x44] sm:$0xf]
    %v1332 = vld [vmem:[%s7 + $0x48] sm:$0xf]
    %v1333 = vld [vmem:[%s7 + $0x4c] sm:$0xf]
    %v1334 = vld [vmem:[%s7 + $0x50] sm:$0xf]
    %v1335 = vld [vmem:[%s7 + $0x54] sm:$0xf]
    %v1336 = vld [vmem:[%s7 + $0x58] sm:$0xf]
    %v1337 = vld [vmem:[%s7 + $0x5c] sm:$0xf]
    %v1338 = vld [vmem:[%s7 + $0x60] sm:$0xf]
    %v1339 = vld [vmem:[%s7 + $0x64] sm:$0xf]
    %v1340 = vld [vmem:[%s7 + $0x68] sm:$0xf]
    %v1341 = vld [vmem:[%s7 + $0x6c] sm:$0xf]
    %v1342 = vld [vmem:[%s7 + $0x70] sm:$0xf]
    %v1343 = vld [vmem:[%s7 + $0x74] sm:$0xf]
    %v1344 = vld [vmem:[%s7 + $0x78] sm:$0xf]
    %v1345 = vld [vmem:[%s7 + $0x7c] sm:$0xf]
    %v1346 = vpack.c.bf16 %v1308, %v1306
    %v1347 = vpack.c.bf16 %v1309, %v1307
    %v1348 = vpack.c.bf16 %v1312, %v1310
    %v1349 = vpack.c.bf16 %v1313, %v1311
    %v1382 = vunpack.c.l.b16 %v1314
    %v1383 = vunpack.c.l.b16 %v1315
    %v1384 = vunpack.c.l.b16 %v1316
    %v1385 = vunpack.c.l.b16 %v1317
    %v1386 = vunpack.c.l.b16 %v1318
    %v1387 = vunpack.c.l.b16 %v1319
    %v1388 = vunpack.c.l.b16 %v1320
    %v1389 = vunpack.c.l.b16 %v1321
    %v1390 = vunpack.c.l.b16 %v1322
    %v1391 = vunpack.c.l.b16 %v1323
    %v1392 = vunpack.c.l.b16 %v1324
    %v1393 = vunpack.c.l.b16 %v1325
    %v1394 = vunpack.c.l.b16 %v1326
    %v1395 = vunpack.c.l.b16 %v1327
    %v1396 = vunpack.c.l.b16 %v1328
    %v1397 = vunpack.c.l.b16 %v1329
    %v1398 = vunpack.c.l.b16 %v1330
    %v1399 = vunpack.c.l.b16 %v1331
    %v1400 = vunpack.c.l.b16 %v1332
    %v1401 = vunpack.c.l.b16 %v1333
    %v1402 = vunpack.c.l.b16 %v1334
    %v1403 = vunpack.c.l.b16 %v1335
    %v1404 = vunpack.c.l.b16 %v1336
    %v1405 = vunpack.c.l.b16 %v1337
    %v1406 = vunpack.c.l.b16 %v1338
    %v1407 = vunpack.c.l.b16 %v1339
    %v1408 = vunpack.c.l.b16 %v1340
    %v1409 = vunpack.c.l.b16 %v1341
    %v1410 = vunpack.c.l.b16 %v1342
    %v1411 = vunpack.c.l.b16 %v1343
    %v1412 = vunpack.c.l.b16 %v1344
    %v1413 = vunpack.c.l.b16 %v1345
    %v1414 = vpack.c.b16 %v1383, %v1382
    %v1415 = vpack.c.b16 %v1385, %v1384
    %v1416 = vpack.c.b16 %v1387, %v1386
    %v1417 = vpack.c.b16 %v1389, %v1388
    %v1418 = vpack.c.b16 %v1391, %v1390
    %v1419 = vpack.c.b16 %v1393, %v1392
    %v1420 = vpack.c.b16 %v1395, %v1394
    %v1421 = vpack.c.b16 %v1397, %v1396
    %v1422 = vpack.c.b16 %v1399, %v1398
    %v1423 = vpack.c.b16 %v1401, %v1400
    %v1424 = vpack.c.b16 %v1403, %v1402
    %v1425 = vpack.c.b16 %v1405, %v1404
    %v1426 = vpack.c.b16 %v1407, %v1406
    %v1427 = vpack.c.b16 %v1409, %v1408
    %v1428 = vpack.c.b16 %v1411, %v1410
    %v1429 = vpack.c.b16 %v1413, %v1412
    %1446 = vmatprep.subr.bf16.mxu0 0
    %1447 = vmatpush1.bf16.msra.mxu0 %v1414
    %1448 = vmatprep.subr.bf16.mxu0 0
    %1449 = vmatpush1.bf16.msra.mxu0 %v1415
    %1450 = vmatprep.subr.bf16.mxu0 0
    %1451 = vmatpush1.bf16.msra.mxu0 %v1416
    %1452 = vmatprep.subr.bf16.mxu0 0
    %1453 = vmatpush1.bf16.msra.mxu0 %v1417
    %1454 = vmatprep.subr.bf16.mxu0 0
    %1455 = vmatpush1.bf16.msra.mxu0 %v1418
    %1456 = vmatprep.subr.bf16.mxu0 0
    %1457 = vmatpush1.bf16.msra.mxu0 %v1419
    %1458 = vmatprep.subr.bf16.mxu0 0
    %1459 = vmatpush1.bf16.msra.mxu0 %v1420
    %1460 = vmatprep.subr.bf16.mxu0 0
    %1461 = vmatpush1.bf16.msra.mxu0 %v1421
    %1462 = vmatprep.subr.bf16.mxu0 0
    %1463 = vmatpush1.bf16.msra.mxu0 %v1422
    %1464 = vmatprep.subr.bf16.mxu0 0
    %1465 = vmatpush1.bf16.msra.mxu0 %v1423
    %1466 = vmatprep.subr.bf16.mxu0 0
    %1467 = vmatpush1.bf16.msra.mxu0 %v1424
    %1468 = vmatprep.subr.bf16.mxu0 0
    %1469 = vmatpush1.bf16.msra.mxu0 %v1425
    %1470 = vmatprep.subr.bf16.mxu0 0
    %1471 = vmatpush1.bf16.msra.mxu0 %v1426
    %1472 = vmatprep.subr.bf16.mxu0 0
    %1473 = vmatpush1.bf16.msra.mxu0 %v1427
    %1474 = vmatprep.subr.bf16.mxu0 0
    %1475 = vmatpush1.bf16.msra.mxu0 %v1428
    %1476 = vmatprep.subr.bf16.mxu0 0
    %1477 = vmatpush1.bf16.msra.mxu0 %v1429
    %1478 = vmatprep.mubr.bf16.mxu0 %v1347
    %1479 = vmatmul.mubr.bf16.gmra.mrb[0].mxu0 %v1346
    %v1480 = vpop.f32.mrb[0].mxu0
    %v1481 = vadd.f32 0.0, %v1480
    %v1482 = vpop.f32.mrb[0].mxu0
    %v1483 = vpop.f32.mrb[0].mxu0
    %v1484 = vadd.f32 0.0, %v1483
    %v1485 = vpop.f32.mrb[0].mxu0
    %1486 = vmatprep.mubr.bf16.mxu0 %v1349
    %1487 = vmatmul.mubr.bf16.gmra.mrb[0].mxu0 %v1348
    %v1488 = vpop.f32.mrb[0].mxu0
    %v1489 = vadd.f32 0.0, %v1488
    %v1490 = vpop.f32.mrb[0].mxu0
    %v1491 = vpop.f32.mrb[0].mxu0
    %v1492 = vadd.f32 0.0, %v1491
    %v1493 = vpop.f32.mrb[0].mxu0
    %1494 = vdwg.mxu0
    %v1495 = vadd.f32 %v907, %v1481
    %v1496 = vadd.f32 %v908, %v1484
    %v1497 = vadd.f32 %v909, %v1489
    %v1498 = vadd.f32 %v910, %v1492
    %s1499 = scalar_lea.vmem %s2, 1
    %v1500 = vld [vmem:[%s1499] sm:$0x1]
    %v1501 = vmul.f32 %v1495, %v1495
    %v1502 = vmul.f32 %v1496, %v1496
    %v1503 = vmul.f32 %v1497, %v1497
    %v1504 = vmul.f32 %v1498, %v1498
    %1505 = vadd.xlane.f32.xlu0 %v1501
    %v1506 = vpop.xlane.xlu0 %1505
    %1507 = vadd.xlane.f32.xlu0 %v1502
    %v1508 = vpop.xlane.xlu0 %1507
    %1509 = vadd.xlane.f32.xlu0 %v1503
    %v1510 = vpop.xlane.xlu0 %1509
    %1511 = vadd.xlane.f32.xlu0 %v1504
    %v1512 = vpop.xlane.xlu0 %1511
    %v1513 = vmul.f32 %v1506, %v82
    %v1514 = vmul.f32 %v1508, %v82
    %v1515 = vmul.f32 %v1510, %v82
    %v1516 = vmul.f32 %v1512, %v82
    %v1517 = vadd.f32 %v1513, 1e-06
    %v1518 = vadd.f32 %v1514, 1e-06
    %v1519 = vadd.f32 %v1515, 1e-06
    %v1520 = vadd.f32 %v1516, 1e-06
    %v1521 = vrsqrt.pop %v1517
    %v1522 = vrsqrt.pop %v1518
    %v1523 = vrsqrt.pop %v1519
    %v1524 = vrsqrt.pop %v1520
    %v1525 = vmul.f32 %v1495, %v1521
    %v1526 = vmul.f32 %v1496, %v1522
    %v1527 = vmul.f32 %v1497, %v1523
    %v1528 = vmul.f32 %v1498, %v1524
    %v1530 = vlaneseq
    %v1531 = vshrl.u32 %v1530, 7
    %v1532 = vsub.s32 0, %v1531
    %v1533 = vrot.slane %v1500, %v1532
    %v1535 = vmul.f32 %v1525, %v1533
    %v1536 = vmul.f32 %v1526, %v1533
    %v1537 = vmul.f32 %v1527, %v1533
    %v1538 = vmul.f32 %v1528, %v1533
    %s1539 = scalar_lea.vmem %s3, 192
    %v1540 = vld [vmem:[%s1539] sm:$0xff]
    %v1541 = vld [vmem:[%s1539 + $0x8] sm:$0xf]
    %v1542 = vld [vmem:[%s1539 + $0xc] sm:$0xff]
    %v1543 = vld [vmem:[%s1539 + $0x14] sm:$0xf]
    %v1544 = vld [vmem:[%s1539 + $0x18] sm:$0xff]
    %v1545 = vld [vmem:[%s1539 + $0x20] sm:$0xf]
    %v1546 = vld [vmem:[%s1539 + $0x24] sm:$0xff]
    %v1547 = vld [vmem:[%s1539 + $0x2c] sm:$0xf]
    %v1548 = vld [vmem:[%s1539 + $0x30] sm:$0xff]
    %v1549 = vld [vmem:[%s1539 + $0x38] sm:$0xf]
    %v1550 = vld [vmem:[%s1539 + $0x3c] sm:$0xff]
    %v1551 = vld [vmem:[%s1539 + $0x44] sm:$0xf]
    %v1552 = vld [vmem:[%s1539 + $0x48] sm:$0xff]
    %v1553 = vld [vmem:[%s1539 + $0x50] sm:$0xf]
    %v1554 = vld [vmem:[%s1539 + $0x54] sm:$0xff]
    %v1555 = vld [vmem:[%s1539 + $0x5c] sm:$0xf]
    %v1556 = vld [vmem:[%s1539 + $0x60] sm:$0xff]
    %v1557 = vld [vmem:[%s1539 + $0x68] sm:$0xf]
    %v1558 = vld [vmem:[%s1539 + $0x6c] sm:$0xff]
    %v1559 = vld [vmem:[%s1539 + $0x74] sm:$0xf]
    %v1560 = vld [vmem:[%s1539 + $0x78] sm:$0xff]
    %v1561 = vld [vmem:[%s1539 + $0x80] sm:$0xf]
    %v1562 = vld [vmem:[%s1539 + $0x84] sm:$0xff]
    %v1563 = vld [vmem:[%s1539 + $0x8c] sm:$0xf]
    %v1564 = vld [vmem:[%s1539 + $0x90] sm:$0xff]
    %v1565 = vld [vmem:[%s1539 + $0x98] sm:$0xf]
    %v1566 = vld [vmem:[%s1539 + $0x9c] sm:$0xff]
    %v1567 = vld [vmem:[%s1539 + $0xa4] sm:$0xf]
    %v1568 = vld [vmem:[%s1539 + $0xa8] sm:$0xff]
    %v1569 = vld [vmem:[%s1539 + $0xb0] sm:$0xf]
    %v1570 = vld [vmem:[%s1539 + $0xb4] sm:$0xff]
    %v1571 = vld [vmem:[%s1539 + $0xbc] sm:$0xf]
    %v1572 = vpack.c.bf16 %v1536, %v1535
    %v1573 = vpack.c.bf16 %v1538, %v1537
    %v1606 = vunpack.c.l.b16 %v1540
    %v1607 = vunpack.c.h.b16 %v1540
    %v1608 = vunpack.c.l.b16 %v1541
    %v1609 = vunpack.c.l.b16 %v1542
    %v1610 = vunpack.c.h.b16 %v1542
    %v1611 = vunpack.c.l.b16 %v1543
    %v1612 = vunpack.c.l.b16 %v1544
    %v1613 = vunpack.c.h.b16 %v1544
    %v1614 = vunpack.c.l.b16 %v1545
    %v1615 = vunpack.c.l.b16 %v1546
    %v1616 = vunpack.c.h.b16 %v1546
    %v1617 = vunpack.c.l.b16 %v1547
    %v1618 = vunpack.c.l.b16 %v1548
    %v1619 = vunpack.c.h.b16 %v1548
    %v1620 = vunpack.c.l.b16 %v1549
    %v1621 = vunpack.c.l.b16 %v1550
    %v1622 = vunpack.c.h.b16 %v1550
    %v1623 = vunpack.c.l.b16 %v1551
    %v1624 = vunpack.c.l.b16 %v1552
    %v1625 = vunpack.c.h.b16 %v1552
    %v1626 = vunpack.c.l.b16 %v1553
    %v1627 = vunpack.c.l.b16 %v1554
    %v1628 = vunpack.c.h.b16 %v1554
    %v1629 = vunpack.c.l.b16 %v1555
    %v1630 = vunpack.c.l.b16 %v1556
    %v1631 = vunpack.c.h.b16 %v1556
    %v1632 = vunpack.c.l.b16 %v1557
    %v1633 = vunpack.c.l.b16 %v1558
    %v1634 = vunpack.c.h.b16 %v1558
    %v1635 = vunpack.c.l.b16 %v1559
    %v1636 = vunpack.c.l.b16 %v1560
    %v1637 = vunpack.c.h.b16 %v1560
    %v1638 = vunpack.c.l.b16 %v1561
    %v1639 = vunpack.c.l.b16 %v1562
    %v1640 = vunpack.c.h.b16 %v1562
    %v1641 = vunpack.c.l.b16 %v1563
    %v1642 = vunpack.c.l.b16 %v1564
    %v1643 = vunpack.c.h.b16 %v1564
    %v1644 = vunpack.c.l.b16 %v1565
    %v1645 = vunpack.c.l.b16 %v1566
    %v1646 = vunpack.c.h.b16 %v1566
    %v1647 = vunpack.c.l.b16 %v1567
    %v1648 = vunpack.c.l.b16 %v1568
    %v1649 = vunpack.c.h.b16 %v1568
    %v1650 = vunpack.c.l.b16 %v1569
    %v1651 = vunpack.c.l.b16 %v1570
    %v1652 = vunpack.c.h.b16 %v1570
    %v1653 = vunpack.c.l.b16 %v1571
    %v1654 = vpack.c.b16 %v1609, %v1606
    %v1655 = vpack.c.b16 %v1610, %v1607
    %v1656 = vpack.c.b16 %v1611, %v1608
    %v1657 = vpack.c.b16 %v1615, %v1612
    %v1658 = vpack.c.b16 %v1616, %v1613
    %v1659 = vpack.c.b16 %v1617, %v1614
    %v1660 = vpack.c.b16 %v1621, %v1618
    %v1661 = vpack.c.b16 %v1622, %v1619
    %v1662 = vpack.c.b16 %v1623, %v1620
    %v1663 = vpack.c.b16 %v1627, %v1624
    %v1664 = vpack.c.b16 %v1628, %v1625
    %v1665 = vpack.c.b16 %v1629, %v1626
    %v1666 = vpack.c.b16 %v1633, %v1630
    %v1667 = vpack.c.b16 %v1634, %v1631
    %v1668 = vpack.c.b16 %v1635, %v1632
    %v1669 = vpack.c.b16 %v1639, %v1636
    %v1670 = vpack.c.b16 %v1640, %v1637
    %v1671 = vpack.c.b16 %v1641, %v1638
    %v1672 = vpack.c.b16 %v1645, %v1642
    %v1673 = vpack.c.b16 %v1646, %v1643
    %v1674 = vpack.c.b16 %v1647, %v1644
    %v1675 = vpack.c.b16 %v1651, %v1648
    %v1676 = vpack.c.b16 %v1652, %v1649
    %v1677 = vpack.c.b16 %v1653, %v1650
    %1702 = vmatprep.subr.bf16.mxu0 %v1655
    %1703 = vmatpush1.bf16.msra.mxu0 %v1654
    %1704 = vmatprep.subr.bf16.mxu0 %v1658
    %1705 = vmatpush1.bf16.msra.mxu0 %v1657
    %1706 = vmatprep.subr.bf16.mxu0 %v1661
    %1707 = vmatpush1.bf16.msra.mxu0 %v1660
    %1708 = vmatprep.subr.bf16.mxu0 %v1664
    %1709 = vmatpush1.bf16.msra.mxu0 %v1663
    %1710 = vmatprep.subr.bf16.mxu0 %v1667
    %1711 = vmatpush1.bf16.msra.mxu0 %v1666
    %1712 = vmatprep.subr.bf16.mxu0 %v1670
    %1713 = vmatpush1.bf16.msra.mxu0 %v1669
    %1714 = vmatprep.subr.bf16.mxu0 %v1673
    %1715 = vmatpush1.bf16.msra.mxu0 %v1672
    %1716 = vmatprep.subr.bf16.mxu0 %v1676
    %1717 = vmatpush1.bf16.msra.mxu0 %v1675
    %1718 = vmatprep.subr.bf16.mxu0 0
    %1719 = vmatpush1.bf16.msra.mxu0 0
    %1720 = vmatprep.subr.bf16.mxu0 0
    %1721 = vmatpush1.bf16.msra.mxu0 0
    %1722 = vmatprep.subr.bf16.mxu0 0
    %1723 = vmatpush1.bf16.msra.mxu0 0
    %1724 = vmatprep.subr.bf16.mxu0 0
    %1725 = vmatpush1.bf16.msra.mxu0 0
    %1726 = vmatprep.subr.bf16.mxu0 0
    %1727 = vmatpush1.bf16.msra.mxu0 0
    %1728 = vmatprep.subr.bf16.mxu0 0
    %1729 = vmatpush1.bf16.msra.mxu0 0
    %1730 = vmatprep.subr.bf16.mxu0 0
    %1731 = vmatpush1.bf16.msra.mxu0 0
    %1732 = vmatprep.subr.bf16.mxu0 0
    %1733 = vmatpush1.bf16.msra.mxu0 0
    %1734 = vmatprep.mubr.bf16.mxu0 0
    %1735 = vmatmul.mubr.bf16.gmra.mrb[0].mxu0 %v1572
    %v1736 = vpop.f32.mrb[0].mxu0
    %v1737 = vadd.f32 0.0, %v1736
    %v1738 = vpop.f32.mrb[0].mxu0
    %v1739 = vadd.f32 0.0, %v1738
    %v1740 = vpop.f32.mrb[0].mxu0
    %v1741 = vadd.f32 0.0, %v1740
    %v1742 = vpop.f32.mrb[0].mxu0
    %v1743 = vadd.f32 0.0, %v1742
    %1744 = vmatprep.mubr.bf16.mxu0 0
    %1745 = vmatmul.mubr.bf16.gmra.mrb[0].mxu0 %v1573
    %v1746 = vpop.f32.mrb[0].mxu0
    %v1747 = vadd.f32 0.0, %v1746
    %v1748 = vpop.f32.mrb[0].mxu0
    %v1749 = vadd.f32 0.0, %v1748
    %v1750 = vpop.f32.mrb[0].mxu0
    %v1751 = vadd.f32 0.0, %v1750
    %v1752 = vpop.f32.mrb[0].mxu0
    %v1753 = vadd.f32 0.0, %v1752
    %1754 = vdwg.mxu0
    %1755 = vmatprep.subr.bf16.mxu0 0
    %1756 = vmatpush1.bf16.msra.mxu0 %v1656
    %1757 = vmatprep.subr.bf16.mxu0 0
    %1758 = vmatpush1.bf16.msra.mxu0 %v1659
    %1759 = vmatprep.subr.bf16.mxu0 0
    %1760 = vmatpush1.bf16.msra.mxu0 %v1662
    %1761 = vmatprep.subr.bf16.mxu0 0
    %1762 = vmatpush1.bf16.msra.mxu0 %v1665
    %1763 = vmatprep.subr.bf16.mxu0 0
    %1764 = vmatpush1.bf16.msra.mxu0 %v1668
    %1765 = vmatprep.subr.bf16.mxu0 0
    %1766 = vmatpush1.bf16.msra.mxu0 %v1671
    %1767 = vmatprep.subr.bf16.mxu0 0
    %1768 = vmatpush1.bf16.msra.mxu0 %v1674
    %1769 = vmatprep.subr.bf16.mxu0 0
    %1770 = vmatpush1.bf16.msra.mxu0 %v1677
    %1771 = vmatprep.subr.bf16.mxu0 0
    %1772 = vmatpush1.bf16.msra.mxu0 0
    %1773 = vmatprep.subr.bf16.mxu0 0
    %1774 = vmatpush1.bf16.msra.mxu0 0
    %1775 = vmatprep.subr.bf16.mxu0 0
    %1776 = vmatpush1.bf16.msra.mxu0 0
    %1777 = vmatprep.subr.bf16.mxu0 0
    %1778 = vmatpush1.bf16.msra.mxu0 0
    %1779 = vmatprep.subr.bf16.mxu0 0
    %1780 = vmatpush1.bf16.msra.mxu0 0
    %1781 = vmatprep.subr.bf16.mxu0 0
    %1782 = vmatpush1.bf16.msra.mxu0 0
    %1783 = vmatprep.subr.bf16.mxu0 0
    %1784 = vmatpush1.bf16.msra.mxu0 0
    %1785 = vmatprep.subr.bf16.mxu0 0
    %1786 = vmatpush1.bf16.msra.mxu0 0
    %1787 = vmatprep.mubr.bf16.mxu0 0
    %1788 = vmatmul.mubr.bf16.gmra.mrb[0].mxu0 %v1572
    %v1789 = vpop.f32.mrb[0].mxu0
    %v1790 = vadd.f32 0.0, %v1789
    %v1791 = vpop.f32.mrb[0].mxu0
    %v1792 = vpop.f32.mrb[0].mxu0
    %v1793 = vadd.f32 0.0, %v1792
    %v1794 = vpop.f32.mrb[0].mxu0
    %1795 = vmatprep.mubr.bf16.mxu0 0
    %1796 = vmatmul.mubr.bf16.gmra.mrb[0].mxu0 %v1573
    %v1797 = vpop.f32.mrb[0].mxu0
    %v1798 = vadd.f32 0.0, %v1797
    %v1799 = vpop.f32.mrb[0].mxu0
    %v1800 = vpop.f32.mrb[0].mxu0
    %v1801 = vadd.f32 0.0, %v1800
    %v1802 = vpop.f32.mrb[0].mxu0
    %1803 = vdwg.mxu0
    %v1804 = vmul.f32 %v1737, 0.125
    %v1805 = vmul.f32 %v1741, 0.125
    %v1806 = vmul.f32 %v1747, 0.125
    %v1807 = vmul.f32 %v1751, 0.125
    %s1808 = scalar_lea.vmem %s4, 64
    %v1809 = vld [vmem:[%s1808] sm:$0xf]
    %v1810 = vld [vmem:[%s1808 + $0x4] sm:$0xf]
    %v1811 = vld [vmem:[%s1808 + $0x8] sm:$0xf]
    %v1812 = vld [vmem:[%s1808 + $0xc] sm:$0xf]
    %v1813 = vld [vmem:[%s1808 + $0x10] sm:$0xf]
    %v1814 = vld [vmem:[%s1808 + $0x14] sm:$0xf]
    %v1815 = vld [vmem:[%s1808 + $0x18] sm:$0xf]
    %v1816 = vld [vmem:[%s1808 + $0x1c] sm:$0xf]
    %v1817 = vld [vmem:[%s1808 + $0x20] sm:$0xf]
    %v1818 = vld [vmem:[%s1808 + $0x24] sm:$0xf]
    %v1819 = vld [vmem:[%s1808 + $0x28] sm:$0xf]
    %v1820 = vld [vmem:[%s1808 + $0x2c] sm:$0xf]
    %v1821 = vld [vmem:[%s1808 + $0x30] sm:$0xf]
    %v1822 = vld [vmem:[%s1808 + $0x34] sm:$0xf]
    %v1823 = vld [vmem:[%s1808 + $0x38] sm:$0xf]
    %v1824 = vld [vmem:[%s1808 + $0x3c] sm:$0xf]
    %v1825 = vpack.c.bf16 %v1805, %v1804
    %v1826 = vpack.c.bf16 %v1807, %v1806
    %v1827 = vpack.c.bf16 %v1743, %v1739
    %v1828 = vpack.c.bf16 %v1753, %v1749
    %v1829 = vpack.c.bf16 %v1793, %v1790
    %v1830 = vpack.c.bf16 %v1801, %v1798
    %v1832 = vsel %vm399, %v1825, 0
    %v1835 = vsel %vm399, %v1826, 0
    %v1838 = vsel %vm399, %v1827, 0
    %v1841 = vsel %vm399, %v1828, 0
    %1843 = vmatprep.subr.bf16.mxu0 0
    %1844 = vmatpush1.bf16.xpose.msra.mxu0 %v1838
    %1845 = vmatprep.subr.bf16.mxu0 0
    %1846 = vmatpush1.bf16.xpose.msra.mxu0 %v1841
    %1847 = vmatprep.subr.bf16.mxu0 0
    %1848 = vmatpush1.bf16.xpose.msra.mxu0 0
    %1849 = vmatprep.subr.bf16.mxu0 0
    %1850 = vmatpush1.bf16.xpose.msra.mxu0 0
    %1851 = vmatprep.subr.bf16.mxu0 0
    %1852 = vmatpush1.bf16.xpose.msra.mxu0 0
    %1853 = vmatprep.subr.bf16.mxu0 0
    %1854 = vmatpush1.bf16.xpose.msra.mxu0 0
    %1855 = vmatprep.subr.bf16.mxu0 0
    %1856 = vmatpush1.bf16.xpose.msra.mxu0 0
    %1857 = vmatprep.subr.bf16.mxu0 0
    %1858 = vmatpush1.bf16.xpose.msra.mxu0 0
    %1859 = vmatprep.subr.bf16.mxu0 0
    %1860 = vmatpush1.bf16.xpose.msra.mxu0 0
    %1861 = vmatprep.subr.bf16.mxu0 0
    %1862 = vmatpush1.bf16.xpose.msra.mxu0 0
    %1863 = vmatprep.subr.bf16.mxu0 0
    %1864 = vmatpush1.bf16.xpose.msra.mxu0 0
    %1865 = vmatprep.subr.bf16.mxu0 0
    %1866 = vmatpush1.bf16.xpose.msra.mxu0 0
    %1867 = vmatprep.subr.bf16.mxu0 0
    %1868 = vmatpush1.bf16.xpose.msra.mxu0 0
    %1869 = vmatprep.subr.bf16.mxu0 0
    %1870 = vmatpush1.bf16.xpose.msra.mxu0 0
    %1871 = vmatprep.subr.bf16.mxu0 0
    %1872 = vmatpush1.bf16.xpose.msra.mxu0 0
    %1873 = vmatprep.subr.bf16.mxu0 0
    %1874 = vmatpush1.bf16.xpose.msra.mxu0 0
    %1875 = vmatprep.mubr.bf16.mxu0 0
    %1876 = vmatmul.mubr.bf16.gmra.mrb[0].mxu0 %v1832
    %v1877 = vpop.f32.mrb[0].mxu0
    %v1878 = vadd.f32 %v45, %v1877
    %v1879 = vpop.f32.mrb[0].mxu0
    %v1880 = vpop.f32.mrb[0].mxu0
    %v1881 = vadd.f32 %v46, %v1880
    %v1882 = vpop.f32.mrb[0].mxu0
    %1883 = vmatprep.mubr.bf16.mxu0 0
    %1884 = vmatmul.mubr.bf16.gmra.mrb[0].mxu0 %v1835
    %v1885 = vpop.f32.mrb[0].mxu0
    %v1886 = vadd.f32 %v47, %v1885
    %v1887 = vpop.f32.mrb[0].mxu0
    %v1888 = vpop.f32.mrb[0].mxu0
    %v1889 = vadd.f32 %v48, %v1888
    %v1890 = vpop.f32.mrb[0].mxu0
    %1891 = vdwg.mxu0
    %v1892 = vsel %vm461, %v1878, -inf
    %1893 = vmax.xlane.f32.xlu0 %v1892
    %v1894 = vpop.xlane.xlu0 %1893
    %v1895 = vsel %vm461, %v1881, -inf
    %1896 = vmax.xlane.f32.xlu0 %v1895
    %v1897 = vpop.xlane.xlu0 %1896
    %v1898 = vsel %vm461, %v1886, -inf
    %1899 = vmax.xlane.f32.xlu0 %v1898
    %v1900 = vpop.xlane.xlu0 %1899
    %v1901 = vsel %vm461, %v1889, -inf
    %1902 = vmax.xlane.f32.xlu0 %v1901
    %v1903 = vpop.xlane.xlu0 %1902
    %v1904 = vsub.f32 %v1878, %v1894
    %v1905 = vsub.f32 %v1881, %v1897
    %v1906 = vsub.f32 %v1886, %v1900
    %v1907 = vsub.f32 %v1889, %v1903
    %v1908 = vmul.f32 %v1904, 1.442695
    %v1909 = vpow.pop %v1908
    %v1910 = vmul.f32 %v1905, 1.442695
    %v1911 = vpow.pop %v1910
    %v1912 = vmul.f32 %v1906, 1.442695
    %v1913 = vpow.pop %v1912
    %v1914 = vmul.f32 %v1907, 1.442695
    %v1915 = vpow.pop %v1914
    %v1916 = vsel %vm461, %v1909, 0.0
    %1917 = vadd.xlane.f32.xlu0 %v1916
    %v1918 = vpop.xlane.xlu0 %1917
    %v1919 = vsel %vm461, %v1911, 0.0
    %1920 = vadd.xlane.f32.xlu0 %v1919
    %v1921 = vpop.xlane.xlu0 %1920
    %v1922 = vsel %vm461, %v1913, 0.0
    %1923 = vadd.xlane.f32.xlu0 %v1922
    %v1924 = vpop.xlane.xlu0 %1923
    %v1925 = vsel %vm461, %v1915, 0.0
    %1926 = vadd.xlane.f32.xlu0 %v1925
    %v1927 = vpop.xlane.xlu0 %1926
    %v1928 = vrcp.pop %v1918
    %v1929 = vrcp.pop %v1921
    %v1930 = vrcp.pop %v1924
    %v1931 = vrcp.pop %v1927
    %v1932 = vmul.f32 %v1909, %v1928
    %v1933 = vmul.f32 %v1911, %v1929
    %v1934 = vmul.f32 %v1913, %v1930
    %v1935 = vmul.f32 %v1915, %v1931
    %v1936 = vpack.c.bf16 %v1933, %v1932
    %v1937 = vpack.c.bf16 %v1935, %v1934
    %v1939 = vsel %vm461, %v1936, 0
    %v1942 = vsel %vm461, %v1937, 0
    %1944 = vmatprep.subr.bf16.mxu0 0
    %1945 = vmatpush1.bf16.msra.mxu0 %v1829
    %1946 = vmatprep.subr.bf16.mxu0 0
    %1947 = vmatpush1.bf16.msra.mxu0 %v1830
    %1948 = vmatprep.subr.bf16.mxu0 0
    %1949 = vmatpush1.bf16.msra.mxu0 0
    %1950 = vmatprep.subr.bf16.mxu0 0
    %1951 = vmatpush1.bf16.msra.mxu0 0
    %1952 = vmatprep.subr.bf16.mxu0 0
    %1953 = vmatpush1.bf16.msra.mxu0 0
    %1954 = vmatprep.subr.bf16.mxu0 0
    %1955 = vmatpush1.bf16.msra.mxu0 0
    %1956 = vmatprep.subr.bf16.mxu0 0
    %1957 = vmatpush1.bf16.msra.mxu0 0
    %1958 = vmatprep.subr.bf16.mxu0 0
    %1959 = vmatpush1.bf16.msra.mxu0 0
    %1960 = vmatprep.subr.bf16.mxu0 0
    %1961 = vmatpush1.bf16.msra.mxu0 0
    %1962 = vmatprep.subr.bf16.mxu0 0
    %1963 = vmatpush1.bf16.msra.mxu0 0
    %1964 = vmatprep.subr.bf16.mxu0 0
    %1965 = vmatpush1.bf16.msra.mxu0 0
    %1966 = vmatprep.subr.bf16.mxu0 0
    %1967 = vmatpush1.bf16.msra.mxu0 0
    %1968 = vmatprep.subr.bf16.mxu0 0
    %1969 = vmatpush1.bf16.msra.mxu0 0
    %1970 = vmatprep.subr.bf16.mxu0 0
    %1971 = vmatpush1.bf16.msra.mxu0 0
    %1972 = vmatprep.subr.bf16.mxu0 0
    %1973 = vmatpush1.bf16.msra.mxu0 0
    %1974 = vmatprep.subr.bf16.mxu0 0
    %1975 = vmatpush1.bf16.msra.mxu0 0
    %1976 = vmatprep.mubr.bf16.mxu0 0
    %1977 = vmatmul.mubr.bf16.gmra.mrb[0].mxu0 %v1939
    %v1978 = vpop.f32.mrb[0].mxu0
    %v1979 = vadd.f32 0.0, %v1978
    %v1980 = vpop.f32.mrb[0].mxu0
    %v1981 = vpop.f32.mrb[0].mxu0
    %v1982 = vadd.f32 0.0, %v1981
    %v1983 = vpop.f32.mrb[0].mxu0
    %1984 = vmatprep.mubr.bf16.mxu0 0
    %1985 = vmatmul.mubr.bf16.gmra.mrb[0].mxu0 %v1942
    %v1986 = vpop.f32.mrb[0].mxu0
    %v1987 = vadd.f32 0.0, %v1986
    %v1988 = vpop.f32.mrb[0].mxu0
    %v1989 = vpop.f32.mrb[0].mxu0
    %v1990 = vadd.f32 0.0, %v1989
    %v1991 = vpop.f32.mrb[0].mxu0
    %1992 = vdwg.mxu0
    %v1993 = vpack.c.bf16 %v1982, %v1979
    %v1994 = vpack.c.bf16 %v1990, %v1987
    %1997 = vrot.lane.b32.xlu0 %v1825, 64
    %v1998 = vpop.permute.xlu0 %1997
    %1999 = vrot.lane.b32.xlu0 %v1826, 64
    %v2000 = vpop.permute.xlu0 %1999
    %2003 = vrot.lane.b32.xlu0 %v1827, 64
    %v2004 = vpop.permute.xlu0 %2003
    %2005 = vrot.lane.b32.xlu0 %v1828, 64
    %v2006 = vpop.permute.xlu0 %2005
    %v2008 = vsel %vm399, %v1998, 0
    %v2011 = vsel %vm399, %v2000, 0
    %v2014 = vsel %vm399, %v2004, 0
    %v2017 = vsel %vm399, %v2006, 0
    %2019 = vmatprep.subr.bf16.mxu0 0
    %2020 = vmatpush1.bf16.xpose.msra.mxu0 %v2014
    %2021 = vmatprep.subr.bf16.mxu0 0
    %2022 = vmatpush1.bf16.xpose.msra.mxu0 %v2017
    %2023 = vmatprep.subr.bf16.mxu0 0
    %2024 = vmatpush1.bf16.xpose.msra.mxu0 0
    %2025 = vmatprep.subr.bf16.mxu0 0
    %2026 = vmatpush1.bf16.xpose.msra.mxu0 0
    %2027 = vmatprep.subr.bf16.mxu0 0
    %2028 = vmatpush1.bf16.xpose.msra.mxu0 0
    %2029 = vmatprep.subr.bf16.mxu0 0
    %2030 = vmatpush1.bf16.xpose.msra.mxu0 0
    %2031 = vmatprep.subr.bf16.mxu0 0
    %2032 = vmatpush1.bf16.xpose.msra.mxu0 0
    %2033 = vmatprep.subr.bf16.mxu0 0
    %2034 = vmatpush1.bf16.xpose.msra.mxu0 0
    %2035 = vmatprep.subr.bf16.mxu0 0
    %2036 = vmatpush1.bf16.xpose.msra.mxu0 0
    %2037 = vmatprep.subr.bf16.mxu0 0
    %2038 = vmatpush1.bf16.xpose.msra.mxu0 0
    %2039 = vmatprep.subr.bf16.mxu0 0
    %2040 = vmatpush1.bf16.xpose.msra.mxu0 0
    %2041 = vmatprep.subr.bf16.mxu0 0
    %2042 = vmatpush1.bf16.xpose.msra.mxu0 0
    %2043 = vmatprep.subr.bf16.mxu0 0
    %2044 = vmatpush1.bf16.xpose.msra.mxu0 0
    %2045 = vmatprep.subr.bf16.mxu0 0
    %2046 = vmatpush1.bf16.xpose.msra.mxu0 0
    %2047 = vmatprep.subr.bf16.mxu0 0
    %2048 = vmatpush1.bf16.xpose.msra.mxu0 0
    %2049 = vmatprep.subr.bf16.mxu0 0
    %2050 = vmatpush1.bf16.xpose.msra.mxu0 0
    %2051 = vmatprep.mubr.bf16.mxu0 0
    %2052 = vmatmul.mubr.bf16.gmra.mrb[0].mxu0 %v2008
    %v2053 = vpop.f32.mrb[0].mxu0
    %v2054 = vadd.f32 %v45, %v2053
    %v2055 = vpop.f32.mrb[0].mxu0
    %v2056 = vpop.f32.mrb[0].mxu0
    %v2057 = vadd.f32 %v46, %v2056
    %v2058 = vpop.f32.mrb[0].mxu0
    %2059 = vmatprep.mubr.bf16.mxu0 0
    %2060 = vmatmul.mubr.bf16.gmra.mrb[0].mxu0 %v2011
    %v2061 = vpop.f32.mrb[0].mxu0
    %v2062 = vadd.f32 %v47, %v2061
    %v2063 = vpop.f32.mrb[0].mxu0
    %v2064 = vpop.f32.mrb[0].mxu0
    %v2065 = vadd.f32 %v48, %v2064
    %v2066 = vpop.f32.mrb[0].mxu0
    %2067 = vdwg.mxu0
    %v2068 = vsel %vm461, %v2054, -inf
    %2069 = vmax.xlane.f32.xlu0 %v2068
    %v2070 = vpop.xlane.xlu0 %2069
    %v2071 = vsel %vm461, %v2057, -inf
    %2072 = vmax.xlane.f32.xlu0 %v2071
    %v2073 = vpop.xlane.xlu0 %2072
    %v2074 = vsel %vm461, %v2062, -inf
    %2075 = vmax.xlane.f32.xlu0 %v2074
    %v2076 = vpop.xlane.xlu0 %2075
    %v2077 = vsel %vm461, %v2065, -inf
    %2078 = vmax.xlane.f32.xlu0 %v2077
    %v2079 = vpop.xlane.xlu0 %2078
    %v2080 = vsub.f32 %v2054, %v2070
    %v2081 = vsub.f32 %v2057, %v2073
    %v2082 = vsub.f32 %v2062, %v2076
    %v2083 = vsub.f32 %v2065, %v2079
    %v2084 = vmul.f32 %v2080, 1.442695
    %v2085 = vpow.pop %v2084
    %v2086 = vmul.f32 %v2081, 1.442695
    %v2087 = vpow.pop %v2086
    %v2088 = vmul.f32 %v2082, 1.442695
    %v2089 = vpow.pop %v2088
    %v2090 = vmul.f32 %v2083, 1.442695
    %v2091 = vpow.pop %v2090
    %v2092 = vsel %vm461, %v2085, 0.0
    %2093 = vadd.xlane.f32.xlu0 %v2092
    %v2094 = vpop.xlane.xlu0 %2093
    %v2095 = vsel %vm461, %v2087, 0.0
    %2096 = vadd.xlane.f32.xlu0 %v2095
    %v2097 = vpop.xlane.xlu0 %2096
    %v2098 = vsel %vm461, %v2089, 0.0
    %2099 = vadd.xlane.f32.xlu0 %v2098
    %v2100 = vpop.xlane.xlu0 %2099
    %v2101 = vsel %vm461, %v2091, 0.0
    %2102 = vadd.xlane.f32.xlu0 %v2101
    %v2103 = vpop.xlane.xlu0 %2102
    %v2104 = vrcp.pop %v2094
    %v2105 = vrcp.pop %v2097
    %v2106 = vrcp.pop %v2100
    %v2107 = vrcp.pop %v2103
    %v2108 = vmul.f32 %v2085, %v2104
    %v2109 = vmul.f32 %v2087, %v2105
    %v2110 = vmul.f32 %v2089, %v2106
    %v2111 = vmul.f32 %v2091, %v2107
    %v2112 = vpack.c.bf16 %v2109, %v2108
    %v2113 = vpack.c.bf16 %v2111, %v2110
    %2116 = vrot.lane.b32.xlu0 %v1829, 64
    %v2117 = vpop.permute.xlu0 %2116
    %2118 = vrot.lane.b32.xlu0 %v1830, 64
    %v2119 = vpop.permute.xlu0 %2118
    %v2123 = vsel %vm461, %v2112, 0
    %v2126 = vsel %vm461, %v2113, 0
    %2128 = vmatprep.subr.bf16.mxu0 0
    %2129 = vmatpush1.bf16.msra.mxu0 %v2117
    %2130 = vmatprep.subr.bf16.mxu0 0
    %2131 = vmatpush1.bf16.msra.mxu0 %v2119
    %2132 = vmatprep.subr.bf16.mxu0 0
    %2133 = vmatpush1.bf16.msra.mxu0 0
    %2134 = vmatprep.subr.bf16.mxu0 0
    %2135 = vmatpush1.bf16.msra.mxu0 0
    %2136 = vmatprep.subr.bf16.mxu0 0
    %2137 = vmatpush1.bf16.msra.mxu0 0
    %2138 = vmatprep.subr.bf16.mxu0 0
    %2139 = vmatpush1.bf16.msra.mxu0 0
    %2140 = vmatprep.subr.bf16.mxu0 0
    %2141 = vmatpush1.bf16.msra.mxu0 0
    %2142 = vmatprep.subr.bf16.mxu0 0
    %2143 = vmatpush1.bf16.msra.mxu0 0
    %2144 = vmatprep.subr.bf16.mxu0 0
    %2145 = vmatpush1.bf16.msra.mxu0 0
    %2146 = vmatprep.subr.bf16.mxu0 0
    %2147 = vmatpush1.bf16.msra.mxu0 0
    %2148 = vmatprep.subr.bf16.mxu0 0
    %2149 = vmatpush1.bf16.msra.mxu0 0
    %2150 = vmatprep.subr.bf16.mxu0 0
    %2151 = vmatpush1.bf16.msra.mxu0 0
    %2152 = vmatprep.subr.bf16.mxu0 0
    %2153 = vmatpush1.bf16.msra.mxu0 0
    %2154 = vmatprep.subr.bf16.mxu0 0
    %2155 = vmatpush1.bf16.msra.mxu0 0
    %2156 = vmatprep.subr.bf16.mxu0 0
    %2157 = vmatpush1.bf16.msra.mxu0 0
    %2158 = vmatprep.subr.bf16.mxu0 0
    %2159 = vmatpush1.bf16.msra.mxu0 0
    %2160 = vmatprep.mubr.bf16.mxu0 0
    %2161 = vmatmul.mubr.bf16.gmra.mrb[0].mxu0 %v2123
    %v2162 = vpop.f32.mrb[0].mxu0
    %v2163 = vadd.f32 0.0, %v2162
    %v2164 = vpop.f32.mrb[0].mxu0
    %v2165 = vpop.f32.mrb[0].mxu0
    %v2166 = vadd.f32 0.0, %v2165
    %v2167 = vpop.f32.mrb[0].mxu0
    %2168 = vmatprep.mubr.bf16.mxu0 0
    %2169 = vmatmul.mubr.bf16.gmra.mrb[0].mxu0 %v2126
    %v2170 = vpop.f32.mrb[0].mxu0
    %v2171 = vadd.f32 0.0, %v2170
    %v2172 = vpop.f32.mrb[0].mxu0
    %v2173 = vpop.f32.mrb[0].mxu0
    %v2174 = vadd.f32 0.0, %v2173
    %v2175 = vpop.f32.mrb[0].mxu0
    %2176 = vdwg.mxu0
    %v2177 = vpack.c.bf16 %v2166, %v2163
    %v2178 = vpack.c.bf16 %v2174, %v2171
    %v2187 = vunpack.c.l.b16 %v1817
    %v2188 = vunpack.c.l.b16 %v1818
    %v2189 = vunpack.c.l.b16 %v1819
    %v2190 = vunpack.c.l.b16 %v1820
    %v2191 = vunpack.c.l.b16 %v1821
    %v2192 = vunpack.c.l.b16 %v1822
    %v2193 = vunpack.c.l.b16 %v1823
    %v2194 = vunpack.c.l.b16 %v1824
    %v2195 = vpack.c.b16 %v2188, %v2187
    %v2196 = vpack.c.b16 %v2190, %v2189
    %v2197 = vpack.c.b16 %v2192, %v2191
    %v2198 = vpack.c.b16 %v2194, %v2193
    %v2204 = vsel %vm399, %v2177, 0
    %v2207 = vsel %vm399, %v2178, 0
    %2209 = vmatprep.subr.bf16.mxu0 0
    %2210 = vmatpush1.bf16.msra.mxu0 %v2195
    %2211 = vmatprep.subr.bf16.mxu0 0
    %2212 = vmatpush1.bf16.msra.mxu0 %v2196
    %2213 = vmatprep.subr.bf16.mxu0 0
    %2214 = vmatpush1.bf16.msra.mxu0 %v2197
    %2215 = vmatprep.subr.bf16.mxu0 0
    %2216 = vmatpush1.bf16.msra.mxu0 %v2198
    %2217 = vmatprep.subr.bf16.mxu0 0
    %2218 = vmatpush1.bf16.msra.mxu0 0
    %2219 = vmatprep.subr.bf16.mxu0 0
    %2220 = vmatpush1.bf16.msra.mxu0 0
    %2221 = vmatprep.subr.bf16.mxu0 0
    %2222 = vmatpush1.bf16.msra.mxu0 0
    %2223 = vmatprep.subr.bf16.mxu0 0
    %2224 = vmatpush1.bf16.msra.mxu0 0
    %2225 = vmatprep.subr.bf16.mxu0 0
    %2226 = vmatpush1.bf16.msra.mxu0 0
    %2227 = vmatprep.subr.bf16.mxu0 0
    %2228 = vmatpush1.bf16.msra.mxu0 0
    %2229 = vmatprep.subr.bf16.mxu0 0
    %2230 = vmatpush1.bf16.msra.mxu0 0
    %2231 = vmatprep.subr.bf16.mxu0 0
    %2232 = vmatpush1.bf16.msra.mxu0 0
    %2233 = vmatprep.subr.bf16.mxu0 0
    %2234 = vmatpush1.bf16.msra.mxu0 0
    %2235 = vmatprep.subr.bf16.mxu0 0
    %2236 = vmatpush1.bf16.msra.mxu0 0
    %2237 = vmatprep.subr.bf16.mxu0 0
    %2238 = vmatpush1.bf16.msra.mxu0 0
    %2239 = vmatprep.subr.bf16.mxu0 0
    %2240 = vmatpush1.bf16.msra.mxu0 0
    %2241 = vmatprep.mubr.bf16.mxu0 0
    %2242 = vmatmul.mubr.bf16.gmra.mrb[0].mxu0 %v2204
    %v2243 = vpop.f32.mrb[0].mxu0
    %v2244 = vadd.f32 0.0, %v2243
    %v2245 = vpop.f32.mrb[0].mxu0
    %v2246 = vpop.f32.mrb[0].mxu0
    %v2247 = vadd.f32 0.0, %v2246
    %v2248 = vpop.f32.mrb[0].mxu0
    %2249 = vmatprep.mubr.bf16.mxu0 0
    %2250 = vmatmul.mubr.bf16.gmra.mrb[0].mxu0 %v2207
    %v2251 = vpop.f32.mrb[0].mxu0
    %v2252 = vadd.f32 0.0, %v2251
    %v2253 = vpop.f32.mrb[0].mxu0
    %v2254 = vpop.f32.mrb[0].mxu0
    %v2255 = vadd.f32 0.0, %v2254
    %v2256 = vpop.f32.mrb[0].mxu0
    %2257 = vdwg.mxu0
    %v2266 = vunpack.c.l.b16 %v1809
    %v2267 = vunpack.c.l.b16 %v1810
    %v2268 = vunpack.c.l.b16 %v1811
    %v2269 = vunpack.c.l.b16 %v1812
    %v2270 = vunpack.c.l.b16 %v1813
    %v2271 = vunpack.c.l.b16 %v1814
    %v2272 = vunpack.c.l.b16 %v1815
    %v2273 = vunpack.c.l.b16 %v1816
    %v2274 = vpack.c.b16 %v2267, %v2266
    %v2275 = vpack.c.b16 %v2269, %v2268
    %v2276 = vpack.c.b16 %v2271, %v2270
    %v2277 = vpack.c.b16 %v2273, %v2272
    %v2283 = vsel %vm399, %v1993, 0
    %v2286 = vsel %vm399, %v1994, 0
    %2288 = vmatprep.subr.bf16.mxu0 0
    %2289 = vmatpush1.bf16.msra.mxu0 %v2274
    %2290 = vmatprep.subr.bf16.mxu0 0
    %2291 = vmatpush1.bf16.msra.mxu0 %v2275
    %2292 = vmatprep.subr.bf16.mxu0 0
    %2293 = vmatpush1.bf16.msra.mxu0 %v2276
    %2294 = vmatprep.subr.bf16.mxu0 0
    %2295 = vmatpush1.bf16.msra.mxu0 %v2277
    %2296 = vmatprep.subr.bf16.mxu0 0
    %2297 = vmatpush1.bf16.msra.mxu0 0
    %2298 = vmatprep.subr.bf16.mxu0 0
    %2299 = vmatpush1.bf16.msra.mxu0 0
    %2300 = vmatprep.subr.bf16.mxu0 0
    %2301 = vmatpush1.bf16.msra.mxu0 0
    %2302 = vmatprep.subr.bf16.mxu0 0
    %2303 = vmatpush1.bf16.msra.mxu0 0
    %2304 = vmatprep.subr.bf16.mxu0 0
    %2305 = vmatpush1.bf16.msra.mxu0 0
    %2306 = vmatprep.subr.bf16.mxu0 0
    %2307 = vmatpush1.bf16.msra.mxu0 0
    %2308 = vmatprep.subr.bf16.mxu0 0
    %2309 = vmatpush1.bf16.msra.mxu0 0
    %2310 = vmatprep.subr.bf16.mxu0 0
    %2311 = vmatpush1.bf16.msra.mxu0 0
    %2312 = vmatprep.subr.bf16.mxu0 0
    %2313 = vmatpush1.bf16.msra.mxu0 0
    %2314 = vmatprep.subr.bf16.mxu0 0
    %2315 = vmatpush1.bf16.msra.mxu0 0
    %2316 = vmatprep.subr.bf16.mxu0 0
    %2317 = vmatpush1.bf16.msra.mxu0 0
    %2318 = vmatprep.subr.bf16.mxu0 0
    %2319 = vmatpush1.bf16.msra.mxu0 0
    %2320 = vmatprep.mubr.bf16.mxu0 0
    %2321 = vmatmul.mubr.bf16.gmra.mrb[0].mxu0 %v2283
    %v2322 = vpop.f32.mrb[0].mxu0
    %v2323 = vadd.f32 %v2244, %v2322
    %v2324 = vpop.f32.mrb[0].mxu0
    %v2325 = vpop.f32.mrb[0].mxu0
    %v2326 = vadd.f32 %v2247, %v2325
    %v2327 = vpop.f32.mrb[0].mxu0
    %2328 = vmatprep.mubr.bf16.mxu0 0
    %2329 = vmatmul.mubr.bf16.gmra.mrb[0].mxu0 %v2286
    %v2330 = vpop.f32.mrb[0].mxu0
    %v2331 = vadd.f32 %v2252, %v2330
    %v2332 = vpop.f32.mrb[0].mxu0
    %v2333 = vpop.f32.mrb[0].mxu0
    %v2334 = vadd.f32 %v2255, %v2333
    %v2335 = vpop.f32.mrb[0].mxu0
    %2336 = vdwg.mxu0
    %v2337 = vadd.f32 %v1495, %v2323
    %v2338 = vadd.f32 %v1496, %v2326
    %v2339 = vadd.f32 %v1497, %v2331
    %v2340 = vadd.f32 %v1498, %v2334
    %s2341 = scalar_lea.vmem %s5, 1
    %v2342 = vld [vmem:[%s2341] sm:$0x1]
    %v2343 = vmul.f32 %v2337, %v2337
    %v2344 = vmul.f32 %v2338, %v2338
    %v2345 = vmul.f32 %v2339, %v2339
    %v2346 = vmul.f32 %v2340, %v2340
    %2347 = vadd.xlane.f32.xlu0 %v2343
    %v2348 = vpop.xlane.xlu0 %2347
    %2349 = vadd.xlane.f32.xlu0 %v2344
    %v2350 = vpop.xlane.xlu0 %2349
    %2351 = vadd.xlane.f32.xlu0 %v2345
    %v2352 = vpop.xlane.xlu0 %2351
    %2353 = vadd.xlane.f32.xlu0 %v2346
    %v2354 = vpop.xlane.xlu0 %2353
    %v2355 = vmul.f32 %v2348, %v82
    %v2356 = vmul.f32 %v2350, %v82
    %v2357 = vmul.f32 %v2352, %v82
    %v2358 = vmul.f32 %v2354, %v82
    %v2359 = vadd.f32 %v2355, 1e-06
    %v2360 = vadd.f32 %v2356, 1e-06
    %v2361 = vadd.f32 %v2357, 1e-06
    %v2362 = vadd.f32 %v2358, 1e-06
    %v2363 = vrsqrt.pop %v2359
    %v2364 = vrsqrt.pop %v2360
    %v2365 = vrsqrt.pop %v2361
    %v2366 = vrsqrt.pop %v2362
    %v2367 = vmul.f32 %v2337, %v2363
    %v2368 = vmul.f32 %v2338, %v2364
    %v2369 = vmul.f32 %v2339, %v2365
    %v2370 = vmul.f32 %v2340, %v2366
    %v2372 = vlaneseq
    %v2373 = vshrl.u32 %v2372, 7
    %v2374 = vsub.s32 0, %v2373
    %v2375 = vrot.slane %v2342, %v2374
    %v2377 = vmul.f32 %v2367, %v2375
    %v2378 = vmul.f32 %v2368, %v2375
    %v2379 = vmul.f32 %v2369, %v2375
    %v2380 = vmul.f32 %v2370, %v2375
    %s2381 = scalar_lea.vmem %s6, 256
    %v2382 = vld [vmem:[%s2381] sm:$0xff]
    %v2383 = vld [vmem:[%s2381 + $0x8] sm:$0xff]
    %v2384 = vld [vmem:[%s2381 + $0x10] sm:$0xff]
    %v2385 = vld [vmem:[%s2381 + $0x18] sm:$0xff]
    %v2386 = vld [vmem:[%s2381 + $0x20] sm:$0xff]
    %v2387 = vld [vmem:[%s2381 + $0x28] sm:$0xff]
    %v2388 = vld [vmem:[%s2381 + $0x30] sm:$0xff]
    %v2389 = vld [vmem:[%s2381 + $0x38] sm:$0xff]
    %v2390 = vld [vmem:[%s2381 + $0x40] sm:$0xff]
    %v2391 = vld [vmem:[%s2381 + $0x48] sm:$0xff]
    %v2392 = vld [vmem:[%s2381 + $0x50] sm:$0xff]
    %v2393 = vld [vmem:[%s2381 + $0x58] sm:$0xff]
    %v2394 = vld [vmem:[%s2381 + $0x60] sm:$0xff]
    %v2395 = vld [vmem:[%s2381 + $0x68] sm:$0xff]
    %v2396 = vld [vmem:[%s2381 + $0x70] sm:$0xff]
    %v2397 = vld [vmem:[%s2381 + $0x78] sm:$0xff]
    %v2398 = vld [vmem:[%s2381 + $0x80] sm:$0xff]
    %v2399 = vld [vmem:[%s2381 + $0x88] sm:$0xff]
    %v2400 = vld [vmem:[%s2381 + $0x90] sm:$0xff]
    %v2401 = vld [vmem:[%s2381 + $0x98] sm:$0xff]
    %v2402 = vld [vmem:[%s2381 + $0xa0] sm:$0xff]
    %v2403 = vld [vmem:[%s2381 + $0xa8] sm:$0xff]
    %v2404 = vld [vmem:[%s2381 + $0xb0] sm:$0xff]
    %v2405 = vld [vmem:[%s2381 + $0xb8] sm:$0xff]
    %v2406 = vld [vmem:[%s2381 + $0xc0] sm:$0xff]
    %v2407 = vld [vmem:[%s2381 + $0xc8] sm:$0xff]
    %v2408 = vld [vmem:[%s2381 + $0xd0] sm:$0xff]
    %v2409 = vld [vmem:[%s2381 + $0xd8] sm:$0xff]
    %v2410 = vld [vmem:[%s2381 + $0xe0] sm:$0xff]
    %v2411 = vld [vmem:[%s2381 + $0xe8] sm:$0xff]
    %v2412 = vld [vmem:[%s2381 + $0xf0] sm:$0xff]
    %v2413 = vld [vmem:[%s2381 + $0xf8] sm:$0xff]
    %v2414 = vpack.c.bf16 %v2378, %v2377
    %v2415 = vpack.c.bf16 %v2380, %v2379
    %v2448 = vunpack.c.l.b16 %v2382
    %v2449 = vunpack.c.h.b16 %v2382
    %v2450 = vunpack.c.l.b16 %v2383
    %v2451 = vunpack.c.h.b16 %v2383
    %v2452 = vunpack.c.l.b16 %v2384
    %v2453 = vunpack.c.h.b16 %v2384
    %v2454 = vunpack.c.l.b16 %v2385
    %v2455 = vunpack.c.h.b16 %v2385
    %v2456 = vunpack.c.l.b16 %v2386
    %v2457 = vunpack.c.h.b16 %v2386
    %v2458 = vunpack.c.l.b16 %v2387
    %v2459 = vunpack.c.h.b16 %v2387
    %v2460 = vunpack.c.l.b16 %v2388
    %v2461 = vunpack.c.h.b16 %v2388
    %v2462 = vunpack.c.l.b16 %v2389
    %v2463 = vunpack.c.h.b16 %v2389
    %v2464 = vunpack.c.l.b16 %v2390
    %v2465 = vunpack.c.h.b16 %v2390
    %v2466 = vunpack.c.l.b16 %v2391
    %v2467 = vunpack.c.h.b16 %v2391
    %v2468 = vunpack.c.l.b16 %v2392
    %v2469 = vunpack.c.h.b16 %v2392
    %v2470 = vunpack.c.l.b16 %v2393
    %v2471 = vunpack.c.h.b16 %v2393
    %v2472 = vunpack.c.l.b16 %v2394
    %v2473 = vunpack.c.h.b16 %v2394
    %v2474 = vunpack.c.l.b16 %v2395
    %v2475 = vunpack.c.h.b16 %v2395
    %v2476 = vunpack.c.l.b16 %v2396
    %v2477 = vunpack.c.h.b16 %v2396
    %v2478 = vunpack.c.l.b16 %v2397
    %v2479 = vunpack.c.h.b16 %v2397
    %v2480 = vunpack.c.l.b16 %v2398
    %v2481 = vunpack.c.h.b16 %v2398
    %v2482 = vunpack.c.l.b16 %v2399
    %v2483 = vunpack.c.h.b16 %v2399
    %v2484 = vunpack.c.l.b16 %v2400
    %v2485 = vunpack.c.h.b16 %v2400
    %v2486 = vunpack.c.l.b16 %v2401
    %v2487 = vunpack.c.h.b16 %v2401
    %v2488 = vunpack.c.l.b16 %v2402
    %v2489 = vunpack.c.h.b16 %v2402
    %v2490 = vunpack.c.l.b16 %v2403
    %v2491 = vunpack.c.h.b16 %v2403
    %v2492 = vunpack.c.l.b16 %v2404
    %v2493 = vunpack.c.h.b16 %v2404
    %v2494 = vunpack.c.l.b16 %v2405
    %v2495 = vunpack.c.h.b16 %v2405
    %v2496 = vunpack.c.l.b16 %v2406
    %v2497 = vunpack.c.h.b16 %v2406
    %v2498 = vunpack.c.l.b16 %v2407
    %v2499 = vunpack.c.h.b16 %v2407
    %v2500 = vunpack.c.l.b16 %v2408
    %v2501 = vunpack.c.h.b16 %v2408
    %v2502 = vunpack.c.l.b16 %v2409
    %v2503 = vunpack.c.h.b16 %v2409
    %v2504 = vunpack.c.l.b16 %v2410
    %v2505 = vunpack.c.h.b16 %v2410
    %v2506 = vunpack.c.l.b16 %v2411
    %v2507 = vunpack.c.h.b16 %v2411
    %v2508 = vunpack.c.l.b16 %v2412
    %v2509 = vunpack.c.h.b16 %v2412
    %v2510 = vunpack.c.l.b16 %v2413
    %v2511 = vunpack.c.h.b16 %v2413
    %v2512 = vpack.c.b16 %v2452, %v2448
    %v2513 = vpack.c.b16 %v2453, %v2449
    %v2514 = vpack.c.b16 %v2454, %v2450
    %v2515 = vpack.c.b16 %v2455, %v2451
    %v2516 = vpack.c.b16 %v2460, %v2456
    %v2517 = vpack.c.b16 %v2461, %v2457
    %v2518 = vpack.c.b16 %v2462, %v2458
    %v2519 = vpack.c.b16 %v2463, %v2459
    %v2520 = vpack.c.b16 %v2468, %v2464
    %v2521 = vpack.c.b16 %v2469, %v2465
    %v2522 = vpack.c.b16 %v2470, %v2466
    %v2523 = vpack.c.b16 %v2471, %v2467
    %v2524 = vpack.c.b16 %v2476, %v2472
    %v2525 = vpack.c.b16 %v2477, %v2473
    %v2526 = vpack.c.b16 %v2478, %v2474
    %v2527 = vpack.c.b16 %v2479, %v2475
    %v2528 = vpack.c.b16 %v2484, %v2480
    %v2529 = vpack.c.b16 %v2485, %v2481
    %v2530 = vpack.c.b16 %v2486, %v2482
    %v2531 = vpack.c.b16 %v2487, %v2483
    %v2532 = vpack.c.b16 %v2492, %v2488
    %v2533 = vpack.c.b16 %v2493, %v2489
    %v2534 = vpack.c.b16 %v2494, %v2490
    %v2535 = vpack.c.b16 %v2495, %v2491
    %v2536 = vpack.c.b16 %v2500, %v2496
    %v2537 = vpack.c.b16 %v2501, %v2497
    %v2538 = vpack.c.b16 %v2502, %v2498
    %v2539 = vpack.c.b16 %v2503, %v2499
    %v2540 = vpack.c.b16 %v2508, %v2504
    %v2541 = vpack.c.b16 %v2509, %v2505
    %v2542 = vpack.c.b16 %v2510, %v2506
    %v2543 = vpack.c.b16 %v2511, %v2507
    %2576 = vmatprep.subr.bf16.mxu0 %v2513
    %2577 = vmatpush1.bf16.msra.mxu0 %v2512
    %2578 = vmatprep.subr.bf16.mxu0 %v2517
    %2579 = vmatpush1.bf16.msra.mxu0 %v2516
    %2580 = vmatprep.subr.bf16.mxu0 %v2521
    %2581 = vmatpush1.bf16.msra.mxu0 %v2520
    %2582 = vmatprep.subr.bf16.mxu0 %v2525
    %2583 = vmatpush1.bf16.msra.mxu0 %v2524
    %2584 = vmatprep.subr.bf16.mxu0 %v2529
    %2585 = vmatpush1.bf16.msra.mxu0 %v2528
    %2586 = vmatprep.subr.bf16.mxu0 %v2533
    %2587 = vmatpush1.bf16.msra.mxu0 %v2532
    %2588 = vmatprep.subr.bf16.mxu0 %v2537
    %2589 = vmatpush1.bf16.msra.mxu0 %v2536
    %2590 = vmatprep.subr.bf16.mxu0 %v2541
    %2591 = vmatpush1.bf16.msra.mxu0 %v2540
    %2592 = vmatprep.subr.bf16.mxu0 0
    %2593 = vmatpush1.bf16.msra.mxu0 0
    %2594 = vmatprep.subr.bf16.mxu0 0
    %2595 = vmatpush1.bf16.msra.mxu0 0
    %2596 = vmatprep.subr.bf16.mxu0 0
    %2597 = vmatpush1.bf16.msra.mxu0 0
    %2598 = vmatprep.subr.bf16.mxu0 0
    %2599 = vmatpush1.bf16.msra.mxu0 0
    %2600 = vmatprep.subr.bf16.mxu0 0
    %2601 = vmatpush1.bf16.msra.mxu0 0
    %2602 = vmatprep.subr.bf16.mxu0 0
    %2603 = vmatpush1.bf16.msra.mxu0 0
    %2604 = vmatprep.subr.bf16.mxu0 0
    %2605 = vmatpush1.bf16.msra.mxu0 0
    %2606 = vmatprep.subr.bf16.mxu0 0
    %2607 = vmatpush1.bf16.msra.mxu0 0
    %2608 = vmatprep.mubr.bf16.mxu0 0
    %2609 = vmatmul.mubr.bf16.gmra.mrb[0].mxu0 %v2414
    %v2610 = vpop.f32.mrb[0].mxu0
    %v2611 = vadd.f32 0.0, %v2610
    %v2612 = vpop.f32.mrb[0].mxu0
    %v2613 = vadd.f32 0.0, %v2612
    %v2614 = vpop.f32.mrb[0].mxu0
    %v2615 = vadd.f32 0.0, %v2614
    %v2616 = vpop.f32.mrb[0].mxu0
    %v2617 = vadd.f32 0.0, %v2616
    %2618 = vmatprep.mubr.bf16.mxu0 0
    %2619 = vmatmul.mubr.bf16.gmra.mrb[0].mxu0 %v2415
    %v2620 = vpop.f32.mrb[0].mxu0
    %v2621 = vadd.f32 0.0, %v2620
    %v2622 = vpop.f32.mrb[0].mxu0
    %v2623 = vadd.f32 0.0, %v2622
    %v2624 = vpop.f32.mrb[0].mxu0
    %v2625 = vadd.f32 0.0, %v2624
    %v2626 = vpop.f32.mrb[0].mxu0
    %v2627 = vadd.f32 0.0, %v2626
    %2628 = vdwg.mxu0
    %2629 = vmatprep.subr.bf16.mxu0 %v2515
    %2630 = vmatpush1.bf16.msra.mxu0 %v2514
    %2631 = vmatprep.subr.bf16.mxu0 %v2519
    %2632 = vmatpush1.bf16.msra.mxu0 %v2518
    %2633 = vmatprep.subr.bf16.mxu0 %v2523
    %2634 = vmatpush1.bf16.msra.mxu0 %v2522
    %2635 = vmatprep.subr.bf16.mxu0 %v2527
    %2636 = vmatpush1.bf16.msra.mxu0 %v2526
    %2637 = vmatprep.subr.bf16.mxu0 %v2531
    %2638 = vmatpush1.bf16.msra.mxu0 %v2530
    %2639 = vmatprep.subr.bf16.mxu0 %v2535
    %2640 = vmatpush1.bf16.msra.mxu0 %v2534
    %2641 = vmatprep.subr.bf16.mxu0 %v2539
    %2642 = vmatpush1.bf16.msra.mxu0 %v2538
    %2643 = vmatprep.subr.bf16.mxu0 %v2543
    %2644 = vmatpush1.bf16.msra.mxu0 %v2542
    %2645 = vmatprep.subr.bf16.mxu0 0
    %2646 = vmatpush1.bf16.msra.mxu0 0
    %2647 = vmatprep.subr.bf16.mxu0 0
    %2648 = vmatpush1.bf16.msra.mxu0 0
    %2649 = vmatprep.subr.bf16.mxu0 0
    %2650 = vmatpush1.bf16.msra.mxu0 0
    %2651 = vmatprep.subr.bf16.mxu0 0
    %2652 = vmatpush1.bf16.msra.mxu0 0
    %2653 = vmatprep.subr.bf16.mxu0 0
    %2654 = vmatpush1.bf16.msra.mxu0 0
    %2655 = vmatprep.subr.bf16.mxu0 0
    %2656 = vmatpush1.bf16.msra.mxu0 0
    %2657 = vmatprep.subr.bf16.mxu0 0
    %2658 = vmatpush1.bf16.msra.mxu0 0
    %2659 = vmatprep.subr.bf16.mxu0 0
    %2660 = vmatpush1.bf16.msra.mxu0 0
    %2661 = vmatprep.mubr.bf16.mxu0 0
    %2662 = vmatmul.mubr.bf16.gmra.mrb[0].mxu0 %v2414
    %v2663 = vpop.f32.mrb[0].mxu0
    %v2664 = vadd.f32 0.0, %v2663
    %v2665 = vpop.f32.mrb[0].mxu0
    %v2666 = vadd.f32 0.0, %v2665
    %v2667 = vpop.f32.mrb[0].mxu0
    %v2668 = vadd.f32 0.0, %v2667
    %v2669 = vpop.f32.mrb[0].mxu0
    %v2670 = vadd.f32 0.0, %v2669
    %2671 = vmatprep.mubr.bf16.mxu0 0
    %2672 = vmatmul.mubr.bf16.gmra.mrb[0].mxu0 %v2415
    %v2673 = vpop.f32.mrb[0].mxu0
    %v2674 = vadd.f32 0.0, %v2673
    %v2675 = vpop.f32.mrb[0].mxu0
    %v2676 = vadd.f32 0.0, %v2675
    %v2677 = vpop.f32.mrb[0].mxu0
    %v2678 = vadd.f32 0.0, %v2677
    %v2679 = vpop.f32.mrb[0].mxu0
    %v2680 = vadd.f32 0.0, %v2679
    %2681 = vdwg.mxu0
    %v2682 = vxor.u32 %v2611, 2147483648
    %v2683 = vxor.u32 %v2613, 2147483648
    %v2684 = vxor.u32 %v2615, 2147483648
    %v2685 = vxor.u32 %v2617, 2147483648
    %v2686 = vxor.u32 %v2621, 2147483648
    %v2687 = vxor.u32 %v2623, 2147483648
    %v2688 = vxor.u32 %v2625, 2147483648
    %v2689 = vxor.u32 %v2627, 2147483648
    %v2690 = vmul.f32 %v2682, 1.442695
    %v2691 = vpow.pop %v2690
    %v2692 = vmul.f32 %v2683, 1.442695
    %v2693 = vpow.pop %v2692
    %v2694 = vmul.f32 %v2684, 1.442695
    %v2695 = vpow.pop %v2694
    %v2696 = vmul.f32 %v2685, 1.442695
    %v2697 = vpow.pop %v2696
    %v2698 = vmul.f32 %v2686, 1.442695
    %v2699 = vpow.pop %v2698
    %v2700 = vmul.f32 %v2687, 1.442695
    %v2701 = vpow.pop %v2700
    %v2702 = vmul.f32 %v2688, 1.442695
    %v2703 = vpow.pop %v2702
    %v2704 = vmul.f32 %v2689, 1.442695
    %v2705 = vpow.pop %v2704
    %v2706 = vadd.f32 %v2691, 1.0
    %v2707 = vadd.f32 %v2693, 1.0
    %v2708 = vadd.f32 %v2695, 1.0
    %v2709 = vadd.f32 %v2697, 1.0
    %v2710 = vadd.f32 %v2699, 1.0
    %v2711 = vadd.f32 %v2701, 1.0
    %v2712 = vadd.f32 %v2703, 1.0
    %v2713 = vadd.f32 %v2705, 1.0
    %v2714 = vrcp.pop %v2706
    %v2715 = vmul.f32 1.0, %v2714
    %v2716 = vrcp.pop %v2707
    %v2717 = vmul.f32 1.0, %v2716
    %v2718 = vrcp.pop %v2708
    %v2719 = vmul.f32 1.0, %v2718
    %v2720 = vrcp.pop %v2709
    %v2721 = vmul.f32 1.0, %v2720
    %v2722 = vrcp.pop %v2710
    %v2723 = vmul.f32 1.0, %v2722
    %v2724 = vrcp.pop %v2711
    %v2725 = vmul.f32 1.0, %v2724
    %v2726 = vrcp.pop %v2712
    %v2727 = vmul.f32 1.0, %v2726
    %v2728 = vrcp.pop %v2713
    %v2729 = vmul.f32 1.0, %v2728
    %v2730 = vmul.f32 %v2611, %v2715
    %v2731 = vmul.f32 %v2613, %v2717
    %v2732 = vmul.f32 %v2615, %v2719
    %v2733 = vmul.f32 %v2617, %v2721
    %v2734 = vmul.f32 %v2621, %v2723
    %v2735 = vmul.f32 %v2623, %v2725
    %v2736 = vmul.f32 %v2625, %v2727
    %v2737 = vmul.f32 %v2627, %v2729
    %v2738 = vmul.f32 %v2730, %v2664
    %v2739 = vmul.f32 %v2731, %v2666
    %v2740 = vmul.f32 %v2732, %v2668
    %v2741 = vmul.f32 %v2733, %v2670
    %v2742 = vmul.f32 %v2734, %v2674
    %v2743 = vmul.f32 %v2735, %v2676
    %v2744 = vmul.f32 %v2736, %v2678
    %v2745 = vmul.f32 %v2737, %v2680
    %s2746 = scalar_lea.vmem %s7, 128
    %v2747 = vld [vmem:[%s2746] sm:$0xf]
    %v2748 = vld [vmem:[%s2746 + $0x4] sm:$0xf]
    %v2749 = vld [vmem:[%s2746 + $0x8] sm:$0xf]
    %v2750 = vld [vmem:[%s2746 + $0xc] sm:$0xf]
    %v2751 = vld [vmem:[%s2746 + $0x10] sm:$0xf]
    %v2752 = vld [vmem:[%s2746 + $0x14] sm:$0xf]
    %v2753 = vld [vmem:[%s2746 + $0x18] sm:$0xf]
    %v2754 = vld [vmem:[%s2746 + $0x1c] sm:$0xf]
    %v2755 = vld [vmem:[%s2746 + $0x20] sm:$0xf]
    %v2756 = vld [vmem:[%s2746 + $0x24] sm:$0xf]
    %v2757 = vld [vmem:[%s2746 + $0x28] sm:$0xf]
    %v2758 = vld [vmem:[%s2746 + $0x2c] sm:$0xf]
    %v2759 = vld [vmem:[%s2746 + $0x30] sm:$0xf]
    %v2760 = vld [vmem:[%s2746 + $0x34] sm:$0xf]
    %v2761 = vld [vmem:[%s2746 + $0x38] sm:$0xf]
    %v2762 = vld [vmem:[%s2746 + $0x3c] sm:$0xf]
    %v2763 = vld [vmem:[%s2746 + $0x40] sm:$0xf]
    %v2764 = vld [vmem:[%s2746 + $0x44] sm:$0xf]
    %v2765 = vld [vmem:[%s2746 + $0x48] sm:$0xf]
    %v2766 = vld [vmem:[%s2746 + $0x4c] sm:$0xf]
    %v2767 = vld [vmem:[%s2746 + $0x50] sm:$0xf]
    %v2768 = vld [vmem:[%s2746 + $0x54] sm:$0xf]
    %v2769 = vld [vmem:[%s2746 + $0x58] sm:$0xf]
    %v2770 = vld [vmem:[%s2746 + $0x5c] sm:$0xf]
    %v2771 = vld [vmem:[%s2746 + $0x60] sm:$0xf]
    %v2772 = vld [vmem:[%s2746 + $0x64] sm:$0xf]
    %v2773 = vld [vmem:[%s2746 + $0x68] sm:$0xf]
    %v2774 = vld [vmem:[%s2746 + $0x6c] sm:$0xf]
    %v2775 = vld [vmem:[%s2746 + $0x70] sm:$0xf]
    %v2776 = vld [vmem:[%s2746 + $0x74] sm:$0xf]
    %v2777 = vld [vmem:[%s2746 + $0x78] sm:$0xf]
    %v2778 = vld [vmem:[%s2746 + $0x7c] sm:$0xf]
    %v2779 = vpack.c.bf16 %v2740, %v2738
    %v2780 = vpack.c.bf16 %v2741, %v2739
    %v2781 = vpack.c.bf16 %v2744, %v2742
    %v2782 = vpack.c.bf16 %v2745, %v2743
    %v2815 = vunpack.c.l.b16 %v2747
    %v2816 = vunpack.c.l.b16 %v2748
    %v2817 = vunpack.c.l.b16 %v2749
    %v2818 = vunpack.c.l.b16 %v2750
    %v2819 = vunpack.c.l.b16 %v2751
    %v2820 = vunpack.c.l.b16 %v2752
    %v2821 = vunpack.c.l.b16 %v2753
    %v2822 = vunpack.c.l.b16 %v2754
    %v2823 = vunpack.c.l.b16 %v2755
    %v2824 = vunpack.c.l.b16 %v2756
    %v2825 = vunpack.c.l.b16 %v2757
    %v2826 = vunpack.c.l.b16 %v2758
    %v2827 = vunpack.c.l.b16 %v2759
    %v2828 = vunpack.c.l.b16 %v2760
    %v2829 = vunpack.c.l.b16 %v2761
    %v2830 = vunpack.c.l.b16 %v2762
    %v2831 = vunpack.c.l.b16 %v2763
    %v2832 = vunpack.c.l.b16 %v2764
    %v2833 = vunpack.c.l.b16 %v2765
    %v2834 = vunpack.c.l.b16 %v2766
    %v2835 = vunpack.c.l.b16 %v2767
    %v2836 = vunpack.c.l.b16 %v2768
    %v2837 = vunpack.c.l.b16 %v2769
    %v2838 = vunpack.c.l.b16 %v2770
    %v2839 = vunpack.c.l.b16 %v2771
    %v2840 = vunpack.c.l.b16 %v2772
    %v2841 = vunpack.c.l.b16 %v2773
    %v2842 = vunpack.c.l.b16 %v2774
    %v2843 = vunpack.c.l.b16 %v2775
    %v2844 = vunpack.c.l.b16 %v2776
    %v2845 = vunpack.c.l.b16 %v2777
    %v2846 = vunpack.c.l.b16 %v2778
    %v2847 = vpack.c.b16 %v2816, %v2815
    %v2848 = vpack.c.b16 %v2818, %v2817
    %v2849 = vpack.c.b16 %v2820, %v2819
    %v2850 = vpack.c.b16 %v2822, %v2821
    %v2851 = vpack.c.b16 %v2824, %v2823
    %v2852 = vpack.c.b16 %v2826, %v2825
    %v2853 = vpack.c.b16 %v2828, %v2827
    %v2854 = vpack.c.b16 %v2830, %v2829
    %v2855 = vpack.c.b16 %v2832, %v2831
    %v2856 = vpack.c.b16 %v2834, %v2833
    %v2857 = vpack.c.b16 %v2836, %v2835
    %v2858 = vpack.c.b16 %v2838, %v2837
    %v2859 = vpack.c.b16 %v2840, %v2839
    %v2860 = vpack.c.b16 %v2842, %v2841
    %v2861 = vpack.c.b16 %v2844, %v2843
    %v2862 = vpack.c.b16 %v2846, %v2845
    %2879 = vmatprep.subr.bf16.mxu0 0
    %2880 = vmatpush1.bf16.msra.mxu0 %v2847
    %2881 = vmatprep.subr.bf16.mxu0 0
    %2882 = vmatpush1.bf16.msra.mxu0 %v2848
    %2883 = vmatprep.subr.bf16.mxu0 0
    %2884 = vmatpush1.bf16.msra.mxu0 %v2849
    %2885 = vmatprep.subr.bf16.mxu0 0
    %2886 = vmatpush1.bf16.msra.mxu0 %v2850
    %2887 = vmatprep.subr.bf16.mxu0 0
    %2888 = vmatpush1.bf16.msra.mxu0 %v2851
    %2889 = vmatprep.subr.bf16.mxu0 0
    %2890 = vmatpush1.bf16.msra.mxu0 %v2852
    %2891 = vmatprep.subr.bf16.mxu0 0
    %2892 = vmatpush1.bf16.msra.mxu0 %v2853
    %2893 = vmatprep.subr.bf16.mxu0 0
    %2894 = vmatpush1.bf16.msra.mxu0 %v2854
    %2895 = vmatprep.subr.bf16.mxu0 0
    %2896 = vmatpush1.bf16.msra.mxu0 %v2855
    %2897 = vmatprep.subr.bf16.mxu0 0
    %2898 = vmatpush1.bf16.msra.mxu0 %v2856
    %2899 = vmatprep.subr.bf16.mxu0 0
    %2900 = vmatpush1.bf16.msra.mxu0 %v2857
    %2901 = vmatprep.subr.bf16.mxu0 0
    %2902 = vmatpush1.bf16.msra.mxu0 %v2858
    %2903 = vmatprep.subr.bf16.mxu0 0
    %2904 = vmatpush1.bf16.msra.mxu0 %v2859
    %2905 = vmatprep.subr.bf16.mxu0 0
    %2906 = vmatpush1.bf16.msra.mxu0 %v2860
    %2907 = vmatprep.subr.bf16.mxu0 0
    %2908 = vmatpush1.bf16.msra.mxu0 %v2861
    %2909 = vmatprep.subr.bf16.mxu0 0
    %2910 = vmatpush1.bf16.msra.mxu0 %v2862
    %2911 = vmatprep.mubr.bf16.mxu0 %v2780
    %2912 = vmatmul.mubr.bf16.gmra.mrb[0].mxu0 %v2779
    %v2913 = vpop.f32.mrb[0].mxu0
    %v2914 = vadd.f32 0.0, %v2913
    %v2915 = vpop.f32.mrb[0].mxu0
    %v2916 = vpop.f32.mrb[0].mxu0
    %v2917 = vadd.f32 0.0, %v2916
    %v2918 = vpop.f32.mrb[0].mxu0
    %2919 = vmatprep.mubr.bf16.mxu0 %v2782
    %2920 = vmatmul.mubr.bf16.gmra.mrb[0].mxu0 %v2781
    %v2921 = vpop.f32.mrb[0].mxu0
    %v2922 = vadd.f32 0.0, %v2921
    %v2923 = vpop.f32.mrb[0].mxu0
    %v2924 = vpop.f32.mrb[0].mxu0
    %v2925 = vadd.f32 0.0, %v2924
    %v2926 = vpop.f32.mrb[0].mxu0
    %2927 = vdwg.mxu0
    %v2928 = vadd.f32 %v2337, %v2914
    %v2929 = vadd.f32 %v2338, %v2917
    %v2930 = vadd.f32 %v2339, %v2922
    %v2931 = vadd.f32 %v2340, %v2925
    %v2932 = vld [vmem:[%s8] sm:$0x1]
    %v2933 = vmul.f32 %v2928, %v2928
    %v2934 = vmul.f32 %v2929, %v2929
    %v2935 = vmul.f32 %v2930, %v2930
    %v2936 = vmul.f32 %v2931, %v2931
    %2937 = vadd.xlane.f32.xlu0 %v2933
    %v2938 = vpop.xlane.xlu0 %2937
    %2939 = vadd.xlane.f32.xlu0 %v2934
    %v2940 = vpop.xlane.xlu0 %2939
    %2941 = vadd.xlane.f32.xlu0 %v2935
    %v2942 = vpop.xlane.xlu0 %2941
    %2943 = vadd.xlane.f32.xlu0 %v2936
    %v2944 = vpop.xlane.xlu0 %2943
    %v2945 = vmul.f32 %v2938, %v82
    %v2946 = vmul.f32 %v2940, %v82
    %v2947 = vmul.f32 %v2942, %v82
    %v2948 = vmul.f32 %v2944, %v82
    %v2949 = vadd.f32 %v2945, 1e-06
    %v2950 = vadd.f32 %v2946, 1e-06
    %v2951 = vadd.f32 %v2947, 1e-06
    %v2952 = vadd.f32 %v2948, 1e-06
    %v2953 = vrsqrt.pop %v2949
    %v2954 = vrsqrt.pop %v2950
    %v2955 = vrsqrt.pop %v2951
    %v2956 = vrsqrt.pop %v2952
    %v2957 = vmul.f32 %v2928, %v2953
    %v2958 = vmul.f32 %v2929, %v2954
    %v2959 = vmul.f32 %v2930, %v2955
    %v2960 = vmul.f32 %v2931, %v2956
    %v2962 = vlaneseq
    %v2963 = vshrl.u32 %v2962, 7
    %v2964 = vsub.s32 0, %v2963
    %v2965 = vrot.slane %v2932, %v2964
    %v2967 = vmul.f32 %v2957, %v2965
    %v2968 = vmul.f32 %v2958, %v2965
    %v2969 = vmul.f32 %v2959, %v2965
    %v2970 = vmul.f32 %v2960, %v2965
    %2971 = vst [vmem:[#allocation2] sm:$0xff] %v2967
    %2972 = vst [vmem:[#allocation2 + $0x8] sm:$0xff] %v2968
    %2973 = vst [vmem:[#allocation2 + $0x10] sm:$0xff] %v2969
    %2974 = vst [vmem:[#allocation2 + $0x18] sm:$0xff] %v2970
    // Predicated region
    $region38: #{llava_next_forward.3} parent=1 // pred_check
      _
    $region39: #{llava_next_forward.3} parent=1 // pred_check_branch
      %2976 = sbr.rel (0) target = $region41
    $region40: #{llava_next_forward.3} parent=1 // pred_region
      %s2978 = ssub.s32 512, 512
      %2979 = vsyncadd [#allocation3], %s2978
      %s2980 = sshll.u32 [#allocation2], 4
      %s2981 = int_to_ptr.vmem [resolvable:$true] %s2980
      %2986 = dma.vmem_to_hbm [thread:$0]  %s2981, 512, %s9, [#allocation3], 128, 128, 8
    $region41: #{llava_next_forward.3} parent=1 // pred_fallthru
      _
    // Predicated region
    $region42: #{llava_next_forward.3} parent=1 // pred_check
      _
    $region43: #{llava_next_forward.3} parent=1 // pred_check_branch
      %2988 = sbr.rel (0) target = $region45
    $region44: #{llava_next_forward.3} parent=1 // pred_region
      %2989 = dma.done [#allocation3], 512
    $region45: #{llava_next_forward.3} parent=1 // pred_fallthru
      _
    %2990 = vsyncpa [#allocation3], 1

// kernel: llava_next_forward.2
$region0: #{llava_next_forward.2}
  #allocation0 [shape = 'u32[]', space=smem, size = 0x4, offset = 0x4, fixed_abs, tag = 'smem constant byte address 0x4 - core index']
  #allocation1 [shape = 'u32[144,128]{1,0:T(1,128)}', space=vmem, size = 0x12000, scoped, tag = 'internal scratch']
  %s0 = inlined_call_operand.vmem [shape: f32[25,192], index: 0, kind: input, shape index: {}]
  %s1 = inlined_call_operand.vmem [shape: s32[25,1], index: 1, kind: input, shape index: {}]
  %s2 = inlined_call_operand.vmem [shape: s32[1,25], index: 2, kind: input, shape index: {}]
  %s3 = inlined_call_operand.vmem [shape: f32[25,128], index: 3, kind: input, shape index: {}]
  %s4 = inlined_call_operand.vmem [shape: bf16[192,128], index: 4, kind: input, shape index: {}]
  %s5 = inlined_call_operand.vmem [shape: f32[1,128], index: 5, kind: input, shape index: {}]
  %s6 = inlined_call_operand.vmem [shape: f32[1,128], index: 6, kind: input, shape index: {}]
  %s7 = inlined_call_operand.vmem [shape: f32[2,1,128], index: 7, kind: input, shape index: {}]
  %s8 = inlined_call_operand.vmem [shape: f32[2,1,128], index: 8, kind: input, shape index: {}]
  %s9 = inlined_call_operand.vmem [shape: bf16[2,128,384], index: 9, kind: input, shape index: {}]
  %s10 = inlined_call_operand.vmem [shape: f32[2,1,384], index: 10, kind: input, shape index: {}]
  %s11 = inlined_call_operand.vmem [shape: bf16[2,128,128], index: 11, kind: input, shape index: {}]
  %s12 = inlined_call_operand.vmem [shape: f32[2,1,128], index: 12, kind: input, shape index: {}]
  %s13 = inlined_call_operand.vmem [shape: f32[2,1,128], index: 13, kind: input, shape index: {}]
  %s14 = inlined_call_operand.vmem [shape: f32[2,1,128], index: 14, kind: input, shape index: {}]
  %s15 = inlined_call_operand.vmem [shape: bf16[2,128,256], index: 15, kind: input, shape index: {}]
  %s16 = inlined_call_operand.vmem [shape: f32[2,1,256], index: 16, kind: input, shape index: {}]
  %s17 = inlined_call_operand.vmem [shape: bf16[2,256,128], index: 17, kind: input, shape index: {}]
  %s18 = inlined_call_operand.vmem [shape: f32[2,1,128], index: 18, kind: input, shape index: {}]
  %s19 = inlined_call_operand.vmem [shape: bf16[128,128], index: 19, kind: input, shape index: {}]
  %s20 = inlined_call_operand.vmem [shape: f32[1,128], index: 20, kind: input, shape index: {}]
  %s21 = inlined_call_operand.vmem [shape: bf16[128,128], index: 21, kind: input, shape index: {}]
  %s22 = inlined_call_operand.vmem [shape: f32[1,128], index: 22, kind: input, shape index: {}]
  %s23 = inlined_call_operand.vmem [shape: bf16[25,128], index: 23, kind: output, shape index: {}]
  %s24 = sld [smem:[#allocation0]]
  $region102: #{llava_next_forward.2} parent=0
    _
  %s26 = ssub.s32 1, %s24
  %s27 = scalar_select 0, %s26, %s24
  // Predicated region
  $region2: #{llava_next_forward.2} parent=0 // pred_check
    _
  $region3: #{llava_next_forward.2} parent=0 // pred_check_branch
    %29 = sbr.rel (0) target = $region5
  $region4: #{llava_next_forward.2} parent=0 // pred_region
    _
  $region5: #{llava_next_forward.2} parent=0 // pred_fallthru
    _
  // Predicated region
  $region6: #{llava_next_forward.2} parent=0 // pred_check
    _
  $region7: #{llava_next_forward.2} parent=0 // pred_check_branch
    %31 = sbr.rel (0) target = $region9
  $region8: #{llava_next_forward.2} parent=0 // pred_region
    _
  $region9: #{llava_next_forward.2} parent=0 // pred_fallthru
    _
  // Predicated region
  $region10: #{llava_next_forward.2} parent=0 // pred_check
    _
  $region11: #{llava_next_forward.2} parent=0 // pred_check_branch
    %33 = sbr.rel (0) target = $region13
  $region12: #{llava_next_forward.2} parent=0 // pred_region
    _
  $region13: #{llava_next_forward.2} parent=0 // pred_fallthru
    _
  // Predicated region
  $region14: #{llava_next_forward.2} parent=0 // pred_check
    _
  $region15: #{llava_next_forward.2} parent=0 // pred_check_branch
    %35 = sbr.rel (0) target = $region17
  $region16: #{llava_next_forward.2} parent=0 // pred_region
    _
  $region17: #{llava_next_forward.2} parent=0 // pred_fallthru
    _
  // Predicated region
  $region18: #{llava_next_forward.2} parent=0 // pred_check
    _
  $region19: #{llava_next_forward.2} parent=0 // pred_check_branch
    %37 = sbr.rel (0) target = $region21
  $region20: #{llava_next_forward.2} parent=0 // pred_region
    _
  $region21: #{llava_next_forward.2} parent=0 // pred_fallthru
    _
  // Predicated region
  $region22: #{llava_next_forward.2} parent=0 // pred_check
    _
  $region23: #{llava_next_forward.2} parent=0 // pred_check_branch
    %39 = sbr.rel (0) target = $region25
  $region24: #{llava_next_forward.2} parent=0 // pred_region
    _
  $region25: #{llava_next_forward.2} parent=0 // pred_fallthru
    _
  // Predicated region
  $region26: #{llava_next_forward.2} parent=0 // pred_check
    _
  $region27: #{llava_next_forward.2} parent=0 // pred_check_branch
    %41 = sbr.rel (0) target = $region29
  $region28: #{llava_next_forward.2} parent=0 // pred_region
    _
  $region29: #{llava_next_forward.2} parent=0 // pred_fallthru
    _
  // Predicated region
  $region30: #{llava_next_forward.2} parent=0 // pred_check
    _
  $region31: #{llava_next_forward.2} parent=0 // pred_check_branch
    %43 = sbr.rel (0) target = $region33
  $region32: #{llava_next_forward.2} parent=0 // pred_region
    _
  $region33: #{llava_next_forward.2} parent=0 // pred_fallthru
    _
  // Predicated region
  $region34: #{llava_next_forward.2} parent=0 // pred_check
    _
  $region35: #{llava_next_forward.2} parent=0 // pred_check_branch
    %45 = sbr.rel (0) target = $region37
  $region36: #{llava_next_forward.2} parent=0 // pred_region
    _
  $region37: #{llava_next_forward.2} parent=0 // pred_fallthru
    _
  // Predicated region
  $region38: #{llava_next_forward.2} parent=0 // pred_check
    _
  $region39: #{llava_next_forward.2} parent=0 // pred_check_branch
    %47 = sbr.rel (0) target = $region41
  $region40: #{llava_next_forward.2} parent=0 // pred_region
    _
  $region41: #{llava_next_forward.2} parent=0 // pred_fallthru
    _
  // Predicated region
  $region42: #{llava_next_forward.2} parent=0 // pred_check
    _
  $region43: #{llava_next_forward.2} parent=0 // pred_check_branch
    %49 = sbr.rel (0) target = $region45
  $region44: #{llava_next_forward.2} parent=0 // pred_region
    _
  $region45: #{llava_next_forward.2} parent=0 // pred_fallthru
    _
  // Predicated region
  $region46: #{llava_next_forward.2} parent=0 // pred_check
    _
  $region47: #{llava_next_forward.2} parent=0 // pred_check_branch
    %51 = sbr.rel (0) target = $region49
  $region48: #{llava_next_forward.2} parent=0 // pred_region
    _
  $region49: #{llava_next_forward.2} parent=0 // pred_fallthru
    _
  // Predicated region
  $region50: #{llava_next_forward.2} parent=0 // pred_check
    _
  $region51: #{llava_next_forward.2} parent=0 // pred_check_branch
    %53 = sbr.rel (0) target = $region53
  $region52: #{llava_next_forward.2} parent=0 // pred_region
    _
  $region53: #{llava_next_forward.2} parent=0 // pred_fallthru
    _
  // Predicated region
  $region54: #{llava_next_forward.2} parent=0 // pred_check
    _
  $region55: #{llava_next_forward.2} parent=0 // pred_check_branch
    %55 = sbr.rel (0) target = $region57
  $region56: #{llava_next_forward.2} parent=0 // pred_region
    _
  $region57: #{llava_next_forward.2} parent=0 // pred_fallthru
    _
  // Predicated region
  $region58: #{llava_next_forward.2} parent=0 // pred_check
    _
  $region59: #{llava_next_forward.2} parent=0 // pred_check_branch
    %57 = sbr.rel (0) target = $region61
  $region60: #{llava_next_forward.2} parent=0 // pred_region
    _
  $region61: #{llava_next_forward.2} parent=0 // pred_fallthru
    _
  // Predicated region
  $region62: #{llava_next_forward.2} parent=0 // pred_check
    _
  $region63: #{llava_next_forward.2} parent=0 // pred_check_branch
    %59 = sbr.rel (0) target = $region65
  $region64: #{llava_next_forward.2} parent=0 // pred_region
    _
  $region65: #{llava_next_forward.2} parent=0 // pred_fallthru
    _
  // Predicated region
  $region66: #{llava_next_forward.2} parent=0 // pred_check
    _
  $region67: #{llava_next_forward.2} parent=0 // pred_check_branch
    %61 = sbr.rel (0) target = $region69
  $region68: #{llava_next_forward.2} parent=0 // pred_region
    _
  $region69: #{llava_next_forward.2} parent=0 // pred_fallthru
    _
  // Predicated region
  $region70: #{llava_next_forward.2} parent=0 // pred_check
    _
  $region71: #{llava_next_forward.2} parent=0 // pred_check_branch
    %63 = sbr.rel (0) target = $region73
  $region72: #{llava_next_forward.2} parent=0 // pred_region
    _
  $region73: #{llava_next_forward.2} parent=0 // pred_fallthru
    _
  // Predicated region
  $region74: #{llava_next_forward.2} parent=0 // pred_check
    _
  $region75: #{llava_next_forward.2} parent=0 // pred_check_branch
    %65 = sbr.rel (0) target = $region77
  $region76: #{llava_next_forward.2} parent=0 // pred_region
    _
  $region77: #{llava_next_forward.2} parent=0 // pred_fallthru
    _
  // Predicated region
  $region78: #{llava_next_forward.2} parent=0 // pred_check
    _
  $region79: #{llava_next_forward.2} parent=0 // pred_check_branch
    %67 = sbr.rel (0) target = $region81
  $region80: #{llava_next_forward.2} parent=0 // pred_region
    _
  $region81: #{llava_next_forward.2} parent=0 // pred_fallthru
    _
  // Predicated region
  $region82: #{llava_next_forward.2} parent=0 // pred_check
    _
  $region83: #{llava_next_forward.2} parent=0 // pred_check_branch
    %69 = sbr.rel (0) target = $region85
  $region84: #{llava_next_forward.2} parent=0 // pred_region
    _
  $region85: #{llava_next_forward.2} parent=0 // pred_fallthru
    _
  // Predicated region
  $region86: #{llava_next_forward.2} parent=0 // pred_check
    _
  $region87: #{llava_next_forward.2} parent=0 // pred_check_branch
    %71 = sbr.rel (0) target = $region89
  $region88: #{llava_next_forward.2} parent=0 // pred_region
    _
  $region89: #{llava_next_forward.2} parent=0 // pred_fallthru
    _
  // Predicated region
  $region90: #{llava_next_forward.2} parent=0 // pred_check
    _
  $region91: #{llava_next_forward.2} parent=0 // pred_check_branch
    %73 = sbr.rel (0) target = $region93
  $region92: #{llava_next_forward.2} parent=0 // pred_region
    _
  $region93: #{llava_next_forward.2} parent=0 // pred_fallthru
    _
  %v75 = vld [vmem:[%s1] sm:$0xff]
  %v76 = vld [vmem:[%s1 + $0x8] sm:$0xff]
  %v77 = vld [vmem:[%s1 + $0x10] sm:$0xff]
  %v78 = vld [vmem:[%s1 + $0x18] sm:$0x1]
  %79 = vset.pattern.permute.xlu0 0
  %80 = vperm.xlu0 %79, %v75
  %v81 = vpop.permute.xlu0 %80
  %82 = vset.pattern.permute.xlu0 0
  %83 = vperm.xlu0 %82, %v76
  %v84 = vpop.permute.xlu0 %83
  %85 = vset.pattern.permute.xlu0 0
  %86 = vperm.xlu0 %85, %v77
  %v87 = vpop.permute.xlu0 %86
  %88 = vset.pattern.permute.xlu0 0
  %89 = vperm.xlu0 %88, %v78
  %v90 = vpop.permute.xlu0 %89
  %v91 = vld [vmem:[%s2] sm:$0x1]
  %v92 = vlaneseq
  %v93 = vshrl.u32 %v92, 7
  %v94 = vsub.s32 0, %v93
  %v95 = vrot.slane %v91, %v94
  %vm96 = vcmp.eq.s32.totalorder %v81, %v95
  %vm97 = vcmp.eq.s32.totalorder %v84, %v95
  %vm98 = vcmp.eq.s32.totalorder %v87, %v95
  %vm99 = vcmp.eq.s32.totalorder %v90, %v95
  %v100 = vsel %vm96, 0.0, -1e+30
  %v101 = vsel %vm97, 0.0, -1e+30
  %v102 = vsel %vm98, 0.0, -1e+30
  %v103 = vsel %vm99, 0.0, -1e+30
  %v104 = vld [vmem:[%s0] sm:$0xff]
  %v105 = vld [vmem:[%s0 + $0x8] sm:$0xff]
  %v106 = vld [vmem:[%s0 + $0x10] sm:$0xff]
  %v107 = vld [vmem:[%s0 + $0x18] sm:$0xff]
  %v108 = vld [vmem:[%s0 + $0x20] sm:$0xff]
  %v109 = vld [vmem:[%s0 + $0x28] sm:$0xff]
  %v110 = vld [vmem:[%s0 + $0x30] sm:$0x1]
  %v111 = vld [vmem:[%s0 + $0x38] sm:$0x1]
  %v112 = vld [vmem:[%s4] sm:$0xf]
  %v113 = vld [vmem:[%s4 + $0x4] sm:$0xf]
  %v114 = vld [vmem:[%s4 + $0x8] sm:$0xf]
  %v115 = vld [vmem:[%s4 + $0xc] sm:$0xf]
  %v116 = vld [vmem:[%s4 + $0x10] sm:$0xf]
  %v117 = vld [vmem:[%s4 + $0x14] sm:$0xf]
  %v118 = vld [vmem:[%s4 + $0x18] sm:$0xf]
  %v119 = vld [vmem:[%s4 + $0x1c] sm:$0xf]
  %v120 = vld [vmem:[%s4 + $0x20] sm:$0xf]
  %v121 = vld [vmem:[%s4 + $0x24] sm:$0xf]
  %v122 = vld [vmem:[%s4 + $0x28] sm:$0xf]
  %v123 = vld [vmem:[%s4 + $0x2c] sm:$0xf]
  %v124 = vld [vmem:[%s4 + $0x30] sm:$0xf]
  %v125 = vld [vmem:[%s4 + $0x34] sm:$0xf]
  %v126 = vld [vmem:[%s4 + $0x38] sm:$0xf]
  %v127 = vld [vmem:[%s4 + $0x3c] sm:$0xf]
  %v128 = vld [vmem:[%s4 + $0x40] sm:$0xf]
  %v129 = vld [vmem:[%s4 + $0x44] sm:$0xf]
  %v130 = vld [vmem:[%s4 + $0x48] sm:$0xf]
  %v131 = vld [vmem:[%s4 + $0x4c] sm:$0xf]
  %v132 = vld [vmem:[%s4 + $0x50] sm:$0xf]
  %v133 = vld [vmem:[%s4 + $0x54] sm:$0xf]
  %v134 = vld [vmem:[%s4 + $0x58] sm:$0xf]
  %v135 = vld [vmem:[%s4 + $0x5c] sm:$0xf]
  %v136 = vpack.c.bf16 %v106, %v104
  %v137 = vpack.c.bf16 %v107, %v105
  %v138 = vpack.c.bf16 %v110, %v108
  %v139 = vpack.c.bf16 %v111, %v109
  %v140 = vld [vmem:[%s3] sm:$0xff]
  %v141 = vld [vmem:[%s3 + $0x8] sm:$0xff]
  %v142 = vld [vmem:[%s3 + $0x10] sm:$0xff]
  %v143 = vld [vmem:[%s3 + $0x18] sm:$0x1]
  %v168 = vunpack.c.l.b16 %v112
  %v169 = vunpack.c.l.b16 %v113
  %v170 = vunpack.c.l.b16 %v114
  %v171 = vunpack.c.l.b16 %v115
  %v172 = vunpack.c.l.b16 %v116
  %v173 = vunpack.c.l.b16 %v117
  %v174 = vunpack.c.l.b16 %v118
  %v175 = vunpack.c.l.b16 %v119
  %v176 = vunpack.c.l.b16 %v120
  %v177 = vunpack.c.l.b16 %v121
  %v178 = vunpack.c.l.b16 %v122
  %v179 = vunpack.c.l.b16 %v123
  %v180 = vunpack.c.l.b16 %v124
  %v181 = vunpack.c.l.b16 %v125
  %v182 = vunpack.c.l.b16 %v126
  %v183 = vunpack.c.l.b16 %v127
  %v184 = vunpack.c.l.b16 %v128
  %v185 = vunpack.c.l.b16 %v129
  %v186 = vunpack.c.l.b16 %v130
  %v187 = vunpack.c.l.b16 %v131
  %v188 = vunpack.c.l.b16 %v132
  %v189 = vunpack.c.l.b16 %v133
  %v190 = vunpack.c.l.b16 %v134
  %v191 = vunpack.c.l.b16 %v135
  %v192 = vpack.c.b16 %v169, %v168
  %v193 = vpack.c.b16 %v171, %v170
  %v194 = vpack.c.b16 %v173, %v172
  %v195 = vpack.c.b16 %v175, %v174
  %v196 = vpack.c.b16 %v177, %v176
  %v197 = vpack.c.b16 %v179, %v178
  %v198 = vpack.c.b16 %v181, %v180
  %v199 = vpack.c.b16 %v183, %v182
  %v200 = vpack.c.b16 %v185, %v184
  %v201 = vpack.c.b16 %v187, %v186
  %v202 = vpack.c.b16 %v189, %v188
  %v203 = vpack.c.b16 %v191, %v190
  %vm216 = vcmask 523264
  %v218 = vsel %vm216, %v137, 0
  %v221 = vsel %vm216, %v139, 0
  %223 = vmatprep.subr.bf16.mxu0 0
  %224 = vmatpush1.bf16.msra.mxu0 %v192
  %225 = vmatprep.subr.bf16.mxu0 0
  %226 = vmatpush1.bf16.msra.mxu0 %v193
  %227 = vmatprep.subr.bf16.mxu0 0
  %228 = vmatpush1.bf16.msra.mxu0 %v194
  %229 = vmatprep.subr.bf16.mxu0 0
  %230 = vmatpush1.bf16.msra.mxu0 %v195
  %231 = vmatprep.subr.bf16.mxu0 0
  %232 = vmatpush1.bf16.msra.mxu0 %v196
  %233 = vmatprep.subr.bf16.mxu0 0
  %234 = vmatpush1.bf16.msra.mxu0 %v197
  %235 = vmatprep.subr.bf16.mxu0 0
  %236 = vmatpush1.bf16.msra.mxu0 %v198
  %237 = vmatprep.subr.bf16.mxu0 0
  %238 = vmatpush1.bf16.msra.mxu0 %v199
  %239 = vmatprep.subr.bf16.mxu0 0
  %240 = vmatpush1.bf16.msra.mxu0 %v200
  %241 = vmatprep.subr.bf16.mxu0 0
  %242 = vmatpush1.bf16.msra.mxu0 %v201
  %243 = vmatprep.subr.bf16.mxu0 0
  %244 = vmatpush1.bf16.msra.mxu0 %v202
  %245 = vmatprep.subr.bf16.mxu0 0
  %246 = vmatpush1.bf16.msra.mxu0 %v203
  %247 = vmatprep.subr.bf16.mxu0 0
  %248 = vmatpush1.bf16.msra.mxu0 0
  %249 = vmatprep.subr.bf16.mxu0 0
  %250 = vmatpush1.bf16.msra.mxu0 0
  %251 = vmatprep.subr.bf16.mxu0 0
  %252 = vmatpush1.bf16.msra.mxu0 0
  %253 = vmatprep.subr.bf16.mxu0 0
  %254 = vmatpush1.bf16.msra.mxu0 0
  %255 = vmatprep.mubr.bf16.mxu0 %v218
  %256 = vmatmul.mubr.bf16.gmra.mrb[0].mxu0 %v136
  %v257 = vpop.f32.mrb[0].mxu0
  %v258 = vadd.f32 %v140, %v257
  %v259 = vpop.f32.mrb[0].mxu0
  %v260 = vpop.f32.mrb[0].mxu0
  %v261 = vadd.f32 %v141, %v260
  %v262 = vpop.f32.mrb[0].mxu0
  %263 = vmatprep.mubr.bf16.mxu0 %v221
  %264 = vmatmul.mubr.bf16.gmra.mrb[0].mxu0 %v138
  %v265 = vpop.f32.mrb[0].mxu0
  %v266 = vadd.f32 %v142, %v265
  %v267 = vpop.f32.mrb[0].mxu0
  %v268 = vpop.f32.mrb[0].mxu0
  %v269 = vadd.f32 %v143, %v268
  %v270 = vpop.f32.mrb[0].mxu0
  %271 = vdwg.mxu0
  %v272 = vld [vmem:[%s5] sm:$0x1]
  %v273 = vld [vmem:[%s6] sm:$0x1]
  %274 = vadd.xlane.f32.xlu0 %v258
  %v275 = vpop.xlane.xlu0 %274
  %276 = vadd.xlane.f32.xlu0 %v261
  %v277 = vpop.xlane.xlu0 %276
  %278 = vadd.xlane.f32.xlu0 %v266
  %v279 = vpop.xlane.xlu0 %278
  %vm280 = vcmask 1040384
  %v281 = vsel %vm280, %v269, 0.0
  %282 = vadd.xlane.f32.xlu0 %v281
  %v283 = vpop.xlane.xlu0 %282
  %v284 = vrcp.pop 128.0
  %v285 = vmul.f32 %v275, %v284
  %v286 = vmul.f32 %v277, %v284
  %v287 = vmul.f32 %v279, %v284
  %v288 = vmul.f32 %v283, %v284
  %v289 = vsub.f32 %v258, %v285
  %v290 = vsub.f32 %v261, %v286
  %v291 = vsub.f32 %v266, %v287
  %v292 = vsub.f32 %v269, %v288
  %v293 = vmul.f32 %v289, %v289
  %v294 = vmul.f32 %v290, %v290
  %v295 = vmul.f32 %v291, %v291
  %v296 = vmul.f32 %v292, %v292
  %297 = vadd.xlane.f32.xlu0 %v293
  %v298 = vpop.xlane.xlu0 %297
  %299 = vadd.xlane.f32.xlu0 %v294
  %v300 = vpop.xlane.xlu0 %299
  %301 = vadd.xlane.f32.xlu0 %v295
  %v302 = vpop.xlane.xlu0 %301
  %v303 = vsel %vm280, %v296, 0.0
  %304 = vadd.xlane.f32.xlu0 %v303
  %v305 = vpop.xlane.xlu0 %304
  %v306 = vmul.f32 %v298, %v284
  %v307 = vmul.f32 %v300, %v284
  %v308 = vmul.f32 %v302, %v284
  %v309 = vmul.f32 %v305, %v284
  %v310 = vadd.f32 %v306, 1e-05
  %v311 = vadd.f32 %v307, 1e-05
  %v312 = vadd.f32 %v308, 1e-05
  %v313 = vadd.f32 %v309, 1e-05
  %v314 = vrsqrt.pop %v310
  %v315 = vrsqrt.pop %v311
  %v316 = vrsqrt.pop %v312
  %v317 = vrsqrt.pop %v313
  %v318 = vmul.f32 %v289, %v314
  %v319 = vmul.f32 %v290, %v315
  %v320 = vmul.f32 %v291, %v316
  %v321 = vmul.f32 %v292, %v317
  %v323 = vlaneseq
  %v324 = vshrl.u32 %v323, 7
  %v325 = vsub.s32 0, %v324
  %v326 = vrot.slane %v272, %v325
  %v328 = vmul.f32 %v318, %v326
  %v329 = vmul.f32 %v319, %v326
  %v330 = vmul.f32 %v320, %v326
  %v331 = vmul.f32 %v321, %v326
  %v333 = vlaneseq
  %v334 = vshrl.u32 %v333, 7
  %v335 = vsub.s32 0, %v334
  %v336 = vrot.slane %v273, %v335
  %v338 = vadd.f32 %v328, %v336
  %v339 = vadd.f32 %v329, %v336
  %v340 = vadd.f32 %v330, %v336
  %v341 = vadd.f32 %v331, %v336
  %v342 = vld [vmem:[%s7] sm:$0x1]
  %v343 = vld [vmem:[%s8] sm:$0x1]
  %344 = vadd.xlane.f32.xlu0 %v338
  %v345 = vpop.xlane.xlu0 %344
  %346 = vadd.xlane.f32.xlu0 %v339
  %v347 = vpop.xlane.xlu0 %346
  %348 = vadd.xlane.f32.xlu0 %v340
  %v349 = vpop.xlane.xlu0 %348
  %v350 = vsel %vm280, %v341, 0.0
  %351 = vadd.xlane.f32.xlu0 %v350
  %v352 = vpop.xlane.xlu0 %351
  %v353 = vmul.f32 %v345, %v284
  %v354 = vmul.f32 %v347, %v284
  %v355 = vmul.f32 %v349, %v284
  %v356 = vmul.f32 %v352, %v284
  %v357 = vsub.f32 %v338, %v353
  %v358 = vsub.f32 %v339, %v354
  %v359 = vsub.f32 %v340, %v355
  %v360 = vsub.f32 %v341, %v356
  %v361 = vmul.f32 %v357, %v357
  %v362 = vmul.f32 %v358, %v358
  %v363 = vmul.f32 %v359, %v359
  %v364 = vmul.f32 %v360, %v360
  %365 = vadd.xlane.f32.xlu0 %v361
  %v366 = vpop.xlane.xlu0 %365
  %367 = vadd.xlane.f32.xlu0 %v362
  %v368 = vpop.xlane.xlu0 %367
  %369 = vadd.xlane.f32.xlu0 %v363
  %v370 = vpop.xlane.xlu0 %369
  %v371 = vsel %vm280, %v364, 0.0
  %372 = vadd.xlane.f32.xlu0 %v371
  %v373 = vpop.xlane.xlu0 %372
  %v374 = vmul.f32 %v366, %v284
  %v375 = vmul.f32 %v368, %v284
  %v376 = vmul.f32 %v370, %v284
  %v377 = vmul.f32 %v373, %v284
  %v378 = vadd.f32 %v374, 1e-05
  %v379 = vadd.f32 %v375, 1e-05
  %v380 = vadd.f32 %v376, 1e-05
  %v381 = vadd.f32 %v377, 1e-05
  %v382 = vrsqrt.pop %v378
  %v383 = vrsqrt.pop %v379
  %v384 = vrsqrt.pop %v380
  %v385 = vrsqrt.pop %v381
  %v386 = vmul.f32 %v357, %v382
  %v387 = vmul.f32 %v358, %v383
  %v388 = vmul.f32 %v359, %v384
  %v389 = vmul.f32 %v360, %v385
  %v391 = vlaneseq
  %v392 = vshrl.u32 %v391, 7
  %v393 = vsub.s32 0, %v392
  %v394 = vrot.slane %v342, %v393
  %v396 = vmul.f32 %v386, %v394
  %v397 = vmul.f32 %v387, %v394
  %v398 = vmul.f32 %v388, %v394
  %v399 = vmul.f32 %v389, %v394
  %v401 = vlaneseq
  %v402 = vshrl.u32 %v401, 7
  %v403 = vsub.s32 0, %v402
  %v404 = vrot.slane %v343, %v403
  %v406 = vadd.f32 %v396, %v404
  %v407 = vadd.f32 %v397, %v404
  %v408 = vadd.f32 %v398, %v404
  %v409 = vadd.f32 %v399, %v404
  %v410 = vld [vmem:[%s9] sm:$0xff]
  %v411 = vld [vmem:[%s9 + $0x8] sm:$0xf]
  %v412 = vld [vmem:[%s9 + $0xc] sm:$0xff]
  %v413 = vld [vmem:[%s9 + $0x14] sm:$0xf]
  %v414 = vld [vmem:[%s9 + $0x18] sm:$0xff]
  %v415 = vld [vmem:[%s9 + $0x20] sm:$0xf]
  %v416 = vld [vmem:[%s9 + $0x24] sm:$0xff]
  %v417 = vld [vmem:[%s9 + $0x2c] sm:$0xf]
  %v418 = vld [vmem:[%s9 + $0x30] sm:$0xff]
  %v419 = vld [vmem:[%s9 + $0x38] sm:$0xf]
  %v420 = vld [vmem:[%s9 + $0x3c] sm:$0xff]
  %v421 = vld [vmem:[%s9 + $0x44] sm:$0xf]
  %v422 = vld [vmem:[%s9 + $0x48] sm:$0xff]
  %v423 = vld [vmem:[%s9 + $0x50] sm:$0xf]
  %v424 = vld [vmem:[%s9 + $0x54] sm:$0xff]
  %v425 = vld [vmem:[%s9 + $0x5c] sm:$0xf]
  %v426 = vld [vmem:[%s9 + $0x60] sm:$0xff]
  %v427 = vld [vmem:[%s9 + $0x68] sm:$0xf]
  %v428 = vld [vmem:[%s9 + $0x6c] sm:$0xff]
  %v429 = vld [vmem:[%s9 + $0x74] sm:$0xf]
  %v430 = vld [vmem:[%s9 + $0x78] sm:$0xff]
  %v431 = vld [vmem:[%s9 + $0x80] sm:$0xf]
  %v432 = vld [vmem:[%s9 + $0x84] sm:$0xff]
  %v433 = vld [vmem:[%s9 + $0x8c] sm:$0xf]
  %v434 = vld [vmem:[%s9 + $0x90] sm:$0xff]
  %v435 = vld [vmem:[%s9 + $0x98] sm:$0xf]
  %v436 = vld [vmem:[%s9 + $0x9c] sm:$0xff]
  %v437 = vld [vmem:[%s9 + $0xa4] sm:$0xf]
  %v438 = vld [vmem:[%s9 + $0xa8] sm:$0xff]
  %v439 = vld [vmem:[%s9 + $0xb0] sm:$0xf]
  %v440 = vld [vmem:[%s9 + $0xb4] sm:$0xff]
  %v441 = vld [vmem:[%s9 + $0xbc] sm:$0xf]
  %v442 = vpack.c.bf16 %v407, %v406
  %v443 = vpack.c.bf16 %v409, %v408
  %v444 = vld [vmem:[%s10] sm:$0x7]
  %v446 = vlaneseq
  %v447 = vshrl.u32 %v446, 7
  %v448 = vsub.s32 0, %v447
  %v449 = vrot.slane %v444, %v448
  %v450 = vlaneseq
  %v451 = vshrl.u32 %v450, 7
  %v452 = vsub.s32 1, %v451
  %v453 = vrot.slane %v444, %v452
  %v454 = vlaneseq
  %v455 = vshrl.u32 %v454, 7
  %v456 = vsub.s32 2, %v455
  %v457 = vrot.slane %v444, %v456
  %v493 = vunpack.c.l.b16 %v410
  %v494 = vunpack.c.h.b16 %v410
  %v495 = vunpack.c.l.b16 %v411
  %v496 = vunpack.c.l.b16 %v412
  %v497 = vunpack.c.h.b16 %v412
  %v498 = vunpack.c.l.b16 %v413
  %v499 = vunpack.c.l.b16 %v414
  %v500 = vunpack.c.h.b16 %v414
  %v501 = vunpack.c.l.b16 %v415
  %v502 = vunpack.c.l.b16 %v416
  %v503 = vunpack.c.h.b16 %v416
  %v504 = vunpack.c.l.b16 %v417
  %v505 = vunpack.c.l.b16 %v418
  %v506 = vunpack.c.h.b16 %v418
  %v507 = vunpack.c.l.b16 %v419
  %v508 = vunpack.c.l.b16 %v420
  %v509 = vunpack.c.h.b16 %v420
  %v510 = vunpack.c.l.b16 %v421
  %v511 = vunpack.c.l.b16 %v422
  %v512 = vunpack.c.h.b16 %v422
  %v513 = vunpack.c.l.b16 %v423
  %v514 = vunpack.c.l.b16 %v424
  %v515 = vunpack.c.h.b16 %v424
  %v516 = vunpack.c.l.b16 %v425
  %v517 = vunpack.c.l.b16 %v426
  %v518 = vunpack.c.h.b16 %v426
  %v519 = vunpack.c.l.b16 %v427
  %v520 = vunpack.c.l.b16 %v428
  %v521 = vunpack.c.h.b16 %v428
  %v522 = vunpack.c.l.b16 %v429
  %v523 = vunpack.c.l.b16 %v430
  %v524 = vunpack.c.h.b16 %v430
  %v525 = vunpack.c.l.b16 %v431
  %v526 = vunpack.c.l.b16 %v432
  %v527 = vunpack.c.h.b16 %v432
  %v528 = vunpack.c.l.b16 %v433
  %v529 = vunpack.c.l.b16 %v434
  %v530 = vunpack.c.h.b16 %v434
  %v531 = vunpack.c.l.b16 %v435
  %v532 = vunpack.c.l.b16 %v436
  %v533 = vunpack.c.h.b16 %v436
  %v534 = vunpack.c.l.b16 %v437
  %v535 = vunpack.c.l.b16 %v438
  %v536 = vunpack.c.h.b16 %v438
  %v537 = vunpack.c.l.b16 %v439
  %v538 = vunpack.c.l.b16 %v440
  %v539 = vunpack.c.h.b16 %v440
  %v540 = vunpack.c.l.b16 %v441
  %v541 = vpack.c.b16 %v496, %v493
  %v542 = vpack.c.b16 %v497, %v494
  %v543 = vpack.c.b16 %v498, %v495
  %v544 = vpack.c.b16 %v502, %v499
  %v545 = vpack.c.b16 %v503, %v500
  %v546 = vpack.c.b16 %v504, %v501
  %v547 = vpack.c.b16 %v508, %v505
  %v548 = vpack.c.b16 %v509, %v506
  %v549 = vpack.c.b16 %v510, %v507
  %v550 = vpack.c.b16 %v514, %v511
  %v551 = vpack.c.b16 %v515, %v512
  %v552 = vpack.c.b16 %v516, %v513
  %v553 = vpack.c.b16 %v520, %v517
  %v554 = vpack.c.b16 %v521, %v518
  %v555 = vpack.c.b16 %v522, %v519
  %v556 = vpack.c.b16 %v526, %v523
  %v557 = vpack.c.b16 %v527, %v524
  %v558 = vpack.c.b16 %v528, %v525
  %v559 = vpack.c.b16 %v532, %v529
  %v560 = vpack.c.b16 %v533, %v530
  %v561 = vpack.c.b16 %v534, %v531
  %v562 = vpack.c.b16 %v538, %v535
  %v563 = vpack.c.b16 %v539, %v536
  %v564 = vpack.c.b16 %v540, %v537
  %589 = vmatprep.subr.bf16.mxu0 %v542
  %590 = vmatpush1.bf16.msra.mxu0 %v541
  %591 = vmatprep.subr.bf16.mxu0 %v545
  %592 = vmatpush1.bf16.msra.mxu0 %v544
  %593 = vmatprep.subr.bf16.mxu0 %v548
  %594 = vmatpush1.bf16.msra.mxu0 %v547
  %595 = vmatprep.subr.bf16.mxu0 %v551
  %596 = vmatpush1.bf16.msra.mxu0 %v550
  %597 = vmatprep.subr.bf16.mxu0 %v554
  %598 = vmatpush1.bf16.msra.mxu0 %v553
  %599 = vmatprep.subr.bf16.mxu0 %v557
  %600 = vmatpush1.bf16.msra.mxu0 %v556
  %601 = vmatprep.subr.bf16.mxu0 %v560
  %602 = vmatpush1.bf16.msra.mxu0 %v559
  %603 = vmatprep.subr.bf16.mxu0 %v563
  %604 = vmatpush1.bf16.msra.mxu0 %v562
  %605 = vmatprep.subr.bf16.mxu0 0
  %606 = vmatpush1.bf16.msra.mxu0 0
  %607 = vmatprep.subr.bf16.mxu0 0
  %608 = vmatpush1.bf16.msra.mxu0 0
  %609 = vmatprep.subr.bf16.mxu0 0
  %610 = vmatpush1.bf16.msra.mxu0 0
  %611 = vmatprep.subr.bf16.mxu0 0
  %612 = vmatpush1.bf16.msra.mxu0 0
  %613 = vmatprep.subr.bf16.mxu0 0
  %614 = vmatpush1.bf16.msra.mxu0 0
  %615 = vmatprep.subr.bf16.mxu0 0
  %616 = vmatpush1.bf16.msra.mxu0 0
  %617 = vmatprep.subr.bf16.mxu0 0
  %618 = vmatpush1.bf16.msra.mxu0 0
  %619 = vmatprep.subr.bf16.mxu0 0
  %620 = vmatpush1.bf16.msra.mxu0 0
  %621 = vmatprep.mubr.bf16.mxu0 0
  %622 = vmatmul.mubr.bf16.gmra.mrb[0].mxu0 %v442
  %v623 = vpop.f32.mrb[0].mxu0
  %v624 = vadd.f32 %v449, %v623
  %v625 = vpop.f32.mrb[0].mxu0
  %v626 = vadd.f32 %v453, %v625
  %v627 = vpop.f32.mrb[0].mxu0
  %v628 = vadd.f32 %v449, %v627
  %v629 = vpop.f32.mrb[0].mxu0
  %v630 = vadd.f32 %v453, %v629
  %631 = vmatprep.mubr.bf16.mxu0 0
  %632 = vmatmul.mubr.bf16.gmra.mrb[0].mxu0 %v443
  %v633 = vpop.f32.mrb[0].mxu0
  %v634 = vadd.f32 %v449, %v633
  %v635 = vpop.f32.mrb[0].mxu0
  %v636 = vadd.f32 %v453, %v635
  %v637 = vpop.f32.mrb[0].mxu0
  %v638 = vadd.f32 %v449, %v637
  %v639 = vpop.f32.mrb[0].mxu0
  %v640 = vadd.f32 %v453, %v639
  %641 = vdwg.mxu0
  %642 = vmatprep.subr.bf16.mxu0 0
  %643 = vmatpush1.bf16.msra.mxu0 %v543
  %644 = vmatprep.subr.bf16.mxu0 0
  %645 = vmatpush1.bf16.msra.mxu0 %v546
  %646 = vmatprep.subr.bf16.mxu0 0
  %647 = vmatpush1.bf16.msra.mxu0 %v549
  %648 = vmatprep.subr.bf16.mxu0 0
  %649 = vmatpush1.bf16.msra.mxu0 %v552
  %650 = vmatprep.subr.bf16.mxu0 0
  %651 = vmatpush1.bf16.msra.mxu0 %v555
  %652 = vmatprep.subr.bf16.mxu0 0
  %653 = vmatpush1.bf16.msra.mxu0 %v558
  %654 = vmatprep.subr.bf16.mxu0 0
  %655 = vmatpush1.bf16.msra.mxu0 %v561
  %656 = vmatprep.subr.bf16.mxu0 0
  %657 = vmatpush1.bf16.msra.mxu0 %v564
  %658 = vmatprep.subr.bf16.mxu0 0
  %659 = vmatpush1.bf16.msra.mxu0 0
  %660 = vmatprep.subr.bf16.mxu0 0
  %661 = vmatpush1.bf16.msra.mxu0 0
  %662 = vmatprep.subr.bf16.mxu0 0
  %663 = vmatpush1.bf16.msra.mxu0 0
  %664 = vmatprep.subr.bf16.mxu0 0
  %665 = vmatpush1.bf16.msra.mxu0 0
  %666 = vmatprep.subr.bf16.mxu0 0
  %667 = vmatpush1.bf16.msra.mxu0 0
  %668 = vmatprep.subr.bf16.mxu0 0
  %669 = vmatpush1.bf16.msra.mxu0 0
  %670 = vmatprep.subr.bf16.mxu0 0
  %671 = vmatpush1.bf16.msra.mxu0 0
  %672 = vmatprep.subr.bf16.mxu0 0
  %673 = vmatpush1.bf16.msra.mxu0 0
  %674 = vmatprep.mubr.bf16.mxu0 0
  %675 = vmatmul.mubr.bf16.gmra.mrb[0].mxu0 %v442
  %v676 = vpop.f32.mrb[0].mxu0
  %v677 = vadd.f32 %v457, %v676
  %v678 = vpop.f32.mrb[0].mxu0
  %v679 = vpop.f32.mrb[0].mxu0
  %v680 = vadd.f32 %v457, %v679
  %v681 = vpop.f32.mrb[0].mxu0
  %682 = vmatprep.mubr.bf16.mxu0 0
  %683 = vmatmul.mubr.bf16.gmra.mrb[0].mxu0 %v443
  %v684 = vpop.f32.mrb[0].mxu0
  %v685 = vadd.f32 %v457, %v684
  %v686 = vpop.f32.mrb[0].mxu0
  %v687 = vpop.f32.mrb[0].mxu0
  %v688 = vadd.f32 %v457, %v687
  %v689 = vpop.f32.mrb[0].mxu0
  %690 = vdwg.mxu0
  %v691 = vmul.f32 %v624, 0.125
  %v692 = vmul.f32 %v628, 0.125
  %v693 = vmul.f32 %v634, 0.125
  %v694 = vmul.f32 %v638, 0.125
  %v695 = vld [vmem:[%s11] sm:$0xf]
  %v696 = vld [vmem:[%s11 + $0x4] sm:$0xf]
  %v697 = vld [vmem:[%s11 + $0x8] sm:$0xf]
  %v698 = vld [vmem:[%s11 + $0xc] sm:$0xf]
  %v699 = vld [vmem:[%s11 + $0x10] sm:$0xf]
  %v700 = vld [vmem:[%s11 + $0x14] sm:$0xf]
  %v701 = vld [vmem:[%s11 + $0x18] sm:$0xf]
  %v702 = vld [vmem:[%s11 + $0x1c] sm:$0xf]
  %v703 = vld [vmem:[%s11 + $0x20] sm:$0xf]
  %v704 = vld [vmem:[%s11 + $0x24] sm:$0xf]
  %v705 = vld [vmem:[%s11 + $0x28] sm:$0xf]
  %v706 = vld [vmem:[%s11 + $0x2c] sm:$0xf]
  %v707 = vld [vmem:[%s11 + $0x30] sm:$0xf]
  %v708 = vld [vmem:[%s11 + $0x34] sm:$0xf]
  %v709 = vld [vmem:[%s11 + $0x38] sm:$0xf]
  %v710 = vld [vmem:[%s11 + $0x3c] sm:$0xf]
  %v711 = vpack.c.bf16 %v692, %v691
  %v712 = vpack.c.bf16 %v694, %v693
  %v713 = vpack.c.bf16 %v630, %v626
  %v714 = vpack.c.bf16 %v640, %v636
  %v715 = vpack.c.bf16 %v680, %v677
  %v716 = vpack.c.bf16 %v688, %v685
  %v718 = vsel %vm216, %v711, 0
  %v721 = vsel %vm216, %v712, 0
  %v724 = vsel %vm216, %v713, 0
  %v727 = vsel %vm216, %v714, 0
  %729 = vmatprep.subr.bf16.mxu0 0
  %730 = vmatpush1.bf16.xpose.msra.mxu0 %v724
  %731 = vmatprep.subr.bf16.mxu0 0
  %732 = vmatpush1.bf16.xpose.msra.mxu0 %v727
  %733 = vmatprep.subr.bf16.mxu0 0
  %734 = vmatpush1.bf16.xpose.msra.mxu0 0
  %735 = vmatprep.subr.bf16.mxu0 0
  %736 = vmatpush1.bf16.xpose.msra.mxu0 0
  %737 = vmatprep.subr.bf16.mxu0 0
  %738 = vmatpush1.bf16.xpose.msra.mxu0 0
  %739 = vmatprep.subr.bf16.mxu0 0
  %740 = vmatpush1.bf16.xpose.msra.mxu0 0
  %741 = vmatprep.subr.bf16.mxu0 0
  %742 = vmatpush1.bf16.xpose.msra.mxu0 0
  %743 = vmatprep.subr.bf16.mxu0 0
  %744 = vmatpush1.bf16.xpose.msra.mxu0 0
  %745 = vmatprep.subr.bf16.mxu0 0
  %746 = vmatpush1.bf16.xpose.msra.mxu0 0
  %747 = vmatprep.subr.bf16.mxu0 0
  %748 = vmatpush1.bf16.xpose.msra.mxu0 0
  %749 = vmatprep.subr.bf16.mxu0 0
  %750 = vmatpush1.bf16.xpose.msra.mxu0 0
  %751 = vmatprep.subr.bf16.mxu0 0
  %752 = vmatpush1.bf16.xpose.msra.mxu0 0
  %753 = vmatprep.subr.bf16.mxu0 0
  %754 = vmatpush1.bf16.xpose.msra.mxu0 0
  %755 = vmatprep.subr.bf16.mxu0 0
  %756 = vmatpush1.bf16.xpose.msra.mxu0 0
  %757 = vmatprep.subr.bf16.mxu0 0
  %758 = vmatpush1.bf16.xpose.msra.mxu0 0
  %759 = vmatprep.subr.bf16.mxu0 0
  %760 = vmatpush1.bf16.xpose.msra.mxu0 0
  %761 = vmatprep.mubr.bf16.mxu0 0
  %762 = vmatmul.mubr.bf16.gmra.mrb[0].mxu0 %v718
  %v763 = vpop.f32.mrb[0].mxu0
  %v764 = vadd.f32 %v100, %v763
  %v765 = vpop.f32.mrb[0].mxu0
  %v766 = vpop.f32.mrb[0].mxu0
  %v767 = vadd.f32 %v101, %v766
  %v768 = vpop.f32.mrb[0].mxu0
  %769 = vmatprep.mubr.bf16.mxu0 0
  %770 = vmatmul.mubr.bf16.gmra.mrb[0].mxu0 %v721
  %v771 = vpop.f32.mrb[0].mxu0
  %v772 = vadd.f32 %v102, %v771
  %v773 = vpop.f32.mrb[0].mxu0
  %v774 = vpop.f32.mrb[0].mxu0
  %v775 = vadd.f32 %v103, %v774
  %v776 = vpop.f32.mrb[0].mxu0
  %777 = vdwg.mxu0
  %vm778 = vcmask 203776
  %v779 = vsel %vm778, %v764, -inf
  %780 = vmax.xlane.f32.xlu0 %v779
  %v781 = vpop.xlane.xlu0 %780
  %v782 = vsel %vm778, %v767, -inf
  %783 = vmax.xlane.f32.xlu0 %v782
  %v784 = vpop.xlane.xlu0 %783
  %v785 = vsel %vm778, %v772, -inf
  %786 = vmax.xlane.f32.xlu0 %v785
  %v787 = vpop.xlane.xlu0 %786
  %vm788 = vcmask 196608
  %v789 = vsel %vm788, %v775, -inf
  %790 = vmax.xlane.f32.xlu0 %v789
  %v791 = vpop.xlane.xlu0 %790
  %v792 = vsub.f32 %v764, %v781
  %v793 = vsub.f32 %v767, %v784
  %v794 = vsub.f32 %v772, %v787
  %v795 = vsub.f32 %v775, %v791
  %v796 = vmul.f32 %v792, 1.442695
  %v797 = vpow.pop %v796
  %v798 = vmul.f32 %v793, 1.442695
  %v799 = vpow.pop %v798
  %v800 = vmul.f32 %v794, 1.442695
  %v801 = vpow.pop %v800
  %v802 = vmul.f32 %v795, 1.442695
  %v803 = vpow.pop %v802
  %v804 = vsel %vm778, %v797, 0.0
  %805 = vadd.xlane.f32.xlu0 %v804
  %v806 = vpop.xlane.xlu0 %805
  %v807 = vsel %vm778, %v799, 0.0
  %808 = vadd.xlane.f32.xlu0 %v807
  %v809 = vpop.xlane.xlu0 %808
  %v810 = vsel %vm778, %v801, 0.0
  %811 = vadd.xlane.f32.xlu0 %v810
  %v812 = vpop.xlane.xlu0 %811
  %v813 = vsel %vm788, %v803, 0.0
  %814 = vadd.xlane.f32.xlu0 %v813
  %v815 = vpop.xlane.xlu0 %814
  %v816 = vrcp.pop %v806
  %v817 = vrcp.pop %v809
  %v818 = vrcp.pop %v812
  %v819 = vrcp.pop %v815
  %v820 = vmul.f32 %v797, %v816
  %v821 = vmul.f32 %v799, %v817
  %v822 = vmul.f32 %v801, %v818
  %v823 = vmul.f32 %v803, %v819
  %v824 = vpack.c.bf16 %v821, %v820
  %v825 = vpack.c.bf16 %v823, %v822
  %v827 = vsel %vm778, %v824, 0
  %v830 = vsel %vm778, %v825, 0
  %vm832 = vcmask 1043456
  %vm833 = vcmask 1044480
  %v834 = vsel %vm832, 4294967295, 65535
  %v835 = vsel %vm833, %v834, 0
  %v837 = vand.u32 %v716, %v835
  %839 = vmatprep.subr.bf16.mxu0 0
  %840 = vmatpush1.bf16.msra.mxu0 %v715
  %841 = vmatprep.subr.bf16.mxu0 0
  %842 = vmatpush1.bf16.msra.mxu0 %v837
  %843 = vmatprep.subr.bf16.mxu0 0
  %844 = vmatpush1.bf16.msra.mxu0 0
  %845 = vmatprep.subr.bf16.mxu0 0
  %846 = vmatpush1.bf16.msra.mxu0 0
  %847 = vmatprep.subr.bf16.mxu0 0
  %848 = vmatpush1.bf16.msra.mxu0 0
  %849 = vmatprep.subr.bf16.mxu0 0
  %850 = vmatpush1.bf16.msra.mxu0 0
  %851 = vmatprep.subr.bf16.mxu0 0
  %852 = vmatpush1.bf16.msra.mxu0 0
  %853 = vmatprep.subr.bf16.mxu0 0
  %854 = vmatpush1.bf16.msra.mxu0 0
  %855 = vmatprep.subr.bf16.mxu0 0
  %856 = vmatpush1.bf16.msra.mxu0 0
  %857 = vmatprep.subr.bf16.mxu0 0
  %858 = vmatpush1.bf16.msra.mxu0 0
  %859 = vmatprep.subr.bf16.mxu0 0
  %860 = vmatpush1.bf16.msra.mxu0 0
  %861 = vmatprep.subr.bf16.mxu0 0
  %862 = vmatpush1.bf16.msra.mxu0 0
  %863 = vmatprep.subr.bf16.mxu0 0
  %864 = vmatpush1.bf16.msra.mxu0 0
  %865 = vmatprep.subr.bf16.mxu0 0
  %866 = vmatpush1.bf16.msra.mxu0 0
  %867 = vmatprep.subr.bf16.mxu0 0
  %868 = vmatpush1.bf16.msra.mxu0 0
  %869 = vmatprep.subr.bf16.mxu0 0
  %870 = vmatpush1.bf16.msra.mxu0 0
  %871 = vmatprep.mubr.bf16.mxu0 0
  %872 = vmatmul.mubr.bf16.gmra.mrb[0].mxu0 %v827
  %v873 = vpop.f32.mrb[0].mxu0
  %v874 = vadd.f32 0.0, %v873
  %v875 = vpop.f32.mrb[0].mxu0
  %v876 = vpop.f32.mrb[0].mxu0
  %v877 = vadd.f32 0.0, %v876
  %v878 = vpop.f32.mrb[0].mxu0
  %879 = vmatprep.mubr.bf16.mxu0 0
  %880 = vmatmul.mubr.bf16.gmra.mrb[0].mxu0 %v830
  %v881 = vpop.f32.mrb[0].mxu0
  %v882 = vadd.f32 0.0, %v881
  %v883 = vpop.f32.mrb[0].mxu0
  %v884 = vpop.f32.mrb[0].mxu0
  %v885 = vadd.f32 0.0, %v884
  %v886 = vpop.f32.mrb[0].mxu0
  %887 = vdwg.mxu0
  %v888 = vpack.c.bf16 %v877, %v874
  %v889 = vpack.c.bf16 %v885, %v882
  %892 = vrot.lane.b32.xlu0 %v711, 64
  %v893 = vpop.permute.xlu0 %892
  %894 = vrot.lane.b32.xlu0 %v712, 64
  %v895 = vpop.permute.xlu0 %894
  %898 = vrot.lane.b32.xlu0 %v713, 64
  %v899 = vpop.permute.xlu0 %898
  %900 = vrot.lane.b32.xlu0 %v714, 64
  %v901 = vpop.permute.xlu0 %900
  %v903 = vsel %vm216, %v893, 0
  %v906 = vsel %vm216, %v895, 0
  %v909 = vsel %vm216, %v899, 0
  %v912 = vsel %vm216, %v901, 0
  %914 = vmatprep.subr.bf16.mxu0 0
  %915 = vmatpush1.bf16.xpose.msra.mxu0 %v909
  %916 = vmatprep.subr.bf16.mxu0 0
  %917 = vmatpush1.bf16.xpose.msra.mxu0 %v912
  %918 = vmatprep.subr.bf16.mxu0 0
  %919 = vmatpush1.bf16.xpose.msra.mxu0 0
  %920 = vmatprep.subr.bf16.mxu0 0
  %921 = vmatpush1.bf16.xpose.msra.mxu0 0
  %922 = vmatprep.subr.bf16.mxu0 0
  %923 = vmatpush1.bf16.xpose.msra.mxu0 0
  %924 = vmatprep.subr.bf16.mxu0 0
  %925 = vmatpush1.bf16.xpose.msra.mxu0 0
  %926 = vmatprep.subr.bf16.mxu0 0
  %927 = vmatpush1.bf16.xpose.msra.mxu0 0
  %928 = vmatprep.subr.bf16.mxu0 0
  %929 = vmatpush1.bf16.xpose.msra.mxu0 0
  %930 = vmatprep.subr.bf16.mxu0 0
  %931 = vmatpush1.bf16.xpose.msra.mxu0 0
  %932 = vmatprep.subr.bf16.mxu0 0
  %933 = vmatpush1.bf16.xpose.msra.mxu0 0
  %934 = vmatprep.subr.bf16.mxu0 0
  %935 = vmatpush1.bf16.xpose.msra.mxu0 0
  %936 = vmatprep.subr.bf16.mxu0 0
  %937 = vmatpush1.bf16.xpose.msra.mxu0 0
  %938 = vmatprep.subr.bf16.mxu0 0
  %939 = vmatpush1.bf16.xpose.msra.mxu0 0
  %940 = vmatprep.subr.bf16.mxu0 0
  %941 = vmatpush1.bf16.xpose.msra.mxu0 0
  %942 = vmatprep.subr.bf16.mxu0 0
  %943 = vmatpush1.bf16.xpose.msra.mxu0 0
  %944 = vmatprep.subr.bf16.mxu0 0
  %945 = vmatpush1.bf16.xpose.msra.mxu0 0
  %946 = vmatprep.mubr.bf16.mxu0 0
  %947 = vmatmul.mubr.bf16.gmra.mrb[0].mxu0 %v903
  %v948 = vpop.f32.mrb[0].mxu0
  %v949 = vadd.f32 %v100, %v948
  %v950 = vpop.f32.mrb[0].mxu0
  %v951 = vpop.f32.mrb[0].mxu0
  %v952 = vadd.f32 %v101, %v951
  %v953 = vpop.f32.mrb[0].mxu0
  %954 = vmatprep.mubr.bf16.mxu0 0
  %955 = vmatmul.mubr.bf16.gmra.mrb[0].mxu0 %v906
  %v956 = vpop.f32.mrb[0].mxu0
  %v957 = vadd.f32 %v102, %v956
  %v958 = vpop.f32.mrb[0].mxu0
  %v959 = vpop.f32.mrb[0].mxu0
  %v960 = vadd.f32 %v103, %v959
  %v961 = vpop.f32.mrb[0].mxu0
  %962 = vdwg.mxu0
  %v963 = vsel %vm778, %v949, -inf
  %964 = vmax.xlane.f32.xlu0 %v963
  %v965 = vpop.xlane.xlu0 %964
  %v966 = vsel %vm778, %v952, -inf
  %967 = vmax.xlane.f32.xlu0 %v966
  %v968 = vpop.xlane.xlu0 %967
  %v969 = vsel %vm778, %v957, -inf
  %970 = vmax.xlane.f32.xlu0 %v969
  %v971 = vpop.xlane.xlu0 %970
  %v972 = vsel %vm788, %v960, -inf
  %973 = vmax.xlane.f32.xlu0 %v972
  %v974 = vpop.xlane.xlu0 %973
  %v975 = vsub.f32 %v949, %v965
  %v976 = vsub.f32 %v952, %v968
  %v977 = vsub.f32 %v957, %v971
  %v978 = vsub.f32 %v960, %v974
  %v979 = vmul.f32 %v975, 1.442695
  %v980 = vpow.pop %v979
  %v981 = vmul.f32 %v976, 1.442695
  %v982 = vpow.pop %v981
  %v983 = vmul.f32 %v977, 1.442695
  %v984 = vpow.pop %v983
  %v985 = vmul.f32 %v978, 1.442695
  %v986 = vpow.pop %v985
  %v987 = vsel %vm778, %v980, 0.0
  %988 = vadd.xlane.f32.xlu0 %v987
  %v989 = vpop.xlane.xlu0 %988
  %v990 = vsel %vm778, %v982, 0.0
  %991 = vadd.xlane.f32.xlu0 %v990
  %v992 = vpop.xlane.xlu0 %991
  %v993 = vsel %vm778, %v984, 0.0
  %994 = vadd.xlane.f32.xlu0 %v993
  %v995 = vpop.xlane.xlu0 %994
  %v996 = vsel %vm788, %v986, 0.0
  %997 = vadd.xlane.f32.xlu0 %v996
  %v998 = vpop.xlane.xlu0 %997
  %v999 = vrcp.pop %v989
  %v1000 = vrcp.pop %v992
  %v1001 = vrcp.pop %v995
  %v1002 = vrcp.pop %v998
  %v1003 = vmul.f32 %v980, %v999
  %v1004 = vmul.f32 %v982, %v1000
  %v1005 = vmul.f32 %v984, %v1001
  %v1006 = vmul.f32 %v986, %v1002
  %v1007 = vpack.c.bf16 %v1004, %v1003
  %v1008 = vpack.c.bf16 %v1006, %v1005
  %1011 = vrot.lane.b32.xlu0 %v715, 64
  %v1012 = vpop.permute.xlu0 %1011
  %1013 = vrot.lane.b32.xlu0 %v716, 64
  %v1014 = vpop.permute.xlu0 %1013
  %v1017 = vsel %vm778, %v1007, 0
  %v1020 = vsel %vm778, %v1008, 0
  %v1023 = vand.u32 %v1014, %v835
  %1025 = vmatprep.subr.bf16.mxu0 0
  %1026 = vmatpush1.bf16.msra.mxu0 %v1012
  %1027 = vmatprep.subr.bf16.mxu0 0
  %1028 = vmatpush1.bf16.msra.mxu0 %v1023
  %1029 = vmatprep.subr.bf16.mxu0 0
  %1030 = vmatpush1.bf16.msra.mxu0 0
  %1031 = vmatprep.subr.bf16.mxu0 0
  %1032 = vmatpush1.bf16.msra.mxu0 0
  %1033 = vmatprep.subr.bf16.mxu0 0
  %1034 = vmatpush1.bf16.msra.mxu0 0
  %1035 = vmatprep.subr.bf16.mxu0 0
  %1036 = vmatpush1.bf16.msra.mxu0 0
  %1037 = vmatprep.subr.bf16.mxu0 0
  %1038 = vmatpush1.bf16.msra.mxu0 0
  %1039 = vmatprep.subr.bf16.mxu0 0
  %1040 = vmatpush1.bf16.msra.mxu0 0
  %1041 = vmatprep.subr.bf16.mxu0 0
  %1042 = vmatpush1.bf16.msra.mxu0 0
  %1043 = vmatprep.subr.bf16.mxu0 0
  %1044 = vmatpush1.bf16.msra.mxu0 0
  %1045 = vmatprep.subr.bf16.mxu0 0
  %1046 = vmatpush1.bf16.msra.mxu0 0
  %1047 = vmatprep.subr.bf16.mxu0 0
  %1048 = vmatpush1.bf16.msra.mxu0 0
  %1049 = vmatprep.subr.bf16.mxu0 0
  %1050 = vmatpush1.bf16.msra.mxu0 0
  %1051 = vmatprep.subr.bf16.mxu0 0
  %1052 = vmatpush1.bf16.msra.mxu0 0
  %1053 = vmatprep.subr.bf16.mxu0 0
  %1054 = vmatpush1.bf16.msra.mxu0 0
  %1055 = vmatprep.subr.bf16.mxu0 0
  %1056 = vmatpush1.bf16.msra.mxu0 0
  %1057 = vmatprep.mubr.bf16.mxu0 0
  %1058 = vmatmul.mubr.bf16.gmra.mrb[0].mxu0 %v1017
  %v1059 = vpop.f32.mrb[0].mxu0
  %v1060 = vadd.f32 0.0, %v1059
  %v1061 = vpop.f32.mrb[0].mxu0
  %v1062 = vpop.f32.mrb[0].mxu0
  %v1063 = vadd.f32 0.0, %v1062
  %v1064 = vpop.f32.mrb[0].mxu0
  %1065 = vmatprep.mubr.bf16.mxu0 0
  %1066 = vmatmul.mubr.bf16.gmra.mrb[0].mxu0 %v1020
  %v1067 = vpop.f32.mrb[0].mxu0
  %v1068 = vadd.f32 0.0, %v1067
  %v1069 = vpop.f32.mrb[0].mxu0
  %v1070 = vpop.f32.mrb[0].mxu0
  %v1071 = vadd.f32 0.0, %v1070
  %v1072 = vpop.f32.mrb[0].mxu0
  %1073 = vdwg.mxu0
  %v1074 = vpack.c.bf16 %v1063, %v1060
  %v1075 = vpack.c.bf16 %v1071, %v1068
  %v1084 = vunpack.c.l.b16 %v703
  %v1085 = vunpack.c.l.b16 %v704
  %v1086 = vunpack.c.l.b16 %v705
  %v1087 = vunpack.c.l.b16 %v706
  %v1088 = vunpack.c.l.b16 %v707
  %v1089 = vunpack.c.l.b16 %v708
  %v1090 = vunpack.c.l.b16 %v709
  %v1091 = vunpack.c.l.b16 %v710
  %v1092 = vpack.c.b16 %v1085, %v1084
  %v1093 = vpack.c.b16 %v1087, %v1086
  %v1094 = vpack.c.b16 %v1089, %v1088
  %v1095 = vpack.c.b16 %v1091, %v1090
  %v1101 = vsel %vm216, %v1074, 0
  %v1104 = vsel %vm216, %v1075, 0
  %1106 = vmatprep.subr.bf16.mxu0 0
  %1107 = vmatpush1.bf16.msra.mxu0 %v1092
  %1108 = vmatprep.subr.bf16.mxu0 0
  %1109 = vmatpush1.bf16.msra.mxu0 %v1093
  %1110 = vmatprep.subr.bf16.mxu0 0
  %1111 = vmatpush1.bf16.msra.mxu0 %v1094
  %1112 = vmatprep.subr.bf16.mxu0 0
  %1113 = vmatpush1.bf16.msra.mxu0 %v1095
  %1114 = vmatprep.subr.bf16.mxu0 0
  %1115 = vmatpush1.bf16.msra.mxu0 0
  %1116 = vmatprep.subr.bf16.mxu0 0
  %1117 = vmatpush1.bf16.msra.mxu0 0
  %1118 = vmatprep.subr.bf16.mxu0 0
  %1119 = vmatpush1.bf16.msra.mxu0 0
  %1120 = vmatprep.subr.bf16.mxu0 0
  %1121 = vmatpush1.bf16.msra.mxu0 0
  %1122 = vmatprep.subr.bf16.mxu0 0
  %1123 = vmatpush1.bf16.msra.mxu0 0
  %1124 = vmatprep.subr.bf16.mxu0 0
  %1125 = vmatpush1.bf16.msra.mxu0 0
  %1126 = vmatprep.subr.bf16.mxu0 0
  %1127 = vmatpush1.bf16.msra.mxu0 0
  %1128 = vmatprep.subr.bf16.mxu0 0
  %1129 = vmatpush1.bf16.msra.mxu0 0
  %1130 = vmatprep.subr.bf16.mxu0 0
  %1131 = vmatpush1.bf16.msra.mxu0 0
  %1132 = vmatprep.subr.bf16.mxu0 0
  %1133 = vmatpush1.bf16.msra.mxu0 0
  %1134 = vmatprep.subr.bf16.mxu0 0
  %1135 = vmatpush1.bf16.msra.mxu0 0
  %1136 = vmatprep.subr.bf16.mxu0 0
  %1137 = vmatpush1.bf16.msra.mxu0 0
  %1138 = vmatprep.mubr.bf16.mxu0 0
  %1139 = vmatmul.mubr.bf16.gmra.mrb[0].mxu0 %v1101
  %v1140 = vpop.f32.mrb[0].mxu0
  %v1141 = vadd.f32 0.0, %v1140
  %v1142 = vpop.f32.mrb[0].mxu0
  %v1143 = vpop.f32.mrb[0].mxu0
  %v1144 = vadd.f32 0.0, %v1143
  %v1145 = vpop.f32.mrb[0].mxu0
  %1146 = vmatprep.mubr.bf16.mxu0 0
  %1147 = vmatmul.mubr.bf16.gmra.mrb[0].mxu0 %v1104
  %v1148 = vpop.f32.mrb[0].mxu0
  %v1149 = vadd.f32 0.0, %v1148
  %v1150 = vpop.f32.mrb[0].mxu0
  %v1151 = vpop.f32.mrb[0].mxu0
  %v1152 = vadd.f32 0.0, %v1151
  %v1153 = vpop.f32.mrb[0].mxu0
  %1154 = vdwg.mxu0
  %v1163 = vunpack.c.l.b16 %v695
  %v1164 = vunpack.c.l.b16 %v696
  %v1165 = vunpack.c.l.b16 %v697
  %v1166 = vunpack.c.l.b16 %v698
  %v1167 = vunpack.c.l.b16 %v699
  %v1168 = vunpack.c.l.b16 %v700
  %v1169 = vunpack.c.l.b16 %v701
  %v1170 = vunpack.c.l.b16 %v702
  %v1171 = vpack.c.b16 %v1164, %v1163
  %v1172 = vpack.c.b16 %v1166, %v1165
  %v1173 = vpack.c.b16 %v1168, %v1167
  %v1174 = vpack.c.b16 %v1170, %v1169
  %v1180 = vsel %vm216, %v888, 0
  %v1183 = vsel %vm216, %v889, 0
  %1185 = vmatprep.subr.bf16.mxu0 0
  %1186 = vmatpush1.bf16.msra.mxu0 %v1171
  %1187 = vmatprep.subr.bf16.mxu0 0
  %1188 = vmatpush1.bf16.msra.mxu0 %v1172
  %1189 = vmatprep.subr.bf16.mxu0 0
  %1190 = vmatpush1.bf16.msra.mxu0 %v1173
  %1191 = vmatprep.subr.bf16.mxu0 0
  %1192 = vmatpush1.bf16.msra.mxu0 %v1174
  %1193 = vmatprep.subr.bf16.mxu0 0
  %1194 = vmatpush1.bf16.msra.mxu0 0
  %1195 = vmatprep.subr.bf16.mxu0 0
  %1196 = vmatpush1.bf16.msra.mxu0 0
  %1197 = vmatprep.subr.bf16.mxu0 0
  %1198 = vmatpush1.bf16.msra.mxu0 0
  %1199 = vmatprep.subr.bf16.mxu0 0
  %1200 = vmatpush1.bf16.msra.mxu0 0
  %1201 = vmatprep.subr.bf16.mxu0 0
  %1202 = vmatpush1.bf16.msra.mxu0 0
  %1203 = vmatprep.subr.bf16.mxu0 0
  %1204 = vmatpush1.bf16.msra.mxu0 0
  %1205 = vmatprep.subr.bf16.mxu0 0
  %1206 = vmatpush1.bf16.msra.mxu0 0
  %1207 = vmatprep.subr.bf16.mxu0 0
  %1208 = vmatpush1.bf16.msra.mxu0 0
  %1209 = vmatprep.subr.bf16.mxu0 0
  %1210 = vmatpush1.bf16.msra.mxu0 0
  %1211 = vmatprep.subr.bf16.mxu0 0
  %1212 = vmatpush1.bf16.msra.mxu0 0
  %1213 = vmatprep.subr.bf16.mxu0 0
  %1214 = vmatpush1.bf16.msra.mxu0 0
  %1215 = vmatprep.subr.bf16.mxu0 0
  %1216 = vmatpush1.bf16.msra.mxu0 0
  %1217 = vmatprep.mubr.bf16.mxu0 0
  %1218 = vmatmul.mubr.bf16.gmra.mrb[0].mxu0 %v1180
  %v1219 = vpop.f32.mrb[0].mxu0
  %v1220 = vadd.f32 %v1141, %v1219
  %v1221 = vpop.f32.mrb[0].mxu0
  %v1222 = vpop.f32.mrb[0].mxu0
  %v1223 = vadd.f32 %v1144, %v1222
  %v1224 = vpop.f32.mrb[0].mxu0
  %1225 = vmatprep.mubr.bf16.mxu0 0
  %1226 = vmatmul.mubr.bf16.gmra.mrb[0].mxu0 %v1183
  %v1227 = vpop.f32.mrb[0].mxu0
  %v1228 = vadd.f32 %v1149, %v1227
  %v1229 = vpop.f32.mrb[0].mxu0
  %v1230 = vpop.f32.mrb[0].mxu0
  %v1231 = vadd.f32 %v1152, %v1230
  %v1232 = vpop.f32.mrb[0].mxu0
  %1233 = vdwg.mxu0
  %v1234 = vadd.f32 %v338, %v1220
  %v1235 = vadd.f32 %v339, %v1223
  %v1236 = vadd.f32 %v340, %v1228
  %v1237 = vadd.f32 %v341, %v1231
  %v1238 = vld [vmem:[%s12] sm:$0x1]
  %v1240 = vlaneseq
  %v1241 = vshrl.u32 %v1240, 7
  %v1242 = vsub.s32 0, %v1241
  %v1243 = vrot.slane %v1238, %v1242
  %v1245 = vadd.f32 %v1234, %v1243
  %v1246 = vadd.f32 %v1235, %v1243
  %v1247 = vadd.f32 %v1236, %v1243
  %v1248 = vadd.f32 %v1237, %v1243
  %v1249 = vld [vmem:[%s13] sm:$0x1]
  %v1250 = vld [vmem:[%s14] sm:$0x1]
  %1251 = vadd.xlane.f32.xlu0 %v1245
  %v1252 = vpop.xlane.xlu0 %1251
  %1253 = vadd.xlane.f32.xlu0 %v1246
  %v1254 = vpop.xlane.xlu0 %1253
  %1255 = vadd.xlane.f32.xlu0 %v1247
  %v1256 = vpop.xlane.xlu0 %1255
  %v1257 = vsel %vm280, %v1248, 0.0
  %1258 = vadd.xlane.f32.xlu0 %v1257
  %v1259 = vpop.xlane.xlu0 %1258
  %v1260 = vmul.f32 %v1252, %v284
  %v1261 = vmul.f32 %v1254, %v284
  %v1262 = vmul.f32 %v1256, %v284
  %v1263 = vmul.f32 %v1259, %v284
  %v1264 = vsub.f32 %v1245, %v1260
  %v1265 = vsub.f32 %v1246, %v1261
  %v1266 = vsub.f32 %v1247, %v1262
  %v1267 = vsub.f32 %v1248, %v1263
  %v1268 = vmul.f32 %v1264, %v1264
  %v1269 = vmul.f32 %v1265, %v1265
  %v1270 = vmul.f32 %v1266, %v1266
  %v1271 = vmul.f32 %v1267, %v1267
  %1272 = vadd.xlane.f32.xlu0 %v1268
  %v1273 = vpop.xlane.xlu0 %1272
  %1274 = vadd.xlane.f32.xlu0 %v1269
  %v1275 = vpop.xlane.xlu0 %1274
  %1276 = vadd.xlane.f32.xlu0 %v1270
  %v1277 = vpop.xlane.xlu0 %1276
  %v1278 = vsel %vm280, %v1271, 0.0
  %1279 = vadd.xlane.f32.xlu0 %v1278
  %v1280 = vpop.xlane.xlu0 %1279
  %v1281 = vmul.f32 %v1273, %v284
  %v1282 = vmul.f32 %v1275, %v284
  %v1283 = vmul.f32 %v1277, %v284
  %v1284 = vmul.f32 %v1280, %v284
  %v1285 = vadd.f32 %v1281, 1e-05
  %v1286 = vadd.f32 %v1282, 1e-05
  %v1287 = vadd.f32 %v1283, 1e-05
  %v1288 = vadd.f32 %v1284, 1e-05
  %v1289 = vrsqrt.pop %v1285
  %v1290 = vrsqrt.pop %v1286
  %v1291 = vrsqrt.pop %v1287
  %v1292 = vrsqrt.pop %v1288
  %v1293 = vmul.f32 %v1264, %v1289
  %v1294 = vmul.f32 %v1265, %v1290
  %v1295 = vmul.f32 %v1266, %v1291
  %v1296 = vmul.f32 %v1267, %v1292
  %v1298 = vlaneseq
  %v1299 = vshrl.u32 %v1298, 7
  %v1300 = vsub.s32 0, %v1299
  %v1301 = vrot.slane %v1249, %v1300
  %v1303 = vmul.f32 %v1293, %v1301
  %v1304 = vmul.f32 %v1294, %v1301
  %v1305 = vmul.f32 %v1295, %v1301
  %v1306 = vmul.f32 %v1296, %v1301
  %v1308 = vlaneseq
  %v1309 = vshrl.u32 %v1308, 7
  %v1310 = vsub.s32 0, %v1309
  %v1311 = vrot.slane %v1250, %v1310
  %v1313 = vadd.f32 %v1303, %v1311
  %v1314 = vadd.f32 %v1304, %v1311
  %v1315 = vadd.f32 %v1305, %v1311
  %v1316 = vadd.f32 %v1306, %v1311
  %v1317 = vld [vmem:[%s15] sm:$0xff]
  %v1318 = vld [vmem:[%s15 + $0x8] sm:$0xff]
  %v1319 = vld [vmem:[%s15 + $0x10] sm:$0xff]
  %v1320 = vld [vmem:[%s15 + $0x18] sm:$0xff]
  %v1321 = vld [vmem:[%s15 + $0x20] sm:$0xff]
  %v1322 = vld [vmem:[%s15 + $0x28] sm:$0xff]
  %v1323 = vld [vmem:[%s15 + $0x30] sm:$0xff]
  %v1324 = vld [vmem:[%s15 + $0x38] sm:$0xff]
  %v1325 = vld [vmem:[%s15 + $0x40] sm:$0xff]
  %v1326 = vld [vmem:[%s15 + $0x48] sm:$0xff]
  %v1327 = vld [vmem:[%s15 + $0x50] sm:$0xff]
  %v1328 = vld [vmem:[%s15 + $0x58] sm:$0xff]
  %v1329 = vld [vmem:[%s15 + $0x60] sm:$0xff]
  %v1330 = vld [vmem:[%s15 + $0x68] sm:$0xff]
  %v1331 = vld [vmem:[%s15 + $0x70] sm:$0xff]
  %v1332 = vld [vmem:[%s15 + $0x78] sm:$0xff]
  %v1333 = vpack.c.bf16 %v1314, %v1313
  %v1334 = vpack.c.bf16 %v1316, %v1315
  %v1335 = vld [vmem:[%s16] sm:$0x3]
  %v1337 = vlaneseq
  %v1338 = vshrl.u32 %v1337, 7
  %v1339 = vsub.s32 0, %v1338
  %v1340 = vrot.slane %v1335, %v1339
  %v1341 = vlaneseq
  %v1342 = vshrl.u32 %v1341, 7
  %v1343 = vsub.s32 1, %v1342
  %v1344 = vrot.slane %v1335, %v1343
  %v1363 = vunpack.c.l.b16 %v1317
  %v1364 = vunpack.c.h.b16 %v1317
  %v1365 = vunpack.c.l.b16 %v1318
  %v1366 = vunpack.c.h.b16 %v1318
  %v1367 = vunpack.c.l.b16 %v1319
  %v1368 = vunpack.c.h.b16 %v1319
  %v1369 = vunpack.c.l.b16 %v1320
  %v1370 = vunpack.c.h.b16 %v1320
  %v1371 = vunpack.c.l.b16 %v1321
  %v1372 = vunpack.c.h.b16 %v1321
  %v1373 = vunpack.c.l.b16 %v1322
  %v1374 = vunpack.c.h.b16 %v1322
  %v1375 = vunpack.c.l.b16 %v1323
  %v1376 = vunpack.c.h.b16 %v1323
  %v1377 = vunpack.c.l.b16 %v1324
  %v1378 = vunpack.c.h.b16 %v1324
  %v1379 = vunpack.c.l.b16 %v1325
  %v1380 = vunpack.c.h.b16 %v1325
  %v1381 = vunpack.c.l.b16 %v1326
  %v1382 = vunpack.c.h.b16 %v1326
  %v1383 = vunpack.c.l.b16 %v1327
  %v1384 = vunpack.c.h.b16 %v1327
  %v1385 = vunpack.c.l.b16 %v1328
  %v1386 = vunpack.c.h.b16 %v1328
  %v1387 = vunpack.c.l.b16 %v1329
  %v1388 = vunpack.c.h.b16 %v1329
  %v1389 = vunpack.c.l.b16 %v1330
  %v1390 = vunpack.c.h.b16 %v1330
  %v1391 = vunpack.c.l.b16 %v1331
  %v1392 = vunpack.c.h.b16 %v1331
  %v1393 = vunpack.c.l.b16 %v1332
  %v1394 = vunpack.c.h.b16 %v1332
  %v1395 = vpack.c.b16 %v1365, %v1363
  %v1396 = vpack.c.b16 %v1366, %v1364
  %v1397 = vpack.c.b16 %v1369, %v1367
  %v1398 = vpack.c.b16 %v1370, %v1368
  %v1399 = vpack.c.b16 %v1373, %v1371
  %v1400 = vpack.c.b16 %v1374, %v1372
  %v1401 = vpack.c.b16 %v1377, %v1375
  %v1402 = vpack.c.b16 %v1378, %v1376
  %v1403 = vpack.c.b16 %v1381, %v1379
  %v1404 = vpack.c.b16 %v1382, %v1380
  %v1405 = vpack.c.b16 %v1385, %v1383
  %v1406 = vpack.c.b16 %v1386, %v1384
  %v1407 = vpack.c.b16 %v1389, %v1387
  %v1408 = vpack.c.b16 %v1390, %v1388
  %v1409 = vpack.c.b16 %v1393, %v1391
  %v1410 = vpack.c.b16 %v1394, %v1392
  %1427 = vmatprep.subr.bf16.mxu0 %v1396
  %1428 = vmatpush1.bf16.msra.mxu0 %v1395
  %1429 = vmatprep.subr.bf16.mxu0 %v1398
  %1430 = vmatpush1.bf16.msra.mxu0 %v1397
  %1431 = vmatprep.subr.bf16.mxu0 %v1400
  %1432 = vmatpush1.bf16.msra.mxu0 %v1399
  %1433 = vmatprep.subr.bf16.mxu0 %v1402
  %1434 = vmatpush1.bf16.msra.mxu0 %v1401
  %1435 = vmatprep.subr.bf16.mxu0 %v1404
  %1436 = vmatpush1.bf16.msra.mxu0 %v1403
  %1437 = vmatprep.subr.bf16.mxu0 %v1406
  %1438 = vmatpush1.bf16.msra.mxu0 %v1405
  %1439 = vmatprep.subr.bf16.mxu0 %v1408
  %1440 = vmatpush1.bf16.msra.mxu0 %v1407
  %1441 = vmatprep.subr.bf16.mxu0 %v1410
  %1442 = vmatpush1.bf16.msra.mxu0 %v1409
  %1443 = vmatprep.subr.bf16.mxu0 0
  %1444 = vmatpush1.bf16.msra.mxu0 0
  %1445 = vmatprep.subr.bf16.mxu0 0
  %1446 = vmatpush1.bf16.msra.mxu0 0
  %1447 = vmatprep.subr.bf16.mxu0 0
  %1448 = vmatpush1.bf16.msra.mxu0 0
  %1449 = vmatprep.subr.bf16.mxu0 0
  %1450 = vmatpush1.bf16.msra.mxu0 0
  %1451 = vmatprep.subr.bf16.mxu0 0
  %1452 = vmatpush1.bf16.msra.mxu0 0
  %1453 = vmatprep.subr.bf16.mxu0 0
  %1454 = vmatpush1.bf16.msra.mxu0 0
  %1455 = vmatprep.subr.bf16.mxu0 0
  %1456 = vmatpush1.bf16.msra.mxu0 0
  %1457 = vmatprep.subr.bf16.mxu0 0
  %1458 = vmatpush1.bf16.msra.mxu0 0
  %1459 = vmatprep.mubr.bf16.mxu0 0
  %1460 = vmatmul.mubr.bf16.gmra.mrb[0].mxu0 %v1333
  %v1461 = vpop.f32.mrb[0].mxu0
  %v1462 = vadd.f32 %v1340, %v1461
  %v1463 = vpop.f32.mrb[0].mxu0
  %v1464 = vadd.f32 %v1344, %v1463
  %v1465 = vpop.f32.mrb[0].mxu0
  %v1466 = vadd.f32 %v1340, %v1465
  %v1467 = vpop.f32.mrb[0].mxu0
  %v1468 = vadd.f32 %v1344, %v1467
  %1469 = vmatprep.mubr.bf16.mxu0 0
  %1470 = vmatmul.mubr.bf16.gmra.mrb[0].mxu0 %v1334
  %v1471 = vpop.f32.mrb[0].mxu0
  %v1472 = vadd.f32 %v1340, %v1471
  %v1473 = vpop.f32.mrb[0].mxu0
  %v1474 = vadd.f32 %v1344, %v1473
  %v1475 = vpop.f32.mrb[0].mxu0
  %v1476 = vadd.f32 %v1340, %v1475
  %v1477 = vpop.f32.mrb[0].mxu0
  %v1478 = vadd.f32 %v1344, %v1477
  %1479 = vdwg.mxu0
  %v1480 = vmul.f32 %v1462, %v1462
  %v1481 = vmul.f32 %v1464, %v1464
  %v1482 = vmul.f32 %v1466, %v1466
  %v1483 = vmul.f32 %v1468, %v1468
  %v1484 = vmul.f32 %v1472, %v1472
  %v1485 = vmul.f32 %v1474, %v1474
  %v1486 = vmul.f32 %v1476, %v1476
  %v1487 = vmul.f32 %v1478, %v1478
  %v1488 = vmul.f32 %v1462, %v1480
  %v1489 = vmul.f32 %v1464, %v1481
  %v1490 = vmul.f32 %v1466, %v1482
  %v1491 = vmul.f32 %v1468, %v1483
  %v1492 = vmul.f32 %v1472, %v1484
  %v1493 = vmul.f32 %v1474, %v1485
  %v1494 = vmul.f32 %v1476, %v1486
  %v1495 = vmul.f32 %v1478, %v1487
  %v1496 = vmul.f32 %v1488, 0.044715
  %v1497 = vmul.f32 %v1489, 0.044715
  %v1498 = vmul.f32 %v1490, 0.044715
  %v1499 = vmul.f32 %v1491, 0.044715
  %v1500 = vmul.f32 %v1492, 0.044715
  %v1501 = vmul.f32 %v1493, 0.044715
  %v1502 = vmul.f32 %v1494, 0.044715
  %v1503 = vmul.f32 %v1495, 0.044715
  %v1504 = vadd.f32 %v1462, %v1496
  %v1505 = vadd.f32 %v1464, %v1497
  %v1506 = vadd.f32 %v1466, %v1498
  %v1507 = vadd.f32 %v1468, %v1499
  %v1508 = vadd.f32 %v1472, %v1500
  %v1509 = vadd.f32 %v1474, %v1501
  %v1510 = vadd.f32 %v1476, %v1502
  %v1511 = vadd.f32 %v1478, %v1503
  %v1512 = vmul.f32 %v1504, 0.7978846
  %v1513 = vmul.f32 %v1505, 0.7978846
  %v1514 = vmul.f32 %v1506, 0.7978846
  %v1515 = vmul.f32 %v1507, 0.7978846
  %v1516 = vmul.f32 %v1508, 0.7978846
  %v1517 = vmul.f32 %v1509, 0.7978846
  %v1518 = vmul.f32 %v1510, 0.7978846
  %v1519 = vmul.f32 %v1511, 0.7978846
  %v1520 = vtanh.pop %v1512
  %v1521 = vtanh.pop %v1513
  %v1522 = vtanh.pop %v1514
  %v1523 = vtanh.pop %v1515
  %v1524 = vtanh.pop %v1516
  %v1525 = vtanh.pop %v1517
  %v1526 = vtanh.pop %v1518
  %v1527 = vtanh.pop %v1519
  %v1528 = vadd.f32 %v1520, 1.0
  %v1529 = vadd.f32 %v1521, 1.0
  %v1530 = vadd.f32 %v1522, 1.0
  %v1531 = vadd.f32 %v1523, 1.0
  %v1532 = vadd.f32 %v1524, 1.0
  %v1533 = vadd.f32 %v1525, 1.0
  %v1534 = vadd.f32 %v1526, 1.0
  %v1535 = vadd.f32 %v1527, 1.0
  %v1536 = vmul.f32 %v1528, 0.5
  %v1537 = vmul.f32 %v1529, 0.5
  %v1538 = vmul.f32 %v1530, 0.5
  %v1539 = vmul.f32 %v1531, 0.5
  %v1540 = vmul.f32 %v1532, 0.5
  %v1541 = vmul.f32 %v1533, 0.5
  %v1542 = vmul.f32 %v1534, 0.5
  %v1543 = vmul.f32 %v1535, 0.5
  %v1544 = vmul.f32 %v1462, %v1536
  %v1545 = vmul.f32 %v1464, %v1537
  %v1546 = vmul.f32 %v1466, %v1538
  %v1547 = vmul.f32 %v1468, %v1539
  %v1548 = vmul.f32 %v1472, %v1540
  %v1549 = vmul.f32 %v1474, %v1541
  %v1550 = vmul.f32 %v1476, %v1542
  %v1551 = vmul.f32 %v1478, %v1543
  %v1552 = vld [vmem:[%s17] sm:$0xf]
  %v1553 = vld [vmem:[%s17 + $0x4] sm:$0xf]
  %v1554 = vld [vmem:[%s17 + $0x8] sm:$0xf]
  %v1555 = vld [vmem:[%s17 + $0xc] sm:$0xf]
  %v1556 = vld [vmem:[%s17 + $0x10] sm:$0xf]
  %v1557 = vld [vmem:[%s17 + $0x14] sm:$0xf]
  %v1558 = vld [vmem:[%s17 + $0x18] sm:$0xf]
  %v1559 = vld [vmem:[%s17 + $0x1c] sm:$0xf]
  %v1560 = vld [vmem:[%s17 + $0x20] sm:$0xf]
  %v1561 = vld [vmem:[%s17 + $0x24] sm:$0xf]
  %v1562 = vld [vmem:[%s17 + $0x28] sm:$0xf]
  %v1563 = vld [vmem:[%s17 + $0x2c] sm:$0xf]
  %v1564 = vld [vmem:[%s17 + $0x30] sm:$0xf]
  %v1565 = vld [vmem:[%s17 + $0x34] sm:$0xf]
  %v1566 = vld [vmem:[%s17 + $0x38] sm:$0xf]
  %v1567 = vld [vmem:[%s17 + $0x3c] sm:$0xf]
  %v1568 = vld [vmem:[%s17 + $0x40] sm:$0xf]
  %v1569 = vld [vmem:[%s17 + $0x44] sm:$0xf]
  %v1570 = vld [vmem:[%s17 + $0x48] sm:$0xf]
  %v1571 = vld [vmem:[%s17 + $0x4c] sm:$0xf]
  %v1572 = vld [vmem:[%s17 + $0x50] sm:$0xf]
  %v1573 = vld [vmem:[%s17 + $0x54] sm:$0xf]
  %v1574 = vld [vmem:[%s17 + $0x58] sm:$0xf]
  %v1575 = vld [vmem:[%s17 + $0x5c] sm:$0xf]
  %v1576 = vld [vmem:[%s17 + $0x60] sm:$0xf]
  %v1577 = vld [vmem:[%s17 + $0x64] sm:$0xf]
  %v1578 = vld [vmem:[%s17 + $0x68] sm:$0xf]
  %v1579 = vld [vmem:[%s17 + $0x6c] sm:$0xf]
  %v1580 = vld [vmem:[%s17 + $0x70] sm:$0xf]
  %v1581 = vld [vmem:[%s17 + $0x74] sm:$0xf]
  %v1582 = vld [vmem:[%s17 + $0x78] sm:$0xf]
  %v1583 = vld [vmem:[%s17 + $0x7c] sm:$0xf]
  %v1584 = vpack.c.bf16 %v1546, %v1544
  %v1585 = vpack.c.bf16 %v1547, %v1545
  %v1586 = vpack.c.bf16 %v1550, %v1548
  %v1587 = vpack.c.bf16 %v1551, %v1549
  %v1620 = vunpack.c.l.b16 %v1552
  %v1621 = vunpack.c.l.b16 %v1553
  %v1622 = vunpack.c.l.b16 %v1554
  %v1623 = vunpack.c.l.b16 %v1555
  %v1624 = vunpack.c.l.b16 %v1556
  %v1625 = vunpack.c.l.b16 %v1557
  %v1626 = vunpack.c.l.b16 %v1558
  %v1627 = vunpack.c.l.b16 %v1559
  %v1628 = vunpack.c.l.b16 %v1560
  %v1629 = vunpack.c.l.b16 %v1561
  %v1630 = vunpack.c.l.b16 %v1562
  %v1631 = vunpack.c.l.b16 %v1563
  %v1632 = vunpack.c.l.b16 %v1564
  %v1633 = vunpack.c.l.b16 %v1565
  %v1634 = vunpack.c.l.b16 %v1566
  %v1635 = vunpack.c.l.b16 %v1567
  %v1636 = vunpack.c.l.b16 %v1568
  %v1637 = vunpack.c.l.b16 %v1569
  %v1638 = vunpack.c.l.b16 %v1570
  %v1639 = vunpack.c.l.b16 %v1571
  %v1640 = vunpack.c.l.b16 %v1572
  %v1641 = vunpack.c.l.b16 %v1573
  %v1642 = vunpack.c.l.b16 %v1574
  %v1643 = vunpack.c.l.b16 %v1575
  %v1644 = vunpack.c.l.b16 %v1576
  %v1645 = vunpack.c.l.b16 %v1577
  %v1646 = vunpack.c.l.b16 %v1578
  %v1647 = vunpack.c.l.b16 %v1579
  %v1648 = vunpack.c.l.b16 %v1580
  %v1649 = vunpack.c.l.b16 %v1581
  %v1650 = vunpack.c.l.b16 %v1582
  %v1651 = vunpack.c.l.b16 %v1583
  %v1652 = vpack.c.b16 %v1621, %v1620
  %v1653 = vpack.c.b16 %v1623, %v1622
  %v1654 = vpack.c.b16 %v1625, %v1624
  %v1655 = vpack.c.b16 %v1627, %v1626
  %v1656 = vpack.c.b16 %v1629, %v1628
  %v1657 = vpack.c.b16 %v1631, %v1630
  %v1658 = vpack.c.b16 %v1633, %v1632
  %v1659 = vpack.c.b16 %v1635, %v1634
  %v1660 = vpack.c.b16 %v1637, %v1636
  %v1661 = vpack.c.b16 %v1639, %v1638
  %v1662 = vpack.c.b16 %v1641, %v1640
  %v1663 = vpack.c.b16 %v1643, %v1642
  %v1664 = vpack.c.b16 %v1645, %v1644
  %v1665 = vpack.c.b16 %v1647, %v1646
  %v1666 = vpack.c.b16 %v1649, %v1648
  %v1667 = vpack.c.b16 %v1651, %v1650
  %1684 = vmatprep.subr.bf16.mxu0 0
  %1685 = vmatpush1.bf16.msra.mxu0 %v1652
  %1686 = vmatprep.subr.bf16.mxu0 0
  %1687 = vmatpush1.bf16.msra.mxu0 %v1653
  %1688 = vmatprep.subr.bf16.mxu0 0
  %1689 = vmatpush1.bf16.msra.mxu0 %v1654
  %1690 = vmatprep.subr.bf16.mxu0 0
  %1691 = vmatpush1.bf16.msra.mxu0 %v1655
  %1692 = vmatprep.subr.bf16.mxu0 0
  %1693 = vmatpush1.bf16.msra.mxu0 %v1656
  %1694 = vmatprep.subr.bf16.mxu0 0
  %1695 = vmatpush1.bf16.msra.mxu0 %v1657
  %1696 = vmatprep.subr.bf16.mxu0 0
  %1697 = vmatpush1.bf16.msra.mxu0 %v1658
  %1698 = vmatprep.subr.bf16.mxu0 0
  %1699 = vmatpush1.bf16.msra.mxu0 %v1659
  %1700 = vmatprep.subr.bf16.mxu0 0
  %1701 = vmatpush1.bf16.msra.mxu0 %v1660
  %1702 = vmatprep.subr.bf16.mxu0 0
  %1703 = vmatpush1.bf16.msra.mxu0 %v1661
  %1704 = vmatprep.subr.bf16.mxu0 0
  %1705 = vmatpush1.bf16.msra.mxu0 %v1662
  %1706 = vmatprep.subr.bf16.mxu0 0
  %1707 = vmatpush1.bf16.msra.mxu0 %v1663
  %1708 = vmatprep.subr.bf16.mxu0 0
  %1709 = vmatpush1.bf16.msra.mxu0 %v1664
  %1710 = vmatprep.subr.bf16.mxu0 0
  %1711 = vmatpush1.bf16.msra.mxu0 %v1665
  %1712 = vmatprep.subr.bf16.mxu0 0
  %1713 = vmatpush1.bf16.msra.mxu0 %v1666
  %1714 = vmatprep.subr.bf16.mxu0 0
  %1715 = vmatpush1.bf16.msra.mxu0 %v1667
  %1716 = vmatprep.mubr.bf16.mxu0 %v1585
  %1717 = vmatmul.mubr.bf16.gmra.mrb[0].mxu0 %v1584
  %v1718 = vpop.f32.mrb[0].mxu0
  %v1719 = vadd.f32 0.0, %v1718
  %v1720 = vpop.f32.mrb[0].mxu0
  %v1721 = vpop.f32.mrb[0].mxu0
  %v1722 = vadd.f32 0.0, %v1721
  %v1723 = vpop.f32.mrb[0].mxu0
  %1724 = vmatprep.mubr.bf16.mxu0 %v1587
  %1725 = vmatmul.mubr.bf16.gmra.mrb[0].mxu0 %v1586
  %v1726 = vpop.f32.mrb[0].mxu0
  %v1727 = vadd.f32 0.0, %v1726
  %v1728 = vpop.f32.mrb[0].mxu0
  %v1729 = vpop.f32.mrb[0].mxu0
  %v1730 = vadd.f32 0.0, %v1729
  %v1731 = vpop.f32.mrb[0].mxu0
  %1732 = vdwg.mxu0
  %v1733 = vadd.f32 %v1245, %v1719
  %v1734 = vadd.f32 %v1246, %v1722
  %v1735 = vadd.f32 %v1247, %v1727
  %v1736 = vadd.f32 %v1248, %v1730
  %v1737 = vld [vmem:[%s18] sm:$0x1]
  %v1739 = vlaneseq
  %v1740 = vshrl.u32 %v1739, 7
  %v1741 = vsub.s32 0, %v1740
  %v1742 = vrot.slane %v1737, %v1741
  %v1744 = vadd.f32 %v1733, %v1742
  %v1745 = vadd.f32 %v1734, %v1742
  %v1746 = vadd.f32 %v1735, %v1742
  %v1747 = vadd.f32 %v1736, %v1742
  %s1748 = scalar_lea.vmem %s7, 1
  %v1749 = vld [vmem:[%s1748] sm:$0x1]
  %s1750 = scalar_lea.vmem %s8, 1
  %v1751 = vld [vmem:[%s1750] sm:$0x1]
  %1752 = vadd.xlane.f32.xlu0 %v1744
  %v1753 = vpop.xlane.xlu0 %1752
  %1754 = vadd.xlane.f32.xlu0 %v1745
  %v1755 = vpop.xlane.xlu0 %1754
  %1756 = vadd.xlane.f32.xlu0 %v1746
  %v1757 = vpop.xlane.xlu0 %1756
  %v1758 = vsel %vm280, %v1747, 0.0
  %1759 = vadd.xlane.f32.xlu0 %v1758
  %v1760 = vpop.xlane.xlu0 %1759
  %v1761 = vmul.f32 %v1753, %v284
  %v1762 = vmul.f32 %v1755, %v284
  %v1763 = vmul.f32 %v1757, %v284
  %v1764 = vmul.f32 %v1760, %v284
  %v1765 = vsub.f32 %v1744, %v1761
  %v1766 = vsub.f32 %v1745, %v1762
  %v1767 = vsub.f32 %v1746, %v1763
  %v1768 = vsub.f32 %v1747, %v1764
  %v1769 = vmul.f32 %v1765, %v1765
  %v1770 = vmul.f32 %v1766, %v1766
  %v1771 = vmul.f32 %v1767, %v1767
  %v1772 = vmul.f32 %v1768, %v1768
  %1773 = vadd.xlane.f32.xlu0 %v1769
  %v1774 = vpop.xlane.xlu0 %1773
  %1775 = vadd.xlane.f32.xlu0 %v1770
  %v1776 = vpop.xlane.xlu0 %1775
  %1777 = vadd.xlane.f32.xlu0 %v1771
  %v1778 = vpop.xlane.xlu0 %1777
  %v1779 = vsel %vm280, %v1772, 0.0
  %1780 = vadd.xlane.f32.xlu0 %v1779
  %v1781 = vpop.xlane.xlu0 %1780
  %v1782 = vmul.f32 %v1774, %v284
  %v1783 = vmul.f32 %v1776, %v284
  %v1784 = vmul.f32 %v1778, %v284
  %v1785 = vmul.f32 %v1781, %v284
  %v1786 = vadd.f32 %v1782, 1e-05
  %v1787 = vadd.f32 %v1783, 1e-05
  %v1788 = vadd.f32 %v1784, 1e-05
  %v1789 = vadd.f32 %v1785, 1e-05
  %v1790 = vrsqrt.pop %v1786
  %v1791 = vrsqrt.pop %v1787
  %v1792 = vrsqrt.pop %v1788
  %v1793 = vrsqrt.pop %v1789
  %v1794 = vmul.f32 %v1765, %v1790
  %v1795 = vmul.f32 %v1766, %v1791
  %v1796 = vmul.f32 %v1767, %v1792
  %v1797 = vmul.f32 %v1768, %v1793
  %v1799 = vlaneseq
  %v1800 = vshrl.u32 %v1799, 7
  %v1801 = vsub.s32 0, %v1800
  %v1802 = vrot.slane %v1749, %v1801
  %v1804 = vmul.f32 %v1794, %v1802
  %v1805 = vmul.f32 %v1795, %v1802
  %v1806 = vmul.f32 %v1796, %v1802
  %v1807 = vmul.f32 %v1797, %v1802
  %v1809 = vlaneseq
  %v1810 = vshrl.u32 %v1809, 7
  %v1811 = vsub.s32 0, %v1810
  %v1812 = vrot.slane %v1751, %v1811
  %v1814 = vadd.f32 %v1804, %v1812
  %v1815 = vadd.f32 %v1805, %v1812
  %v1816 = vadd.f32 %v1806, %v1812
  %v1817 = vadd.f32 %v1807, %v1812
  %s1818 = scalar_lea.vmem %s9, 192
  %v1819 = vld [vmem:[%s1818] sm:$0xff]
  %v1820 = vld [vmem:[%s1818 + $0x8] sm:$0xf]
  %v1821 = vld [vmem:[%s1818 + $0xc] sm:$0xff]
  %v1822 = vld [vmem:[%s1818 + $0x14] sm:$0xf]
  %v1823 = vld [vmem:[%s1818 + $0x18] sm:$0xff]
  %v1824 = vld [vmem:[%s1818 + $0x20] sm:$0xf]
  %v1825 = vld [vmem:[%s1818 + $0x24] sm:$0xff]
  %v1826 = vld [vmem:[%s1818 + $0x2c] sm:$0xf]
  %v1827 = vld [vmem:[%s1818 + $0x30] sm:$0xff]
  %v1828 = vld [vmem:[%s1818 + $0x38] sm:$0xf]
  %v1829 = vld [vmem:[%s1818 + $0x3c] sm:$0xff]
  %v1830 = vld [vmem:[%s1818 + $0x44] sm:$0xf]
  %v1831 = vld [vmem:[%s1818 + $0x48] sm:$0xff]
  %v1832 = vld [vmem:[%s1818 + $0x50] sm:$0xf]
  %v1833 = vld [vmem:[%s1818 + $0x54] sm:$0xff]
  %v1834 = vld [vmem:[%s1818 + $0x5c] sm:$0xf]
  %v1835 = vld [vmem:[%s1818 + $0x60] sm:$0xff]
  %v1836 = vld [vmem:[%s1818 + $0x68] sm:$0xf]
  %v1837 = vld [vmem:[%s1818 + $0x6c] sm:$0xff]
  %v1838 = vld [vmem:[%s1818 + $0x74] sm:$0xf]
  %v1839 = vld [vmem:[%s1818 + $0x78] sm:$0xff]
  %v1840 = vld [vmem:[%s1818 + $0x80] sm:$0xf]
  %v1841 = vld [vmem:[%s1818 + $0x84] sm:$0xff]
  %v1842 = vld [vmem:[%s1818 + $0x8c] sm:$0xf]
  %v1843 = vld [vmem:[%s1818 + $0x90] sm:$0xff]
  %v1844 = vld [vmem:[%s1818 + $0x98] sm:$0xf]
  %v1845 = vld [vmem:[%s1818 + $0x9c] sm:$0xff]
  %v1846 = vld [vmem:[%s1818 + $0xa4] sm:$0xf]
  %v1847 = vld [vmem:[%s1818 + $0xa8] sm:$0xff]
  %v1848 = vld [vmem:[%s1818 + $0xb0] sm:$0xf]
  %v1849 = vld [vmem:[%s1818 + $0xb4] sm:$0xff]
  %v1850 = vld [vmem:[%s1818 + $0xbc] sm:$0xf]
  %v1851 = vpack.c.bf16 %v1815, %v1814
  %v1852 = vpack.c.bf16 %v1817, %v1816
  %s1853 = scalar_lea.vmem %s10, 3
  %v1854 = vld [vmem:[%s1853] sm:$0x7]
  %v1856 = vlaneseq
  %v1857 = vshrl.u32 %v1856, 7
  %v1858 = vsub.s32 0, %v1857
  %v1859 = vrot.slane %v1854, %v1858
  %v1860 = vlaneseq
  %v1861 = vshrl.u32 %v1860, 7
  %v1862 = vsub.s32 1, %v1861
  %v1863 = vrot.slane %v1854, %v1862
  %v1864 = vlaneseq
  %v1865 = vshrl.u32 %v1864, 7
  %v1866 = vsub.s32 2, %v1865
  %v1867 = vrot.slane %v1854, %v1866
  %v1903 = vunpack.c.l.b16 %v1819
  %v1904 = vunpack.c.h.b16 %v1819
  %v1905 = vunpack.c.l.b16 %v1820
  %v1906 = vunpack.c.l.b16 %v1821
  %v1907 = vunpack.c.h.b16 %v1821
  %v1908 = vunpack.c.l.b16 %v1822
  %v1909 = vunpack.c.l.b16 %v1823
  %v1910 = vunpack.c.h.b16 %v1823
  %v1911 = vunpack.c.l.b16 %v1824
  %v1912 = vunpack.c.l.b16 %v1825
  %v1913 = vunpack.c.h.b16 %v1825
  %v1914 = vunpack.c.l.b16 %v1826
  %v1915 = vunpack.c.l.b16 %v1827
  %v1916 = vunpack.c.h.b16 %v1827
  %v1917 = vunpack.c.l.b16 %v1828
  %v1918 = vunpack.c.l.b16 %v1829
  %v1919 = vunpack.c.h.b16 %v1829
  %v1920 = vunpack.c.l.b16 %v1830
  %v1921 = vunpack.c.l.b16 %v1831
  %v1922 = vunpack.c.h.b16 %v1831
  %v1923 = vunpack.c.l.b16 %v1832
  %v1924 = vunpack.c.l.b16 %v1833
  %v1925 = vunpack.c.h.b16 %v1833
  %v1926 = vunpack.c.l.b16 %v1834
  %v1927 = vunpack.c.l.b16 %v1835
  %v1928 = vunpack.c.h.b16 %v1835
  %v1929 = vunpack.c.l.b16 %v1836
  %v1930 = vunpack.c.l.b16 %v1837
  %v1931 = vunpack.c.h.b16 %v1837
  %v1932 = vunpack.c.l.b16 %v1838
  %v1933 = vunpack.c.l.b16 %v1839
  %v1934 = vunpack.c.h.b16 %v1839
  %v1935 = vunpack.c.l.b16 %v1840
  %v1936 = vunpack.c.l.b16 %v1841
  %v1937 = vunpack.c.h.b16 %v1841
  %v1938 = vunpack.c.l.b16 %v1842
  %v1939 = vunpack.c.l.b16 %v1843
  %v1940 = vunpack.c.h.b16 %v1843
  %v1941 = vunpack.c.l.b16 %v1844
  %v1942 = vunpack.c.l.b16 %v1845
  %v1943 = vunpack.c.h.b16 %v1845
  %v1944 = vunpack.c.l.b16 %v1846
  %v1945 = vunpack.c.l.b16 %v1847
  %v1946 = vunpack.c.h.b16 %v1847
  %v1947 = vunpack.c.l.b16 %v1848
  %v1948 = vunpack.c.l.b16 %v1849
  %v1949 = vunpack.c.h.b16 %v1849
  %v1950 = vunpack.c.l.b16 %v1850
  %v1951 = vpack.c.b16 %v1906, %v1903
  %v1952 = vpack.c.b16 %v1907, %v1904
  %v1953 = vpack.c.b16 %v1908, %v1905
  %v1954 = vpack.c.b16 %v1912, %v1909
  %v1955 = vpack.c.b16 %v1913, %v1910
  %v1956 = vpack.c.b16 %v1914, %v1911
  %v1957 = vpack.c.b16 %v1918, %v1915
  %v1958 = vpack.c.b16 %v1919, %v1916
  %v1959 = vpack.c.b16 %v1920, %v1917
  %v1960 = vpack.c.b16 %v1924, %v1921
  %v1961 = vpack.c.b16 %v1925, %v1922
  %v1962 = vpack.c.b16 %v1926, %v1923
  %v1963 = vpack.c.b16 %v1930, %v1927
  %v1964 = vpack.c.b16 %v1931, %v1928
  %v1965 = vpack.c.b16 %v1932, %v1929
  %v1966 = vpack.c.b16 %v1936, %v1933
  %v1967 = vpack.c.b16 %v1937, %v1934
  %v1968 = vpack.c.b16 %v1938, %v1935
  %v1969 = vpack.c.b16 %v1942, %v1939
  %v1970 = vpack.c.b16 %v1943, %v1940
  %v1971 = vpack.c.b16 %v1944, %v1941
  %v1972 = vpack.c.b16 %v1948, %v1945
  %v1973 = vpack.c.b16 %v1949, %v1946
  %v1974 = vpack.c.b16 %v1950, %v1947
  %1999 = vmatprep.subr.bf16.mxu0 %v1952
  %2000 = vmatpush1.bf16.msra.mxu0 %v1951
  %2001 = vmatprep.subr.bf16.mxu0 %v1955
  %2002 = vmatpush1.bf16.msra.mxu0 %v1954
  %2003 = vmatprep.subr.bf16.mxu0 %v1958
  %2004 = vmatpush1.bf16.msra.mxu0 %v1957
  %2005 = vmatprep.subr.bf16.mxu0 %v1961
  %2006 = vmatpush1.bf16.msra.mxu0 %v1960
  %2007 = vmatprep.subr.bf16.mxu0 %v1964
  %2008 = vmatpush1.bf16.msra.mxu0 %v1963
  %2009 = vmatprep.subr.bf16.mxu0 %v1967
  %2010 = vmatpush1.bf16.msra.mxu0 %v1966
  %2011 = vmatprep.subr.bf16.mxu0 %v1970
  %2012 = vmatpush1.bf16.msra.mxu0 %v1969
  %2013 = vmatprep.subr.bf16.mxu0 %v1973
  %2014 = vmatpush1.bf16.msra.mxu0 %v1972
  %2015 = vmatprep.subr.bf16.mxu0 0
  %2016 = vmatpush1.bf16.msra.mxu0 0
  %2017 = vmatprep.subr.bf16.mxu0 0
  %2018 = vmatpush1.bf16.msra.mxu0 0
  %2019 = vmatprep.subr.bf16.mxu0 0
  %2020 = vmatpush1.bf16.msra.mxu0 0
  %2021 = vmatprep.subr.bf16.mxu0 0
  %2022 = vmatpush1.bf16.msra.mxu0 0
  %2023 = vmatprep.subr.bf16.mxu0 0
  %2024 = vmatpush1.bf16.msra.mxu0 0
  %2025 = vmatprep.subr.bf16.mxu0 0
  %2026 = vmatpush1.bf16.msra.mxu0 0
  %2027 = vmatprep.subr.bf16.mxu0 0
  %2028 = vmatpush1.bf16.msra.mxu0 0
  %2029 = vmatprep.subr.bf16.mxu0 0
  %2030 = vmatpush1.bf16.msra.mxu0 0
  %2031 = vmatprep.mubr.bf16.mxu0 0
  %2032 = vmatmul.mubr.bf16.gmra.mrb[0].mxu0 %v1851
  %v2033 = vpop.f32.mrb[0].mxu0
  %v2034 = vadd.f32 %v1859, %v2033
  %v2035 = vpop.f32.mrb[0].mxu0
  %v2036 = vadd.f32 %v1863, %v2035
  %v2037 = vpop.f32.mrb[0].mxu0
  %v2038 = vadd.f32 %v1859, %v2037
  %v2039 = vpop.f32.mrb[0].mxu0
  %v2040 = vadd.f32 %v1863, %v2039
  %2041 = vmatprep.mubr.bf16.mxu0 0
  %2042 = vmatmul.mubr.bf16.gmra.mrb[0].mxu0 %v1852
  %v2043 = vpop.f32.mrb[0].mxu0
  %v2044 = vadd.f32 %v1859, %v2043
  %v2045 = vpop.f32.mrb[0].mxu0
  %v2046 = vadd.f32 %v1863, %v2045
  %v2047 = vpop.f32.mrb[0].mxu0
  %v2048 = vadd.f32 %v1859, %v2047
  %v2049 = vpop.f32.mrb[0].mxu0
  %v2050 = vadd.f32 %v1863, %v2049
  %2051 = vdwg.mxu0
  %2052 = vmatprep.subr.bf16.mxu0 0
  %2053 = vmatpush1.bf16.msra.mxu0 %v1953
  %2054 = vmatprep.subr.bf16.mxu0 0
  %2055 = vmatpush1.bf16.msra.mxu0 %v1956
  %2056 = vmatprep.subr.bf16.mxu0 0
  %2057 = vmatpush1.bf16.msra.mxu0 %v1959
  %2058 = vmatprep.subr.bf16.mxu0 0
  %2059 = vmatpush1.bf16.msra.mxu0 %v1962
  %2060 = vmatprep.subr.bf16.mxu0 0
  %2061 = vmatpush1.bf16.msra.mxu0 %v1965
  %2062 = vmatprep.subr.bf16.mxu0 0
  %2063 = vmatpush1.bf16.msra.mxu0 %v1968
  %2064 = vmatprep.subr.bf16.mxu0 0
  %2065 = vmatpush1.bf16.msra.mxu0 %v1971
  %2066 = vmatprep.subr.bf16.mxu0 0
  %2067 = vmatpush1.bf16.msra.mxu0 %v1974
  %2068 = vmatprep.subr.bf16.mxu0 0
  %2069 = vmatpush1.bf16.msra.mxu0 0
  %2070 = vmatprep.subr.bf16.mxu0 0
  %2071 = vmatpush1.bf16.msra.mxu0 0
  %2072 = vmatprep.subr.bf16.mxu0 0
  %2073 = vmatpush1.bf16.msra.mxu0 0
  %2074 = vmatprep.subr.bf16.mxu0 0
  %2075 = vmatpush1.bf16.msra.mxu0 0
  %2076 = vmatprep.subr.bf16.mxu0 0
  %2077 = vmatpush1.bf16.msra.mxu0 0
  %2078 = vmatprep.subr.bf16.mxu0 0
  %2079 = vmatpush1.bf16.msra.mxu0 0
  %2080 = vmatprep.subr.bf16.mxu0 0
  %2081 = vmatpush1.bf16.msra.mxu0 0
  %2082 = vmatprep.subr.bf16.mxu0 0
  %2083 = vmatpush1.bf16.msra.mxu0 0
  %2084 = vmatprep.mubr.bf16.mxu0 0
  %2085 = vmatmul.mubr.bf16.gmra.mrb[0].mxu0 %v1851
  %v2086 = vpop.f32.mrb[0].mxu0
  %v2087 = vadd.f32 %v1867, %v2086
  %v2088 = vpop.f32.mrb[0].mxu0
  %v2089 = vpop.f32.mrb[0].mxu0
  %v2090 = vadd.f32 %v1867, %v2089
  %v2091 = vpop.f32.mrb[0].mxu0
  %2092 = vmatprep.mubr.bf16.mxu0 0
  %2093 = vmatmul.mubr.bf16.gmra.mrb[0].mxu0 %v1852
  %v2094 = vpop.f32.mrb[0].mxu0
  %v2095 = vadd.f32 %v1867, %v2094
  %v2096 = vpop.f32.mrb[0].mxu0
  %v2097 = vpop.f32.mrb[0].mxu0
  %v2098 = vadd.f32 %v1867, %v2097
  %v2099 = vpop.f32.mrb[0].mxu0
  %2100 = vdwg.mxu0
  %v2101 = vmul.f32 %v2034, 0.125
  %v2102 = vmul.f32 %v2038, 0.125
  %v2103 = vmul.f32 %v2044, 0.125
  %v2104 = vmul.f32 %v2048, 0.125
  %s2105 = scalar_lea.vmem %s11, 64
  %v2106 = vld [vmem:[%s2105] sm:$0xf]
  %v2107 = vld [vmem:[%s2105 + $0x4] sm:$0xf]
  %v2108 = vld [vmem:[%s2105 + $0x8] sm:$0xf]
  %v2109 = vld [vmem:[%s2105 + $0xc] sm:$0xf]
  %v2110 = vld [vmem:[%s2105 + $0x10] sm:$0xf]
  %v2111 = vld [vmem:[%s2105 + $0x14] sm:$0xf]
  %v2112 = vld [vmem:[%s2105 + $0x18] sm:$0xf]
  %v2113 = vld [vmem:[%s2105 + $0x1c] sm:$0xf]
  %v2114 = vld [vmem:[%s2105 + $0x20] sm:$0xf]
  %v2115 = vld [vmem:[%s2105 + $0x24] sm:$0xf]
  %v2116 = vld [vmem:[%s2105 + $0x28] sm:$0xf]
  %v2117 = vld [vmem:[%s2105 + $0x2c] sm:$0xf]
  %v2118 = vld [vmem:[%s2105 + $0x30] sm:$0xf]
  %v2119 = vld [vmem:[%s2105 + $0x34] sm:$0xf]
  %v2120 = vld [vmem:[%s2105 + $0x38] sm:$0xf]
  %v2121 = vld [vmem:[%s2105 + $0x3c] sm:$0xf]
  %v2122 = vpack.c.bf16 %v2102, %v2101
  %v2123 = vpack.c.bf16 %v2104, %v2103
  %v2124 = vpack.c.bf16 %v2040, %v2036
  %v2125 = vpack.c.bf16 %v2050, %v2046
  %v2126 = vpack.c.bf16 %v2090, %v2087
  %v2127 = vpack.c.bf16 %v2098, %v2095
  %v2129 = vsel %vm216, %v2122, 0
  %v2132 = vsel %vm216, %v2123, 0
  %v2135 = vsel %vm216, %v2124, 0
  %v2138 = vsel %vm216, %v2125, 0
  %2140 = vmatprep.subr.bf16.mxu0 0
  %2141 = vmatpush1.bf16.xpose.msra.mxu0 %v2135
  %2142 = vmatprep.subr.bf16.mxu0 0
  %2143 = vmatpush1.bf16.xpose.msra.mxu0 %v2138
  %2144 = vmatprep.subr.bf16.mxu0 0
  %2145 = vmatpush1.bf16.xpose.msra.mxu0 0
  %2146 = vmatprep.subr.bf16.mxu0 0
  %2147 = vmatpush1.bf16.xpose.msra.mxu0 0
  %2148 = vmatprep.subr.bf16.mxu0 0
  %2149 = vmatpush1.bf16.xpose.msra.mxu0 0
  %2150 = vmatprep.subr.bf16.mxu0 0
  %2151 = vmatpush1.bf16.xpose.msra.mxu0 0
  %2152 = vmatprep.subr.bf16.mxu0 0
  %2153 = vmatpush1.bf16.xpose.msra.mxu0 0
  %2154 = vmatprep.subr.bf16.mxu0 0
  %2155 = vmatpush1.bf16.xpose.msra.mxu0 0
  %2156 = vmatprep.subr.bf16.mxu0 0
  %2157 = vmatpush1.bf16.xpose.msra.mxu0 0
  %2158 = vmatprep.subr.bf16.mxu0 0
  %2159 = vmatpush1.bf16.xpose.msra.mxu0 0
  %2160 = vmatprep.subr.bf16.mxu0 0
  %2161 = vmatpush1.bf16.xpose.msra.mxu0 0
  %2162 = vmatprep.subr.bf16.mxu0 0
  %2163 = vmatpush1.bf16.xpose.msra.mxu0 0
  %2164 = vmatprep.subr.bf16.mxu0 0
  %2165 = vmatpush1.bf16.xpose.msra.mxu0 0
  %2166 = vmatprep.subr.bf16.mxu0 0
  %2167 = vmatpush1.bf16.xpose.msra.mxu0 0
  %2168 = vmatprep.subr.bf16.mxu0 0
  %2169 = vmatpush1.bf16.xpose.msra.mxu0 0
  %2170 = vmatprep.subr.bf16.mxu0 0
  %2171 = vmatpush1.bf16.xpose.msra.mxu0 0
  %2172 = vmatprep.mubr.bf16.mxu0 0
  %2173 = vmatmul.mubr.bf16.gmra.mrb[0].mxu0 %v2129
  %v2174 = vpop.f32.mrb[0].mxu0
  %v2175 = vadd.f32 %v100, %v2174
  %v2176 = vpop.f32.mrb[0].mxu0
  %v2177 = vpop.f32.mrb[0].mxu0
  %v2178 = vadd.f32 %v101, %v2177
  %v2179 = vpop.f32.mrb[0].mxu0
  %2180 = vmatprep.mubr.bf16.mxu0 0
  %2181 = vmatmul.mubr.bf16.gmra.mrb[0].mxu0 %v2132
  %v2182 = vpop.f32.mrb[0].mxu0
  %v2183 = vadd.f32 %v102, %v2182
  %v2184 = vpop.f32.mrb[0].mxu0
  %v2185 = vpop.f32.mrb[0].mxu0
  %v2186 = vadd.f32 %v103, %v2185
  %v2187 = vpop.f32.mrb[0].mxu0
  %2188 = vdwg.mxu0
  %v2189 = vsel %vm778, %v2175, -inf
  %2190 = vmax.xlane.f32.xlu0 %v2189
  %v2191 = vpop.xlane.xlu0 %2190
  %v2192 = vsel %vm778, %v2178, -inf
  %2193 = vmax.xlane.f32.xlu0 %v2192
  %v2194 = vpop.xlane.xlu0 %2193
  %v2195 = vsel %vm778, %v2183, -inf
  %2196 = vmax.xlane.f32.xlu0 %v2195
  %v2197 = vpop.xlane.xlu0 %2196
  %v2198 = vsel %vm788, %v2186, -inf
  %2199 = vmax.xlane.f32.xlu0 %v2198
  %v2200 = vpop.xlane.xlu0 %2199
  %v2201 = vsub.f32 %v2175, %v2191
  %v2202 = vsub.f32 %v2178, %v2194
  %v2203 = vsub.f32 %v2183, %v2197
  %v2204 = vsub.f32 %v2186, %v2200
  %v2205 = vmul.f32 %v2201, 1.442695
  %v2206 = vpow.pop %v2205
  %v2207 = vmul.f32 %v2202, 1.442695
  %v2208 = vpow.pop %v2207
  %v2209 = vmul.f32 %v2203, 1.442695
  %v2210 = vpow.pop %v2209
  %v2211 = vmul.f32 %v2204, 1.442695
  %v2212 = vpow.pop %v2211
  %v2213 = vsel %vm778, %v2206, 0.0
  %2214 = vadd.xlane.f32.xlu0 %v2213
  %v2215 = vpop.xlane.xlu0 %2214
  %v2216 = vsel %vm778, %v2208, 0.0
  %2217 = vadd.xlane.f32.xlu0 %v2216
  %v2218 = vpop.xlane.xlu0 %2217
  %v2219 = vsel %vm778, %v2210, 0.0
  %2220 = vadd.xlane.f32.xlu0 %v2219
  %v2221 = vpop.xlane.xlu0 %2220
  %v2222 = vsel %vm788, %v2212, 0.0
  %2223 = vadd.xlane.f32.xlu0 %v2222
  %v2224 = vpop.xlane.xlu0 %2223
  %v2225 = vrcp.pop %v2215
  %v2226 = vrcp.pop %v2218
  %v2227 = vrcp.pop %v2221
  %v2228 = vrcp.pop %v2224
  %v2229 = vmul.f32 %v2206, %v2225
  %v2230 = vmul.f32 %v2208, %v2226
  %v2231 = vmul.f32 %v2210, %v2227
  %v2232 = vmul.f32 %v2212, %v2228
  %v2233 = vpack.c.bf16 %v2230, %v2229
  %v2234 = vpack.c.bf16 %v2232, %v2231
  %v2236 = vsel %vm778, %v2233, 0
  %v2239 = vsel %vm778, %v2234, 0
  %v2242 = vand.u32 %v2127, %v835
  %2244 = vmatprep.subr.bf16.mxu0 0
  %2245 = vmatpush1.bf16.msra.mxu0 %v2126
  %2246 = vmatprep.subr.bf16.mxu0 0
  %2247 = vmatpush1.bf16.msra.mxu0 %v2242
  %2248 = vmatprep.subr.bf16.mxu0 0
  %2249 = vmatpush1.bf16.msra.mxu0 0
  %2250 = vmatprep.subr.bf16.mxu0 0
  %2251 = vmatpush1.bf16.msra.mxu0 0
  %2252 = vmatprep.subr.bf16.mxu0 0
  %2253 = vmatpush1.bf16.msra.mxu0 0
  %2254 = vmatprep.subr.bf16.mxu0 0
  %2255 = vmatpush1.bf16.msra.mxu0 0
  %2256 = vmatprep.subr.bf16.mxu0 0
  %2257 = vmatpush1.bf16.msra.mxu0 0
  %2258 = vmatprep.subr.bf16.mxu0 0
  %2259 = vmatpush1.bf16.msra.mxu0 0
  %2260 = vmatprep.subr.bf16.mxu0 0
  %2261 = vmatpush1.bf16.msra.mxu0 0
  %2262 = vmatprep.subr.bf16.mxu0 0
  %2263 = vmatpush1.bf16.msra.mxu0 0
  %2264 = vmatprep.subr.bf16.mxu0 0
  %2265 = vmatpush1.bf16.msra.mxu0 0
  %2266 = vmatprep.subr.bf16.mxu0 0
  %2267 = vmatpush1.bf16.msra.mxu0 0
  %2268 = vmatprep.subr.bf16.mxu0 0
  %2269 = vmatpush1.bf16.msra.mxu0 0
  %2270 = vmatprep.subr.bf16.mxu0 0
  %2271 = vmatpush1.bf16.msra.mxu0 0
  %2272 = vmatprep.subr.bf16.mxu0 0
  %2273 = vmatpush1.bf16.msra.mxu0 0
  %2274 = vmatprep.subr.bf16.mxu0 0
  %2275 = vmatpush1.bf16.msra.mxu0 0
  %2276 = vmatprep.mubr.bf16.mxu0 0
  %2277 = vmatmul.mubr.bf16.gmra.mrb[0].mxu0 %v2236
  %v2278 = vpop.f32.mrb[0].mxu0
  %v2279 = vadd.f32 0.0, %v2278
  %v2280 = vpop.f32.mrb[0].mxu0
  %v2281 = vpop.f32.mrb[0].mxu0
  %v2282 = vadd.f32 0.0, %v2281
  %v2283 = vpop.f32.mrb[0].mxu0
  %2284 = vmatprep.mubr.bf16.mxu0 0
  %2285 = vmatmul.mubr.bf16.gmra.mrb[0].mxu0 %v2239
  %v2286 = vpop.f32.mrb[0].mxu0
  %v2287 = vadd.f32 0.0, %v2286
  %v2288 = vpop.f32.mrb[0].mxu0
  %v2289 = vpop.f32.mrb[0].mxu0
  %v2290 = vadd.f32 0.0, %v2289
  %v2291 = vpop.f32.mrb[0].mxu0
  %2292 = vdwg.mxu0
  %v2293 = vpack.c.bf16 %v2282, %v2279
  %v2294 = vpack.c.bf16 %v2290, %v2287
  %2297 = vrot.lane.b32.xlu0 %v2122, 64
  %v2298 = vpop.permute.xlu0 %2297
  %2299 = vrot.lane.b32.xlu0 %v2123, 64
  %v2300 = vpop.permute.xlu0 %2299
  %2303 = vrot.lane.b32.xlu0 %v2124, 64
  %v2304 = vpop.permute.xlu0 %2303
  %2305 = vrot.lane.b32.xlu0 %v2125, 64
  %v2306 = vpop.permute.xlu0 %2305
  %v2308 = vsel %vm216, %v2298, 0
  %v2311 = vsel %vm216, %v2300, 0
  %v2314 = vsel %vm216, %v2304, 0
  %v2317 = vsel %vm216, %v2306, 0
  %2319 = vmatprep.subr.bf16.mxu0 0
  %2320 = vmatpush1.bf16.xpose.msra.mxu0 %v2314
  %2321 = vmatprep.subr.bf16.mxu0 0
  %2322 = vmatpush1.bf16.xpose.msra.mxu0 %v2317
  %2323 = vmatprep.subr.bf16.mxu0 0
  %2324 = vmatpush1.bf16.xpose.msra.mxu0 0
  %2325 = vmatprep.subr.bf16.mxu0 0
  %2326 = vmatpush1.bf16.xpose.msra.mxu0 0
  %2327 = vmatprep.subr.bf16.mxu0 0
  %2328 = vmatpush1.bf16.xpose.msra.mxu0 0
  %2329 = vmatprep.subr.bf16.mxu0 0
  %2330 = vmatpush1.bf16.xpose.msra.mxu0 0
  %2331 = vmatprep.subr.bf16.mxu0 0
  %2332 = vmatpush1.bf16.xpose.msra.mxu0 0
  %2333 = vmatprep.subr.bf16.mxu0 0
  %2334 = vmatpush1.bf16.xpose.msra.mxu0 0
  %2335 = vmatprep.subr.bf16.mxu0 0
  %2336 = vmatpush1.bf16.xpose.msra.mxu0 0
  %2337 = vmatprep.subr.bf16.mxu0 0
  %2338 = vmatpush1.bf16.xpose.msra.mxu0 0
  %2339 = vmatprep.subr.bf16.mxu0 0
  %2340 = vmatpush1.bf16.xpose.msra.mxu0 0
  %2341 = vmatprep.subr.bf16.mxu0 0
  %2342 = vmatpush1.bf16.xpose.msra.mxu0 0
  %2343 = vmatprep.subr.bf16.mxu0 0
  %2344 = vmatpush1.bf16.xpose.msra.mxu0 0
  %2345 = vmatprep.subr.bf16.mxu0 0
  %2346 = vmatpush1.bf16.xpose.msra.mxu0 0
  %2347 = vmatprep.subr.bf16.mxu0 0
  %2348 = vmatpush1.bf16.xpose.msra.mxu0 0
  %2349 = vmatprep.subr.bf16.mxu0 0
  %2350 = vmatpush1.bf16.xpose.msra.mxu0 0
  %2351 = vmatprep.mubr.bf16.mxu0 0
  %2352 = vmatmul.mubr.bf16.gmra.mrb[0].mxu0 %v2308
  %v2353 = vpop.f32.mrb[0].mxu0
  %v2354 = vadd.f32 %v100, %v2353
  %v2355 = vpop.f32.mrb[0].mxu0
  %v2356 = vpop.f32.mrb[0].mxu0
  %v2357 = vadd.f32 %v101, %v2356
  %v2358 = vpop.f32.mrb[0].mxu0
  %2359 = vmatprep.mubr.bf16.mxu0 0
  %2360 = vmatmul.mubr.bf16.gmra.mrb[0].mxu0 %v2311
  %v2361 = vpop.f32.mrb[0].mxu0
  %v2362 = vadd.f32 %v102, %v2361
  %v2363 = vpop.f32.mrb[0].mxu0
  %v2364 = vpop.f32.mrb[0].mxu0
  %v2365 = vadd.f32 %v103, %v2364
  %v2366 = vpop.f32.mrb[0].mxu0
  %2367 = vdwg.mxu0
  %v2368 = vsel %vm778, %v2354, -inf
  %2369 = vmax.xlane.f32.xlu0 %v2368
  %v2370 = vpop.xlane.xlu0 %2369
  %v2371 = vsel %vm778, %v2357, -inf
  %2372 = vmax.xlane.f32.xlu0 %v2371
  %v2373 = vpop.xlane.xlu0 %2372
  %v2374 = vsel %vm778, %v2362, -inf
  %2375 = vmax.xlane.f32.xlu0 %v2374
  %v2376 = vpop.xlane.xlu0 %2375
  %v2377 = vsel %vm788, %v2365, -inf
  %2378 = vmax.xlane.f32.xlu0 %v2377
  %v2379 = vpop.xlane.xlu0 %2378
  %v2380 = vsub.f32 %v2354, %v2370
  %v2381 = vsub.f32 %v2357, %v2373
  %v2382 = vsub.f32 %v2362, %v2376
  %v2383 = vsub.f32 %v2365, %v2379
  %v2384 = vmul.f32 %v2380, 1.442695
  %v2385 = vpow.pop %v2384
  %v2386 = vmul.f32 %v2381, 1.442695
  %v2387 = vpow.pop %v2386
  %v2388 = vmul.f32 %v2382, 1.442695
  %v2389 = vpow.pop %v2388
  %v2390 = vmul.f32 %v2383, 1.442695
  %v2391 = vpow.pop %v2390
  %v2392 = vsel %vm778, %v2385, 0.0
  %2393 = vadd.xlane.f32.xlu0 %v2392
  %v2394 = vpop.xlane.xlu0 %2393
  %v2395 = vsel %vm778, %v2387, 0.0
  %2396 = vadd.xlane.f32.xlu0 %v2395
  %v2397 = vpop.xlane.xlu0 %2396
  %v2398 = vsel %vm778, %v2389, 0.0
  %2399 = vadd.xlane.f32.xlu0 %v2398
  %v2400 = vpop.xlane.xlu0 %2399
  %v2401 = vsel %vm788, %v2391, 0.0
  %2402 = vadd.xlane.f32.xlu0 %v2401
  %v2403 = vpop.xlane.xlu0 %2402
  %v2404 = vrcp.pop %v2394
  %v2405 = vrcp.pop %v2397
  %v2406 = vrcp.pop %v2400
  %v2407 = vrcp.pop %v2403
  %v2408 = vmul.f32 %v2385, %v2404
  %v2409 = vmul.f32 %v2387, %v2405
  %v2410 = vmul.f32 %v2389, %v2406
  %v2411 = vmul.f32 %v2391, %v2407
  %v2412 = vpack.c.bf16 %v2409, %v2408
  %v2413 = vpack.c.bf16 %v2411, %v2410
  %2416 = vrot.lane.b32.xlu0 %v2126, 64
  %v2417 = vpop.permute.xlu0 %2416
  %2418 = vrot.lane.b32.xlu0 %v2127, 64
  %v2419 = vpop.permute.xlu0 %2418
  %v2422 = vsel %vm778, %v2412, 0
  %v2425 = vsel %vm778, %v2413, 0
  %v2428 = vand.u32 %v2419, %v835
  %2430 = vmatprep.subr.bf16.mxu0 0
  %2431 = vmatpush1.bf16.msra.mxu0 %v2417
  %2432 = vmatprep.subr.bf16.mxu0 0
  %2433 = vmatpush1.bf16.msra.mxu0 %v2428
  %2434 = vmatprep.subr.bf16.mxu0 0
  %2435 = vmatpush1.bf16.msra.mxu0 0
  %2436 = vmatprep.subr.bf16.mxu0 0
  %2437 = vmatpush1.bf16.msra.mxu0 0
  %2438 = vmatprep.subr.bf16.mxu0 0
  %2439 = vmatpush1.bf16.msra.mxu0 0
  %2440 = vmatprep.subr.bf16.mxu0 0
  %2441 = vmatpush1.bf16.msra.mxu0 0
  %2442 = vmatprep.subr.bf16.mxu0 0
  %2443 = vmatpush1.bf16.msra.mxu0 0
  %2444 = vmatprep.subr.bf16.mxu0 0
  %2445 = vmatpush1.bf16.msra.mxu0 0
  %2446 = vmatprep.subr.bf16.mxu0 0
  %2447 = vmatpush1.bf16.msra.mxu0 0
  %2448 = vmatprep.subr.bf16.mxu0 0
  %2449 = vmatpush1.bf16.msra.mxu0 0
  %2450 = vmatprep.subr.bf16.mxu0 0
  %2451 = vmatpush1.bf16.msra.mxu0 0
  %2452 = vmatprep.subr.bf16.mxu0 0
  %2453 = vmatpush1.bf16.msra.mxu0 0
  %2454 = vmatprep.subr.bf16.mxu0 0
  %2455 = vmatpush1.bf16.msra.mxu0 0
  %2456 = vmatprep.subr.bf16.mxu0 0
  %2457 = vmatpush1.bf16.msra.mxu0 0
  %2458 = vmatprep.subr.bf16.mxu0 0
  %2459 = vmatpush1.bf16.msra.mxu0 0
  %2460 = vmatprep.subr.bf16.mxu0 0
  %2461 = vmatpush1.bf16.msra.mxu0 0
  %2462 = vmatprep.mubr.bf16.mxu0 0
  %2463 = vmatmul.mubr.bf16.gmra.mrb[0].mxu0 %v2422
  %v2464 = vpop.f32.mrb[0].mxu0
  %v2465 = vadd.f32 0.0, %v2464
  %v2466 = vpop.f32.mrb[0].mxu0
  %v2467 = vpop.f32.mrb[0].mxu0
  %v2468 = vadd.f32 0.0, %v2467
  %v2469 = vpop.f32.mrb[0].mxu0
  %2470 = vmatprep.mubr.bf16.mxu0 0
  %2471 = vmatmul.mubr.bf16.gmra.mrb[0].mxu0 %v2425
  %v2472 = vpop.f32.mrb[0].mxu0
  %v2473 = vadd.f32 0.0, %v2472
  %v2474 = vpop.f32.mrb[0].mxu0
  %v2475 = vpop.f32.mrb[0].mxu0
  %v2476 = vadd.f32 0.0, %v2475
  %v2477 = vpop.f32.mrb[0].mxu0
  %2478 = vdwg.mxu0
  %v2479 = vpack.c.bf16 %v2468, %v2465
  %v2480 = vpack.c.bf16 %v2476, %v2473
  %v2489 = vunpack.c.l.b16 %v2114
  %v2490 = vunpack.c.l.b16 %v2115
  %v2491 = vunpack.c.l.b16 %v2116
  %v2492 = vunpack.c.l.b16 %v2117
  %v2493 = vunpack.c.l.b16 %v2118
  %v2494 = vunpack.c.l.b16 %v2119
  %v2495 = vunpack.c.l.b16 %v2120
  %v2496 = vunpack.c.l.b16 %v2121
  %v2497 = vpack.c.b16 %v2490, %v2489
  %v2498 = vpack.c.b16 %v2492, %v2491
  %v2499 = vpack.c.b16 %v2494, %v2493
  %v2500 = vpack.c.b16 %v2496, %v2495
  %v2506 = vsel %vm216, %v2479, 0
  %v2509 = vsel %vm216, %v2480, 0
  %2511 = vmatprep.subr.bf16.mxu0 0
  %2512 = vmatpush1.bf16.msra.mxu0 %v2497
  %2513 = vmatprep.subr.bf16.mxu0 0
  %2514 = vmatpush1.bf16.msra.mxu0 %v2498
  %2515 = vmatprep.subr.bf16.mxu0 0
  %2516 = vmatpush1.bf16.msra.mxu0 %v2499
  %2517 = vmatprep.subr.bf16.mxu0 0
  %2518 = vmatpush1.bf16.msra.mxu0 %v2500
  %2519 = vmatprep.subr.bf16.mxu0 0
  %2520 = vmatpush1.bf16.msra.mxu0 0
  %2521 = vmatprep.subr.bf16.mxu0 0
  %2522 = vmatpush1.bf16.msra.mxu0 0
  %2523 = vmatprep.subr.bf16.mxu0 0
  %2524 = vmatpush1.bf16.msra.mxu0 0
  %2525 = vmatprep.subr.bf16.mxu0 0
  %2526 = vmatpush1.bf16.msra.mxu0 0
  %2527 = vmatprep.subr.bf16.mxu0 0
  %2528 = vmatpush1.bf16.msra.mxu0 0
  %2529 = vmatprep.subr.bf16.mxu0 0
  %2530 = vmatpush1.bf16.msra.mxu0 0
  %2531 = vmatprep.subr.bf16.mxu0 0
  %2532 = vmatpush1.bf16.msra.mxu0 0
  %2533 = vmatprep.subr.bf16.mxu0 0
  %2534 = vmatpush1.bf16.msra.mxu0 0
  %2535 = vmatprep.subr.bf16.mxu0 0
  %2536 = vmatpush1.bf16.msra.mxu0 0
  %2537 = vmatprep.subr.bf16.mxu0 0
  %2538 = vmatpush1.bf16.msra.mxu0 0
  %2539 = vmatprep.subr.bf16.mxu0 0
  %2540 = vmatpush1.bf16.msra.mxu0 0
  %2541 = vmatprep.subr.bf16.mxu0 0
  %2542 = vmatpush1.bf16.msra.mxu0 0
  %2543 = vmatprep.mubr.bf16.mxu0 0
  %2544 = vmatmul.mubr.bf16.gmra.mrb[0].mxu0 %v2506
  %v2545 = vpop.f32.mrb[0].mxu0
  %v2546 = vadd.f32 0.0, %v2545
  %v2547 = vpop.f32.mrb[0].mxu0
  %v2548 = vpop.f32.mrb[0].mxu0
  %v2549 = vadd.f32 0.0, %v2548
  %v2550 = vpop.f32.mrb[0].mxu0
  %2551 = vmatprep.mubr.bf16.mxu0 0
  %2552 = vmatmul.mubr.bf16.gmra.mrb[0].mxu0 %v2509
  %v2553 = vpop.f32.mrb[0].mxu0
  %v2554 = vadd.f32 0.0, %v2553
  %v2555 = vpop.f32.mrb[0].mxu0
  %v2556 = vpop.f32.mrb[0].mxu0
  %v2557 = vadd.f32 0.0, %v2556
  %v2558 = vpop.f32.mrb[0].mxu0
  %2559 = vdwg.mxu0
  %v2568 = vunpack.c.l.b16 %v2106
  %v2569 = vunpack.c.l.b16 %v2107
  %v2570 = vunpack.c.l.b16 %v2108
  %v2571 = vunpack.c.l.b16 %v2109
  %v2572 = vunpack.c.l.b16 %v2110
  %v2573 = vunpack.c.l.b16 %v2111
  %v2574 = vunpack.c.l.b16 %v2112
  %v2575 = vunpack.c.l.b16 %v2113
  %v2576 = vpack.c.b16 %v2569, %v2568
  %v2577 = vpack.c.b16 %v2571, %v2570
  %v2578 = vpack.c.b16 %v2573, %v2572
  %v2579 = vpack.c.b16 %v2575, %v2574
  %v2585 = vsel %vm216, %v2293, 0
  %v2588 = vsel %vm216, %v2294, 0
  %2590 = vmatprep.subr.bf16.mxu0 0
  %2591 = vmatpush1.bf16.msra.mxu0 %v2576
  %2592 = vmatprep.subr.bf16.mxu0 0
  %2593 = vmatpush1.bf16.msra.mxu0 %v2577
  %2594 = vmatprep.subr.bf16.mxu0 0
  %2595 = vmatpush1.bf16.msra.mxu0 %v2578
  %2596 = vmatprep.subr.bf16.mxu0 0
  %2597 = vmatpush1.bf16.msra.mxu0 %v2579
  %2598 = vmatprep.subr.bf16.mxu0 0
  %2599 = vmatpush1.bf16.msra.mxu0 0
  %2600 = vmatprep.subr.bf16.mxu0 0
  %2601 = vmatpush1.bf16.msra.mxu0 0
  %2602 = vmatprep.subr.bf16.mxu0 0
  %2603 = vmatpush1.bf16.msra.mxu0 0
  %2604 = vmatprep.subr.bf16.mxu0 0
  %2605 = vmatpush1.bf16.msra.mxu0 0
  %2606 = vmatprep.subr.bf16.mxu0 0
  %2607 = vmatpush1.bf16.msra.mxu0 0
  %2608 = vmatprep.subr.bf16.mxu0 0
  %2609 = vmatpush1.bf16.msra.mxu0 0
  %2610 = vmatprep.subr.bf16.mxu0 0
  %2611 = vmatpush1.bf16.msra.mxu0 0
  %2612 = vmatprep.subr.bf16.mxu0 0
  %2613 = vmatpush1.bf16.msra.mxu0 0
  %2614 = vmatprep.subr.bf16.mxu0 0
  %2615 = vmatpush1.bf16.msra.mxu0 0
  %2616 = vmatprep.subr.bf16.mxu0 0
  %2617 = vmatpush1.bf16.msra.mxu0 0
  %2618 = vmatprep.subr.bf16.mxu0 0
  %2619 = vmatpush1.bf16.msra.mxu0 0
  %2620 = vmatprep.subr.bf16.mxu0 0
  %2621 = vmatpush1.bf16.msra.mxu0 0
  %2622 = vmatprep.mubr.bf16.mxu0 0
  %2623 = vmatmul.mubr.bf16.gmra.mrb[0].mxu0 %v2585
  %v2624 = vpop.f32.mrb[0].mxu0
  %v2625 = vadd.f32 %v2546, %v2624
  %v2626 = vpop.f32.mrb[0].mxu0
  %v2627 = vpop.f32.mrb[0].mxu0
  %v2628 = vadd.f32 %v2549, %v2627
  %v2629 = vpop.f32.mrb[0].mxu0
  %2630 = vmatprep.mubr.bf16.mxu0 0
  %2631 = vmatmul.mubr.bf16.gmra.mrb[0].mxu0 %v2588
  %v2632 = vpop.f32.mrb[0].mxu0
  %v2633 = vadd.f32 %v2554, %v2632
  %v2634 = vpop.f32.mrb[0].mxu0
  %v2635 = vpop.f32.mrb[0].mxu0
  %v2636 = vadd.f32 %v2557, %v2635
  %v2637 = vpop.f32.mrb[0].mxu0
  %2638 = vdwg.mxu0
  %v2639 = vadd.f32 %v1744, %v2625
  %v2640 = vadd.f32 %v1745, %v2628
  %v2641 = vadd.f32 %v1746, %v2633
  %v2642 = vadd.f32 %v1747, %v2636
  %s2643 = scalar_lea.vmem %s12, 1
  %v2644 = vld [vmem:[%s2643] sm:$0x1]
  %v2646 = vlaneseq
  %v2647 = vshrl.u32 %v2646, 7
  %v2648 = vsub.s32 0, %v2647
  %v2649 = vrot.slane %v2644, %v2648
  %v2651 = vadd.f32 %v2639, %v2649
  %v2652 = vadd.f32 %v2640, %v2649
  %v2653 = vadd.f32 %v2641, %v2649
  %v2654 = vadd.f32 %v2642, %v2649
  %s2655 = scalar_lea.vmem %s13, 1
  %v2656 = vld [vmem:[%s2655] sm:$0x1]
  %s2657 = scalar_lea.vmem %s14, 1
  %v2658 = vld [vmem:[%s2657] sm:$0x1]
  %2659 = vadd.xlane.f32.xlu0 %v2651
  %v2660 = vpop.xlane.xlu0 %2659
  %2661 = vadd.xlane.f32.xlu0 %v2652
  %v2662 = vpop.xlane.xlu0 %2661
  %2663 = vadd.xlane.f32.xlu0 %v2653
  %v2664 = vpop.xlane.xlu0 %2663
  %v2665 = vsel %vm280, %v2654, 0.0
  %2666 = vadd.xlane.f32.xlu0 %v2665
  %v2667 = vpop.xlane.xlu0 %2666
  %v2668 = vmul.f32 %v2660, %v284
  %v2669 = vmul.f32 %v2662, %v284
  %v2670 = vmul.f32 %v2664, %v284
  %v2671 = vmul.f32 %v2667, %v284
  %v2672 = vsub.f32 %v2651, %v2668
  %v2673 = vsub.f32 %v2652, %v2669
  %v2674 = vsub.f32 %v2653, %v2670
  %v2675 = vsub.f32 %v2654, %v2671
  %v2676 = vmul.f32 %v2672, %v2672
  %v2677 = vmul.f32 %v2673, %v2673
  %v2678 = vmul.f32 %v2674, %v2674
  %v2679 = vmul.f32 %v2675, %v2675
  %2680 = vadd.xlane.f32.xlu0 %v2676
  %v2681 = vpop.xlane.xlu0 %2680
  %2682 = vadd.xlane.f32.xlu0 %v2677
  %v2683 = vpop.xlane.xlu0 %2682
  %2684 = vadd.xlane.f32.xlu0 %v2678
  %v2685 = vpop.xlane.xlu0 %2684
  %v2686 = vsel %vm280, %v2679, 0.0
  %2687 = vadd.xlane.f32.xlu0 %v2686
  %v2688 = vpop.xlane.xlu0 %2687
  %v2689 = vmul.f32 %v2681, %v284
  %v2690 = vmul.f32 %v2683, %v284
  %v2691 = vmul.f32 %v2685, %v284
  %v2692 = vmul.f32 %v2688, %v284
  %v2693 = vadd.f32 %v2689, 1e-05
  %v2694 = vadd.f32 %v2690, 1e-05
  %v2695 = vadd.f32 %v2691, 1e-05
  %v2696 = vadd.f32 %v2692, 1e-05
  %v2697 = vrsqrt.pop %v2693
  %v2698 = vrsqrt.pop %v2694
  %v2699 = vrsqrt.pop %v2695
  %v2700 = vrsqrt.pop %v2696
  %v2701 = vmul.f32 %v2672, %v2697
  %v2702 = vmul.f32 %v2673, %v2698
  %v2703 = vmul.f32 %v2674, %v2699
  %v2704 = vmul.f32 %v2675, %v2700
  %v2706 = vlaneseq
  %v2707 = vshrl.u32 %v2706, 7
  %v2708 = vsub.s32 0, %v2707
  %v2709 = vrot.slane %v2656, %v2708
  %v2711 = vmul.f32 %v2701, %v2709
  %v2712 = vmul.f32 %v2702, %v2709
  %v2713 = vmul.f32 %v2703, %v2709
  %v2714 = vmul.f32 %v2704, %v2709
  %v2716 = vlaneseq
  %v2717 = vshrl.u32 %v2716, 7
  %v2718 = vsub.s32 0, %v2717
  %v2719 = vrot.slane %v2658, %v2718
  %v2721 = vadd.f32 %v2711, %v2719
  %v2722 = vadd.f32 %v2712, %v2719
  %v2723 = vadd.f32 %v2713, %v2719
  %v2724 = vadd.f32 %v2714, %v2719
  %s2725 = scalar_lea.vmem %s15, 128
  %v2726 = vld [vmem:[%s2725] sm:$0xff]
  %v2727 = vld [vmem:[%s2725 + $0x8] sm:$0xff]
  %v2728 = vld [vmem:[%s2725 + $0x10] sm:$0xff]
  %v2729 = vld [vmem:[%s2725 + $0x18] sm:$0xff]
  %v2730 = vld [vmem:[%s2725 + $0x20] sm:$0xff]
  %v2731 = vld [vmem:[%s2725 + $0x28] sm:$0xff]
  %v2732 = vld [vmem:[%s2725 + $0x30] sm:$0xff]
  %v2733 = vld [vmem:[%s2725 + $0x38] sm:$0xff]
  %v2734 = vld [vmem:[%s2725 + $0x40] sm:$0xff]
  %v2735 = vld [vmem:[%s2725 + $0x48] sm:$0xff]
  %v2736 = vld [vmem:[%s2725 + $0x50] sm:$0xff]
  %v2737 = vld [vmem:[%s2725 + $0x58] sm:$0xff]
  %v2738 = vld [vmem:[%s2725 + $0x60] sm:$0xff]
  %v2739 = vld [vmem:[%s2725 + $0x68] sm:$0xff]
  %v2740 = vld [vmem:[%s2725 + $0x70] sm:$0xff]
  %v2741 = vld [vmem:[%s2725 + $0x78] sm:$0xff]
  %v2742 = vpack.c.bf16 %v2722, %v2721
  %v2743 = vpack.c.bf16 %v2724, %v2723
  %s2744 = scalar_lea.vmem %s16, 2
  %v2745 = vld [vmem:[%s2744] sm:$0x3]
  %v2747 = vlaneseq
  %v2748 = vshrl.u32 %v2747, 7
  %v2749 = vsub.s32 0, %v2748
  %v2750 = vrot.slane %v2745, %v2749
  %v2751 = vlaneseq
  %v2752 = vshrl.u32 %v2751, 7
  %v2753 = vsub.s32 1, %v2752
  %v2754 = vrot.slane %v2745, %v2753
  %v2773 = vunpack.c.l.b16 %v2726
  %v2774 = vunpack.c.h.b16 %v2726
  %v2775 = vunpack.c.l.b16 %v2727
  %v2776 = vunpack.c.h.b16 %v2727
  %v2777 = vunpack.c.l.b16 %v2728
  %v2778 = vunpack.c.h.b16 %v2728
  %v2779 = vunpack.c.l.b16 %v2729
  %v2780 = vunpack.c.h.b16 %v2729
  %v2781 = vunpack.c.l.b16 %v2730
  %v2782 = vunpack.c.h.b16 %v2730
  %v2783 = vunpack.c.l.b16 %v2731
  %v2784 = vunpack.c.h.b16 %v2731
  %v2785 = vunpack.c.l.b16 %v2732
  %v2786 = vunpack.c.h.b16 %v2732
  %v2787 = vunpack.c.l.b16 %v2733
  %v2788 = vunpack.c.h.b16 %v2733
  %v2789 = vunpack.c.l.b16 %v2734
  %v2790 = vunpack.c.h.b16 %v2734
  %v2791 = vunpack.c.l.b16 %v2735
  %v2792 = vunpack.c.h.b16 %v2735
  %v2793 = vunpack.c.l.b16 %v2736
  %v2794 = vunpack.c.h.b16 %v2736
  %v2795 = vunpack.c.l.b16 %v2737
  %v2796 = vunpack.c.h.b16 %v2737
  %v2797 = vunpack.c.l.b16 %v2738
  %v2798 = vunpack.c.h.b16 %v2738
  %v2799 = vunpack.c.l.b16 %v2739
  %v2800 = vunpack.c.h.b16 %v2739
  %v2801 = vunpack.c.l.b16 %v2740
  %v2802 = vunpack.c.h.b16 %v2740
  %v2803 = vunpack.c.l.b16 %v2741
  %v2804 = vunpack.c.h.b16 %v2741
  %v2805 = vpack.c.b16 %v2775, %v2773
  %v2806 = vpack.c.b16 %v2776, %v2774
  %v2807 = vpack.c.b16 %v2779, %v2777
  %v2808 = vpack.c.b16 %v2780, %v2778
  %v2809 = vpack.c.b16 %v2783, %v2781
  %v2810 = vpack.c.b16 %v2784, %v2782
  %v2811 = vpack.c.b16 %v2787, %v2785
  %v2812 = vpack.c.b16 %v2788, %v2786
  %v2813 = vpack.c.b16 %v2791, %v2789
  %v2814 = vpack.c.b16 %v2792, %v2790
  %v2815 = vpack.c.b16 %v2795, %v2793
  %v2816 = vpack.c.b16 %v2796, %v2794
  %v2817 = vpack.c.b16 %v2799, %v2797
  %v2818 = vpack.c.b16 %v2800, %v2798
  %v2819 = vpack.c.b16 %v2803, %v2801
  %v2820 = vpack.c.b16 %v2804, %v2802
  %2837 = vmatprep.subr.bf16.mxu0 %v2806
  %2838 = vmatpush1.bf16.msra.mxu0 %v2805
  %2839 = vmatprep.subr.bf16.mxu0 %v2808
  %2840 = vmatpush1.bf16.msra.mxu0 %v2807
  %2841 = vmatprep.subr.bf16.mxu0 %v2810
  %2842 = vmatpush1.bf16.msra.mxu0 %v2809
  %2843 = vmatprep.subr.bf16.mxu0 %v2812
  %2844 = vmatpush1.bf16.msra.mxu0 %v2811
  %2845 = vmatprep.subr.bf16.mxu0 %v2814
  %2846 = vmatpush1.bf16.msra.mxu0 %v2813
  %2847 = vmatprep.subr.bf16.mxu0 %v2816
  %2848 = vmatpush1.bf16.msra.mxu0 %v2815
  %2849 = vmatprep.subr.bf16.mxu0 %v2818
  %2850 = vmatpush1.bf16.msra.mxu0 %v2817
  %2851 = vmatprep.subr.bf16.mxu0 %v2820
  %2852 = vmatpush1.bf16.msra.mxu0 %v2819
  %2853 = vmatprep.subr.bf16.mxu0 0
  %2854 = vmatpush1.bf16.msra.mxu0 0
  %2855 = vmatprep.subr.bf16.mxu0 0
  %2856 = vmatpush1.bf16.msra.mxu0 0
  %2857 = vmatprep.subr.bf16.mxu0 0
  %2858 = vmatpush1.bf16.msra.mxu0 0
  %2859 = vmatprep.subr.bf16.mxu0 0
  %2860 = vmatpush1.bf16.msra.mxu0 0
  %2861 = vmatprep.subr.bf16.mxu0 0
  %2862 = vmatpush1.bf16.msra.mxu0 0
  %2863 = vmatprep.subr.bf16.mxu0 0
  %2864 = vmatpush1.bf16.msra.mxu0 0
  %2865 = vmatprep.subr.bf16.mxu0 0
  %2866 = vmatpush1.bf16.msra.mxu0 0
  %2867 = vmatprep.subr.bf16.mxu0 0
  %2868 = vmatpush1.bf16.msra.mxu0 0
  %2869 = vmatprep.mubr.bf16.mxu0 0
  %2870 = vmatmul.mubr.bf16.gmra.mrb[0].mxu0 %v2742
  %v2871 = vpop.f32.mrb[0].mxu0
  %v2872 = vadd.f32 %v2750, %v2871
  %v2873 = vpop.f32.mrb[0].mxu0
  %v2874 = vadd.f32 %v2754, %v2873
  %v2875 = vpop.f32.mrb[0].mxu0
  %v2876 = vadd.f32 %v2750, %v2875
  %v2877 = vpop.f32.mrb[0].mxu0
  %v2878 = vadd.f32 %v2754, %v2877
  %2879 = vmatprep.mubr.bf16.mxu0 0
  %2880 = vmatmul.mubr.bf16.gmra.mrb[0].mxu0 %v2743
  %v2881 = vpop.f32.mrb[0].mxu0
  %v2882 = vadd.f32 %v2750, %v2881
  %v2883 = vpop.f32.mrb[0].mxu0
  %v2884 = vadd.f32 %v2754, %v2883
  %v2885 = vpop.f32.mrb[0].mxu0
  %v2886 = vadd.f32 %v2750, %v2885
  %v2887 = vpop.f32.mrb[0].mxu0
  %v2888 = vadd.f32 %v2754, %v2887
  %2889 = vdwg.mxu0
  %v2890 = vmul.f32 %v2872, %v2872
  %v2891 = vmul.f32 %v2874, %v2874
  %v2892 = vmul.f32 %v2876, %v2876
  %v2893 = vmul.f32 %v2878, %v2878
  %v2894 = vmul.f32 %v2882, %v2882
  %v2895 = vmul.f32 %v2884, %v2884
  %v2896 = vmul.f32 %v2886, %v2886
  %v2897 = vmul.f32 %v2888, %v2888
  %v2898 = vmul.f32 %v2872, %v2890
  %v2899 = vmul.f32 %v2874, %v2891
  %v2900 = vmul.f32 %v2876, %v2892
  %v2901 = vmul.f32 %v2878, %v2893
  %v2902 = vmul.f32 %v2882, %v2894
  %v2903 = vmul.f32 %v2884, %v2895
  %v2904 = vmul.f32 %v2886, %v2896
  %v2905 = vmul.f32 %v2888, %v2897
  %v2906 = vmul.f32 %v2898, 0.044715
  %v2907 = vmul.f32 %v2899, 0.044715
  %v2908 = vmul.f32 %v2900, 0.044715
  %v2909 = vmul.f32 %v2901, 0.044715
  %v2910 = vmul.f32 %v2902, 0.044715
  %v2911 = vmul.f32 %v2903, 0.044715
  %v2912 = vmul.f32 %v2904, 0.044715
  %v2913 = vmul.f32 %v2905, 0.044715
  %v2914 = vadd.f32 %v2872, %v2906
  %v2915 = vadd.f32 %v2874, %v2907
  %v2916 = vadd.f32 %v2876, %v2908
  %v2917 = vadd.f32 %v2878, %v2909
  %v2918 = vadd.f32 %v2882, %v2910
  %v2919 = vadd.f32 %v2884, %v2911
  %v2920 = vadd.f32 %v2886, %v2912
  %v2921 = vadd.f32 %v2888, %v2913
  %v2922 = vmul.f32 %v2914, 0.7978846
  %v2923 = vmul.f32 %v2915, 0.7978846
  %v2924 = vmul.f32 %v2916, 0.7978846
  %v2925 = vmul.f32 %v2917, 0.7978846
  %v2926 = vmul.f32 %v2918, 0.7978846
  %v2927 = vmul.f32 %v2919, 0.7978846
  %v2928 = vmul.f32 %v2920, 0.7978846
  %v2929 = vmul.f32 %v2921, 0.7978846
  %v2930 = vtanh.pop %v2922
  %v2931 = vtanh.pop %v2923
  %v2932 = vtanh.pop %v2924
  %v2933 = vtanh.pop %v2925
  %v2934 = vtanh.pop %v2926
  %v2935 = vtanh.pop %v2927
  %v2936 = vtanh.pop %v2928
  %v2937 = vtanh.pop %v2929
  %v2938 = vadd.f32 %v2930, 1.0
  %v2939 = vadd.f32 %v2931, 1.0
  %v2940 = vadd.f32 %v2932, 1.0
  %v2941 = vadd.f32 %v2933, 1.0
  %v2942 = vadd.f32 %v2934, 1.0
  %v2943 = vadd.f32 %v2935, 1.0
  %v2944 = vadd.f32 %v2936, 1.0
  %v2945 = vadd.f32 %v2937, 1.0
  %v2946 = vmul.f32 %v2938, 0.5
  %v2947 = vmul.f32 %v2939, 0.5
  %v2948 = vmul.f32 %v2940, 0.5
  %v2949 = vmul.f32 %v2941, 0.5
  %v2950 = vmul.f32 %v2942, 0.5
  %v2951 = vmul.f32 %v2943, 0.5
  %v2952 = vmul.f32 %v2944, 0.5
  %v2953 = vmul.f32 %v2945, 0.5
  %v2954 = vmul.f32 %v2872, %v2946
  %v2955 = vmul.f32 %v2874, %v2947
  %v2956 = vmul.f32 %v2876, %v2948
  %v2957 = vmul.f32 %v2878, %v2949
  %v2958 = vmul.f32 %v2882, %v2950
  %v2959 = vmul.f32 %v2884, %v2951
  %v2960 = vmul.f32 %v2886, %v2952
  %v2961 = vmul.f32 %v2888, %v2953
  %s2962 = scalar_lea.vmem %s17, 128
  %v2963 = vld [vmem:[%s2962] sm:$0xf]
  %v2964 = vld [vmem:[%s2962 + $0x4] sm:$0xf]
  %v2965 = vld [vmem:[%s2962 + $0x8] sm:$0xf]
  %v2966 = vld [vmem:[%s2962 + $0xc] sm:$0xf]
  %v2967 = vld [vmem:[%s2962 + $0x10] sm:$0xf]
  %v2968 = vld [vmem:[%s2962 + $0x14] sm:$0xf]
  %v2969 = vld [vmem:[%s2962 + $0x18] sm:$0xf]
  %v2970 = vld [vmem:[%s2962 + $0x1c] sm:$0xf]
  %v2971 = vld [vmem:[%s2962 + $0x20] sm:$0xf]
  %v2972 = vld [vmem:[%s2962 + $0x24] sm:$0xf]
  %v2973 = vld [vmem:[%s2962 + $0x28] sm:$0xf]
  %v2974 = vld [vmem:[%s2962 + $0x2c] sm:$0xf]
  %v2975 = vld [vmem:[%s2962 + $0x30] sm:$0xf]
  %v2976 = vld [vmem:[%s2962 + $0x34] sm:$0xf]
  %v2977 = vld [vmem:[%s2962 + $0x38] sm:$0xf]
  %v2978 = vld [vmem:[%s2962 + $0x3c] sm:$0xf]
  %v2979 = vld [vmem:[%s2962 + $0x40] sm:$0xf]
  %v2980 = vld [vmem:[%s2962 + $0x44] sm:$0xf]
  %v2981 = vld [vmem:[%s2962 + $0x48] sm:$0xf]
  %v2982 = vld [vmem:[%s2962 + $0x4c] sm:$0xf]
  %v2983 = vld [vmem:[%s2962 + $0x50] sm:$0xf]
  %v2984 = vld [vmem:[%s2962 + $0x54] sm:$0xf]
  %v2985 = vld [vmem:[%s2962 + $0x58] sm:$0xf]
  %v2986 = vld [vmem:[%s2962 + $0x5c] sm:$0xf]
  %v2987 = vld [vmem:[%s2962 + $0x60] sm:$0xf]
  %v2988 = vld [vmem:[%s2962 + $0x64] sm:$0xf]
  %v2989 = vld [vmem:[%s2962 + $0x68] sm:$0xf]
  %v2990 = vld [vmem:[%s2962 + $0x6c] sm:$0xf]
  %v2991 = vld [vmem:[%s2962 + $0x70] sm:$0xf]
  %v2992 = vld [vmem:[%s2962 + $0x74] sm:$0xf]
  %v2993 = vld [vmem:[%s2962 + $0x78] sm:$0xf]
  %v2994 = vld [vmem:[%s2962 + $0x7c] sm:$0xf]
  %v2995 = vpack.c.bf16 %v2956, %v2954
  %v2996 = vpack.c.bf16 %v2957, %v2955
  %v2997 = vpack.c.bf16 %v2960, %v2958
  %v2998 = vpack.c.bf16 %v2961, %v2959
  %v3031 = vunpack.c.l.b16 %v2963
  %v3032 = vunpack.c.l.b16 %v2964
  %v3033 = vunpack.c.l.b16 %v2965
  %v3034 = vunpack.c.l.b16 %v2966
  %v3035 = vunpack.c.l.b16 %v2967
  %v3036 = vunpack.c.l.b16 %v2968
  %v3037 = vunpack.c.l.b16 %v2969
  %v3038 = vunpack.c.l.b16 %v2970
  %v3039 = vunpack.c.l.b16 %v2971
  %v3040 = vunpack.c.l.b16 %v2972
  %v3041 = vunpack.c.l.b16 %v2973
  %v3042 = vunpack.c.l.b16 %v2974
  %v3043 = vunpack.c.l.b16 %v2975
  %v3044 = vunpack.c.l.b16 %v2976
  %v3045 = vunpack.c.l.b16 %v2977
  %v3046 = vunpack.c.l.b16 %v2978
  %v3047 = vunpack.c.l.b16 %v2979
  %v3048 = vunpack.c.l.b16 %v2980
  %v3049 = vunpack.c.l.b16 %v2981
  %v3050 = vunpack.c.l.b16 %v2982
  %v3051 = vunpack.c.l.b16 %v2983
  %v3052 = vunpack.c.l.b16 %v2984
  %v3053 = vunpack.c.l.b16 %v2985
  %v3054 = vunpack.c.l.b16 %v2986
  %v3055 = vunpack.c.l.b16 %v2987
  %v3056 = vunpack.c.l.b16 %v2988
  %v3057 = vunpack.c.l.b16 %v2989
  %v3058 = vunpack.c.l.b16 %v2990
  %v3059 = vunpack.c.l.b16 %v2991
  %v3060 = vunpack.c.l.b16 %v2992
  %v3061 = vunpack.c.l.b16 %v2993
  %v3062 = vunpack.c.l.b16 %v2994
  %v3063 = vpack.c.b16 %v3032, %v3031
  %v3064 = vpack.c.b16 %v3034, %v3033
  %v3065 = vpack.c.b16 %v3036, %v3035
  %v3066 = vpack.c.b16 %v3038, %v3037
  %v3067 = vpack.c.b16 %v3040, %v3039
  %v3068 = vpack.c.b16 %v3042, %v3041
  %v3069 = vpack.c.b16 %v3044, %v3043
  %v3070 = vpack.c.b16 %v3046, %v3045
  %v3071 = vpack.c.b16 %v3048, %v3047
  %v3072 = vpack.c.b16 %v3050, %v3049
  %v3073 = vpack.c.b16 %v3052, %v3051
  %v3074 = vpack.c.b16 %v3054, %v3053
  %v3075 = vpack.c.b16 %v3056, %v3055
  %v3076 = vpack.c.b16 %v3058, %v3057
  %v3077 = vpack.c.b16 %v3060, %v3059
  %v3078 = vpack.c.b16 %v3062, %v3061
  %3095 = vmatprep.subr.bf16.mxu0 0
  %3096 = vmatpush1.bf16.msra.mxu0 %v3063
  %3097 = vmatprep.subr.bf16.mxu0 0
  %3098 = vmatpush1.bf16.msra.mxu0 %v3064
  %3099 = vmatprep.subr.bf16.mxu0 0
  %3100 = vmatpush1.bf16.msra.mxu0 %v3065
  %3101 = vmatprep.subr.bf16.mxu0 0
  %3102 = vmatpush1.bf16.msra.mxu0 %v3066
  %3103 = vmatprep.subr.bf16.mxu0 0
  %3104 = vmatpush1.bf16.msra.mxu0 %v3067
  %3105 = vmatprep.subr.bf16.mxu0 0
  %3106 = vmatpush1.bf16.msra.mxu0 %v3068
  %3107 = vmatprep.subr.bf16.mxu0 0
  %3108 = vmatpush1.bf16.msra.mxu0 %v3069
  %3109 = vmatprep.subr.bf16.mxu0 0
  %3110 = vmatpush1.bf16.msra.mxu0 %v3070
  %3111 = vmatprep.subr.bf16.mxu0 0
  %3112 = vmatpush1.bf16.msra.mxu0 %v3071
  %3113 = vmatprep.subr.bf16.mxu0 0
  %3114 = vmatpush1.bf16.msra.mxu0 %v3072
  %3115 = vmatprep.subr.bf16.mxu0 0
  %3116 = vmatpush1.bf16.msra.mxu0 %v3073
  %3117 = vmatprep.subr.bf16.mxu0 0
  %3118 = vmatpush1.bf16.msra.mxu0 %v3074
  %3119 = vmatprep.subr.bf16.mxu0 0
  %3120 = vmatpush1.bf16.msra.mxu0 %v3075
  %3121 = vmatprep.subr.bf16.mxu0 0
  %3122 = vmatpush1.bf16.msra.mxu0 %v3076
  %3123 = vmatprep.subr.bf16.mxu0 0
  %3124 = vmatpush1.bf16.msra.mxu0 %v3077
  %3125 = vmatprep.subr.bf16.mxu0 0
  %3126 = vmatpush1.bf16.msra.mxu0 %v3078
  %3127 = vmatprep.mubr.bf16.mxu0 %v2996
  %3128 = vmatmul.mubr.bf16.gmra.mrb[0].mxu0 %v2995
  %v3129 = vpop.f32.mrb[0].mxu0
  %v3130 = vadd.f32 0.0, %v3129
  %v3131 = vpop.f32.mrb[0].mxu0
  %v3132 = vpop.f32.mrb[0].mxu0
  %v3133 = vadd.f32 0.0, %v3132
  %v3134 = vpop.f32.mrb[0].mxu0
  %3135 = vmatprep.mubr.bf16.mxu0 %v2998
  %3136 = vmatmul.mubr.bf16.gmra.mrb[0].mxu0 %v2997
  %v3137 = vpop.f32.mrb[0].mxu0
  %v3138 = vadd.f32 0.0, %v3137
  %v3139 = vpop.f32.mrb[0].mxu0
  %v3140 = vpop.f32.mrb[0].mxu0
  %v3141 = vadd.f32 0.0, %v3140
  %v3142 = vpop.f32.mrb[0].mxu0
  %3143 = vdwg.mxu0
  %v3144 = vadd.f32 %v2651, %v3130
  %v3145 = vadd.f32 %v2652, %v3133
  %v3146 = vadd.f32 %v2653, %v3138
  %v3147 = vadd.f32 %v2654, %v3141
  %s3148 = scalar_lea.vmem %s18, 1
  %v3149 = vld [vmem:[%s3148] sm:$0x1]
  %v3151 = vlaneseq
  %v3152 = vshrl.u32 %v3151, 7
  %v3153 = vsub.s32 0, %v3152
  %v3154 = vrot.slane %v3149, %v3153
  %v3156 = vadd.f32 %v3144, %v3154
  %v3157 = vadd.f32 %v3145, %v3154
  %v3158 = vadd.f32 %v3146, %v3154
  %v3159 = vadd.f32 %v3147, %v3154
  %v3160 = vld [vmem:[%s19] sm:$0xf]
  %v3161 = vld [vmem:[%s19 + $0x4] sm:$0xf]
  %v3162 = vld [vmem:[%s19 + $0x8] sm:$0xf]
  %v3163 = vld [vmem:[%s19 + $0xc] sm:$0xf]
  %v3164 = vld [vmem:[%s19 + $0x10] sm:$0xf]
  %v3165 = vld [vmem:[%s19 + $0x14] sm:$0xf]
  %v3166 = vld [vmem:[%s19 + $0x18] sm:$0xf]
  %v3167 = vld [vmem:[%s19 + $0x1c] sm:$0xf]
  %v3168 = vld [vmem:[%s19 + $0x20] sm:$0xf]
  %v3169 = vld [vmem:[%s19 + $0x24] sm:$0xf]
  %v3170 = vld [vmem:[%s19 + $0x28] sm:$0xf]
  %v3171 = vld [vmem:[%s19 + $0x2c] sm:$0xf]
  %v3172 = vld [vmem:[%s19 + $0x30] sm:$0xf]
  %v3173 = vld [vmem:[%s19 + $0x34] sm:$0xf]
  %v3174 = vld [vmem:[%s19 + $0x38] sm:$0xf]
  %v3175 = vld [vmem:[%s19 + $0x3c] sm:$0xf]
  %v3176 = vpack.c.bf16 %v3157, %v3156
  %v3177 = vpack.c.bf16 %v3159, %v3158
  %v3178 = vld [vmem:[%s20] sm:$0x1]
  %v3180 = vlaneseq
  %v3181 = vshrl.u32 %v3180, 7
  %v3182 = vsub.s32 0, %v3181
  %v3183 = vrot.slane %v3178, %v3182
  %v3201 = vunpack.c.l.b16 %v3160
  %v3202 = vunpack.c.l.b16 %v3161
  %v3203 = vunpack.c.l.b16 %v3162
  %v3204 = vunpack.c.l.b16 %v3163
  %v3205 = vunpack.c.l.b16 %v3164
  %v3206 = vunpack.c.l.b16 %v3165
  %v3207 = vunpack.c.l.b16 %v3166
  %v3208 = vunpack.c.l.b16 %v3167
  %v3209 = vunpack.c.l.b16 %v3168
  %v3210 = vunpack.c.l.b16 %v3169
  %v3211 = vunpack.c.l.b16 %v3170
  %v3212 = vunpack.c.l.b16 %v3171
  %v3213 = vunpack.c.l.b16 %v3172
  %v3214 = vunpack.c.l.b16 %v3173
  %v3215 = vunpack.c.l.b16 %v3174
  %v3216 = vunpack.c.l.b16 %v3175
  %v3217 = vpack.c.b16 %v3202, %v3201
  %v3218 = vpack.c.b16 %v3204, %v3203
  %v3219 = vpack.c.b16 %v3206, %v3205
  %v3220 = vpack.c.b16 %v3208, %v3207
  %v3221 = vpack.c.b16 %v3210, %v3209
  %v3222 = vpack.c.b16 %v3212, %v3211
  %v3223 = vpack.c.b16 %v3214, %v3213
  %v3224 = vpack.c.b16 %v3216, %v3215
  %3233 = vmatprep.subr.bf16.mxu0 0
  %3234 = vmatpush1.bf16.msra.mxu0 %v3217
  %3235 = vmatprep.subr.bf16.mxu0 0
  %3236 = vmatpush1.bf16.msra.mxu0 %v3218
  %3237 = vmatprep.subr.bf16.mxu0 0
  %3238 = vmatpush1.bf16.msra.mxu0 %v3219
  %3239 = vmatprep.subr.bf16.mxu0 0
  %3240 = vmatpush1.bf16.msra.mxu0 %v3220
  %3241 = vmatprep.subr.bf16.mxu0 0
  %3242 = vmatpush1.bf16.msra.mxu0 %v3221
  %3243 = vmatprep.subr.bf16.mxu0 0
  %3244 = vmatpush1.bf16.msra.mxu0 %v3222
  %3245 = vmatprep.subr.bf16.mxu0 0
  %3246 = vmatpush1.bf16.msra.mxu0 %v3223
  %3247 = vmatprep.subr.bf16.mxu0 0
  %3248 = vmatpush1.bf16.msra.mxu0 %v3224
  %3249 = vmatprep.subr.bf16.mxu0 0
  %3250 = vmatpush1.bf16.msra.mxu0 0
  %3251 = vmatprep.subr.bf16.mxu0 0
  %3252 = vmatpush1.bf16.msra.mxu0 0
  %3253 = vmatprep.subr.bf16.mxu0 0
  %3254 = vmatpush1.bf16.msra.mxu0 0
  %3255 = vmatprep.subr.bf16.mxu0 0
  %3256 = vmatpush1.bf16.msra.mxu0 0
  %3257 = vmatprep.subr.bf16.mxu0 0
  %3258 = vmatpush1.bf16.msra.mxu0 0
  %3259 = vmatprep.subr.bf16.mxu0 0
  %3260 = vmatpush1.bf16.msra.mxu0 0
  %3261 = vmatprep.subr.bf16.mxu0 0
  %3262 = vmatpush1.bf16.msra.mxu0 0
  %3263 = vmatprep.subr.bf16.mxu0 0
  %3264 = vmatpush1.bf16.msra.mxu0 0
  %3265 = vmatprep.mubr.bf16.mxu0 0
  %3266 = vmatmul.mubr.bf16.gmra.mrb[0].mxu0 %v3176
  %v3267 = vpop.f32.mrb[0].mxu0
  %v3268 = vadd.f32 %v3183, %v3267
  %v3269 = vpop.f32.mrb[0].mxu0
  %v3270 = vpop.f32.mrb[0].mxu0
  %v3271 = vadd.f32 %v3183, %v3270
  %v3272 = vpop.f32.mrb[0].mxu0
  %3273 = vmatprep.mubr.bf16.mxu0 0
  %3274 = vmatmul.mubr.bf16.gmra.mrb[0].mxu0 %v3177
  %v3275 = vpop.f32.mrb[0].mxu0
  %v3276 = vadd.f32 %v3183, %v3275
  %v3277 = vpop.f32.mrb[0].mxu0
  %v3278 = vpop.f32.mrb[0].mxu0
  %v3279 = vadd.f32 %v3183, %v3278
  %v3280 = vpop.f32.mrb[0].mxu0
  %3281 = vdwg.mxu0
  %v3282 = vmul.f32 %v3268, %v3268
  %v3283 = vmul.f32 %v3271, %v3271
  %v3284 = vmul.f32 %v3276, %v3276
  %v3285 = vmul.f32 %v3279, %v3279
  %v3286 = vmul.f32 %v3268, %v3282
  %v3287 = vmul.f32 %v3271, %v3283
  %v3288 = vmul.f32 %v3276, %v3284
  %v3289 = vmul.f32 %v3279, %v3285
  %v3290 = vmul.f32 %v3286, 0.044715
  %v3291 = vmul.f32 %v3287, 0.044715
  %v3292 = vmul.f32 %v3288, 0.044715
  %v3293 = vmul.f32 %v3289, 0.044715
  %v3294 = vadd.f32 %v3268, %v3290
  %v3295 = vadd.f32 %v3271, %v3291
  %v3296 = vadd.f32 %v3276, %v3292
  %v3297 = vadd.f32 %v3279, %v3293
  %v3298 = vmul.f32 %v3294, 0.7978846
  %v3299 = vmul.f32 %v3295, 0.7978846
  %v3300 = vmul.f32 %v3296, 0.7978846
  %v3301 = vmul.f32 %v3297, 0.7978846
  %v3302 = vtanh.pop %v3298
  %v3303 = vtanh.pop %v3299
  %v3304 = vtanh.pop %v3300
  %v3305 = vtanh.pop %v3301
  %v3306 = vadd.f32 %v3302, 1.0
  %v3307 = vadd.f32 %v3303, 1.0
  %v3308 = vadd.f32 %v3304, 1.0
  %v3309 = vadd.f32 %v3305, 1.0
  %v3310 = vmul.f32 %v3306, 0.5
  %v3311 = vmul.f32 %v3307, 0.5
  %v3312 = vmul.f32 %v3308, 0.5
  %v3313 = vmul.f32 %v3309, 0.5
  %v3314 = vmul.f32 %v3268, %v3310
  %v3315 = vmul.f32 %v3271, %v3311
  %v3316 = vmul.f32 %v3276, %v3312
  %v3317 = vmul.f32 %v3279, %v3313
  %v3318 = vld [vmem:[%s21] sm:$0xf]
  %v3319 = vld [vmem:[%s21 + $0x4] sm:$0xf]
  %v3320 = vld [vmem:[%s21 + $0x8] sm:$0xf]
  %v3321 = vld [vmem:[%s21 + $0xc] sm:$0xf]
  %v3322 = vld [vmem:[%s21 + $0x10] sm:$0xf]
  %v3323 = vld [vmem:[%s21 + $0x14] sm:$0xf]
  %v3324 = vld [vmem:[%s21 + $0x18] sm:$0xf]
  %v3325 = vld [vmem:[%s21 + $0x1c] sm:$0xf]
  %v3326 = vld [vmem:[%s21 + $0x20] sm:$0xf]
  %v3327 = vld [vmem:[%s21 + $0x24] sm:$0xf]
  %v3328 = vld [vmem:[%s21 + $0x28] sm:$0xf]
  %v3329 = vld [vmem:[%s21 + $0x2c] sm:$0xf]
  %v3330 = vld [vmem:[%s21 + $0x30] sm:$0xf]
  %v3331 = vld [vmem:[%s21 + $0x34] sm:$0xf]
  %v3332 = vld [vmem:[%s21 + $0x38] sm:$0xf]
  %v3333 = vld [vmem:[%s21 + $0x3c] sm:$0xf]
  %v3334 = vpack.c.bf16 %v3315, %v3314
  %v3335 = vpack.c.bf16 %v3317, %v3316
  %v3336 = vld [vmem:[%s22] sm:$0x1]
  %v3338 = vlaneseq
  %v3339 = vshrl.u32 %v3338, 7
  %v3340 = vsub.s32 0, %v3339
  %v3341 = vrot.slane %v3336, %v3340
  %v3359 = vunpack.c.l.b16 %v3318
  %v3360 = vunpack.c.l.b16 %v3319
  %v3361 = vunpack.c.l.b16 %v3320
  %v3362 = vunpack.c.l.b16 %v3321
  %v3363 = vunpack.c.l.b16 %v3322
  %v3364 = vunpack.c.l.b16 %v3323
  %v3365 = vunpack.c.l.b16 %v3324
  %v3366 = vunpack.c.l.b16 %v3325
  %v3367 = vunpack.c.l.b16 %v3326
  %v3368 = vunpack.c.l.b16 %v3327
  %v3369 = vunpack.c.l.b16 %v3328
  %v3370 = vunpack.c.l.b16 %v3329
  %v3371 = vunpack.c.l.b16 %v3330
  %v3372 = vunpack.c.l.b16 %v3331
  %v3373 = vunpack.c.l.b16 %v3332
  %v3374 = vunpack.c.l.b16 %v3333
  %v3375 = vpack.c.b16 %v3360, %v3359
  %v3376 = vpack.c.b16 %v3362, %v3361
  %v3377 = vpack.c.b16 %v3364, %v3363
  %v3378 = vpack.c.b16 %v3366, %v3365
  %v3379 = vpack.c.b16 %v3368, %v3367
  %v3380 = vpack.c.b16 %v3370, %v3369
  %v3381 = vpack.c.b16 %v3372, %v3371
  %v3382 = vpack.c.b16 %v3374, %v3373
  %3391 = vmatprep.subr.bf16.mxu0 0
  %3392 = vmatpush1.bf16.msra.mxu0 %v3375
  %3393 = vmatprep.subr.bf16.mxu0 0
  %3394 = vmatpush1.bf16.msra.mxu0 %v3376
  %3395 = vmatprep.subr.bf16.mxu0 0
  %3396 = vmatpush1.bf16.msra.mxu0 %v3377
  %3397 = vmatprep.subr.bf16.mxu0 0
  %3398 = vmatpush1.bf16.msra.mxu0 %v3378
  %3399 = vmatprep.subr.bf16.mxu0 0
  %3400 = vmatpush1.bf16.msra.mxu0 %v3379
  %3401 = vmatprep.subr.bf16.mxu0 0
  %3402 = vmatpush1.bf16.msra.mxu0 %v3380
  %3403 = vmatprep.subr.bf16.mxu0 0
  %3404 = vmatpush1.bf16.msra.mxu0 %v3381
  %3405 = vmatprep.subr.bf16.mxu0 0
  %3406 = vmatpush1.bf16.msra.mxu0 %v3382
  %3407 = vmatprep.subr.bf16.mxu0 0
  %3408 = vmatpush1.bf16.msra.mxu0 0
  %3409 = vmatprep.subr.bf16.mxu0 0
  %3410 = vmatpush1.bf16.msra.mxu0 0
  %3411 = vmatprep.subr.bf16.mxu0 0
  %3412 = vmatpush1.bf16.msra.mxu0 0
  %3413 = vmatprep.subr.bf16.mxu0 0
  %3414 = vmatpush1.bf16.msra.mxu0 0
  %3415 = vmatprep.subr.bf16.mxu0 0
  %3416 = vmatpush1.bf16.msra.mxu0 0
  %3417 = vmatprep.subr.bf16.mxu0 0
  %3418 = vmatpush1.bf16.msra.mxu0 0
  %3419 = vmatprep.subr.bf16.mxu0 0
  %3420 = vmatpush1.bf16.msra.mxu0 0
  %3421 = vmatprep.subr.bf16.mxu0 0
  %3422 = vmatpush1.bf16.msra.mxu0 0
  %3423 = vmatprep.mubr.bf16.mxu0 0
  %3424 = vmatmul.mubr.bf16.gmra.mrb[0].mxu0 %v3334
  %v3425 = vpop.f32.mrb[0].mxu0
  %v3426 = vadd.f32 %v3341, %v3425
  %v3427 = vpop.f32.mrb[0].mxu0
  %v3428 = vpop.f32.mrb[0].mxu0
  %v3429 = vadd.f32 %v3341, %v3428
  %v3430 = vpop.f32.mrb[0].mxu0
  %3431 = vmatprep.mubr.bf16.mxu0 0
  %3432 = vmatmul.mubr.bf16.gmra.mrb[0].mxu0 %v3335
  %v3433 = vpop.f32.mrb[0].mxu0
  %v3434 = vadd.f32 %v3341, %v3433
  %v3435 = vpop.f32.mrb[0].mxu0
  %v3436 = vpop.f32.mrb[0].mxu0
  %v3437 = vadd.f32 %v3341, %v3436
  %v3438 = vpop.f32.mrb[0].mxu0
  %3439 = vdwg.mxu0
  %v3440 = vpack.c.bf16 %v3429, %v3426
  %v3441 = vpack.c.bf16 %v3437, %v3434
  %v3444 = vunpack.c.l.b16 %v3440
  %v3445 = vunpack.c.h.b16 %v3440
  %v3446 = vunpack.c.l.b16 %v3441
  %v3447 = vunpack.c.h.b16 %v3441
  %v3448 = vpack.c.b16 %v3444, %v3444
  %v3449 = vpack.c.b16 %v3445, %v3445
  %v3450 = vpack.c.b16 %v3446, %v3446
  %v3451 = vpack.c.b16 %v3447, %v3447
  %3456 = vst [vmem:[%s23] sm:$0xf] %v3448
  %3457 = vst [vmem:[%s23 + $0x4] sm:$0xf] %v3449
  %3458 = vst [vmem:[%s23 + $0x8] sm:$0xf] %v3450
  %vm3459 = vcmask 1040384
  %vm3460 = vsmask.f32 256
  %vm3461 = vmand %vm3459, %vm3460
  %v3462 = vld [vmem:[%s23 + $0xc] sm:$0x1]
  %v3463 = vsel %vm3461, %v3451, %v3462
  %3464 = vst [vmem:[%s23 + $0xc] sm:$0x1] %v3463
  // Predicated region
  $region94: #{llava_next_forward.2} parent=0 // pred_check
    _
  $region95: #{llava_next_forward.2} parent=0 // pred_check_branch
    %3466 = sbr.rel (0) target = $region97
  $region96: #{llava_next_forward.2} parent=0 // pred_region
    _
  $region97: #{llava_next_forward.2} parent=0 // pred_fallthru
    _
  // Predicated region
  $region98: #{llava_next_forward.2} parent=0 // pred_check
    _
  $region99: #{llava_next_forward.2} parent=0 // pred_check_branch
    %3468 = sbr.rel (0) target = $region101
  $region100: #{llava_next_forward.2} parent=0 // pred_region
    _
  $region101: #{llava_next_forward.2} parent=0 // pred_fallthru
    _

</llo_original>
